<compile_context>
chip_gen: v7x
topology: tpu7x:2x2x1
jax: 0.10.0
libtpu: 0.0.40
codegen_flags: <defaults>
</compile_context>

<pallas_src>
import jax
import jax.numpy as jnp
from jax.experimental import pallas as pl
from jax.experimental.pallas import tpu as pltpu


def _make_mha_kernel(num_heads, d_k, TKV, n_kv, scale):
    def kernel(q_ref, k_ref, v_ref,
               wq_ref, wk_ref, wv_ref, wo_ref,
               bq_ref, bk_ref, bv_ref, bo_ref,
               o_ref,
               k_scr, v_scr, q_scr, ctx_scr):
        """grid = (batch, query_tile, head); qi/h are sequential ("arbitrary")."""
        qi = pl.program_id(1)
        h = pl.program_id(2)
        TQ = q_scr.shape[0]

        # ---- K/V projections: once per batch element, all heads at once -----
        @pl.when((qi == 0) & (h == 0))
        def _():
            k = k_ref[0]                                                 # (S, D) bf16
            v = v_ref[0]
            Kp = jnp.dot(k, wk_ref[...], preferred_element_type=jnp.float32) + bk_ref[...]
            Vp = jnp.dot(v, wv_ref[...], preferred_element_type=jnp.float32) + bv_ref[...]
            # Cache K pre-transposed (D, S): one XLU transpose per batch
            # element instead of one per (qi, h) score matmul.
            k_scr[...] = Kp.T.astype(jnp.bfloat16)
            v_scr[...] = Vp.astype(jnp.bfloat16)

        # ---- Q projection: once per query tile, all heads at once -----------
        @pl.when(h == 0)
        def _():
            q = q_ref[0]                                                 # (TQ, D) bf16
            Qp = (jnp.dot(q, wq_ref[...], preferred_element_type=jnp.float32)
                  + bq_ref[...]) * scale          # reference quirk: scores * sqrt(d_k)
            q_scr[...] = Qp.astype(jnp.bfloat16)

        off = pl.multiple_of(h * d_k, 128)
        Qh = q_scr[:, pl.ds(off, d_k)]                                   # (TQ, d_k) bf16

        # ---- flash-style online softmax over fixed (TQ, TKV) KV tiles -------
        def kv_step(t, carry):
            m, l, acc = carry
            ks = t * TKV
            if TKV % 128 == 0:
                ks = pl.multiple_of(ks, 128)
            kt = k_scr[pl.ds(off, d_k), pl.ds(ks, TKV)]                  # (d_k, TKV) bf16
            vt = v_scr[pl.ds(ks, TKV), pl.ds(off, d_k)]                  # (TKV, d_k) bf16
            s = jnp.dot(Qh, kt, preferred_element_type=jnp.float32)      # (TQ, TKV) f32
            m_new = jnp.maximum(m, jnp.max(s, axis=-1, keepdims=True))
            a = jnp.exp(m - m_new)
            p = jnp.exp(s - m_new)
            l_new = a * l + jnp.sum(p, axis=-1, keepdims=True)
            acc_new = a * acc + jnp.dot(p.astype(jnp.bfloat16), vt,
                                        preferred_element_type=jnp.float32)
            return m_new, l_new, acc_new

        carry0 = (jnp.full((TQ, 1), -jnp.inf, jnp.float32),
                  jnp.zeros((TQ, 1), jnp.float32),
                  jnp.zeros((TQ, d_k), jnp.float32))
        _, l, acc = jax.lax.fori_loop(0, n_kv, kv_step, carry0, unroll=n_kv <= 4)

        ctx = acc * pl.reciprocal(l, approx=True)                        # (TQ, d_k) f32
        ctx_scr[:, pl.ds(off, d_k)] = ctx.astype(jnp.bfloat16)

        # ---- fused output projection: single full-width matmul on last head -
        @pl.when(h == num_heads - 1)
        def _():
            out = jnp.dot(ctx_scr[...], wo_ref[...],
                          preferred_element_type=jnp.float32) + bo_ref[...]
            o_ref[0] = out.astype(o_ref.dtype)

    return kernel


def multi_headed_attention(query, key, value, params, *, num_heads,
                           q_tile=256, kv_tile=512):
    """query/key/value: (B, S, d_model) float32.  mask is not supported (None)."""
    B, S, D = query.shape
    assert D % num_heads == 0
    d_k = D // num_heads
    assert D % 128 == 0, "d_model must be a multiple of 128"
    assert num_heads == 1 or d_k % 128 == 0, "d_k must be a multiple of 128 (or h == 1)"
    assert S % 8 == 0

    TQ = S if S <= q_tile else q_tile
    assert S % TQ == 0
    n_q = S // TQ

    TKV = S if S <= kv_tile else kv_tile
    assert S % TKV == 0
    assert TKV == S or TKV % 128 == 0
    n_kv = S // TKV

    wq, bq, wk, bk, wv, bv, wo, bo = params
    scale = float(d_k) ** 0.5        # reference quirk: scores * sqrt(d_k)

    # nn.Linear computes x @ W.T -> pre-transpose once on the host; bf16 MXU operands.
    wq_t = wq.T.astype(jnp.bfloat16)
    wk_t = wk.T.astype(jnp.bfloat16)
    wv_t = wv.T.astype(jnp.bfloat16)
    wo_t = wo.T.astype(jnp.bfloat16)
    bq_r = bq.reshape(1, D).astype(jnp.float32)
    bk_r = bk.reshape(1, D).astype(jnp.float32)
    bv_r = bv.reshape(1, D).astype(jnp.float32)
    bo_r = bo.reshape(1, D).astype(jnp.float32)

    # bf16 activations: halves HBM->VMEM DMA and the K/V block VMEM footprint.
    q_bf = query.astype(jnp.bfloat16)
    k_bf = key.astype(jnp.bfloat16)
    v_bf = value.astype(jnp.bfloat16)

    q_spec = pl.BlockSpec((1, TQ, D), lambda b, qi, h: (b, qi, 0))
    kv_spec = pl.BlockSpec((1, S, D), lambda b, qi, h: (b, 0, 0))
    w_spec = pl.BlockSpec((D, D), lambda b, qi, h: (0, 0))      # resident weights
    b_spec = pl.BlockSpec((1, D), lambda b, qi, h: (0, 0))      # resident biases
    out_spec = pl.BlockSpec((1, TQ, D), lambda b, qi, h: (b, qi, 0))

    # Double-buffered input/output blocks + persistent scratch (bytes).
    vmem_est = (2 * TQ * D * 2                  # q blocks (bf16)
                + 2 * 2 * S * D * 2             # k, v blocks (bf16)
                + 2 * 4 * D * D * 2             # 4 weight blocks (bf16)
                + 2 * 4 * 8 * D * 4             # biases (sublane-padded f32)
                + 2 * TQ * D * 4                # out blocks (f32)
                + 2 * S * D * 2                 # k_scr + v_scr
                + 2 * TQ * D * 2)               # q_scr + ctx_scr
    vmem_limit = min(max(int(1.5 * vmem_est), 32 * 1024 * 1024), 64 * 1024 * 1024)

    cost = pl.CostEstimate(
        flops=B * (8 * S * D * D + 4 * S * S * D),
        transcendentals=B * num_heads * S * S,
        bytes_accessed=3 * B * S * D * 2 + 4 * D * D * 2 + 4 * D * 4 + B * S * D * 4,
    )

    grid_spec = pltpu.PrefetchScalarGridSpec(
        num_scalar_prefetch=0,
        grid=(B, n_q, num_heads),
        in_specs=[q_spec, kv_spec, kv_spec,
                  w_spec, w_spec, w_spec, w_spec,      # wq, wk, wv, wo (resident)
                  b_spec, b_spec, b_spec, b_spec],     # bq, bk, bv, bo (resident)
        out_specs=out_spec,
        scratch_shapes=[pltpu.VMEM((D, S), jnp.bfloat16),    # K^T cache (all heads)
                        pltpu.VMEM((S, D), jnp.bfloat16),    # V cache (all heads)
                        pltpu.VMEM((TQ, D), jnp.bfloat16),   # Q projection cache
                        pltpu.VMEM((TQ, D), jnp.bfloat16)],  # per-head ctx slab
    )

    kernel = _make_mha_kernel(num_heads, d_k, TKV, n_kv, scale)

    # qi/h stay "arbitrary": the K/V + Q scratch caches and the per-head ctx
    # slab are sequential dependencies; batch is sharded across TensorCores.
    return pl.pallas_call(
        kernel,
        out_shape=jax.ShapeDtypeStruct((B, S, D), jnp.float32),
        grid_spec=grid_spec,
        compiler_params=pltpu.CompilerParams(
            dimension_semantics=("parallel", "arbitrary", "arbitrary"),
            vmem_limit_bytes=vmem_limit),
        cost_estimate=cost,
    )(q_bf, k_bf, v_bf, wq_t, wk_t, wv_t, wo_t, bq_r, bk_r, bv_r, bo_r)


def _reference_jax(query, key, value, params, *, num_heads):
    """Pure-JAX f32 reference mirroring the PyTorch module (eval mode, mask=None)."""
    B, S, D = query.shape
    d_k = D // num_heads
    wq, bq, wk, bk, wv, bv, wo, bo = params

    def proj(x, w, b):
        return x @ w.T + b

    def split_heads(x):  # (B, S, D) -> (B, h, S, d_k)
        return x.reshape(B, S, num_heads, d_k).transpose(0, 2, 1, 3)

    Q = split_heads(proj(query, wq, bq))
    K = split_heads(proj(key, wk, bk))
    V = split_heads(proj(value, wv, bv))

    scale = d_k ** (-0.5)
    scores = jnp.einsum("bhqd,bhkd->bhqk", Q, K) / scale
    p = jax.nn.softmax(scores, axis=-1)
    x = jnp.einsum("bhqk,bhkd->bhqd", p, V)
    x = x.transpose(0, 2, 1, 3).reshape(B, S, D)
    return x @ wo.T + bo


def init_params(key, d_model):
    """Deterministic init (PyTorch nn.Linear style: U(-1/sqrt(in), 1/sqrt(in)))."""
    bound = 1.0 / (d_model ** 0.5)
    keys = jax.random.split(key, 8)
    mk_w = lambda k: jax.random.uniform(k, (d_model, d_model), jnp.float32, -bound, bound)
    mk_b = lambda k: jax.random.uniform(k, (d_model,), jnp.float32, -bound, bound)
    return (mk_w(keys[0]), mk_b(keys[1]),   # wq, bq
            mk_w(keys[2]), mk_b(keys[3]),   # wk, bk
            mk_w(keys[4]), mk_b(keys[5]),   # wv, bv
            mk_w(keys[6]), mk_b(keys[7]))   # wo, bo


if __name__ == "__main__":
    # Small but lane-aligned demo shapes: d_k = 128, two query tiles (exercises
    # the K/V scratch reuse across qi), two KV tiles (exercises the online
    # softmax loop), two heads (exercises the fused output-projection slab).
    B, S, d_model, h = 2, 512, 256, 2

    root = jax.random.PRNGKey(0)
    kq, kk, kv, kp = jax.random.split(root, 4)
    # Modest activation scale keeps the reference's `* sqrt(d_k)` score
    # amplification (faithful quirk) in a regime where the f32 reference and
    # the bf16-MXU kernel are numerically comparable.
    query = 0.25 * jax.random.normal(kq, (B, S, d_model), jnp.float32)
    key_ = 0.25 * jax.random.normal(kk, (B, S, d_model), jnp.float32)
    value = 0.25 * jax.random.normal(kv, (B, S, d_model), jnp.float32)
    params = init_params(kp, d_model)

    out = multi_headed_attention(query, key_, value, params, num_heads=h,
                                 q_tile=256, kv_tile=256)
    out = jax.block_until_ready(out)

    ref = _reference_jax(query, key_, value, params, num_heads=h)
    assert out.shape == (B, S, d_model)
    # Tolerance sized for bf16 MXU operands + EUP approx reciprocal vs f32 ref.
    assert jnp.allclose(out, ref, atol=5e-2, rtol=5e-2), (
        f"mismatch vs reference: max abs err = {jnp.max(jnp.abs(out - ref))}")

    print("KERNEL_OK")
</pallas_src>

<mosaic_0001>
module attributes {stable_mosaic.version = 11 : i64} {
  func.func @kernel(%arg0: i32, %arg1: i32, %arg2: i32, %arg3: memref<1x256x256xbf16, #tpu.memory_space<vmem>>, %arg4: memref<1x512x256xbf16, #tpu.memory_space<vmem>>, %arg5: memref<1x512x256xbf16, #tpu.memory_space<vmem>>, %arg6: memref<256x256xbf16, #tpu.memory_space<vmem>>, %arg7: memref<256x256xbf16, #tpu.memory_space<vmem>>, %arg8: memref<256x256xbf16, #tpu.memory_space<vmem>>, %arg9: memref<256x256xbf16, #tpu.memory_space<vmem>>, %arg10: memref<1x256xf32, #tpu.memory_space<vmem>>, %arg11: memref<1x256xf32, #tpu.memory_space<vmem>>, %arg12: memref<1x256xf32, #tpu.memory_space<vmem>>, %arg13: memref<1x256xf32, #tpu.memory_space<vmem>>, %arg14: memref<1x256x256xf32, #tpu.memory_space<vmem>>, %arg15: memref<256x512xbf16, #tpu.memory_space<vmem>>, %arg16: memref<512x256xbf16, #tpu.memory_space<vmem>>, %arg17: memref<256x256xbf16, #tpu.memory_space<vmem>>, %arg18: memref<256x256xbf16, #tpu.memory_space<vmem>>) attributes {dimension_semantics = [#tpu.dimension_semantics<parallel>, #tpu.dimension_semantics<arbitrary>, #tpu.dimension_semantics<arbitrary>], iteration_bounds = array<i64: 2, 2, 2>, scalar_prefetch = 0 : i64, scratch_operands = 4 : i64, tpu.core_type = #tpu.core_type<tc>, window_params = [{transform_indices = @transform_0, window_bounds = array<i64: 1, 256, 256>}, {transform_indices = @transform_1, window_bounds = array<i64: 1, 512, 256>}, {transform_indices = @transform_2, window_bounds = array<i64: 1, 512, 256>}, {pipeline_mode = #tpu.pipeline_mode<synchronous>, transform_indices = @transform_3, window_bounds = array<i64: 256, 256>}, {pipeline_mode = #tpu.pipeline_mode<synchronous>, transform_indices = @transform_4, window_bounds = array<i64: 256, 256>}, {pipeline_mode = #tpu.pipeline_mode<synchronous>, transform_indices = @transform_5, window_bounds = array<i64: 256, 256>}, {pipeline_mode = #tpu.pipeline_mode<synchronous>, transform_indices = @transform_6, window_bounds = array<i64: 256, 256>}, {pipeline_mode = #tpu.pipeline_mode<synchronous>, transform_indices = @transform_7, window_bounds = array<i64: 1, 256>}, {pipeline_mode = #tpu.pipeline_mode<synchronous>, transform_indices = @transform_8, window_bounds = array<i64: 1, 256>}, {pipeline_mode = #tpu.pipeline_mode<synchronous>, transform_indices = @transform_9, window_bounds = array<i64: 1, 256>}, {pipeline_mode = #tpu.pipeline_mode<synchronous>, transform_indices = @transform_10, window_bounds = array<i64: 1, 256>}, {transform_indices = @transform_11, window_bounds = array<i64: 1, 256, 256>}]} {
    %c0_i32 = arith.constant 0 : i32
    %0 = arith.cmpi eq, %arg1, %c0_i32 : i32
    %c0_i32_0 = arith.constant 0 : i32
    %1 = arith.cmpi eq, %arg2, %c0_i32_0 : i32
    %2 = arith.andi %0, %1 : i1
    %3 = arith.extui %2 : i1 to i32
    %c0_i32_1 = arith.constant 0 : i32
    %4 = arith.cmpi ne, %3, %c0_i32_1 : i32
    scf.if %4 {
      %c0_19 = arith.constant 0 : index
      %c0_20 = arith.constant 0 : index
      %c0_21 = arith.constant 0 : index
      %76 = vector.load %arg4[%c0_19, %c0_20, %c0_21] : memref<1x512x256xbf16, #tpu.memory_space<vmem>>, vector<1x512x256xbf16>
      %77 = vector.shape_cast %76 : vector<1x512x256xbf16> to vector<512x256xbf16>
      %c0_22 = arith.constant 0 : index
      %c0_23 = arith.constant 0 : index
      %c0_24 = arith.constant 0 : index
      %78 = vector.load %arg5[%c0_22, %c0_23, %c0_24] : memref<1x512x256xbf16, #tpu.memory_space<vmem>>, vector<1x512x256xbf16>
      %79 = vector.shape_cast %78 : vector<1x512x256xbf16> to vector<512x256xbf16>
      %c0_25 = arith.constant 0 : index
      %c0_26 = arith.constant 0 : index
      %80 = vector.load %arg7[%c0_25, %c0_26] : memref<256x256xbf16, #tpu.memory_space<vmem>>, vector<256x256xbf16>
      %cst_27 = arith.constant dense<0.000000e+00> : vector<512x256xf32>
      %81 = tpu.matmul %77, %80, %cst_27 {dimension_numbers = #tpu.dot_dimension_numbers<[1], [0], [0], [1], [0, 0, 1, 1], [], []>} : vector<512x256xbf16>, vector<256x256xbf16>, vector<512x256xf32> -> vector<512x256xf32>
      %c0_28 = arith.constant 0 : index
      %c0_29 = arith.constant 0 : index
      %82 = vector.load %arg11[%c0_28, %c0_29] : memref<1x256xf32, #tpu.memory_space<vmem>>, vector<1x256xf32>
      %83 = vector.broadcast %82 : vector<1x256xf32> to vector<512x256xf32>
      %84 = arith.addf %81, %83 : vector<512x256xf32>
      %c0_30 = arith.constant 0 : index
      %c0_31 = arith.constant 0 : index
      %85 = vector.load %arg8[%c0_30, %c0_31] : memref<256x256xbf16, #tpu.memory_space<vmem>>, vector<256x256xbf16>
      %cst_32 = arith.constant dense<0.000000e+00> : vector<512x256xf32>
      %86 = tpu.matmul %79, %85, %cst_32 {dimension_numbers = #tpu.dot_dimension_numbers<[1], [0], [0], [1], [0, 0, 1, 1], [], []>} : vector<512x256xbf16>, vector<256x256xbf16>, vector<512x256xf32> -> vector<512x256xf32>
      %c0_33 = arith.constant 0 : index
      %c0_34 = arith.constant 0 : index
      %87 = vector.load %arg12[%c0_33, %c0_34] : memref<1x256xf32, #tpu.memory_space<vmem>>, vector<1x256xf32>
      %88 = vector.broadcast %87 : vector<1x256xf32> to vector<512x256xf32>
      %89 = arith.addf %86, %88 : vector<512x256xf32>
      %90 = tpu.transpose %84, [1, 0] : vector<512x256xf32> -> vector<256x512xf32>
      %91 = arith.truncf %90 : vector<256x512xf32> to vector<256x512xbf16>
      %c0_35 = arith.constant 0 : index
      %c0_36 = arith.constant 0 : index
      %92 = vector.load %arg15[%c0_35, %c0_36] : memref<256x512xbf16, #tpu.memory_space<vmem>>, vector<256x512xbf16>
      tpu.vector_store %arg15[%c0_35, %c0_36], %91 {strides = array<i32>} : memref<256x512xbf16, #tpu.memory_space<vmem>>, vector<256x512xbf16>,
      %93 = arith.truncf %89 : vector<512x256xf32> to vector<512x256xbf16>
      %c0_37 = arith.constant 0 : index
      %c0_38 = arith.constant 0 : index
      %94 = vector.load %arg16[%c0_37, %c0_38] : memref<512x256xbf16, #tpu.memory_space<vmem>>, vector<512x256xbf16>
      tpu.vector_store %arg16[%c0_37, %c0_38], %93 {strides = array<i32>} : memref<512x256xbf16, #tpu.memory_space<vmem>>, vector<512x256xbf16>,
    } else {
    }
    %c0_i32_2 = arith.constant 0 : i32
    %5 = arith.cmpi eq, %arg2, %c0_i32_2 : i32
    %6 = arith.extui %5 : i1 to i32
    %c0_i32_3 = arith.constant 0 : i32
    %7 = arith.cmpi ne, %6, %c0_i32_3 : i32
    scf.if %7 {
      %c0_19 = arith.constant 0 : index
      %c0_20 = arith.constant 0 : index
      %c0_21 = arith.constant 0 : index
      %76 = vector.load %arg3[%c0_19, %c0_20, %c0_21] : memref<1x256x256xbf16, #tpu.memory_space<vmem>>, vector<1x256x256xbf16>
      %77 = vector.shape_cast %76 : vector<1x256x256xbf16> to vector<256x256xbf16>
      %c0_22 = arith.constant 0 : index
      %c0_23 = arith.constant 0 : index
      %78 = vector.load %arg6[%c0_22, %c0_23] : memref<256x256xbf16, #tpu.memory_space<vmem>>, vector<256x256xbf16>
      %cst_24 = arith.constant dense<0.000000e+00> : vector<256x256xf32>
      %79 = tpu.matmul %77, %78, %cst_24 {dimension_numbers = #tpu.dot_dimension_numbers<[1], [0], [0], [1], [0, 0, 1, 1], [], []>} : vector<256x256xbf16>, vector<256x256xbf16>, vector<256x256xf32> -> vector<256x256xf32>
      %c0_25 = arith.constant 0 : index
      %c0_26 = arith.constant 0 : index
      %80 = vector.load %arg10[%c0_25, %c0_26] : memref<1x256xf32, #tpu.memory_space<vmem>>, vector<1x256xf32>
      %81 = vector.broadcast %80 : vector<1x256xf32> to vector<256x256xf32>
      %82 = arith.addf %79, %81 : vector<256x256xf32>
      %cst_27 = arith.constant 11.3137083 : f32
      %83 = vector.broadcast %cst_27 : f32 to vector<256x256xf32>
      %84 = arith.mulf %82, %83 : vector<256x256xf32>
      %85 = arith.truncf %84 : vector<256x256xf32> to vector<256x256xbf16>
      %c0_28 = arith.constant 0 : index
      %c0_29 = arith.constant 0 : index
      %86 = vector.load %arg17[%c0_28, %c0_29] : memref<256x256xbf16, #tpu.memory_space<vmem>>, vector<256x256xbf16>
      tpu.vector_store %arg17[%c0_28, %c0_29], %85 {strides = array<i32>} : memref<256x256xbf16, #tpu.memory_space<vmem>>, vector<256x256xbf16>,
    } else {
    }
    %c128_i32 = arith.constant 128 : i32
    %8 = arith.muli %arg2, %c128_i32 : i32
    %9 = tpu.assume_multiple %8, 128 : i32
    %c0 = arith.constant 0 : index
    %10 = arith.index_cast %9 : i32 to index
    %11 = vector.load %arg17[%c0, %10] : memref<256x256xbf16, #tpu.memory_space<vmem>>, vector<256x128xbf16>
    %cst = arith.constant 0xFF800000 : f32
    %12 = vector.broadcast %cst : f32 to vector<256x1xf32>
    %cst_4 = arith.constant 0.000000e+00 : f32
    %13 = vector.broadcast %cst_4 : f32 to vector<256x1xf32>
    %cst_5 = arith.constant 0.000000e+00 : f32
    %14 = vector.broadcast %cst_5 : f32 to vector<256x128xf32>
    %c0_i32_6 = arith.constant 0 : i32
    %c256_i32 = arith.constant 256 : i32
    %15 = arith.muli %c0_i32_6, %c256_i32 : i32
    %16 = tpu.assume_multiple %15, 128 : i32
    %17 = arith.index_cast %9 : i32 to index
    %18 = arith.index_cast %16 : i32 to index
    %19 = vector.load %arg15[%17, %18] : memref<256x512xbf16, #tpu.memory_space<vmem>>, vector<128x256xbf16>
    %20 = arith.index_cast %16 : i32 to index
    %21 = arith.index_cast %9 : i32 to index
    %22 = vector.load %arg16[%20, %21] : memref<512x256xbf16, #tpu.memory_space<vmem>>, vector<256x128xbf16>
    %cst_7 = arith.constant dense<0.000000e+00> : vector<256x256xf32>
    %23 = tpu.matmul %11, %19, %cst_7 {dimension_numbers = #tpu.dot_dimension_numbers<[1], [0], [0], [1], [0, 0, 1, 1], [], []>} : vector<256x128xbf16>, vector<128x256xbf16>, vector<256x256xf32> -> vector<256x256xf32>
    %cst_8 = arith.constant dense<0xFF800000> : vector<256xf32>
    %24 = vector.multi_reduction <maximumf>, %23, %cst_8 [1] : vector<256x256xf32> to vector<256xf32>
    %25 = vector.shape_cast %24 : vector<256xf32> to vector<256x1xf32>
    %26 = arith.maximumf %12, %25 : vector<256x1xf32>
    %27 = arith.subf %12, %26 : vector<256x1xf32>
    %28 = math.exp %27 : vector<256x1xf32>
    %29 = vector.broadcast %26 : vector<256x1xf32> to vector<256x256xf32>
    %30 = arith.subf %23, %29 : vector<256x256xf32>
    %31 = math.exp %30 : vector<256x256xf32>
    %32 = arith.mulf %28, %13 : vector<256x1xf32>
    %cst_9 = arith.constant dense<0.000000e+00> : vector<256xf32>
    %33 = vector.multi_reduction <add>, %31, %cst_9 [1] : vector<256x256xf32> to vector<256xf32>
    %34 = vector.shape_cast %33 : vector<256xf32> to vector<256x1xf32>
    %35 = arith.addf %32, %34 : vector<256x1xf32>
    %36 = vector.broadcast %28 : vector<256x1xf32> to vector<256x128xf32>
    %37 = arith.mulf %36, %14 : vector<256x128xf32>
    %38 = arith.truncf %31 : vector<256x256xf32> to vector<256x256xbf16>
    %cst_10 = arith.constant dense<0.000000e+00> : vector<256x128xf32>
    %39 = tpu.matmul %38, %22, %cst_10 {dimension_numbers = #tpu.dot_dimension_numbers<[1], [0], [0], [1], [0, 0, 1, 1], [], []>} : vector<256x256xbf16>, vector<256x128xbf16>, vector<256x128xf32> -> vector<256x128xf32>
    %40 = arith.addf %37, %39 : vector<256x128xf32>
    %c1_i32 = arith.constant 1 : i32
    %c256_i32_11 = arith.constant 256 : i32
    %41 = arith.muli %c1_i32, %c256_i32_11 : i32
    %42 = tpu.assume_multiple %41, 128 : i32
    %43 = arith.index_cast %9 : i32 to index
    %44 = arith.index_cast %42 : i32 to index
    %45 = vector.load %arg15[%43, %44] : memref<256x512xbf16, #tpu.memory_space<vmem>>, vector<128x256xbf16>
    %46 = arith.index_cast %42 : i32 to index
    %47 = arith.index_cast %9 : i32 to index
    %48 = vector.load %arg16[%46, %47] : memref<512x256xbf16, #tpu.memory_space<vmem>>, vector<256x128xbf16>
    %cst_12 = arith.constant dense<0.000000e+00> : vector<256x256xf32>
    %49 = tpu.matmul %11, %45, %cst_12 {dimension_numbers = #tpu.dot_dimension_numbers<[1], [0], [0], [1], [0, 0, 1, 1], [], []>} : vector<256x128xbf16>, vector<128x256xbf16>, vector<256x256xf32> -> vector<256x256xf32>
    %cst_13 = arith.constant dense<0xFF800000> : vector<256xf32>
    %50 = vector.multi_reduction <maximumf>, %49, %cst_13 [1] : vector<256x256xf32> to vector<256xf32>
    %51 = vector.shape_cast %50 : vector<256xf32> to vector<256x1xf32>
    %52 = arith.maximumf %26, %51 : vector<256x1xf32>
    %53 = arith.subf %26, %52 : vector<256x1xf32>
    %54 = math.exp %53 : vector<256x1xf32>
    %55 = vector.broadcast %52 : vector<256x1xf32> to vector<256x256xf32>
    %56 = arith.subf %49, %55 : vector<256x256xf32>
    %57 = math.exp %56 : vector<256x256xf32>
    %58 = arith.mulf %54, %35 : vector<256x1xf32>
    %cst_14 = arith.constant dense<0.000000e+00> : vector<256xf32>
    %59 = vector.multi_reduction <add>, %57, %cst_14 [1] : vector<256x256xf32> to vector<256xf32>
    %60 = vector.shape_cast %59 : vector<256xf32> to vector<256x1xf32>
    %61 = arith.addf %58, %60 : vector<256x1xf32>
    %62 = vector.broadcast %54 : vector<256x1xf32> to vector<256x128xf32>
    %63 = arith.mulf %62, %40 : vector<256x128xf32>
    %64 = arith.truncf %57 : vector<256x256xf32> to vector<256x256xbf16>
    %cst_15 = arith.constant dense<0.000000e+00> : vector<256x128xf32>
    %65 = tpu.matmul %64, %48, %cst_15 {dimension_numbers = #tpu.dot_dimension_numbers<[1], [0], [0], [1], [0, 0, 1, 1], [], []>} : vector<256x256xbf16>, vector<256x128xbf16>, vector<256x128xf32> -> vector<256x128xf32>
    %66 = arith.addf %63, %65 : vector<256x128xf32>
    %c2_i32 = arith.constant 2 : i32
    %67 = tpu.reciprocal %61 {approx = true} : vector<256x1xf32> -> vector<256x1xf32>
    %68 = vector.broadcast %67 : vector<256x1xf32> to vector<256x128xf32>
    %69 = arith.mulf %66, %68 : vector<256x128xf32>
    %70 = arith.truncf %69 : vector<256x128xf32> to vector<256x128xbf16>
    %c0_16 = arith.constant 0 : index
    %71 = arith.index_cast %9 : i32 to index
    %72 = vector.load %arg18[%c0_16, %71] : memref<256x256xbf16, #tpu.memory_space<vmem>>, vector<256x128xbf16>
    tpu.vector_store %arg18[%c0_16, %71], %70 {strides = array<i32>} : memref<256x256xbf16, #tpu.memory_space<vmem>>, vector<256x128xbf16>,
    %c1_i32_17 = arith.constant 1 : i32
    %73 = arith.cmpi eq, %arg2, %c1_i32_17 : i32
    %74 = arith.extui %73 : i1 to i32
    %c0_i32_18 = arith.constant 0 : i32
    %75 = arith.cmpi ne, %74, %c0_i32_18 : i32
    scf.if %75 {
      %c0_19 = arith.constant 0 : index
      %c0_20 = arith.constant 0 : index
      %76 = vector.load %arg18[%c0_19, %c0_20] : memref<256x256xbf16, #tpu.memory_space<vmem>>, vector<256x256xbf16>
      %c0_21 = arith.constant 0 : index
      %c0_22 = arith.constant 0 : index
      %77 = vector.load %arg9[%c0_21, %c0_22] : memref<256x256xbf16, #tpu.memory_space<vmem>>, vector<256x256xbf16>
      %cst_23 = arith.constant dense<0.000000e+00> : vector<256x256xf32>
      %78 = tpu.matmul %76, %77, %cst_23 {dimension_numbers = #tpu.dot_dimension_numbers<[1], [0], [0], [1], [0, 0, 1, 1], [], []>} : vector<256x256xbf16>, vector<256x256xbf16>, vector<256x256xf32> -> vector<256x256xf32>
      %c0_24 = arith.constant 0 : index
      %c0_25 = arith.constant 0 : index
      %79 = vector.load %arg13[%c0_24, %c0_25] : memref<1x256xf32, #tpu.memory_space<vmem>>, vector<1x256xf32>
      %80 = vector.broadcast %79 : vector<1x256xf32> to vector<256x256xf32>
      %81 = arith.addf %78, %80 : vector<256x256xf32>
      %c0_26 = arith.constant 0 : index
      %c0_27 = arith.constant 0 : index
      %c0_28 = arith.constant 0 : index
      %82 = vector.load %arg14[%c0_26, %c0_27, %c0_28] : memref<1x256x256xf32, #tpu.memory_space<vmem>>, vector<1x256x256xf32>
      %83 = vector.shape_cast %82 : vector<1x256x256xf32> to vector<256x256xf32>
      %84 = vector.shape_cast %81 : vector<256x256xf32> to vector<1x256x256xf32>
      tpu.vector_store %arg14[%c0_26, %c0_27, %c0_28], %84 {strides = array<i32>} : memref<1x256x256xf32, #tpu.memory_space<vmem>>, vector<1x256x256xf32>,
    } else {
    }
    return
  }
  func.func @transform_0(%arg0: i32, %arg1: i32, %arg2: i32) -> (i32, i32, i32) {
    %c0_i32 = arith.constant 0 : i32
    %c0_i32_0 = arith.constant 0 : i32
    return %arg0, %arg1, %c0_i32 : i32, i32, i32
  }
  func.func @transform_1(%arg0: i32, %arg1: i32, %arg2: i32) -> (i32, i32, i32) {
    %c0_i32 = arith.constant 0 : i32
    %c0_i32_0 = arith.constant 0 : i32
    %c0_i32_1 = arith.constant 0 : i32
    return %arg0, %c0_i32, %c0_i32_0 : i32, i32, i32
  }
  func.func @transform_2(%arg0: i32, %arg1: i32, %arg2: i32) -> (i32, i32, i32) {
    %c0_i32 = arith.constant 0 : i32
    %c0_i32_0 = arith.constant 0 : i32
    %c0_i32_1 = arith.constant 0 : i32
    return %arg0, %c0_i32, %c0_i32_0 : i32, i32, i32
  }
  func.func @transform_3(%arg0: i32, %arg1: i32, %arg2: i32) -> (i32, i32) {
    %c0_i32 = arith.constant 0 : i32
    %c0_i32_0 = arith.constant 0 : i32
    %c0_i32_1 = arith.constant 0 : i32
    return %c0_i32, %c0_i32_0 : i32, i32
  }
  func.func @transform_4(%arg0: i32, %arg1: i32, %arg2: i32) -> (i32, i32) {
    %c0_i32 = arith.constant 0 : i32
    %c0_i32_0 = arith.constant 0 : i32
    %c0_i32_1 = arith.constant 0 : i32
    return %c0_i32, %c0_i32_0 : i32, i32
  }
  func.func @transform_5(%arg0: i32, %arg1: i32, %arg2: i32) -> (i32, i32) {
    %c0_i32 = arith.constant 0 : i32
    %c0_i32_0 = arith.constant 0 : i32
    %c0_i32_1 = arith.constant 0 : i32
    return %c0_i32, %c0_i32_0 : i32, i32
  }
  func.func @transform_6(%arg0: i32, %arg1: i32, %arg2: i32) -> (i32, i32) {
    %c0_i32 = arith.constant 0 : i32
    %c0_i32_0 = arith.constant 0 : i32
    %c0_i32_1 = arith.constant 0 : i32
    return %c0_i32, %c0_i32_0 : i32, i32
  }
  func.func @transform_7(%arg0: i32, %arg1: i32, %arg2: i32) -> (i32, i32) {
    %c0_i32 = arith.constant 0 : i32
    %c0_i32_0 = arith.constant 0 : i32
    %c0_i32_1 = arith.constant 0 : i32
    return %c0_i32, %c0_i32_0 : i32, i32
  }
  func.func @transform_8(%arg0: i32, %arg1: i32, %arg2: i32) -> (i32, i32) {
    %c0_i32 = arith.constant 0 : i32
    %c0_i32_0 = arith.constant 0 : i32
    %c0_i32_1 = arith.constant 0 : i32
    return %c0_i32, %c0_i32_0 : i32, i32
  }
  func.func @transform_9(%arg0: i32, %arg1: i32, %arg2: i32) -> (i32, i32) {
    %c0_i32 = arith.constant 0 : i32
    %c0_i32_0 = arith.constant 0 : i32
    %c0_i32_1 = arith.constant 0 : i32
    return %c0_i32, %c0_i32_0 : i32, i32
  }
  func.func @transform_10(%arg0: i32, %arg1: i32, %arg2: i32) -> (i32, i32) {
    %c0_i32 = arith.constant 0 : i32
    %c0_i32_0 = arith.constant 0 : i32
    %c0_i32_1 = arith.constant 0 : i32
    return %c0_i32, %c0_i32_0 : i32, i32
  }
  func.func @transform_11(%arg0: i32, %arg1: i32, %arg2: i32) -> (i32, i32, i32) {
    %c0_i32 = arith.constant 0 : i32
    %c0_i32_0 = arith.constant 0 : i32
    return %arg0, %arg1, %c0_i32 : i32, i32, i32
  }
}

</mosaic_0001>

<llo_original>
// kernel: tpu_custom_call.1
$region0: #{tpu_custom_call.1}
  #allocation0 [shape = 'u32[]', space=smem, size = 0x4, offset = 0x4, fixed_abs, tag = 'smem constant byte address 0x4 - core index']
  #allocation1 [shape = 'u32[144,128]{1,0:T(1,128)}', space=vmem, size = 0x12000, scoped, tag = 'internal scratch']
  #allocation2 [shape = 'bf16[256,512]{1,0:T(16,128)(2,1)}', space=vmem, size = 0x40000, scoped, tag = 'scratch operand']
  #allocation3 [shape = 'bf16[512,256]{1,0:T(16,128)(2,1)}', space=vmem, size = 0x40000, scoped, tag = 'scratch operand']
  #allocation4 [shape = 'bf16[256,256]{1,0:T(16,128)(2,1)}', space=vmem, size = 0x20000, scoped, tag = 'scratch operand']
  #allocation5 [shape = 'bf16[256,256]{1,0:T(16,128)(2,1)}', space=vmem, size = 0x20000, scoped, tag = 'scratch operand']
  %s0 = inlined_call_operand.hbm [shape: bf16[2,512,256], index: 0, kind: input, shape index: {}]
  %s1 = inlined_call_operand.hbm [shape: bf16[2,512,256], index: 1, kind: input, shape index: {}]
  %s2 = inlined_call_operand.hbm [shape: bf16[2,512,256], index: 2, kind: input, shape index: {}]
  %s3 = inlined_call_operand.hbm [shape: bf16[256,256], index: 3, kind: input, shape index: {}]
  %s4 = inlined_call_operand.hbm [shape: bf16[256,256], index: 4, kind: input, shape index: {}]
  %s5 = inlined_call_operand.hbm [shape: bf16[256,256], index: 5, kind: input, shape index: {}]
  %s6 = inlined_call_operand.hbm [shape: bf16[256,256], index: 6, kind: input, shape index: {}]
  %s7 = inlined_call_operand.vmem [shape: f32[1,256], index: 7, kind: input, shape index: {}]
  %s8 = inlined_call_operand.vmem [shape: f32[1,256], index: 8, kind: input, shape index: {}]
  %s9 = inlined_call_operand.vmem [shape: f32[1,256], index: 9, kind: input, shape index: {}]
  %s10 = inlined_call_operand.vmem [shape: f32[1,256], index: 10, kind: input, shape index: {}]
  %s11 = inlined_call_operand.hbm [shape: f32[2,512,256], index: 11, kind: output, shape index: {}]
  %s12 = sld [smem:[#allocation0]]
  $region117: #{tpu_custom_call.1} parent=0
    _
  %s14 = ssub.s32 1, %s12
  %s15 = scalar_select 0, %s14, %s12
  $region1: #{tpu_custom_call.1} parent=0
    #allocation6 [shape = 'u8[262144]{0}', space=vmem, size = 0x40000, scoped, tag = 'input window, operand 0']
    #allocation7 [shape = 's32[2]{0}', space=sflag, size = 0x8, scoped, tag = 'scoped memory for tpu_custom_call.1']
    #allocation8 [shape = 's32[2]{0}', space=sflag, size = 0x8, scoped, tag = 'scoped memory for tpu_custom_call.1']
    #allocation9 [shape = 'u8[524288]{0}', space=vmem, size = 0x80000, scoped, tag = 'input window, operand 1']
    #allocation10 [shape = 's32[2]{0}', space=sflag, size = 0x8, scoped, tag = 'scoped memory for tpu_custom_call.1']
    #allocation11 [shape = 'u8[524288]{0}', space=vmem, size = 0x80000, scoped, tag = 'input window, operand 2']
    #allocation12 [shape = 'u8[131072]{0}', space=vmem, size = 0x20000, scoped, tag = 'input window, operand 3, single buffered']
    #allocation13 [shape = 's32[1]{0}', space=sflag, size = 0x4, scoped, tag = 'scoped memory for tpu_custom_call.1']
    #allocation14 [shape = 'u8[131072]{0}', space=vmem, size = 0x20000, scoped, tag = 'input window, operand 4, single buffered']
    #allocation15 [shape = 'u8[131072]{0}', space=vmem, size = 0x20000, scoped, tag = 'input window, operand 5, single buffered']
    #allocation16 [shape = 's32[1]{0}', space=sflag, size = 0x4, scoped, tag = 'scoped memory for tpu_custom_call.1']
    #allocation17 [shape = 'u8[131072]{0}', space=vmem, size = 0x20000, scoped, tag = 'input window, operand 6, single buffered']
    #allocation18 [shape = 'u8[524288]{0}', space=vmem, size = 0x80000, scoped, tag = 'output window, operand 0']
    %16 = vsyncpa [#allocation7], 0
    %s17 = scalar_lea.sflag [#allocation7], 1
    %18 = vsyncpa %s17, 0
    %19 = vsyncpa [#allocation10], 0
    %s20 = scalar_lea.sflag [#allocation10], 1
    %21 = vsyncpa %s20, 0
    %22 = vsyncpa [#allocation13], 0
    %23 = vsyncpa [#allocation16], 0
    %24 = vsyncpa [#allocation8], 0
    %s25 = scalar_lea.sflag [#allocation8], 1
    %26 = vsyncpa %s25, 0
    loop: start=0, step=1, limit=10
    $region2: #{tpu_custom_call.1} parent=1 // loop_pre_header
      _
    $region3: #{tpu_custom_call.1} parent=1 // loop_header
      %s28 = sphi 0, %s32
      %p29 = scmp.ge.s32.totalorder %s28, 10
      %s35 = sphi 0, %s54
      %s36 = sphi 0, %s50
      %s37 = sphi 0, %s46
      %s38 = sphi 0, %s35
      %s39 = sphi 0, %s36
      %s40 = sphi 0, %s37
      %s41 = sphi 0, %s38
      %s42 = sphi 0, %s39
      %s43 = sphi 0, %s40
      %s59 = sphi 0, %s61
      %s62 = sphi 0, %s59
      %s63 = sphi 0, %s62
      %s79 = sphi 0, %s63
      %s85 = sphi 0, %s87
      %s88 = sphi 0, %s85
      %s89 = sphi 0, %s88
      %s105 = sphi 0, %s89
      %s111 = sphi 0, %s113
      %s114 = sphi 0, %s111
      %s115 = sphi 0, %s114
      %s131 = sphi 0, %s115
      %s135 = sphi 0, %s135
      %s137 = sphi 0, %s135
      %s138 = sphi 0, %s137
      %s152 = sphi 0, %s138
      %s156 = sphi 0, %s156
      %s158 = sphi 0, %s156
      %s159 = sphi 0, %s158
      %s173 = sphi 0, %s159
      %s177 = sphi 0, %s177
      %s179 = sphi 0, %s177
      %s180 = sphi 0, %s179
      %s194 = sphi 0, %s180
      %s198 = sphi 0, %s198
      %s200 = sphi 0, %s198
      %s201 = sphi 0, %s200
      %s215 = sphi 0, %s201
      %s219 = sphi 0, %s219
      %s221 = sphi 0, %s219
      %s222 = sphi 0, %s221
      %s236 = sphi 0, %s222
      %s240 = sphi 0, %s240
      %s242 = sphi 0, %s240
      %s243 = sphi 0, %s242
      %s257 = sphi 0, %s243
      %s261 = sphi 0, %s261
      %s263 = sphi 0, %s261
      %s264 = sphi 0, %s263
      %s278 = sphi 0, %s264
      %s282 = sphi 0, %s282
      %s284 = sphi 0, %s282
      %s285 = sphi 0, %s284
      %s299 = sphi 0, %s285
      %s307 = sphi 0, %s309
      %s310 = sphi 0, %s307
      %s311 = sphi 0, %s310
      %s327 = sphi 0, %s311
    $region4: #{tpu_custom_call.1} parent=1 // loop_header_branch
      %31 = sbr.rel (%p29) target = $region8
    $region5: #{tpu_custom_call.1} parent=1 // loop_body
      %s33 = ssub.s32 %s28, 1
      %s34 = ssub.s32 %s28, 2
      %s44 = sadd.s32 1, %s37
      %p45 = scmp.ge.s32.totalorder %s44, 2
      %s46 = scalar_select %p45, 0, %s44
      %s47 = sadd.s32 1, %s36
      %s48 = scalar_select %p45, %s47, %s36
      %p49 = scmp.ge.s32.totalorder %s48, 2
      %s50 = scalar_select %p49, 0, %s48
      %s51 = sadd.s32 1, %s35
      %s52 = scalar_select %p49, %s51, %s35
      %p53 = scmp.ge.s32.totalorder %s52, 2
      %s54 = scalar_select %p53, 0, %s52
      %s55 = ssub.s32 %s35, %s54
      %s56 = ssub.s32 %s36, %s50
      %s57 = sor.u32 %s55, %s56
      %p58 = scmp.eq.s32.totalorder %s57, 0
      %s60 = sadd.s32 %s59, 1
      %s61 = scalar_select %p58, %s59, %s60
      %p64 = pneg %p58
      %p65 = scmp.eq.s32.totalorder %s28, 7
      %p66 = por %p64, %p65
      %p67 = scmp.ne.s32.totalorder %s59, %s62
      %p68 = scmp.eq.s32.totalorder %s28, 0
      %p69 = por %p67, %p68
      %p70 = scmp.ne.s32.totalorder %s59, %s62
      %p71 = scmp.eq.s32.totalorder %s33, 7
      %p72 = por %p70, %p71
      %p73 = scmp.ne.s32.totalorder %s62, %s63
      %p74 = scmp.eq.s32.totalorder %s33, 0
      %p75 = por %p73, %p74
      %p76 = scmp.ne.s32.totalorder %s62, %s63
      %p77 = scmp.eq.s32.totalorder %s34, 7
      %p78 = por %p76, %p77
      %p80 = scmp.ne.s32.totalorder %s63, %s79
      %p81 = scmp.eq.s32.totalorder %s34, 0
      %p82 = por %p80, %p81
      %s83 = ssub.s32 %s35, %s54
      %p84 = scmp.eq.s32.totalorder %s83, 0
      %s86 = sadd.s32 %s85, 1
      %s87 = scalar_select %p84, %s85, %s86
      %p90 = pneg %p84
      %p91 = scmp.eq.s32.totalorder %s28, 7
      %p92 = por %p90, %p91
      %p93 = scmp.ne.s32.totalorder %s85, %s88
      %p94 = scmp.eq.s32.totalorder %s28, 0
      %p95 = por %p93, %p94
      %p96 = scmp.ne.s32.totalorder %s85, %s88
      %p97 = scmp.eq.s32.totalorder %s33, 7
      %p98 = por %p96, %p97
      %p99 = scmp.ne.s32.totalorder %s88, %s89
      %p100 = scmp.eq.s32.totalorder %s33, 0
      %p101 = por %p99, %p100
      %p102 = scmp.ne.s32.totalorder %s88, %s89
      %p103 = scmp.eq.s32.totalorder %s34, 7
      %p104 = por %p102, %p103
      %p106 = scmp.ne.s32.totalorder %s89, %s105
      %p107 = scmp.eq.s32.totalorder %s34, 0
      %p108 = por %p106, %p107
      %s109 = ssub.s32 %s35, %s54
      %p110 = scmp.eq.s32.totalorder %s109, 0
      %s112 = sadd.s32 %s111, 1
      %s113 = scalar_select %p110, %s111, %s112
      %p116 = pneg %p110
      %p117 = scmp.eq.s32.totalorder %s28, 7
      %p118 = por %p116, %p117
      %p119 = scmp.ne.s32.totalorder %s111, %s114
      %p120 = scmp.eq.s32.totalorder %s28, 0
      %p121 = por %p119, %p120
      %p122 = scmp.ne.s32.totalorder %s111, %s114
      %p123 = scmp.eq.s32.totalorder %s33, 7
      %p124 = por %p122, %p123
      %p125 = scmp.ne.s32.totalorder %s114, %s115
      %p126 = scmp.eq.s32.totalorder %s33, 0
      %p127 = por %p125, %p126
      %p128 = scmp.ne.s32.totalorder %s114, %s115
      %p129 = scmp.eq.s32.totalorder %s34, 7
      %p130 = por %p128, %p129
      %p132 = scmp.ne.s32.totalorder %s115, %s131
      %p133 = scmp.eq.s32.totalorder %s34, 0
      %p134 = por %p132, %p133
      %s136 = sadd.s32 %s135, 1
      %p139 = scmp.eq.s32.totalorder %s28, 7
      %p140 = scmp.ne.s32.totalorder %s135, %s137
      %p141 = scmp.eq.s32.totalorder %s28, 0
      %p142 = por %p140, %p141
      %p143 = scmp.ne.s32.totalorder %s135, %s137
      %p144 = scmp.eq.s32.totalorder %s33, 7
      %p145 = por %p143, %p144
      %p146 = scmp.ne.s32.totalorder %s137, %s138
      %p147 = scmp.eq.s32.totalorder %s33, 0
      %p148 = por %p146, %p147
      %p149 = scmp.ne.s32.totalorder %s137, %s138
      %p150 = scmp.eq.s32.totalorder %s34, 7
      %p151 = por %p149, %p150
      %p153 = scmp.ne.s32.totalorder %s138, %s152
      %p154 = scmp.eq.s32.totalorder %s34, 0
      %p155 = por %p153, %p154
      %s157 = sadd.s32 %s156, 1
      %p160 = scmp.eq.s32.totalorder %s28, 7
      %p161 = scmp.ne.s32.totalorder %s156, %s158
      %p162 = scmp.eq.s32.totalorder %s28, 0
      %p163 = por %p161, %p162
      %p164 = scmp.ne.s32.totalorder %s156, %s158
      %p165 = scmp.eq.s32.totalorder %s33, 7
      %p166 = por %p164, %p165
      %p167 = scmp.ne.s32.totalorder %s158, %s159
      %p168 = scmp.eq.s32.totalorder %s33, 0
      %p169 = por %p167, %p168
      %p170 = scmp.ne.s32.totalorder %s158, %s159
      %p171 = scmp.eq.s32.totalorder %s34, 7
      %p172 = por %p170, %p171
      %p174 = scmp.ne.s32.totalorder %s159, %s173
      %p175 = scmp.eq.s32.totalorder %s34, 0
      %p176 = por %p174, %p175
      %s178 = sadd.s32 %s177, 1
      %p181 = scmp.eq.s32.totalorder %s28, 7
      %p182 = scmp.ne.s32.totalorder %s177, %s179
      %p183 = scmp.eq.s32.totalorder %s28, 0
      %p184 = por %p182, %p183
      %p185 = scmp.ne.s32.totalorder %s177, %s179
      %p186 = scmp.eq.s32.totalorder %s33, 7
      %p187 = por %p185, %p186
      %p188 = scmp.ne.s32.totalorder %s179, %s180
      %p189 = scmp.eq.s32.totalorder %s33, 0
      %p190 = por %p188, %p189
      %p191 = scmp.ne.s32.totalorder %s179, %s180
      %p192 = scmp.eq.s32.totalorder %s34, 7
      %p193 = por %p191, %p192
      %p195 = scmp.ne.s32.totalorder %s180, %s194
      %p196 = scmp.eq.s32.totalorder %s34, 0
      %p197 = por %p195, %p196
      %s199 = sadd.s32 %s198, 1
      %p202 = scmp.eq.s32.totalorder %s28, 7
      %p203 = scmp.ne.s32.totalorder %s198, %s200
      %p204 = scmp.eq.s32.totalorder %s28, 0
      %p205 = por %p203, %p204
      %p206 = scmp.ne.s32.totalorder %s198, %s200
      %p207 = scmp.eq.s32.totalorder %s33, 7
      %p208 = por %p206, %p207
      %p209 = scmp.ne.s32.totalorder %s200, %s201
      %p210 = scmp.eq.s32.totalorder %s33, 0
      %p211 = por %p209, %p210
      %p212 = scmp.ne.s32.totalorder %s200, %s201
      %p213 = scmp.eq.s32.totalorder %s34, 7
      %p214 = por %p212, %p213
      %p216 = scmp.ne.s32.totalorder %s201, %s215
      %p217 = scmp.eq.s32.totalorder %s34, 0
      %p218 = por %p216, %p217
      %s220 = sadd.s32 %s219, 1
      %p223 = scmp.eq.s32.totalorder %s28, 7
      %p224 = scmp.ne.s32.totalorder %s219, %s221
      %p225 = scmp.eq.s32.totalorder %s28, 0
      %p226 = por %p224, %p225
      %p227 = scmp.ne.s32.totalorder %s219, %s221
      %p228 = scmp.eq.s32.totalorder %s33, 7
      %p229 = por %p227, %p228
      %p230 = scmp.ne.s32.totalorder %s221, %s222
      %p231 = scmp.eq.s32.totalorder %s33, 0
      %p232 = por %p230, %p231
      %p233 = scmp.ne.s32.totalorder %s221, %s222
      %p234 = scmp.eq.s32.totalorder %s34, 7
      %p235 = por %p233, %p234
      %p237 = scmp.ne.s32.totalorder %s222, %s236
      %p238 = scmp.eq.s32.totalorder %s34, 0
      %p239 = por %p237, %p238
      %s241 = sadd.s32 %s240, 1
      %p244 = scmp.eq.s32.totalorder %s28, 7
      %p245 = scmp.ne.s32.totalorder %s240, %s242
      %p246 = scmp.eq.s32.totalorder %s28, 0
      %p247 = por %p245, %p246
      %p248 = scmp.ne.s32.totalorder %s240, %s242
      %p249 = scmp.eq.s32.totalorder %s33, 7
      %p250 = por %p248, %p249
      %p251 = scmp.ne.s32.totalorder %s242, %s243
      %p252 = scmp.eq.s32.totalorder %s33, 0
      %p253 = por %p251, %p252
      %p254 = scmp.ne.s32.totalorder %s242, %s243
      %p255 = scmp.eq.s32.totalorder %s34, 7
      %p256 = por %p254, %p255
      %p258 = scmp.ne.s32.totalorder %s243, %s257
      %p259 = scmp.eq.s32.totalorder %s34, 0
      %p260 = por %p258, %p259
      %s262 = sadd.s32 %s261, 1
      %p265 = scmp.eq.s32.totalorder %s28, 7
      %p266 = scmp.ne.s32.totalorder %s261, %s263
      %p267 = scmp.eq.s32.totalorder %s28, 0
      %p268 = por %p266, %p267
      %p269 = scmp.ne.s32.totalorder %s261, %s263
      %p270 = scmp.eq.s32.totalorder %s33, 7
      %p271 = por %p269, %p270
      %p272 = scmp.ne.s32.totalorder %s263, %s264
      %p273 = scmp.eq.s32.totalorder %s33, 0
      %p274 = por %p272, %p273
      %p275 = scmp.ne.s32.totalorder %s263, %s264
      %p276 = scmp.eq.s32.totalorder %s34, 7
      %p277 = por %p275, %p276
      %p279 = scmp.ne.s32.totalorder %s264, %s278
      %p280 = scmp.eq.s32.totalorder %s34, 0
      %p281 = por %p279, %p280
      %s283 = sadd.s32 %s282, 1
      %p286 = scmp.eq.s32.totalorder %s28, 7
      %p287 = scmp.ne.s32.totalorder %s282, %s284
      %p288 = scmp.eq.s32.totalorder %s28, 0
      %p289 = por %p287, %p288
      %p290 = scmp.ne.s32.totalorder %s282, %s284
      %p291 = scmp.eq.s32.totalorder %s33, 7
      %p292 = por %p290, %p291
      %p293 = scmp.ne.s32.totalorder %s284, %s285
      %p294 = scmp.eq.s32.totalorder %s33, 0
      %p295 = por %p293, %p294
      %p296 = scmp.ne.s32.totalorder %s284, %s285
      %p297 = scmp.eq.s32.totalorder %s34, 7
      %p298 = por %p296, %p297
      %p300 = scmp.ne.s32.totalorder %s285, %s299
      %p301 = scmp.eq.s32.totalorder %s34, 0
      %p302 = por %p300, %p301
      %s303 = ssub.s32 %s35, %s54
      %s304 = ssub.s32 %s36, %s50
      %s305 = sor.u32 %s303, %s304
      %p306 = scmp.eq.s32.totalorder %s305, 0
      %s308 = sadd.s32 %s307, 1
      %s309 = scalar_select %p306, %s307, %s308
      %p312 = pneg %p306
      %p313 = scmp.eq.s32.totalorder %s28, 7
      %p314 = por %p312, %p313
      %p315 = scmp.ne.s32.totalorder %s307, %s310
      %p316 = scmp.eq.s32.totalorder %s28, 0
      %p317 = por %p315, %p316
      %p318 = scmp.ne.s32.totalorder %s307, %s310
      %p319 = scmp.eq.s32.totalorder %s33, 7
      %p320 = por %p318, %p319
      %p321 = scmp.ne.s32.totalorder %s310, %s311
      %p322 = scmp.eq.s32.totalorder %s33, 0
      %p323 = por %p321, %p322
      %p324 = scmp.ne.s32.totalorder %s310, %s311
      %p325 = scmp.eq.s32.totalorder %s34, 7
      %p326 = por %p324, %p325
      %p328 = scmp.ne.s32.totalorder %s311, %s327
      %p329 = scmp.eq.s32.totalorder %s34, 0
      %p330 = por %p328, %p329
      %p331 = scmp.le.s32.totalorder 1, %s28
      %p332 = scmp.lt.s32.totalorder %s28, 9
      %p333 = pnand %p331, %p332
      %p334 = pneg %p333
      // Predicated region
      $region9: #{tpu_custom_call.1} parent=5 // pred_check
        _
      $region10: #{tpu_custom_call.1} parent=5 // pred_check_branch
        %336 = sbr.rel (%p333) target = $region12
      $region11: #{tpu_custom_call.1} parent=5 // pred_region
        %s337 = ssub.s32 %s28, 1
        // Predicated region
        $region13: #{tpu_custom_call.1} parent=11 // pred_check
          %p338 = pneg %p148
        $region14: #{tpu_custom_call.1} parent=11 // pred_check_branch
          %340 = sbr.rel (%p338) target = $region16
        $region15: #{tpu_custom_call.1} parent=11 // pred_region
          %s342 = ssub.s32 4096, 4096
          %343 = vsyncadd [#allocation13], %s342
          %s344 = sshll.u32 [#allocation12], 4
          %s345 = int_to_ptr.vmem [resolvable:$true] %s344
          %350 = dma.hbm_to_vmem [thread:$0]  %s3, 4096, %s345, [#allocation13], 128, 128, 8
        $region16: #{tpu_custom_call.1} parent=11 // pred_fallthru
          _
        // Predicated region
        $region17: #{tpu_custom_call.1} parent=11 // pred_check
          %p351 = pneg %p169
        $region18: #{tpu_custom_call.1} parent=11 // pred_check_branch
          %353 = sbr.rel (%p351) target = $region20
        $region19: #{tpu_custom_call.1} parent=11 // pred_region
          %s355 = ssub.s32 4096, 4096
          %356 = vsyncadd [#allocation13], %s355
          %s357 = sshll.u32 [#allocation14], 4
          %s358 = int_to_ptr.vmem [resolvable:$true] %s357
          %363 = dma.hbm_to_vmem [thread:$0]  %s4, 4096, %s358, [#allocation13], 128, 128, 8
        $region20: #{tpu_custom_call.1} parent=11 // pred_fallthru
          _
        // Predicated region
        $region21: #{tpu_custom_call.1} parent=11 // pred_check
          %p364 = pneg %p190
        $region22: #{tpu_custom_call.1} parent=11 // pred_check_branch
          %366 = sbr.rel (%p364) target = $region24
        $region23: #{tpu_custom_call.1} parent=11 // pred_region
          %s368 = ssub.s32 4096, 4096
          %369 = vsyncadd [#allocation16], %s368
          %s370 = sshll.u32 [#allocation15], 4
          %s371 = int_to_ptr.vmem [resolvable:$true] %s370
          %376 = dma.hbm_to_vmem [thread:$0]  %s5, 4096, %s371, [#allocation16], 128, 128, 8
        $region24: #{tpu_custom_call.1} parent=11 // pred_fallthru
          _
        // Predicated region
        $region25: #{tpu_custom_call.1} parent=11 // pred_check
          %p377 = pneg %p211
        $region26: #{tpu_custom_call.1} parent=11 // pred_check_branch
          %379 = sbr.rel (%p377) target = $region28
        $region27: #{tpu_custom_call.1} parent=11 // pred_region
          %s381 = ssub.s32 4096, 4096
          %382 = vsyncadd [#allocation16], %s381
          %s383 = sshll.u32 [#allocation17], 4
          %s384 = int_to_ptr.vmem [resolvable:$true] %s383
          %389 = dma.hbm_to_vmem [thread:$0]  %s6, 4096, %s384, [#allocation16], 128, 128, 8
        $region28: #{tpu_custom_call.1} parent=11 // pred_fallthru
          _
        // Predicated region
        $region29: #{tpu_custom_call.1} parent=11 // pred_check
          %p390 = pneg %p232
        $region30: #{tpu_custom_call.1} parent=11 // pred_check_branch
          %392 = sbr.rel (%p390) target = $region32
        $region31: #{tpu_custom_call.1} parent=11 // pred_region
          _
        $region32: #{tpu_custom_call.1} parent=11 // pred_fallthru
          _
        // Predicated region
        $region33: #{tpu_custom_call.1} parent=11 // pred_check
          %p393 = pneg %p253
        $region34: #{tpu_custom_call.1} parent=11 // pred_check_branch
          %395 = sbr.rel (%p393) target = $region36
        $region35: #{tpu_custom_call.1} parent=11 // pred_region
          _
        $region36: #{tpu_custom_call.1} parent=11 // pred_fallthru
          _
        // Predicated region
        $region37: #{tpu_custom_call.1} parent=11 // pred_check
          %p396 = pneg %p274
        $region38: #{tpu_custom_call.1} parent=11 // pred_check_branch
          %398 = sbr.rel (%p396) target = $region40
        $region39: #{tpu_custom_call.1} parent=11 // pred_region
          _
        $region40: #{tpu_custom_call.1} parent=11 // pred_fallthru
          _
        // Predicated region
        $region41: #{tpu_custom_call.1} parent=11 // pred_check
          %p399 = pneg %p295
        $region42: #{tpu_custom_call.1} parent=11 // pred_check_branch
          %401 = sbr.rel (%p399) target = $region44
        $region43: #{tpu_custom_call.1} parent=11 // pred_region
          _
        $region44: #{tpu_custom_call.1} parent=11 // pred_fallthru
          _
      $region12: #{tpu_custom_call.1} parent=5 // pred_fallthru
        _
      %p402 = scmp.lt.s32.totalorder %s28, 8
      // Predicated region
      $region45: #{tpu_custom_call.1} parent=5 // pred_check
        %p403 = pneg %p402
      $region46: #{tpu_custom_call.1} parent=5 // pred_check_branch
        %405 = sbr.rel (%p403) target = $region48
      $region47: #{tpu_custom_call.1} parent=5 // pred_region
        // Predicated region
        $region49: #{tpu_custom_call.1} parent=47 // pred_check
          %p406 = pneg %p69
        $region50: #{tpu_custom_call.1} parent=47 // pred_check_branch
          %408 = sbr.rel (%p406) target = $region52
        $region51: #{tpu_custom_call.1} parent=47 // pred_region
          %s409 = sand.u32 %s59, 1
          %s410 = scalar_lea.sflag [#allocation7], %s409
          %s411 = sand.u32 %s59, 1
          %s412 = smul.addr %s411, 256
          %s413 = scalar_lea.vmem [#allocation6], %s412
          %s414 = smul.u32 32, %s36
          %s416 = ssub.s32 4096, 4096
          %417 = vsyncadd %s410, %s416
          %s418 = smul.addr %s414, 2
          %s419 = smul.addr %s35, 128
          %s420 = sadd.s32 %s418, %s419
          %s421 = smul.addr %s420, 64
          %s422 = scalar_lea.hbm %s0, %s421
          %s423 = sshll.u32 %s413, 4
          %s424 = int_to_ptr.vmem [resolvable:$true] %s423
          %429 = dma.hbm_to_vmem [thread:$0]  %s422, 4096, %s424, %s410, 128, 128, 8
        $region52: #{tpu_custom_call.1} parent=47 // pred_fallthru
          _
        // Predicated region
        $region53: #{tpu_custom_call.1} parent=47 // pred_check
          %p430 = pneg %p95
        $region54: #{tpu_custom_call.1} parent=47 // pred_check_branch
          %432 = sbr.rel (%p430) target = $region56
        $region55: #{tpu_custom_call.1} parent=47 // pred_region
          %s433 = sand.u32 %s28, 1
          %s434 = scalar_lea.sflag [#allocation10], %s433
          %s435 = sand.u32 %s85, 1
          %s436 = smul.addr %s435, 512
          %s437 = scalar_lea.vmem [#allocation9], %s436
          %s439 = ssub.s32 8192, 8192
          %440 = vsyncadd %s434, %s439
          %s441 = smul.addr %s35, 128
          %s442 = smul.addr %s441, 64
          %s443 = scalar_lea.hbm %s1, %s442
          %s444 = sshll.u32 %s437, 4
          %s445 = int_to_ptr.vmem [resolvable:$true] %s444
          %450 = dma.hbm_to_vmem [thread:$0]  %s443, 8192, %s445, %s434, 128, 128, 8
        $region56: #{tpu_custom_call.1} parent=47 // pred_fallthru
          _
        // Predicated region
        $region57: #{tpu_custom_call.1} parent=47 // pred_check
          %p451 = pneg %p121
        $region58: #{tpu_custom_call.1} parent=47 // pred_check_branch
          %453 = sbr.rel (%p451) target = $region60
        $region59: #{tpu_custom_call.1} parent=47 // pred_region
          %s454 = sand.u32 %s28, 1
          %s455 = scalar_lea.sflag [#allocation10], %s454
          %s456 = sand.u32 %s111, 1
          %s457 = smul.addr %s456, 512
          %s458 = scalar_lea.vmem [#allocation11], %s457
          %s460 = ssub.s32 8192, 8192
          %461 = vsyncadd %s455, %s460
          %s462 = smul.addr %s35, 128
          %s463 = smul.addr %s462, 64
          %s464 = scalar_lea.hbm %s2, %s463
          %s465 = sshll.u32 %s458, 4
          %s466 = int_to_ptr.vmem [resolvable:$true] %s465
          %471 = dma.hbm_to_vmem [thread:$0]  %s464, 8192, %s466, %s455, 128, 128, 8
        $region60: #{tpu_custom_call.1} parent=47 // pred_fallthru
          _
      $region48: #{tpu_custom_call.1} parent=5 // pred_fallthru
        _
      %p472 = scmp.le.s32.totalorder 1, %s28
      %p473 = scmp.lt.s32.totalorder %s28, 9
      %p474 = pnand %p472, %p473
      %p475 = pneg %p474
      // Predicated region
      $region61: #{tpu_custom_call.1} parent=5 // pred_check
        _
      $region62: #{tpu_custom_call.1} parent=5 // pred_check_branch
        %477 = sbr.rel (%p474) target = $region64
      $region63: #{tpu_custom_call.1} parent=5 // pred_region
        %s478 = ssub.s32 %s28, 1
        %s479 = sand.u32 %s62, 1
        %s480 = scalar_lea.sflag [#allocation7], %s479
        %s481 = sand.u32 %s62, 1
        %s482 = smul.addr %s481, 256
        %s483 = scalar_lea.vmem [#allocation6], %s482
        // Predicated region
        $region65: #{tpu_custom_call.1} parent=63 // pred_check
          %p484 = pneg %p75
        $region66: #{tpu_custom_call.1} parent=63 // pred_check_branch
          %486 = sbr.rel (%p484) target = $region68
        $region67: #{tpu_custom_call.1} parent=63 // pred_region
          %487 = dma.done %s480, 4096
        $region68: #{tpu_custom_call.1} parent=63 // pred_fallthru
          _
        %s488 = sand.u32 %s33, 1
        %s489 = scalar_lea.sflag [#allocation10], %s488
        %s490 = sand.u32 %s88, 1
        %s491 = smul.addr %s490, 512
        %s492 = scalar_lea.vmem [#allocation9], %s491
        // Predicated region
        $region69: #{tpu_custom_call.1} parent=63 // pred_check
          %p493 = pneg %p101
        $region70: #{tpu_custom_call.1} parent=63 // pred_check_branch
          %495 = sbr.rel (%p493) target = $region72
        $region71: #{tpu_custom_call.1} parent=63 // pred_region
          %496 = dma.done %s489, 8192
        $region72: #{tpu_custom_call.1} parent=63 // pred_fallthru
          _
        %s497 = sand.u32 %s33, 1
        %s498 = scalar_lea.sflag [#allocation10], %s497
        %s499 = sand.u32 %s114, 1
        %s500 = smul.addr %s499, 512
        %s501 = scalar_lea.vmem [#allocation11], %s500
        // Predicated region
        $region73: #{tpu_custom_call.1} parent=63 // pred_check
          %p502 = pneg %p127
        $region74: #{tpu_custom_call.1} parent=63 // pred_check_branch
          %504 = sbr.rel (%p502) target = $region76
        $region75: #{tpu_custom_call.1} parent=63 // pred_region
          %505 = dma.done %s498, 8192
        $region76: #{tpu_custom_call.1} parent=63 // pred_fallthru
          _
        // Predicated region
        $region77: #{tpu_custom_call.1} parent=63 // pred_check
          %p506 = pneg %p148
        $region78: #{tpu_custom_call.1} parent=63 // pred_check_branch
          %508 = sbr.rel (%p506) target = $region80
        $region79: #{tpu_custom_call.1} parent=63 // pred_region
          %509 = dma.done [#allocation13], 4096
        $region80: #{tpu_custom_call.1} parent=63 // pred_fallthru
          _
        // Predicated region
        $region81: #{tpu_custom_call.1} parent=63 // pred_check
          %p510 = pneg %p169
        $region82: #{tpu_custom_call.1} parent=63 // pred_check_branch
          %512 = sbr.rel (%p510) target = $region84
        $region83: #{tpu_custom_call.1} parent=63 // pred_region
          %513 = dma.done [#allocation13], 4096
        $region84: #{tpu_custom_call.1} parent=63 // pred_fallthru
          _
        // Predicated region
        $region85: #{tpu_custom_call.1} parent=63 // pred_check
          %p514 = pneg %p190
        $region86: #{tpu_custom_call.1} parent=63 // pred_check_branch
          %516 = sbr.rel (%p514) target = $region88
        $region87: #{tpu_custom_call.1} parent=63 // pred_region
          %517 = dma.done [#allocation16], 4096
        $region88: #{tpu_custom_call.1} parent=63 // pred_fallthru
          _
        // Predicated region
        $region89: #{tpu_custom_call.1} parent=63 // pred_check
          %p518 = pneg %p211
        $region90: #{tpu_custom_call.1} parent=63 // pred_check_branch
          %520 = sbr.rel (%p518) target = $region92
        $region91: #{tpu_custom_call.1} parent=63 // pred_region
          %521 = dma.done [#allocation16], 4096
        $region92: #{tpu_custom_call.1} parent=63 // pred_fallthru
          _
        %s522 = sand.u32 %s62, 1
        %s523 = scalar_lea.sflag [#allocation7], %s522
        %s524 = sand.u32 %s62, 1
        %s525 = smul.addr %s524, 256
        %s526 = scalar_lea.vmem [#allocation6], %s525
        %p527 = pneg %p75
        %p528 = pneg %p72
        %s529 = sand.u32 %s33, 1
        %s530 = scalar_lea.sflag [#allocation10], %s529
        %s531 = sand.u32 %s88, 1
        %s532 = smul.addr %s531, 512
        %s533 = scalar_lea.vmem [#allocation9], %s532
        %p534 = pneg %p101
        %p535 = pneg %p98
        %s536 = sand.u32 %s33, 1
        %s537 = scalar_lea.sflag [#allocation10], %s536
        %s538 = sand.u32 %s114, 1
        %s539 = smul.addr %s538, 512
        %s540 = scalar_lea.vmem [#allocation11], %s539
        %p541 = pneg %p127
        %p542 = pneg %p124
        %p543 = pneg %p148
        %p544 = pneg %p145
        %p545 = pneg %p169
        %p546 = pneg %p166
        %p547 = pneg %p190
        %p548 = pneg %p187
        %p549 = pneg %p211
        %p550 = pneg %p208
        %p551 = pneg %p232
        %p552 = pneg %p229
        %p553 = pneg %p253
        %p554 = pneg %p250
        %p555 = pneg %p274
        %p556 = pneg %p271
        %p557 = pneg %p295
        %p558 = pneg %p292
        %p559 = pneg %p323
        %p560 = pneg %p320
        %s561 = sand.u32 %s310, 1
        %s562 = scalar_lea.sflag [#allocation8], %s561
        %s563 = sand.u32 %s310, 1
        %s564 = smul.addr %s563, 512
        %s565 = scalar_lea.vmem [#allocation18], %s564
        %s566 = smul.u32 32, %s39
        %s567 = smul.u32 32, %s39
        %p569 = scmp.eq.s32.totalorder %s39, 0
        %p570 = scmp.eq.s32.totalorder %s40, 0
        %p571 = pnand %p569, %p570
        %p572 = pneg %p571
        // Predicated region
        $region93: #{tpu_custom_call.1} parent=63 // pred_check
          _
        $region94: #{tpu_custom_call.1} parent=63 // pred_check_branch
          %574 = sbr.rel (%p571) target = $region96
        $region95: #{tpu_custom_call.1} parent=63 // pred_region
          %v575 = vld [vmem:[%s492] sm:$0xff]
          %v576 = vld [vmem:[%s492 + $0x8] sm:$0xff]
          %v577 = vld [vmem:[%s492 + $0x10] sm:$0xff]
          %v578 = vld [vmem:[%s492 + $0x18] sm:$0xff]
          %v579 = vld [vmem:[%s492 + $0x20] sm:$0xff]
          %v580 = vld [vmem:[%s492 + $0x28] sm:$0xff]
          %v581 = vld [vmem:[%s492 + $0x30] sm:$0xff]
          %v582 = vld [vmem:[%s492 + $0x38] sm:$0xff]
          %v583 = vld [vmem:[%s492 + $0x40] sm:$0xff]
          %v584 = vld [vmem:[%s492 + $0x48] sm:$0xff]
          %v585 = vld [vmem:[%s492 + $0x50] sm:$0xff]
          %v586 = vld [vmem:[%s492 + $0x58] sm:$0xff]
          %v587 = vld [vmem:[%s492 + $0x60] sm:$0xff]
          %v588 = vld [vmem:[%s492 + $0x68] sm:$0xff]
          %v589 = vld [vmem:[%s492 + $0x70] sm:$0xff]
          %v590 = vld [vmem:[%s492 + $0x78] sm:$0xff]
          %v591 = vld [vmem:[%s492 + $0x80] sm:$0xff]
          %v592 = vld [vmem:[%s492 + $0x88] sm:$0xff]
          %v593 = vld [vmem:[%s492 + $0x90] sm:$0xff]
          %v594 = vld [vmem:[%s492 + $0x98] sm:$0xff]
          %v595 = vld [vmem:[%s492 + $0xa0] sm:$0xff]
          %v596 = vld [vmem:[%s492 + $0xa8] sm:$0xff]
          %v597 = vld [vmem:[%s492 + $0xb0] sm:$0xff]
          %v598 = vld [vmem:[%s492 + $0xb8] sm:$0xff]
          %v599 = vld [vmem:[%s492 + $0xc0] sm:$0xff]
          %v600 = vld [vmem:[%s492 + $0xc8] sm:$0xff]
          %v601 = vld [vmem:[%s492 + $0xd0] sm:$0xff]
          %v602 = vld [vmem:[%s492 + $0xd8] sm:$0xff]
          %v603 = vld [vmem:[%s492 + $0xe0] sm:$0xff]
          %v604 = vld [vmem:[%s492 + $0xe8] sm:$0xff]
          %v605 = vld [vmem:[%s492 + $0xf0] sm:$0xff]
          %v606 = vld [vmem:[%s492 + $0xf8] sm:$0xff]
          %v607 = vld [vmem:[%s492 + $0x100] sm:$0xff]
          %v608 = vld [vmem:[%s492 + $0x108] sm:$0xff]
          %v609 = vld [vmem:[%s492 + $0x110] sm:$0xff]
          %v610 = vld [vmem:[%s492 + $0x118] sm:$0xff]
          %v611 = vld [vmem:[%s492 + $0x120] sm:$0xff]
          %v612 = vld [vmem:[%s492 + $0x128] sm:$0xff]
          %v613 = vld [vmem:[%s492 + $0x130] sm:$0xff]
          %v614 = vld [vmem:[%s492 + $0x138] sm:$0xff]
          %v615 = vld [vmem:[%s492 + $0x140] sm:$0xff]
          %v616 = vld [vmem:[%s492 + $0x148] sm:$0xff]
          %v617 = vld [vmem:[%s492 + $0x150] sm:$0xff]
          %v618 = vld [vmem:[%s492 + $0x158] sm:$0xff]
          %v619 = vld [vmem:[%s492 + $0x160] sm:$0xff]
          %v620 = vld [vmem:[%s492 + $0x168] sm:$0xff]
          %v621 = vld [vmem:[%s492 + $0x170] sm:$0xff]
          %v622 = vld [vmem:[%s492 + $0x178] sm:$0xff]
          %v623 = vld [vmem:[%s492 + $0x180] sm:$0xff]
          %v624 = vld [vmem:[%s492 + $0x188] sm:$0xff]
          %v625 = vld [vmem:[%s492 + $0x190] sm:$0xff]
          %v626 = vld [vmem:[%s492 + $0x198] sm:$0xff]
          %v627 = vld [vmem:[%s492 + $0x1a0] sm:$0xff]
          %v628 = vld [vmem:[%s492 + $0x1a8] sm:$0xff]
          %v629 = vld [vmem:[%s492 + $0x1b0] sm:$0xff]
          %v630 = vld [vmem:[%s492 + $0x1b8] sm:$0xff]
          %v631 = vld [vmem:[%s492 + $0x1c0] sm:$0xff]
          %v632 = vld [vmem:[%s492 + $0x1c8] sm:$0xff]
          %v633 = vld [vmem:[%s492 + $0x1d0] sm:$0xff]
          %v634 = vld [vmem:[%s492 + $0x1d8] sm:$0xff]
          %v635 = vld [vmem:[%s492 + $0x1e0] sm:$0xff]
          %v636 = vld [vmem:[%s492 + $0x1e8] sm:$0xff]
          %v637 = vld [vmem:[%s492 + $0x1f0] sm:$0xff]
          %v638 = vld [vmem:[%s492 + $0x1f8] sm:$0xff]
          %v639 = vld [vmem:[%s501] sm:$0xff]
          %v640 = vld [vmem:[%s501 + $0x8] sm:$0xff]
          %v641 = vld [vmem:[%s501 + $0x10] sm:$0xff]
          %v642 = vld [vmem:[%s501 + $0x18] sm:$0xff]
          %v643 = vld [vmem:[%s501 + $0x20] sm:$0xff]
          %v644 = vld [vmem:[%s501 + $0x28] sm:$0xff]
          %v645 = vld [vmem:[%s501 + $0x30] sm:$0xff]
          %v646 = vld [vmem:[%s501 + $0x38] sm:$0xff]
          %v647 = vld [vmem:[%s501 + $0x40] sm:$0xff]
          %v648 = vld [vmem:[%s501 + $0x48] sm:$0xff]
          %v649 = vld [vmem:[%s501 + $0x50] sm:$0xff]
          %v650 = vld [vmem:[%s501 + $0x58] sm:$0xff]
          %v651 = vld [vmem:[%s501 + $0x60] sm:$0xff]
          %v652 = vld [vmem:[%s501 + $0x68] sm:$0xff]
          %v653 = vld [vmem:[%s501 + $0x70] sm:$0xff]
          %v654 = vld [vmem:[%s501 + $0x78] sm:$0xff]
          %v655 = vld [vmem:[%s501 + $0x80] sm:$0xff]
          %v656 = vld [vmem:[%s501 + $0x88] sm:$0xff]
          %v657 = vld [vmem:[%s501 + $0x90] sm:$0xff]
          %v658 = vld [vmem:[%s501 + $0x98] sm:$0xff]
          %v659 = vld [vmem:[%s501 + $0xa0] sm:$0xff]
          %v660 = vld [vmem:[%s501 + $0xa8] sm:$0xff]
          %v661 = vld [vmem:[%s501 + $0xb0] sm:$0xff]
          %v662 = vld [vmem:[%s501 + $0xb8] sm:$0xff]
          %v663 = vld [vmem:[%s501 + $0xc0] sm:$0xff]
          %v664 = vld [vmem:[%s501 + $0xc8] sm:$0xff]
          %v665 = vld [vmem:[%s501 + $0xd0] sm:$0xff]
          %v666 = vld [vmem:[%s501 + $0xd8] sm:$0xff]
          %v667 = vld [vmem:[%s501 + $0xe0] sm:$0xff]
          %v668 = vld [vmem:[%s501 + $0xe8] sm:$0xff]
          %v669 = vld [vmem:[%s501 + $0xf0] sm:$0xff]
          %v670 = vld [vmem:[%s501 + $0xf8] sm:$0xff]
          %v671 = vld [vmem:[%s501 + $0x100] sm:$0xff]
          %v672 = vld [vmem:[%s501 + $0x108] sm:$0xff]
          %v673 = vld [vmem:[%s501 + $0x110] sm:$0xff]
          %v674 = vld [vmem:[%s501 + $0x118] sm:$0xff]
          %v675 = vld [vmem:[%s501 + $0x120] sm:$0xff]
          %v676 = vld [vmem:[%s501 + $0x128] sm:$0xff]
          %v677 = vld [vmem:[%s501 + $0x130] sm:$0xff]
          %v678 = vld [vmem:[%s501 + $0x138] sm:$0xff]
          %v679 = vld [vmem:[%s501 + $0x140] sm:$0xff]
          %v680 = vld [vmem:[%s501 + $0x148] sm:$0xff]
          %v681 = vld [vmem:[%s501 + $0x150] sm:$0xff]
          %v682 = vld [vmem:[%s501 + $0x158] sm:$0xff]
          %v683 = vld [vmem:[%s501 + $0x160] sm:$0xff]
          %v684 = vld [vmem:[%s501 + $0x168] sm:$0xff]
          %v685 = vld [vmem:[%s501 + $0x170] sm:$0xff]
          %v686 = vld [vmem:[%s501 + $0x178] sm:$0xff]
          %v687 = vld [vmem:[%s501 + $0x180] sm:$0xff]
          %v688 = vld [vmem:[%s501 + $0x188] sm:$0xff]
          %v689 = vld [vmem:[%s501 + $0x190] sm:$0xff]
          %v690 = vld [vmem:[%s501 + $0x198] sm:$0xff]
          %v691 = vld [vmem:[%s501 + $0x1a0] sm:$0xff]
          %v692 = vld [vmem:[%s501 + $0x1a8] sm:$0xff]
          %v693 = vld [vmem:[%s501 + $0x1b0] sm:$0xff]
          %v694 = vld [vmem:[%s501 + $0x1b8] sm:$0xff]
          %v695 = vld [vmem:[%s501 + $0x1c0] sm:$0xff]
          %v696 = vld [vmem:[%s501 + $0x1c8] sm:$0xff]
          %v697 = vld [vmem:[%s501 + $0x1d0] sm:$0xff]
          %v698 = vld [vmem:[%s501 + $0x1d8] sm:$0xff]
          %v699 = vld [vmem:[%s501 + $0x1e0] sm:$0xff]
          %v700 = vld [vmem:[%s501 + $0x1e8] sm:$0xff]
          %v701 = vld [vmem:[%s501 + $0x1f0] sm:$0xff]
          %v702 = vld [vmem:[%s501 + $0x1f8] sm:$0xff]
          %v703 = vld [vmem:[#allocation14] sm:$0xff]
          %v704 = vld [vmem:[#allocation14 + $0x8] sm:$0xff]
          %v705 = vld [vmem:[#allocation14 + $0x10] sm:$0xff]
          %v706 = vld [vmem:[#allocation14 + $0x18] sm:$0xff]
          %v707 = vld [vmem:[#allocation14 + $0x20] sm:$0xff]
          %v708 = vld [vmem:[#allocation14 + $0x28] sm:$0xff]
          %v709 = vld [vmem:[#allocation14 + $0x30] sm:$0xff]
          %v710 = vld [vmem:[#allocation14 + $0x38] sm:$0xff]
          %v711 = vld [vmem:[#allocation14 + $0x40] sm:$0xff]
          %v712 = vld [vmem:[#allocation14 + $0x48] sm:$0xff]
          %v713 = vld [vmem:[#allocation14 + $0x50] sm:$0xff]
          %v714 = vld [vmem:[#allocation14 + $0x58] sm:$0xff]
          %v715 = vld [vmem:[#allocation14 + $0x60] sm:$0xff]
          %v716 = vld [vmem:[#allocation14 + $0x68] sm:$0xff]
          %v717 = vld [vmem:[#allocation14 + $0x70] sm:$0xff]
          %v718 = vld [vmem:[#allocation14 + $0x78] sm:$0xff]
          %v719 = vld [vmem:[#allocation14 + $0x80] sm:$0xff]
          %v720 = vld [vmem:[#allocation14 + $0x88] sm:$0xff]
          %v721 = vld [vmem:[#allocation14 + $0x90] sm:$0xff]
          %v722 = vld [vmem:[#allocation14 + $0x98] sm:$0xff]
          %v723 = vld [vmem:[#allocation14 + $0xa0] sm:$0xff]
          %v724 = vld [vmem:[#allocation14 + $0xa8] sm:$0xff]
          %v725 = vld [vmem:[#allocation14 + $0xb0] sm:$0xff]
          %v726 = vld [vmem:[#allocation14 + $0xb8] sm:$0xff]
          %v727 = vld [vmem:[#allocation14 + $0xc0] sm:$0xff]
          %v728 = vld [vmem:[#allocation14 + $0xc8] sm:$0xff]
          %v729 = vld [vmem:[#allocation14 + $0xd0] sm:$0xff]
          %v730 = vld [vmem:[#allocation14 + $0xd8] sm:$0xff]
          %v731 = vld [vmem:[#allocation14 + $0xe0] sm:$0xff]
          %v732 = vld [vmem:[#allocation14 + $0xe8] sm:$0xff]
          %v733 = vld [vmem:[#allocation14 + $0xf0] sm:$0xff]
          %v734 = vld [vmem:[#allocation14 + $0xf8] sm:$0xff]
          %v735 = vld [vmem:[%s8] sm:$0x3]
          %v737 = vlaneseq
          %v738 = vshrl.u32 %v737, 7
          %v739 = vsub.s32 0, %v738
          %v740 = vrot.slane %v735, %v739
          %v741 = vlaneseq
          %v742 = vshrl.u32 %v741, 7
          %v743 = vsub.s32 1, %v742
          %v744 = vrot.slane %v735, %v743
          %v811 = vunpack.c.l.b16 %v575
          %v812 = vunpack.c.h.b16 %v575
          %v813 = vunpack.c.l.b16 %v576
          %v814 = vunpack.c.h.b16 %v576
          %v815 = vunpack.c.l.b16 %v577
          %v816 = vunpack.c.h.b16 %v577
          %v817 = vunpack.c.l.b16 %v578
          %v818 = vunpack.c.h.b16 %v578
          %v819 = vunpack.c.l.b16 %v579
          %v820 = vunpack.c.h.b16 %v579
          %v821 = vunpack.c.l.b16 %v580
          %v822 = vunpack.c.h.b16 %v580
          %v823 = vunpack.c.l.b16 %v581
          %v824 = vunpack.c.h.b16 %v581
          %v825 = vunpack.c.l.b16 %v582
          %v826 = vunpack.c.h.b16 %v582
          %v827 = vunpack.c.l.b16 %v583
          %v828 = vunpack.c.h.b16 %v583
          %v829 = vunpack.c.l.b16 %v584
          %v830 = vunpack.c.h.b16 %v584
          %v831 = vunpack.c.l.b16 %v585
          %v832 = vunpack.c.h.b16 %v585
          %v833 = vunpack.c.l.b16 %v586
          %v834 = vunpack.c.h.b16 %v586
          %v835 = vunpack.c.l.b16 %v587
          %v836 = vunpack.c.h.b16 %v587
          %v837 = vunpack.c.l.b16 %v588
          %v838 = vunpack.c.h.b16 %v588
          %v839 = vunpack.c.l.b16 %v589
          %v840 = vunpack.c.h.b16 %v589
          %v841 = vunpack.c.l.b16 %v590
          %v842 = vunpack.c.h.b16 %v590
          %v843 = vunpack.c.l.b16 %v591
          %v844 = vunpack.c.h.b16 %v591
          %v845 = vunpack.c.l.b16 %v592
          %v846 = vunpack.c.h.b16 %v592
          %v847 = vunpack.c.l.b16 %v593
          %v848 = vunpack.c.h.b16 %v593
          %v849 = vunpack.c.l.b16 %v594
          %v850 = vunpack.c.h.b16 %v594
          %v851 = vunpack.c.l.b16 %v595
          %v852 = vunpack.c.h.b16 %v595
          %v853 = vunpack.c.l.b16 %v596
          %v854 = vunpack.c.h.b16 %v596
          %v855 = vunpack.c.l.b16 %v597
          %v856 = vunpack.c.h.b16 %v597
          %v857 = vunpack.c.l.b16 %v598
          %v858 = vunpack.c.h.b16 %v598
          %v859 = vunpack.c.l.b16 %v599
          %v860 = vunpack.c.h.b16 %v599
          %v861 = vunpack.c.l.b16 %v600
          %v862 = vunpack.c.h.b16 %v600
          %v863 = vunpack.c.l.b16 %v601
          %v864 = vunpack.c.h.b16 %v601
          %v865 = vunpack.c.l.b16 %v602
          %v866 = vunpack.c.h.b16 %v602
          %v867 = vunpack.c.l.b16 %v603
          %v868 = vunpack.c.h.b16 %v603
          %v869 = vunpack.c.l.b16 %v604
          %v870 = vunpack.c.h.b16 %v604
          %v871 = vunpack.c.l.b16 %v605
          %v872 = vunpack.c.h.b16 %v605
          %v873 = vunpack.c.l.b16 %v606
          %v874 = vunpack.c.h.b16 %v606
          %v875 = vunpack.c.l.b16 %v607
          %v876 = vunpack.c.h.b16 %v607
          %v877 = vunpack.c.l.b16 %v608
          %v878 = vunpack.c.h.b16 %v608
          %v879 = vunpack.c.l.b16 %v609
          %v880 = vunpack.c.h.b16 %v609
          %v881 = vunpack.c.l.b16 %v610
          %v882 = vunpack.c.h.b16 %v610
          %v883 = vunpack.c.l.b16 %v611
          %v884 = vunpack.c.h.b16 %v611
          %v885 = vunpack.c.l.b16 %v612
          %v886 = vunpack.c.h.b16 %v612
          %v887 = vunpack.c.l.b16 %v613
          %v888 = vunpack.c.h.b16 %v613
          %v889 = vunpack.c.l.b16 %v614
          %v890 = vunpack.c.h.b16 %v614
          %v891 = vunpack.c.l.b16 %v615
          %v892 = vunpack.c.h.b16 %v615
          %v893 = vunpack.c.l.b16 %v616
          %v894 = vunpack.c.h.b16 %v616
          %v895 = vunpack.c.l.b16 %v617
          %v896 = vunpack.c.h.b16 %v617
          %v897 = vunpack.c.l.b16 %v618
          %v898 = vunpack.c.h.b16 %v618
          %v899 = vunpack.c.l.b16 %v619
          %v900 = vunpack.c.h.b16 %v619
          %v901 = vunpack.c.l.b16 %v620
          %v902 = vunpack.c.h.b16 %v620
          %v903 = vunpack.c.l.b16 %v621
          %v904 = vunpack.c.h.b16 %v621
          %v905 = vunpack.c.l.b16 %v622
          %v906 = vunpack.c.h.b16 %v622
          %v907 = vunpack.c.l.b16 %v623
          %v908 = vunpack.c.h.b16 %v623
          %v909 = vunpack.c.l.b16 %v624
          %v910 = vunpack.c.h.b16 %v624
          %v911 = vunpack.c.l.b16 %v625
          %v912 = vunpack.c.h.b16 %v625
          %v913 = vunpack.c.l.b16 %v626
          %v914 = vunpack.c.h.b16 %v626
          %v915 = vunpack.c.l.b16 %v627
          %v916 = vunpack.c.h.b16 %v627
          %v917 = vunpack.c.l.b16 %v628
          %v918 = vunpack.c.h.b16 %v628
          %v919 = vunpack.c.l.b16 %v629
          %v920 = vunpack.c.h.b16 %v629
          %v921 = vunpack.c.l.b16 %v630
          %v922 = vunpack.c.h.b16 %v630
          %v923 = vunpack.c.l.b16 %v631
          %v924 = vunpack.c.h.b16 %v631
          %v925 = vunpack.c.l.b16 %v632
          %v926 = vunpack.c.h.b16 %v632
          %v927 = vunpack.c.l.b16 %v633
          %v928 = vunpack.c.h.b16 %v633
          %v929 = vunpack.c.l.b16 %v634
          %v930 = vunpack.c.h.b16 %v634
          %v931 = vunpack.c.l.b16 %v635
          %v932 = vunpack.c.h.b16 %v635
          %v933 = vunpack.c.l.b16 %v636
          %v934 = vunpack.c.h.b16 %v636
          %v935 = vunpack.c.l.b16 %v637
          %v936 = vunpack.c.h.b16 %v637
          %v937 = vunpack.c.l.b16 %v638
          %v938 = vunpack.c.h.b16 %v638
          %v939 = vpack.c.b16 %v813, %v811
          %v940 = vpack.c.b16 %v814, %v812
          %v941 = vpack.c.b16 %v817, %v815
          %v942 = vpack.c.b16 %v818, %v816
          %v943 = vpack.c.b16 %v821, %v819
          %v944 = vpack.c.b16 %v822, %v820
          %v945 = vpack.c.b16 %v825, %v823
          %v946 = vpack.c.b16 %v826, %v824
          %v947 = vpack.c.b16 %v829, %v827
          %v948 = vpack.c.b16 %v830, %v828
          %v949 = vpack.c.b16 %v833, %v831
          %v950 = vpack.c.b16 %v834, %v832
          %v951 = vpack.c.b16 %v837, %v835
          %v952 = vpack.c.b16 %v838, %v836
          %v953 = vpack.c.b16 %v841, %v839
          %v954 = vpack.c.b16 %v842, %v840
          %v955 = vpack.c.b16 %v845, %v843
          %v956 = vpack.c.b16 %v846, %v844
          %v957 = vpack.c.b16 %v849, %v847
          %v958 = vpack.c.b16 %v850, %v848
          %v959 = vpack.c.b16 %v853, %v851
          %v960 = vpack.c.b16 %v854, %v852
          %v961 = vpack.c.b16 %v857, %v855
          %v962 = vpack.c.b16 %v858, %v856
          %v963 = vpack.c.b16 %v861, %v859
          %v964 = vpack.c.b16 %v862, %v860
          %v965 = vpack.c.b16 %v865, %v863
          %v966 = vpack.c.b16 %v866, %v864
          %v967 = vpack.c.b16 %v869, %v867
          %v968 = vpack.c.b16 %v870, %v868
          %v969 = vpack.c.b16 %v873, %v871
          %v970 = vpack.c.b16 %v874, %v872
          %v971 = vpack.c.b16 %v877, %v875
          %v972 = vpack.c.b16 %v878, %v876
          %v973 = vpack.c.b16 %v881, %v879
          %v974 = vpack.c.b16 %v882, %v880
          %v975 = vpack.c.b16 %v885, %v883
          %v976 = vpack.c.b16 %v886, %v884
          %v977 = vpack.c.b16 %v889, %v887
          %v978 = vpack.c.b16 %v890, %v888
          %v979 = vpack.c.b16 %v893, %v891
          %v980 = vpack.c.b16 %v894, %v892
          %v981 = vpack.c.b16 %v897, %v895
          %v982 = vpack.c.b16 %v898, %v896
          %v983 = vpack.c.b16 %v901, %v899
          %v984 = vpack.c.b16 %v902, %v900
          %v985 = vpack.c.b16 %v905, %v903
          %v986 = vpack.c.b16 %v906, %v904
          %v987 = vpack.c.b16 %v909, %v907
          %v988 = vpack.c.b16 %v910, %v908
          %v989 = vpack.c.b16 %v913, %v911
          %v990 = vpack.c.b16 %v914, %v912
          %v991 = vpack.c.b16 %v917, %v915
          %v992 = vpack.c.b16 %v918, %v916
          %v993 = vpack.c.b16 %v921, %v919
          %v994 = vpack.c.b16 %v922, %v920
          %v995 = vpack.c.b16 %v925, %v923
          %v996 = vpack.c.b16 %v926, %v924
          %v997 = vpack.c.b16 %v929, %v927
          %v998 = vpack.c.b16 %v930, %v928
          %v999 = vpack.c.b16 %v933, %v931
          %v1000 = vpack.c.b16 %v934, %v932
          %v1001 = vpack.c.b16 %v937, %v935
          %v1002 = vpack.c.b16 %v938, %v936
          %v1099 = vunpack.c.l.b16 %v703
          %v1100 = vunpack.c.h.b16 %v703
          %v1101 = vunpack.c.l.b16 %v704
          %v1102 = vunpack.c.h.b16 %v704
          %v1103 = vunpack.c.l.b16 %v705
          %v1104 = vunpack.c.h.b16 %v705
          %v1105 = vunpack.c.l.b16 %v706
          %v1106 = vunpack.c.h.b16 %v706
          %v1107 = vunpack.c.l.b16 %v707
          %v1108 = vunpack.c.h.b16 %v707
          %v1109 = vunpack.c.l.b16 %v708
          %v1110 = vunpack.c.h.b16 %v708
          %v1111 = vunpack.c.l.b16 %v709
          %v1112 = vunpack.c.h.b16 %v709
          %v1113 = vunpack.c.l.b16 %v710
          %v1114 = vunpack.c.h.b16 %v710
          %v1115 = vunpack.c.l.b16 %v711
          %v1116 = vunpack.c.h.b16 %v711
          %v1117 = vunpack.c.l.b16 %v712
          %v1118 = vunpack.c.h.b16 %v712
          %v1119 = vunpack.c.l.b16 %v713
          %v1120 = vunpack.c.h.b16 %v713
          %v1121 = vunpack.c.l.b16 %v714
          %v1122 = vunpack.c.h.b16 %v714
          %v1123 = vunpack.c.l.b16 %v715
          %v1124 = vunpack.c.h.b16 %v715
          %v1125 = vunpack.c.l.b16 %v716
          %v1126 = vunpack.c.h.b16 %v716
          %v1127 = vunpack.c.l.b16 %v717
          %v1128 = vunpack.c.h.b16 %v717
          %v1129 = vunpack.c.l.b16 %v718
          %v1130 = vunpack.c.h.b16 %v718
          %v1131 = vunpack.c.l.b16 %v719
          %v1132 = vunpack.c.h.b16 %v719
          %v1133 = vunpack.c.l.b16 %v720
          %v1134 = vunpack.c.h.b16 %v720
          %v1135 = vunpack.c.l.b16 %v721
          %v1136 = vunpack.c.h.b16 %v721
          %v1137 = vunpack.c.l.b16 %v722
          %v1138 = vunpack.c.h.b16 %v722
          %v1139 = vunpack.c.l.b16 %v723
          %v1140 = vunpack.c.h.b16 %v723
          %v1141 = vunpack.c.l.b16 %v724
          %v1142 = vunpack.c.h.b16 %v724
          %v1143 = vunpack.c.l.b16 %v725
          %v1144 = vunpack.c.h.b16 %v725
          %v1145 = vunpack.c.l.b16 %v726
          %v1146 = vunpack.c.h.b16 %v726
          %v1147 = vunpack.c.l.b16 %v727
          %v1148 = vunpack.c.h.b16 %v727
          %v1149 = vunpack.c.l.b16 %v728
          %v1150 = vunpack.c.h.b16 %v728
          %v1151 = vunpack.c.l.b16 %v729
          %v1152 = vunpack.c.h.b16 %v729
          %v1153 = vunpack.c.l.b16 %v730
          %v1154 = vunpack.c.h.b16 %v730
          %v1155 = vunpack.c.l.b16 %v731
          %v1156 = vunpack.c.h.b16 %v731
          %v1157 = vunpack.c.l.b16 %v732
          %v1158 = vunpack.c.h.b16 %v732
          %v1159 = vunpack.c.l.b16 %v733
          %v1160 = vunpack.c.h.b16 %v733
          %v1161 = vunpack.c.l.b16 %v734
          %v1162 = vunpack.c.h.b16 %v734
          %v1163 = vpack.c.b16 %v1101, %v1099
          %v1164 = vpack.c.b16 %v1102, %v1100
          %v1165 = vpack.c.b16 %v1105, %v1103
          %v1166 = vpack.c.b16 %v1106, %v1104
          %v1167 = vpack.c.b16 %v1109, %v1107
          %v1168 = vpack.c.b16 %v1110, %v1108
          %v1169 = vpack.c.b16 %v1113, %v1111
          %v1170 = vpack.c.b16 %v1114, %v1112
          %v1171 = vpack.c.b16 %v1117, %v1115
          %v1172 = vpack.c.b16 %v1118, %v1116
          %v1173 = vpack.c.b16 %v1121, %v1119
          %v1174 = vpack.c.b16 %v1122, %v1120
          %v1175 = vpack.c.b16 %v1125, %v1123
          %v1176 = vpack.c.b16 %v1126, %v1124
          %v1177 = vpack.c.b16 %v1129, %v1127
          %v1178 = vpack.c.b16 %v1130, %v1128
          %v1179 = vpack.c.b16 %v1133, %v1131
          %v1180 = vpack.c.b16 %v1134, %v1132
          %v1181 = vpack.c.b16 %v1137, %v1135
          %v1182 = vpack.c.b16 %v1138, %v1136
          %v1183 = vpack.c.b16 %v1141, %v1139
          %v1184 = vpack.c.b16 %v1142, %v1140
          %v1185 = vpack.c.b16 %v1145, %v1143
          %v1186 = vpack.c.b16 %v1146, %v1144
          %v1187 = vpack.c.b16 %v1149, %v1147
          %v1188 = vpack.c.b16 %v1150, %v1148
          %v1189 = vpack.c.b16 %v1153, %v1151
          %v1190 = vpack.c.b16 %v1154, %v1152
          %v1191 = vpack.c.b16 %v1157, %v1155
          %v1192 = vpack.c.b16 %v1158, %v1156
          %v1193 = vpack.c.b16 %v1161, %v1159
          %v1194 = vpack.c.b16 %v1162, %v1160
          %1227 = vmatprep.subr.bf16.mxu0 %v1164
          %1228 = vmatpush1.bf16.msra.mxu0 %v1163
          %1229 = vmatprep.subr.bf16.mxu0 %v1166
          %1230 = vmatpush1.bf16.msra.mxu0 %v1165
          %1231 = vmatprep.subr.bf16.mxu0 %v1168
          %1232 = vmatpush1.bf16.msra.mxu0 %v1167
          %1233 = vmatprep.subr.bf16.mxu0 %v1170
          %1234 = vmatpush1.bf16.msra.mxu0 %v1169
          %1235 = vmatprep.subr.bf16.mxu0 %v1172
          %1236 = vmatpush1.bf16.msra.mxu0 %v1171
          %1237 = vmatprep.subr.bf16.mxu0 %v1174
          %1238 = vmatpush1.bf16.msra.mxu0 %v1173
          %1239 = vmatprep.subr.bf16.mxu0 %v1176
          %1240 = vmatpush1.bf16.msra.mxu0 %v1175
          %1241 = vmatprep.subr.bf16.mxu0 %v1178
          %1242 = vmatpush1.bf16.msra.mxu0 %v1177
          %1243 = vmatprep.subr.bf16.mxu0 %v1180
          %1244 = vmatpush1.bf16.msra.mxu0 %v1179
          %1245 = vmatprep.subr.bf16.mxu0 %v1182
          %1246 = vmatpush1.bf16.msra.mxu0 %v1181
          %1247 = vmatprep.subr.bf16.mxu0 %v1184
          %1248 = vmatpush1.bf16.msra.mxu0 %v1183
          %1249 = vmatprep.subr.bf16.mxu0 %v1186
          %1250 = vmatpush1.bf16.msra.mxu0 %v1185
          %1251 = vmatprep.subr.bf16.mxu0 %v1188
          %1252 = vmatpush1.bf16.msra.mxu0 %v1187
          %1253 = vmatprep.subr.bf16.mxu0 %v1190
          %1254 = vmatpush1.bf16.msra.mxu0 %v1189
          %1255 = vmatprep.subr.bf16.mxu0 %v1192
          %1256 = vmatpush1.bf16.msra.mxu0 %v1191
          %1257 = vmatprep.subr.bf16.mxu0 %v1194
          %1258 = vmatpush1.bf16.msra.mxu0 %v1193
          %1259 = vmatprep.mubr.bf16.mxu0 %v940
          %1260 = vmatmul.mubr.bf16.gmra.mrb[0].mxu0 %v939
          %v1261 = vpop.f32.mrb[0].mxu0
          %v1262 = vadd.f32 %v740, %v1261
          %v1263 = vpop.f32.mrb[0].mxu0
          %v1264 = vadd.f32 %v744, %v1263
          %v1265 = vpop.f32.mrb[0].mxu0
          %v1266 = vadd.f32 %v740, %v1265
          %v1267 = vpop.f32.mrb[0].mxu0
          %v1268 = vadd.f32 %v744, %v1267
          %1269 = vmatprep.mubr.bf16.mxu0 %v942
          %1270 = vmatmul.mubr.bf16.gmra.mrb[0].mxu0 %v941
          %v1271 = vpop.f32.mrb[0].mxu0
          %v1272 = vadd.f32 %v740, %v1271
          %v1273 = vpop.f32.mrb[0].mxu0
          %v1274 = vadd.f32 %v744, %v1273
          %v1275 = vpop.f32.mrb[0].mxu0
          %v1276 = vadd.f32 %v740, %v1275
          %v1277 = vpop.f32.mrb[0].mxu0
          %v1278 = vadd.f32 %v744, %v1277
          %1279 = vmatprep.mubr.bf16.mxu0 %v944
          %1280 = vmatmul.mubr.bf16.gmra.mrb[0].mxu0 %v943
          %v1281 = vpop.f32.mrb[0].mxu0
          %v1282 = vadd.f32 %v740, %v1281
          %v1283 = vpop.f32.mrb[0].mxu0
          %v1284 = vadd.f32 %v744, %v1283
          %v1285 = vpop.f32.mrb[0].mxu0
          %v1286 = vadd.f32 %v740, %v1285
          %v1287 = vpop.f32.mrb[0].mxu0
          %v1288 = vadd.f32 %v744, %v1287
          %1289 = vmatprep.mubr.bf16.mxu0 %v946
          %1290 = vmatmul.mubr.bf16.gmra.mrb[0].mxu0 %v945
          %v1291 = vpop.f32.mrb[0].mxu0
          %v1292 = vadd.f32 %v740, %v1291
          %v1293 = vpop.f32.mrb[0].mxu0
          %v1294 = vadd.f32 %v744, %v1293
          %v1295 = vpop.f32.mrb[0].mxu0
          %v1296 = vadd.f32 %v740, %v1295
          %v1297 = vpop.f32.mrb[0].mxu0
          %v1298 = vadd.f32 %v744, %v1297
          %1299 = vmatprep.mubr.bf16.mxu0 %v948
          %1300 = vmatmul.mubr.bf16.gmra.mrb[0].mxu0 %v947
          %v1301 = vpop.f32.mrb[0].mxu0
          %v1302 = vadd.f32 %v740, %v1301
          %v1303 = vpop.f32.mrb[0].mxu0
          %v1304 = vadd.f32 %v744, %v1303
          %v1305 = vpop.f32.mrb[0].mxu0
          %v1306 = vadd.f32 %v740, %v1305
          %v1307 = vpop.f32.mrb[0].mxu0
          %v1308 = vadd.f32 %v744, %v1307
          %1309 = vmatprep.mubr.bf16.mxu0 %v950
          %1310 = vmatmul.mubr.bf16.gmra.mrb[0].mxu0 %v949
          %v1311 = vpop.f32.mrb[0].mxu0
          %v1312 = vadd.f32 %v740, %v1311
          %v1313 = vpop.f32.mrb[0].mxu0
          %v1314 = vadd.f32 %v744, %v1313
          %v1315 = vpop.f32.mrb[0].mxu0
          %v1316 = vadd.f32 %v740, %v1315
          %v1317 = vpop.f32.mrb[0].mxu0
          %v1318 = vadd.f32 %v744, %v1317
          %1319 = vmatprep.mubr.bf16.mxu0 %v952
          %1320 = vmatmul.mubr.bf16.gmra.mrb[0].mxu0 %v951
          %v1321 = vpop.f32.mrb[0].mxu0
          %v1322 = vadd.f32 %v740, %v1321
          %v1323 = vpop.f32.mrb[0].mxu0
          %v1324 = vadd.f32 %v744, %v1323
          %v1325 = vpop.f32.mrb[0].mxu0
          %v1326 = vadd.f32 %v740, %v1325
          %v1327 = vpop.f32.mrb[0].mxu0
          %v1328 = vadd.f32 %v744, %v1327
          %1329 = vmatprep.mubr.bf16.mxu0 %v954
          %1330 = vmatmul.mubr.bf16.gmra.mrb[0].mxu0 %v953
          %v1331 = vpop.f32.mrb[0].mxu0
          %v1332 = vadd.f32 %v740, %v1331
          %v1333 = vpop.f32.mrb[0].mxu0
          %v1334 = vadd.f32 %v744, %v1333
          %v1335 = vpop.f32.mrb[0].mxu0
          %v1336 = vadd.f32 %v740, %v1335
          %v1337 = vpop.f32.mrb[0].mxu0
          %v1338 = vadd.f32 %v744, %v1337
          %1339 = vmatprep.mubr.bf16.mxu0 %v956
          %1340 = vmatmul.mubr.bf16.gmra.mrb[0].mxu0 %v955
          %v1341 = vpop.f32.mrb[0].mxu0
          %v1342 = vadd.f32 %v740, %v1341
          %v1343 = vpop.f32.mrb[0].mxu0
          %v1344 = vadd.f32 %v744, %v1343
          %v1345 = vpop.f32.mrb[0].mxu0
          %v1346 = vadd.f32 %v740, %v1345
          %v1347 = vpop.f32.mrb[0].mxu0
          %v1348 = vadd.f32 %v744, %v1347
          %1349 = vmatprep.mubr.bf16.mxu0 %v958
          %1350 = vmatmul.mubr.bf16.gmra.mrb[0].mxu0 %v957
          %v1351 = vpop.f32.mrb[0].mxu0
          %v1352 = vadd.f32 %v740, %v1351
          %v1353 = vpop.f32.mrb[0].mxu0
          %v1354 = vadd.f32 %v744, %v1353
          %v1355 = vpop.f32.mrb[0].mxu0
          %v1356 = vadd.f32 %v740, %v1355
          %v1357 = vpop.f32.mrb[0].mxu0
          %v1358 = vadd.f32 %v744, %v1357
          %1359 = vmatprep.mubr.bf16.mxu0 %v960
          %1360 = vmatmul.mubr.bf16.gmra.mrb[0].mxu0 %v959
          %v1361 = vpop.f32.mrb[0].mxu0
          %v1362 = vadd.f32 %v740, %v1361
          %v1363 = vpop.f32.mrb[0].mxu0
          %v1364 = vadd.f32 %v744, %v1363
          %v1365 = vpop.f32.mrb[0].mxu0
          %v1366 = vadd.f32 %v740, %v1365
          %v1367 = vpop.f32.mrb[0].mxu0
          %v1368 = vadd.f32 %v744, %v1367
          %1369 = vmatprep.mubr.bf16.mxu0 %v962
          %1370 = vmatmul.mubr.bf16.gmra.mrb[0].mxu0 %v961
          %v1371 = vpop.f32.mrb[0].mxu0
          %v1372 = vadd.f32 %v740, %v1371
          %v1373 = vpop.f32.mrb[0].mxu0
          %v1374 = vadd.f32 %v744, %v1373
          %v1375 = vpop.f32.mrb[0].mxu0
          %v1376 = vadd.f32 %v740, %v1375
          %v1377 = vpop.f32.mrb[0].mxu0
          %v1378 = vadd.f32 %v744, %v1377
          %1379 = vmatprep.mubr.bf16.mxu0 %v964
          %1380 = vmatmul.mubr.bf16.gmra.mrb[0].mxu0 %v963
          %v1381 = vpop.f32.mrb[0].mxu0
          %v1382 = vadd.f32 %v740, %v1381
          %v1383 = vpop.f32.mrb[0].mxu0
          %v1384 = vadd.f32 %v744, %v1383
          %v1385 = vpop.f32.mrb[0].mxu0
          %v1386 = vadd.f32 %v740, %v1385
          %v1387 = vpop.f32.mrb[0].mxu0
          %v1388 = vadd.f32 %v744, %v1387
          %1389 = vmatprep.mubr.bf16.mxu0 %v966
          %1390 = vmatmul.mubr.bf16.gmra.mrb[0].mxu0 %v965
          %v1391 = vpop.f32.mrb[0].mxu0
          %v1392 = vadd.f32 %v740, %v1391
          %v1393 = vpop.f32.mrb[0].mxu0
          %v1394 = vadd.f32 %v744, %v1393
          %v1395 = vpop.f32.mrb[0].mxu0
          %v1396 = vadd.f32 %v740, %v1395
          %v1397 = vpop.f32.mrb[0].mxu0
          %v1398 = vadd.f32 %v744, %v1397
          %1399 = vmatprep.mubr.bf16.mxu0 %v968
          %1400 = vmatmul.mubr.bf16.gmra.mrb[0].mxu0 %v967
          %v1401 = vpop.f32.mrb[0].mxu0
          %v1402 = vadd.f32 %v740, %v1401
          %v1403 = vpop.f32.mrb[0].mxu0
          %v1404 = vadd.f32 %v744, %v1403
          %v1405 = vpop.f32.mrb[0].mxu0
          %v1406 = vadd.f32 %v740, %v1405
          %v1407 = vpop.f32.mrb[0].mxu0
          %v1408 = vadd.f32 %v744, %v1407
          %1409 = vmatprep.mubr.bf16.mxu0 %v970
          %1410 = vmatmul.mubr.bf16.gmra.mrb[0].mxu0 %v969
          %v1411 = vpop.f32.mrb[0].mxu0
          %v1412 = vadd.f32 %v740, %v1411
          %v1413 = vpop.f32.mrb[0].mxu0
          %v1414 = vadd.f32 %v744, %v1413
          %v1415 = vpop.f32.mrb[0].mxu0
          %v1416 = vadd.f32 %v740, %v1415
          %v1417 = vpop.f32.mrb[0].mxu0
          %v1418 = vadd.f32 %v744, %v1417
          %1419 = vmatprep.mubr.bf16.mxu0 %v972
          %1420 = vmatmul.mubr.bf16.gmra.mrb[0].mxu0 %v971
          %v1421 = vpop.f32.mrb[0].mxu0
          %v1422 = vadd.f32 %v740, %v1421
          %v1423 = vpop.f32.mrb[0].mxu0
          %v1424 = vadd.f32 %v744, %v1423
          %v1425 = vpop.f32.mrb[0].mxu0
          %v1426 = vadd.f32 %v740, %v1425
          %v1427 = vpop.f32.mrb[0].mxu0
          %v1428 = vadd.f32 %v744, %v1427
          %1429 = vmatprep.mubr.bf16.mxu0 %v974
          %1430 = vmatmul.mubr.bf16.gmra.mrb[0].mxu0 %v973
          %v1431 = vpop.f32.mrb[0].mxu0
          %v1432 = vadd.f32 %v740, %v1431
          %v1433 = vpop.f32.mrb[0].mxu0
          %v1434 = vadd.f32 %v744, %v1433
          %v1435 = vpop.f32.mrb[0].mxu0
          %v1436 = vadd.f32 %v740, %v1435
          %v1437 = vpop.f32.mrb[0].mxu0
          %v1438 = vadd.f32 %v744, %v1437
          %1439 = vmatprep.mubr.bf16.mxu0 %v976
          %1440 = vmatmul.mubr.bf16.gmra.mrb[0].mxu0 %v975
          %v1441 = vpop.f32.mrb[0].mxu0
          %v1442 = vadd.f32 %v740, %v1441
          %v1443 = vpop.f32.mrb[0].mxu0
          %v1444 = vadd.f32 %v744, %v1443
          %v1445 = vpop.f32.mrb[0].mxu0
          %v1446 = vadd.f32 %v740, %v1445
          %v1447 = vpop.f32.mrb[0].mxu0
          %v1448 = vadd.f32 %v744, %v1447
          %1449 = vmatprep.mubr.bf16.mxu0 %v978
          %1450 = vmatmul.mubr.bf16.gmra.mrb[0].mxu0 %v977
          %v1451 = vpop.f32.mrb[0].mxu0
          %v1452 = vadd.f32 %v740, %v1451
          %v1453 = vpop.f32.mrb[0].mxu0
          %v1454 = vadd.f32 %v744, %v1453
          %v1455 = vpop.f32.mrb[0].mxu0
          %v1456 = vadd.f32 %v740, %v1455
          %v1457 = vpop.f32.mrb[0].mxu0
          %v1458 = vadd.f32 %v744, %v1457
          %1459 = vmatprep.mubr.bf16.mxu0 %v980
          %1460 = vmatmul.mubr.bf16.gmra.mrb[0].mxu0 %v979
          %v1461 = vpop.f32.mrb[0].mxu0
          %v1462 = vadd.f32 %v740, %v1461
          %v1463 = vpop.f32.mrb[0].mxu0
          %v1464 = vadd.f32 %v744, %v1463
          %v1465 = vpop.f32.mrb[0].mxu0
          %v1466 = vadd.f32 %v740, %v1465
          %v1467 = vpop.f32.mrb[0].mxu0
          %v1468 = vadd.f32 %v744, %v1467
          %1469 = vmatprep.mubr.bf16.mxu0 %v982
          %1470 = vmatmul.mubr.bf16.gmra.mrb[0].mxu0 %v981
          %v1471 = vpop.f32.mrb[0].mxu0
          %v1472 = vadd.f32 %v740, %v1471
          %v1473 = vpop.f32.mrb[0].mxu0
          %v1474 = vadd.f32 %v744, %v1473
          %v1475 = vpop.f32.mrb[0].mxu0
          %v1476 = vadd.f32 %v740, %v1475
          %v1477 = vpop.f32.mrb[0].mxu0
          %v1478 = vadd.f32 %v744, %v1477
          %1479 = vmatprep.mubr.bf16.mxu0 %v984
          %1480 = vmatmul.mubr.bf16.gmra.mrb[0].mxu0 %v983
          %v1481 = vpop.f32.mrb[0].mxu0
          %v1482 = vadd.f32 %v740, %v1481
          %v1483 = vpop.f32.mrb[0].mxu0
          %v1484 = vadd.f32 %v744, %v1483
          %v1485 = vpop.f32.mrb[0].mxu0
          %v1486 = vadd.f32 %v740, %v1485
          %v1487 = vpop.f32.mrb[0].mxu0
          %v1488 = vadd.f32 %v744, %v1487
          %1489 = vmatprep.mubr.bf16.mxu0 %v986
          %1490 = vmatmul.mubr.bf16.gmra.mrb[0].mxu0 %v985
          %v1491 = vpop.f32.mrb[0].mxu0
          %v1492 = vadd.f32 %v740, %v1491
          %v1493 = vpop.f32.mrb[0].mxu0
          %v1494 = vadd.f32 %v744, %v1493
          %v1495 = vpop.f32.mrb[0].mxu0
          %v1496 = vadd.f32 %v740, %v1495
          %v1497 = vpop.f32.mrb[0].mxu0
          %v1498 = vadd.f32 %v744, %v1497
          %1499 = vmatprep.mubr.bf16.mxu0 %v988
          %1500 = vmatmul.mubr.bf16.gmra.mrb[0].mxu0 %v987
          %v1501 = vpop.f32.mrb[0].mxu0
          %v1502 = vadd.f32 %v740, %v1501
          %v1503 = vpop.f32.mrb[0].mxu0
          %v1504 = vadd.f32 %v744, %v1503
          %v1505 = vpop.f32.mrb[0].mxu0
          %v1506 = vadd.f32 %v740, %v1505
          %v1507 = vpop.f32.mrb[0].mxu0
          %v1508 = vadd.f32 %v744, %v1507
          %1509 = vmatprep.mubr.bf16.mxu0 %v990
          %1510 = vmatmul.mubr.bf16.gmra.mrb[0].mxu0 %v989
          %v1511 = vpop.f32.mrb[0].mxu0
          %v1512 = vadd.f32 %v740, %v1511
          %v1513 = vpop.f32.mrb[0].mxu0
          %v1514 = vadd.f32 %v744, %v1513
          %v1515 = vpop.f32.mrb[0].mxu0
          %v1516 = vadd.f32 %v740, %v1515
          %v1517 = vpop.f32.mrb[0].mxu0
          %v1518 = vadd.f32 %v744, %v1517
          %1519 = vmatprep.mubr.bf16.mxu0 %v992
          %1520 = vmatmul.mubr.bf16.gmra.mrb[0].mxu0 %v991
          %v1521 = vpop.f32.mrb[0].mxu0
          %v1522 = vadd.f32 %v740, %v1521
          %v1523 = vpop.f32.mrb[0].mxu0
          %v1524 = vadd.f32 %v744, %v1523
          %v1525 = vpop.f32.mrb[0].mxu0
          %v1526 = vadd.f32 %v740, %v1525
          %v1527 = vpop.f32.mrb[0].mxu0
          %v1528 = vadd.f32 %v744, %v1527
          %1529 = vmatprep.mubr.bf16.mxu0 %v994
          %1530 = vmatmul.mubr.bf16.gmra.mrb[0].mxu0 %v993
          %v1531 = vpop.f32.mrb[0].mxu0
          %v1532 = vadd.f32 %v740, %v1531
          %v1533 = vpop.f32.mrb[0].mxu0
          %v1534 = vadd.f32 %v744, %v1533
          %v1535 = vpop.f32.mrb[0].mxu0
          %v1536 = vadd.f32 %v740, %v1535
          %v1537 = vpop.f32.mrb[0].mxu0
          %v1538 = vadd.f32 %v744, %v1537
          %1539 = vmatprep.mubr.bf16.mxu0 %v996
          %1540 = vmatmul.mubr.bf16.gmra.mrb[0].mxu0 %v995
          %v1541 = vpop.f32.mrb[0].mxu0
          %v1542 = vadd.f32 %v740, %v1541
          %v1543 = vpop.f32.mrb[0].mxu0
          %v1544 = vadd.f32 %v744, %v1543
          %v1545 = vpop.f32.mrb[0].mxu0
          %v1546 = vadd.f32 %v740, %v1545
          %v1547 = vpop.f32.mrb[0].mxu0
          %v1548 = vadd.f32 %v744, %v1547
          %1549 = vmatprep.mubr.bf16.mxu0 %v998
          %1550 = vmatmul.mubr.bf16.gmra.mrb[0].mxu0 %v997
          %v1551 = vpop.f32.mrb[0].mxu0
          %v1552 = vadd.f32 %v740, %v1551
          %v1553 = vpop.f32.mrb[0].mxu0
          %v1554 = vadd.f32 %v744, %v1553
          %v1555 = vpop.f32.mrb[0].mxu0
          %v1556 = vadd.f32 %v740, %v1555
          %v1557 = vpop.f32.mrb[0].mxu0
          %v1558 = vadd.f32 %v744, %v1557
          %1559 = vmatprep.mubr.bf16.mxu0 %v1000
          %1560 = vmatmul.mubr.bf16.gmra.mrb[0].mxu0 %v999
          %v1561 = vpop.f32.mrb[0].mxu0
          %v1562 = vadd.f32 %v740, %v1561
          %v1563 = vpop.f32.mrb[0].mxu0
          %v1564 = vadd.f32 %v744, %v1563
          %v1565 = vpop.f32.mrb[0].mxu0
          %v1566 = vadd.f32 %v740, %v1565
          %v1567 = vpop.f32.mrb[0].mxu0
          %v1568 = vadd.f32 %v744, %v1567
          %1569 = vmatprep.mubr.bf16.mxu0 %v1002
          %1570 = vmatmul.mubr.bf16.gmra.mrb[0].mxu0 %v1001
          %v1571 = vpop.f32.mrb[0].mxu0
          %v1572 = vadd.f32 %v740, %v1571
          %v1573 = vpop.f32.mrb[0].mxu0
          %v1574 = vadd.f32 %v744, %v1573
          %v1575 = vpop.f32.mrb[0].mxu0
          %v1576 = vadd.f32 %v740, %v1575
          %v1577 = vpop.f32.mrb[0].mxu0
          %v1578 = vadd.f32 %v744, %v1577
          %1579 = vdwg.mxu0
          %v1580 = vld [vmem:[#allocation15] sm:$0xff]
          %v1581 = vld [vmem:[#allocation15 + $0x8] sm:$0xff]
          %v1582 = vld [vmem:[#allocation15 + $0x10] sm:$0xff]
          %v1583 = vld [vmem:[#allocation15 + $0x18] sm:$0xff]
          %v1584 = vld [vmem:[#allocation15 + $0x20] sm:$0xff]
          %v1585 = vld [vmem:[#allocation15 + $0x28] sm:$0xff]
          %v1586 = vld [vmem:[#allocation15 + $0x30] sm:$0xff]
          %v1587 = vld [vmem:[#allocation15 + $0x38] sm:$0xff]
          %v1588 = vld [vmem:[#allocation15 + $0x40] sm:$0xff]
          %v1589 = vld [vmem:[#allocation15 + $0x48] sm:$0xff]
          %v1590 = vld [vmem:[#allocation15 + $0x50] sm:$0xff]
          %v1591 = vld [vmem:[#allocation15 + $0x58] sm:$0xff]
          %v1592 = vld [vmem:[#allocation15 + $0x60] sm:$0xff]
          %v1593 = vld [vmem:[#allocation15 + $0x68] sm:$0xff]
          %v1594 = vld [vmem:[#allocation15 + $0x70] sm:$0xff]
          %v1595 = vld [vmem:[#allocation15 + $0x78] sm:$0xff]
          %v1596 = vld [vmem:[#allocation15 + $0x80] sm:$0xff]
          %v1597 = vld [vmem:[#allocation15 + $0x88] sm:$0xff]
          %v1598 = vld [vmem:[#allocation15 + $0x90] sm:$0xff]
          %v1599 = vld [vmem:[#allocation15 + $0x98] sm:$0xff]
          %v1600 = vld [vmem:[#allocation15 + $0xa0] sm:$0xff]
          %v1601 = vld [vmem:[#allocation15 + $0xa8] sm:$0xff]
          %v1602 = vld [vmem:[#allocation15 + $0xb0] sm:$0xff]
          %v1603 = vld [vmem:[#allocation15 + $0xb8] sm:$0xff]
          %v1604 = vld [vmem:[#allocation15 + $0xc0] sm:$0xff]
          %v1605 = vld [vmem:[#allocation15 + $0xc8] sm:$0xff]
          %v1606 = vld [vmem:[#allocation15 + $0xd0] sm:$0xff]
          %v1607 = vld [vmem:[#allocation15 + $0xd8] sm:$0xff]
          %v1608 = vld [vmem:[#allocation15 + $0xe0] sm:$0xff]
          %v1609 = vld [vmem:[#allocation15 + $0xe8] sm:$0xff]
          %v1610 = vld [vmem:[#allocation15 + $0xf0] sm:$0xff]
          %v1611 = vld [vmem:[#allocation15 + $0xf8] sm:$0xff]
          %v1612 = vld [vmem:[%s9] sm:$0x3]
          %v1614 = vlaneseq
          %v1615 = vshrl.u32 %v1614, 7
          %v1616 = vsub.s32 0, %v1615
          %v1617 = vrot.slane %v1612, %v1616
          %v1618 = vlaneseq
          %v1619 = vshrl.u32 %v1618, 7
          %v1620 = vsub.s32 1, %v1619
          %v1621 = vrot.slane %v1612, %v1620
          %v1688 = vunpack.c.l.b16 %v639
          %v1689 = vunpack.c.h.b16 %v639
          %v1690 = vunpack.c.l.b16 %v640
          %v1691 = vunpack.c.h.b16 %v640
          %v1692 = vunpack.c.l.b16 %v641
          %v1693 = vunpack.c.h.b16 %v641
          %v1694 = vunpack.c.l.b16 %v642
          %v1695 = vunpack.c.h.b16 %v642
          %v1696 = vunpack.c.l.b16 %v643
          %v1697 = vunpack.c.h.b16 %v643
          %v1698 = vunpack.c.l.b16 %v644
          %v1699 = vunpack.c.h.b16 %v644
          %v1700 = vunpack.c.l.b16 %v645
          %v1701 = vunpack.c.h.b16 %v645
          %v1702 = vunpack.c.l.b16 %v646
          %v1703 = vunpack.c.h.b16 %v646
          %v1704 = vunpack.c.l.b16 %v647
          %v1705 = vunpack.c.h.b16 %v647
          %v1706 = vunpack.c.l.b16 %v648
          %v1707 = vunpack.c.h.b16 %v648
          %v1708 = vunpack.c.l.b16 %v649
          %v1709 = vunpack.c.h.b16 %v649
          %v1710 = vunpack.c.l.b16 %v650
          %v1711 = vunpack.c.h.b16 %v650
          %v1712 = vunpack.c.l.b16 %v651
          %v1713 = vunpack.c.h.b16 %v651
          %v1714 = vunpack.c.l.b16 %v652
          %v1715 = vunpack.c.h.b16 %v652
          %v1716 = vunpack.c.l.b16 %v653
          %v1717 = vunpack.c.h.b16 %v653
          %v1718 = vunpack.c.l.b16 %v654
          %v1719 = vunpack.c.h.b16 %v654
          %v1720 = vunpack.c.l.b16 %v655
          %v1721 = vunpack.c.h.b16 %v655
          %v1722 = vunpack.c.l.b16 %v656
          %v1723 = vunpack.c.h.b16 %v656
          %v1724 = vunpack.c.l.b16 %v657
          %v1725 = vunpack.c.h.b16 %v657
          %v1726 = vunpack.c.l.b16 %v658
          %v1727 = vunpack.c.h.b16 %v658
          %v1728 = vunpack.c.l.b16 %v659
          %v1729 = vunpack.c.h.b16 %v659
          %v1730 = vunpack.c.l.b16 %v660
          %v1731 = vunpack.c.h.b16 %v660
          %v1732 = vunpack.c.l.b16 %v661
          %v1733 = vunpack.c.h.b16 %v661
          %v1734 = vunpack.c.l.b16 %v662
          %v1735 = vunpack.c.h.b16 %v662
          %v1736 = vunpack.c.l.b16 %v663
          %v1737 = vunpack.c.h.b16 %v663
          %v1738 = vunpack.c.l.b16 %v664
          %v1739 = vunpack.c.h.b16 %v664
          %v1740 = vunpack.c.l.b16 %v665
          %v1741 = vunpack.c.h.b16 %v665
          %v1742 = vunpack.c.l.b16 %v666
          %v1743 = vunpack.c.h.b16 %v666
          %v1744 = vunpack.c.l.b16 %v667
          %v1745 = vunpack.c.h.b16 %v667
          %v1746 = vunpack.c.l.b16 %v668
          %v1747 = vunpack.c.h.b16 %v668
          %v1748 = vunpack.c.l.b16 %v669
          %v1749 = vunpack.c.h.b16 %v669
          %v1750 = vunpack.c.l.b16 %v670
          %v1751 = vunpack.c.h.b16 %v670
          %v1752 = vunpack.c.l.b16 %v671
          %v1753 = vunpack.c.h.b16 %v671
          %v1754 = vunpack.c.l.b16 %v672
          %v1755 = vunpack.c.h.b16 %v672
          %v1756 = vunpack.c.l.b16 %v673
          %v1757 = vunpack.c.h.b16 %v673
          %v1758 = vunpack.c.l.b16 %v674
          %v1759 = vunpack.c.h.b16 %v674
          %v1760 = vunpack.c.l.b16 %v675
          %v1761 = vunpack.c.h.b16 %v675
          %v1762 = vunpack.c.l.b16 %v676
          %v1763 = vunpack.c.h.b16 %v676
          %v1764 = vunpack.c.l.b16 %v677
          %v1765 = vunpack.c.h.b16 %v677
          %v1766 = vunpack.c.l.b16 %v678
          %v1767 = vunpack.c.h.b16 %v678
          %v1768 = vunpack.c.l.b16 %v679
          %v1769 = vunpack.c.h.b16 %v679
          %v1770 = vunpack.c.l.b16 %v680
          %v1771 = vunpack.c.h.b16 %v680
          %v1772 = vunpack.c.l.b16 %v681
          %v1773 = vunpack.c.h.b16 %v681
          %v1774 = vunpack.c.l.b16 %v682
          %v1775 = vunpack.c.h.b16 %v682
          %v1776 = vunpack.c.l.b16 %v683
          %v1777 = vunpack.c.h.b16 %v683
          %v1778 = vunpack.c.l.b16 %v684
          %v1779 = vunpack.c.h.b16 %v684
          %v1780 = vunpack.c.l.b16 %v685
          %v1781 = vunpack.c.h.b16 %v685
          %v1782 = vunpack.c.l.b16 %v686
          %v1783 = vunpack.c.h.b16 %v686
          %v1784 = vunpack.c.l.b16 %v687
          %v1785 = vunpack.c.h.b16 %v687
          %v1786 = vunpack.c.l.b16 %v688
          %v1787 = vunpack.c.h.b16 %v688
          %v1788 = vunpack.c.l.b16 %v689
          %v1789 = vunpack.c.h.b16 %v689
          %v1790 = vunpack.c.l.b16 %v690
          %v1791 = vunpack.c.h.b16 %v690
          %v1792 = vunpack.c.l.b16 %v691
          %v1793 = vunpack.c.h.b16 %v691
          %v1794 = vunpack.c.l.b16 %v692
          %v1795 = vunpack.c.h.b16 %v692
          %v1796 = vunpack.c.l.b16 %v693
          %v1797 = vunpack.c.h.b16 %v693
          %v1798 = vunpack.c.l.b16 %v694
          %v1799 = vunpack.c.h.b16 %v694
          %v1800 = vunpack.c.l.b16 %v695
          %v1801 = vunpack.c.h.b16 %v695
          %v1802 = vunpack.c.l.b16 %v696
          %v1803 = vunpack.c.h.b16 %v696
          %v1804 = vunpack.c.l.b16 %v697
          %v1805 = vunpack.c.h.b16 %v697
          %v1806 = vunpack.c.l.b16 %v698
          %v1807 = vunpack.c.h.b16 %v698
          %v1808 = vunpack.c.l.b16 %v699
          %v1809 = vunpack.c.h.b16 %v699
          %v1810 = vunpack.c.l.b16 %v700
          %v1811 = vunpack.c.h.b16 %v700
          %v1812 = vunpack.c.l.b16 %v701
          %v1813 = vunpack.c.h.b16 %v701
          %v1814 = vunpack.c.l.b16 %v702
          %v1815 = vunpack.c.h.b16 %v702
          %v1816 = vpack.c.b16 %v1690, %v1688
          %v1817 = vpack.c.b16 %v1691, %v1689
          %v1818 = vpack.c.b16 %v1694, %v1692
          %v1819 = vpack.c.b16 %v1695, %v1693
          %v1820 = vpack.c.b16 %v1698, %v1696
          %v1821 = vpack.c.b16 %v1699, %v1697
          %v1822 = vpack.c.b16 %v1702, %v1700
          %v1823 = vpack.c.b16 %v1703, %v1701
          %v1824 = vpack.c.b16 %v1706, %v1704
          %v1825 = vpack.c.b16 %v1707, %v1705
          %v1826 = vpack.c.b16 %v1710, %v1708
          %v1827 = vpack.c.b16 %v1711, %v1709
          %v1828 = vpack.c.b16 %v1714, %v1712
          %v1829 = vpack.c.b16 %v1715, %v1713
          %v1830 = vpack.c.b16 %v1718, %v1716
          %v1831 = vpack.c.b16 %v1719, %v1717
          %v1832 = vpack.c.b16 %v1722, %v1720
          %v1833 = vpack.c.b16 %v1723, %v1721
          %v1834 = vpack.c.b16 %v1726, %v1724
          %v1835 = vpack.c.b16 %v1727, %v1725
          %v1836 = vpack.c.b16 %v1730, %v1728
          %v1837 = vpack.c.b16 %v1731, %v1729
          %v1838 = vpack.c.b16 %v1734, %v1732
          %v1839 = vpack.c.b16 %v1735, %v1733
          %v1840 = vpack.c.b16 %v1738, %v1736
          %v1841 = vpack.c.b16 %v1739, %v1737
          %v1842 = vpack.c.b16 %v1742, %v1740
          %v1843 = vpack.c.b16 %v1743, %v1741
          %v1844 = vpack.c.b16 %v1746, %v1744
          %v1845 = vpack.c.b16 %v1747, %v1745
          %v1846 = vpack.c.b16 %v1750, %v1748
          %v1847 = vpack.c.b16 %v1751, %v1749
          %v1848 = vpack.c.b16 %v1754, %v1752
          %v1849 = vpack.c.b16 %v1755, %v1753
          %v1850 = vpack.c.b16 %v1758, %v1756
          %v1851 = vpack.c.b16 %v1759, %v1757
          %v1852 = vpack.c.b16 %v1762, %v1760
          %v1853 = vpack.c.b16 %v1763, %v1761
          %v1854 = vpack.c.b16 %v1766, %v1764
          %v1855 = vpack.c.b16 %v1767, %v1765
          %v1856 = vpack.c.b16 %v1770, %v1768
          %v1857 = vpack.c.b16 %v1771, %v1769
          %v1858 = vpack.c.b16 %v1774, %v1772
          %v1859 = vpack.c.b16 %v1775, %v1773
          %v1860 = vpack.c.b16 %v1778, %v1776
          %v1861 = vpack.c.b16 %v1779, %v1777
          %v1862 = vpack.c.b16 %v1782, %v1780
          %v1863 = vpack.c.b16 %v1783, %v1781
          %v1864 = vpack.c.b16 %v1786, %v1784
          %v1865 = vpack.c.b16 %v1787, %v1785
          %v1866 = vpack.c.b16 %v1790, %v1788
          %v1867 = vpack.c.b16 %v1791, %v1789
          %v1868 = vpack.c.b16 %v1794, %v1792
          %v1869 = vpack.c.b16 %v1795, %v1793
          %v1870 = vpack.c.b16 %v1798, %v1796
          %v1871 = vpack.c.b16 %v1799, %v1797
          %v1872 = vpack.c.b16 %v1802, %v1800
          %v1873 = vpack.c.b16 %v1803, %v1801
          %v1874 = vpack.c.b16 %v1806, %v1804
          %v1875 = vpack.c.b16 %v1807, %v1805
          %v1876 = vpack.c.b16 %v1810, %v1808
          %v1877 = vpack.c.b16 %v1811, %v1809
          %v1878 = vpack.c.b16 %v1814, %v1812
          %v1879 = vpack.c.b16 %v1815, %v1813
          %v1976 = vunpack.c.l.b16 %v1580
          %v1977 = vunpack.c.h.b16 %v1580
          %v1978 = vunpack.c.l.b16 %v1581
          %v1979 = vunpack.c.h.b16 %v1581
          %v1980 = vunpack.c.l.b16 %v1582
          %v1981 = vunpack.c.h.b16 %v1582
          %v1982 = vunpack.c.l.b16 %v1583
          %v1983 = vunpack.c.h.b16 %v1583
          %v1984 = vunpack.c.l.b16 %v1584
          %v1985 = vunpack.c.h.b16 %v1584
          %v1986 = vunpack.c.l.b16 %v1585
          %v1987 = vunpack.c.h.b16 %v1585
          %v1988 = vunpack.c.l.b16 %v1586
          %v1989 = vunpack.c.h.b16 %v1586
          %v1990 = vunpack.c.l.b16 %v1587
          %v1991 = vunpack.c.h.b16 %v1587
          %v1992 = vunpack.c.l.b16 %v1588
          %v1993 = vunpack.c.h.b16 %v1588
          %v1994 = vunpack.c.l.b16 %v1589
          %v1995 = vunpack.c.h.b16 %v1589
          %v1996 = vunpack.c.l.b16 %v1590
          %v1997 = vunpack.c.h.b16 %v1590
          %v1998 = vunpack.c.l.b16 %v1591
          %v1999 = vunpack.c.h.b16 %v1591
          %v2000 = vunpack.c.l.b16 %v1592
          %v2001 = vunpack.c.h.b16 %v1592
          %v2002 = vunpack.c.l.b16 %v1593
          %v2003 = vunpack.c.h.b16 %v1593
          %v2004 = vunpack.c.l.b16 %v1594
          %v2005 = vunpack.c.h.b16 %v1594
          %v2006 = vunpack.c.l.b16 %v1595
          %v2007 = vunpack.c.h.b16 %v1595
          %v2008 = vunpack.c.l.b16 %v1596
          %v2009 = vunpack.c.h.b16 %v1596
          %v2010 = vunpack.c.l.b16 %v1597
          %v2011 = vunpack.c.h.b16 %v1597
          %v2012 = vunpack.c.l.b16 %v1598
          %v2013 = vunpack.c.h.b16 %v1598
          %v2014 = vunpack.c.l.b16 %v1599
          %v2015 = vunpack.c.h.b16 %v1599
          %v2016 = vunpack.c.l.b16 %v1600
          %v2017 = vunpack.c.h.b16 %v1600
          %v2018 = vunpack.c.l.b16 %v1601
          %v2019 = vunpack.c.h.b16 %v1601
          %v2020 = vunpack.c.l.b16 %v1602
          %v2021 = vunpack.c.h.b16 %v1602
          %v2022 = vunpack.c.l.b16 %v1603
          %v2023 = vunpack.c.h.b16 %v1603
          %v2024 = vunpack.c.l.b16 %v1604
          %v2025 = vunpack.c.h.b16 %v1604
          %v2026 = vunpack.c.l.b16 %v1605
          %v2027 = vunpack.c.h.b16 %v1605
          %v2028 = vunpack.c.l.b16 %v1606
          %v2029 = vunpack.c.h.b16 %v1606
          %v2030 = vunpack.c.l.b16 %v1607
          %v2031 = vunpack.c.h.b16 %v1607
          %v2032 = vunpack.c.l.b16 %v1608
          %v2033 = vunpack.c.h.b16 %v1608
          %v2034 = vunpack.c.l.b16 %v1609
          %v2035 = vunpack.c.h.b16 %v1609
          %v2036 = vunpack.c.l.b16 %v1610
          %v2037 = vunpack.c.h.b16 %v1610
          %v2038 = vunpack.c.l.b16 %v1611
          %v2039 = vunpack.c.h.b16 %v1611
          %v2040 = vpack.c.b16 %v1978, %v1976
          %v2041 = vpack.c.b16 %v1979, %v1977
          %v2042 = vpack.c.b16 %v1982, %v1980
          %v2043 = vpack.c.b16 %v1983, %v1981
          %v2044 = vpack.c.b16 %v1986, %v1984
          %v2045 = vpack.c.b16 %v1987, %v1985
          %v2046 = vpack.c.b16 %v1990, %v1988
          %v2047 = vpack.c.b16 %v1991, %v1989
          %v2048 = vpack.c.b16 %v1994, %v1992
          %v2049 = vpack.c.b16 %v1995, %v1993
          %v2050 = vpack.c.b16 %v1998, %v1996
          %v2051 = vpack.c.b16 %v1999, %v1997
          %v2052 = vpack.c.b16 %v2002, %v2000
          %v2053 = vpack.c.b16 %v2003, %v2001
          %v2054 = vpack.c.b16 %v2006, %v2004
          %v2055 = vpack.c.b16 %v2007, %v2005
          %v2056 = vpack.c.b16 %v2010, %v2008
          %v2057 = vpack.c.b16 %v2011, %v2009
          %v2058 = vpack.c.b16 %v2014, %v2012
          %v2059 = vpack.c.b16 %v2015, %v2013
          %v2060 = vpack.c.b16 %v2018, %v2016
          %v2061 = vpack.c.b16 %v2019, %v2017
          %v2062 = vpack.c.b16 %v2022, %v2020
          %v2063 = vpack.c.b16 %v2023, %v2021
          %v2064 = vpack.c.b16 %v2026, %v2024
          %v2065 = vpack.c.b16 %v2027, %v2025
          %v2066 = vpack.c.b16 %v2030, %v2028
          %v2067 = vpack.c.b16 %v2031, %v2029
          %v2068 = vpack.c.b16 %v2034, %v2032
          %v2069 = vpack.c.b16 %v2035, %v2033
          %v2070 = vpack.c.b16 %v2038, %v2036
          %v2071 = vpack.c.b16 %v2039, %v2037
          %2104 = vmatprep.subr.bf16.mxu0 %v2041
          %2105 = vmatpush1.bf16.msra.mxu0 %v2040
          %2106 = vmatprep.subr.bf16.mxu0 %v2043
          %2107 = vmatpush1.bf16.msra.mxu0 %v2042
          %2108 = vmatprep.subr.bf16.mxu0 %v2045
          %2109 = vmatpush1.bf16.msra.mxu0 %v2044
          %2110 = vmatprep.subr.bf16.mxu0 %v2047
          %2111 = vmatpush1.bf16.msra.mxu0 %v2046
          %2112 = vmatprep.subr.bf16.mxu0 %v2049
          %2113 = vmatpush1.bf16.msra.mxu0 %v2048
          %2114 = vmatprep.subr.bf16.mxu0 %v2051
          %2115 = vmatpush1.bf16.msra.mxu0 %v2050
          %2116 = vmatprep.subr.bf16.mxu0 %v2053
          %2117 = vmatpush1.bf16.msra.mxu0 %v2052
          %2118 = vmatprep.subr.bf16.mxu0 %v2055
          %2119 = vmatpush1.bf16.msra.mxu0 %v2054
          %2120 = vmatprep.subr.bf16.mxu0 %v2057
          %2121 = vmatpush1.bf16.msra.mxu0 %v2056
          %2122 = vmatprep.subr.bf16.mxu0 %v2059
          %2123 = vmatpush1.bf16.msra.mxu0 %v2058
          %2124 = vmatprep.subr.bf16.mxu0 %v2061
          %2125 = vmatpush1.bf16.msra.mxu0 %v2060
          %2126 = vmatprep.subr.bf16.mxu0 %v2063
          %2127 = vmatpush1.bf16.msra.mxu0 %v2062
          %2128 = vmatprep.subr.bf16.mxu0 %v2065
          %2129 = vmatpush1.bf16.msra.mxu0 %v2064
          %2130 = vmatprep.subr.bf16.mxu0 %v2067
          %2131 = vmatpush1.bf16.msra.mxu0 %v2066
          %2132 = vmatprep.subr.bf16.mxu0 %v2069
          %2133 = vmatpush1.bf16.msra.mxu0 %v2068
          %2134 = vmatprep.subr.bf16.mxu0 %v2071
          %2135 = vmatpush1.bf16.msra.mxu0 %v2070
          %2136 = vmatprep.mubr.bf16.mxu0 %v1817
          %2137 = vmatmul.mubr.bf16.gmra.mrb[0].mxu0 %v1816
          %v2138 = vpop.f32.mrb[0].mxu0
          %v2139 = vadd.f32 %v1617, %v2138
          %v2140 = vpop.f32.mrb[0].mxu0
          %v2141 = vadd.f32 %v1621, %v2140
          %v2142 = vpop.f32.mrb[0].mxu0
          %v2143 = vadd.f32 %v1617, %v2142
          %v2144 = vpop.f32.mrb[0].mxu0
          %v2145 = vadd.f32 %v1621, %v2144
          %2146 = vmatprep.mubr.bf16.mxu0 %v1819
          %2147 = vmatmul.mubr.bf16.gmra.mrb[0].mxu0 %v1818
          %v2148 = vpop.f32.mrb[0].mxu0
          %v2149 = vadd.f32 %v1617, %v2148
          %v2150 = vpop.f32.mrb[0].mxu0
          %v2151 = vadd.f32 %v1621, %v2150
          %v2152 = vpop.f32.mrb[0].mxu0
          %v2153 = vadd.f32 %v1617, %v2152
          %v2154 = vpop.f32.mrb[0].mxu0
          %v2155 = vadd.f32 %v1621, %v2154
          %2156 = vmatprep.mubr.bf16.mxu0 %v1821
          %2157 = vmatmul.mubr.bf16.gmra.mrb[0].mxu0 %v1820
          %v2158 = vpop.f32.mrb[0].mxu0
          %v2159 = vadd.f32 %v1617, %v2158
          %v2160 = vpop.f32.mrb[0].mxu0
          %v2161 = vadd.f32 %v1621, %v2160
          %v2162 = vpop.f32.mrb[0].mxu0
          %v2163 = vadd.f32 %v1617, %v2162
          %v2164 = vpop.f32.mrb[0].mxu0
          %v2165 = vadd.f32 %v1621, %v2164
          %2166 = vmatprep.mubr.bf16.mxu0 %v1823
          %2167 = vmatmul.mubr.bf16.gmra.mrb[0].mxu0 %v1822
          %v2168 = vpop.f32.mrb[0].mxu0
          %v2169 = vadd.f32 %v1617, %v2168
          %v2170 = vpop.f32.mrb[0].mxu0
          %v2171 = vadd.f32 %v1621, %v2170
          %v2172 = vpop.f32.mrb[0].mxu0
          %v2173 = vadd.f32 %v1617, %v2172
          %v2174 = vpop.f32.mrb[0].mxu0
          %v2175 = vadd.f32 %v1621, %v2174
          %2176 = vmatprep.mubr.bf16.mxu0 %v1825
          %2177 = vmatmul.mubr.bf16.gmra.mrb[0].mxu0 %v1824
          %v2178 = vpop.f32.mrb[0].mxu0
          %v2179 = vadd.f32 %v1617, %v2178
          %v2180 = vpop.f32.mrb[0].mxu0
          %v2181 = vadd.f32 %v1621, %v2180
          %v2182 = vpop.f32.mrb[0].mxu0
          %v2183 = vadd.f32 %v1617, %v2182
          %v2184 = vpop.f32.mrb[0].mxu0
          %v2185 = vadd.f32 %v1621, %v2184
          %2186 = vmatprep.mubr.bf16.mxu0 %v1827
          %2187 = vmatmul.mubr.bf16.gmra.mrb[0].mxu0 %v1826
          %v2188 = vpop.f32.mrb[0].mxu0
          %v2189 = vadd.f32 %v1617, %v2188
          %v2190 = vpop.f32.mrb[0].mxu0
          %v2191 = vadd.f32 %v1621, %v2190
          %v2192 = vpop.f32.mrb[0].mxu0
          %v2193 = vadd.f32 %v1617, %v2192
          %v2194 = vpop.f32.mrb[0].mxu0
          %v2195 = vadd.f32 %v1621, %v2194
          %2196 = vmatprep.mubr.bf16.mxu0 %v1829
          %2197 = vmatmul.mubr.bf16.gmra.mrb[0].mxu0 %v1828
          %v2198 = vpop.f32.mrb[0].mxu0
          %v2199 = vadd.f32 %v1617, %v2198
          %v2200 = vpop.f32.mrb[0].mxu0
          %v2201 = vadd.f32 %v1621, %v2200
          %v2202 = vpop.f32.mrb[0].mxu0
          %v2203 = vadd.f32 %v1617, %v2202
          %v2204 = vpop.f32.mrb[0].mxu0
          %v2205 = vadd.f32 %v1621, %v2204
          %2206 = vmatprep.mubr.bf16.mxu0 %v1831
          %2207 = vmatmul.mubr.bf16.gmra.mrb[0].mxu0 %v1830
          %v2208 = vpop.f32.mrb[0].mxu0
          %v2209 = vadd.f32 %v1617, %v2208
          %v2210 = vpop.f32.mrb[0].mxu0
          %v2211 = vadd.f32 %v1621, %v2210
          %v2212 = vpop.f32.mrb[0].mxu0
          %v2213 = vadd.f32 %v1617, %v2212
          %v2214 = vpop.f32.mrb[0].mxu0
          %v2215 = vadd.f32 %v1621, %v2214
          %2216 = vmatprep.mubr.bf16.mxu0 %v1833
          %2217 = vmatmul.mubr.bf16.gmra.mrb[0].mxu0 %v1832
          %v2218 = vpop.f32.mrb[0].mxu0
          %v2219 = vadd.f32 %v1617, %v2218
          %v2220 = vpop.f32.mrb[0].mxu0
          %v2221 = vadd.f32 %v1621, %v2220
          %v2222 = vpop.f32.mrb[0].mxu0
          %v2223 = vadd.f32 %v1617, %v2222
          %v2224 = vpop.f32.mrb[0].mxu0
          %v2225 = vadd.f32 %v1621, %v2224
          %2226 = vmatprep.mubr.bf16.mxu0 %v1835
          %2227 = vmatmul.mubr.bf16.gmra.mrb[0].mxu0 %v1834
          %v2228 = vpop.f32.mrb[0].mxu0
          %v2229 = vadd.f32 %v1617, %v2228
          %v2230 = vpop.f32.mrb[0].mxu0
          %v2231 = vadd.f32 %v1621, %v2230
          %v2232 = vpop.f32.mrb[0].mxu0
          %v2233 = vadd.f32 %v1617, %v2232
          %v2234 = vpop.f32.mrb[0].mxu0
          %v2235 = vadd.f32 %v1621, %v2234
          %2236 = vmatprep.mubr.bf16.mxu0 %v1837
          %2237 = vmatmul.mubr.bf16.gmra.mrb[0].mxu0 %v1836
          %v2238 = vpop.f32.mrb[0].mxu0
          %v2239 = vadd.f32 %v1617, %v2238
          %v2240 = vpop.f32.mrb[0].mxu0
          %v2241 = vadd.f32 %v1621, %v2240
          %v2242 = vpop.f32.mrb[0].mxu0
          %v2243 = vadd.f32 %v1617, %v2242
          %v2244 = vpop.f32.mrb[0].mxu0
          %v2245 = vadd.f32 %v1621, %v2244
          %2246 = vmatprep.mubr.bf16.mxu0 %v1839
          %2247 = vmatmul.mubr.bf16.gmra.mrb[0].mxu0 %v1838
          %v2248 = vpop.f32.mrb[0].mxu0
          %v2249 = vadd.f32 %v1617, %v2248
          %v2250 = vpop.f32.mrb[0].mxu0
          %v2251 = vadd.f32 %v1621, %v2250
          %v2252 = vpop.f32.mrb[0].mxu0
          %v2253 = vadd.f32 %v1617, %v2252
          %v2254 = vpop.f32.mrb[0].mxu0
          %v2255 = vadd.f32 %v1621, %v2254
          %2256 = vmatprep.mubr.bf16.mxu0 %v1841
          %2257 = vmatmul.mubr.bf16.gmra.mrb[0].mxu0 %v1840
          %v2258 = vpop.f32.mrb[0].mxu0
          %v2259 = vadd.f32 %v1617, %v2258
          %v2260 = vpop.f32.mrb[0].mxu0
          %v2261 = vadd.f32 %v1621, %v2260
          %v2262 = vpop.f32.mrb[0].mxu0
          %v2263 = vadd.f32 %v1617, %v2262
          %v2264 = vpop.f32.mrb[0].mxu0
          %v2265 = vadd.f32 %v1621, %v2264
          %2266 = vmatprep.mubr.bf16.mxu0 %v1843
          %2267 = vmatmul.mubr.bf16.gmra.mrb[0].mxu0 %v1842
          %v2268 = vpop.f32.mrb[0].mxu0
          %v2269 = vadd.f32 %v1617, %v2268
          %v2270 = vpop.f32.mrb[0].mxu0
          %v2271 = vadd.f32 %v1621, %v2270
          %v2272 = vpop.f32.mrb[0].mxu0
          %v2273 = vadd.f32 %v1617, %v2272
          %v2274 = vpop.f32.mrb[0].mxu0
          %v2275 = vadd.f32 %v1621, %v2274
          %2276 = vmatprep.mubr.bf16.mxu0 %v1845
          %2277 = vmatmul.mubr.bf16.gmra.mrb[0].mxu0 %v1844
          %v2278 = vpop.f32.mrb[0].mxu0
          %v2279 = vadd.f32 %v1617, %v2278
          %v2280 = vpop.f32.mrb[0].mxu0
          %v2281 = vadd.f32 %v1621, %v2280
          %v2282 = vpop.f32.mrb[0].mxu0
          %v2283 = vadd.f32 %v1617, %v2282
          %v2284 = vpop.f32.mrb[0].mxu0
          %v2285 = vadd.f32 %v1621, %v2284
          %2286 = vmatprep.mubr.bf16.mxu0 %v1847
          %2287 = vmatmul.mubr.bf16.gmra.mrb[0].mxu0 %v1846
          %v2288 = vpop.f32.mrb[0].mxu0
          %v2289 = vadd.f32 %v1617, %v2288
          %v2290 = vpop.f32.mrb[0].mxu0
          %v2291 = vadd.f32 %v1621, %v2290
          %v2292 = vpop.f32.mrb[0].mxu0
          %v2293 = vadd.f32 %v1617, %v2292
          %v2294 = vpop.f32.mrb[0].mxu0
          %v2295 = vadd.f32 %v1621, %v2294
          %2296 = vmatprep.mubr.bf16.mxu0 %v1849
          %2297 = vmatmul.mubr.bf16.gmra.mrb[0].mxu0 %v1848
          %v2298 = vpop.f32.mrb[0].mxu0
          %v2299 = vadd.f32 %v1617, %v2298
          %v2300 = vpop.f32.mrb[0].mxu0
          %v2301 = vadd.f32 %v1621, %v2300
          %v2302 = vpop.f32.mrb[0].mxu0
          %v2303 = vadd.f32 %v1617, %v2302
          %v2304 = vpop.f32.mrb[0].mxu0
          %v2305 = vadd.f32 %v1621, %v2304
          %2306 = vmatprep.mubr.bf16.mxu0 %v1851
          %2307 = vmatmul.mubr.bf16.gmra.mrb[0].mxu0 %v1850
          %v2308 = vpop.f32.mrb[0].mxu0
          %v2309 = vadd.f32 %v1617, %v2308
          %v2310 = vpop.f32.mrb[0].mxu0
          %v2311 = vadd.f32 %v1621, %v2310
          %v2312 = vpop.f32.mrb[0].mxu0
          %v2313 = vadd.f32 %v1617, %v2312
          %v2314 = vpop.f32.mrb[0].mxu0
          %v2315 = vadd.f32 %v1621, %v2314
          %2316 = vmatprep.mubr.bf16.mxu0 %v1853
          %2317 = vmatmul.mubr.bf16.gmra.mrb[0].mxu0 %v1852
          %v2318 = vpop.f32.mrb[0].mxu0
          %v2319 = vadd.f32 %v1617, %v2318
          %v2320 = vpop.f32.mrb[0].mxu0
          %v2321 = vadd.f32 %v1621, %v2320
          %v2322 = vpop.f32.mrb[0].mxu0
          %v2323 = vadd.f32 %v1617, %v2322
          %v2324 = vpop.f32.mrb[0].mxu0
          %v2325 = vadd.f32 %v1621, %v2324
          %2326 = vmatprep.mubr.bf16.mxu0 %v1855
          %2327 = vmatmul.mubr.bf16.gmra.mrb[0].mxu0 %v1854
          %v2328 = vpop.f32.mrb[0].mxu0
          %v2329 = vadd.f32 %v1617, %v2328
          %v2330 = vpop.f32.mrb[0].mxu0
          %v2331 = vadd.f32 %v1621, %v2330
          %v2332 = vpop.f32.mrb[0].mxu0
          %v2333 = vadd.f32 %v1617, %v2332
          %v2334 = vpop.f32.mrb[0].mxu0
          %v2335 = vadd.f32 %v1621, %v2334
          %2336 = vmatprep.mubr.bf16.mxu0 %v1857
          %2337 = vmatmul.mubr.bf16.gmra.mrb[0].mxu0 %v1856
          %v2338 = vpop.f32.mrb[0].mxu0
          %v2339 = vadd.f32 %v1617, %v2338
          %v2340 = vpop.f32.mrb[0].mxu0
          %v2341 = vadd.f32 %v1621, %v2340
          %v2342 = vpop.f32.mrb[0].mxu0
          %v2343 = vadd.f32 %v1617, %v2342
          %v2344 = vpop.f32.mrb[0].mxu0
          %v2345 = vadd.f32 %v1621, %v2344
          %2346 = vmatprep.mubr.bf16.mxu0 %v1859
          %2347 = vmatmul.mubr.bf16.gmra.mrb[0].mxu0 %v1858
          %v2348 = vpop.f32.mrb[0].mxu0
          %v2349 = vadd.f32 %v1617, %v2348
          %v2350 = vpop.f32.mrb[0].mxu0
          %v2351 = vadd.f32 %v1621, %v2350
          %v2352 = vpop.f32.mrb[0].mxu0
          %v2353 = vadd.f32 %v1617, %v2352
          %v2354 = vpop.f32.mrb[0].mxu0
          %v2355 = vadd.f32 %v1621, %v2354
          %2356 = vmatprep.mubr.bf16.mxu0 %v1861
          %2357 = vmatmul.mubr.bf16.gmra.mrb[0].mxu0 %v1860
          %v2358 = vpop.f32.mrb[0].mxu0
          %v2359 = vadd.f32 %v1617, %v2358
          %v2360 = vpop.f32.mrb[0].mxu0
          %v2361 = vadd.f32 %v1621, %v2360
          %v2362 = vpop.f32.mrb[0].mxu0
          %v2363 = vadd.f32 %v1617, %v2362
          %v2364 = vpop.f32.mrb[0].mxu0
          %v2365 = vadd.f32 %v1621, %v2364
          %2366 = vmatprep.mubr.bf16.mxu0 %v1863
          %2367 = vmatmul.mubr.bf16.gmra.mrb[0].mxu0 %v1862
          %v2368 = vpop.f32.mrb[0].mxu0
          %v2369 = vadd.f32 %v1617, %v2368
          %v2370 = vpop.f32.mrb[0].mxu0
          %v2371 = vadd.f32 %v1621, %v2370
          %v2372 = vpop.f32.mrb[0].mxu0
          %v2373 = vadd.f32 %v1617, %v2372
          %v2374 = vpop.f32.mrb[0].mxu0
          %v2375 = vadd.f32 %v1621, %v2374
          %2376 = vmatprep.mubr.bf16.mxu0 %v1865
          %2377 = vmatmul.mubr.bf16.gmra.mrb[0].mxu0 %v1864
          %v2378 = vpop.f32.mrb[0].mxu0
          %v2379 = vadd.f32 %v1617, %v2378
          %v2380 = vpop.f32.mrb[0].mxu0
          %v2381 = vadd.f32 %v1621, %v2380
          %v2382 = vpop.f32.mrb[0].mxu0
          %v2383 = vadd.f32 %v1617, %v2382
          %v2384 = vpop.f32.mrb[0].mxu0
          %v2385 = vadd.f32 %v1621, %v2384
          %2386 = vmatprep.mubr.bf16.mxu0 %v1867
          %2387 = vmatmul.mubr.bf16.gmra.mrb[0].mxu0 %v1866
          %v2388 = vpop.f32.mrb[0].mxu0
          %v2389 = vadd.f32 %v1617, %v2388
          %v2390 = vpop.f32.mrb[0].mxu0
          %v2391 = vadd.f32 %v1621, %v2390
          %v2392 = vpop.f32.mrb[0].mxu0
          %v2393 = vadd.f32 %v1617, %v2392
          %v2394 = vpop.f32.mrb[0].mxu0
          %v2395 = vadd.f32 %v1621, %v2394
          %2396 = vmatprep.mubr.bf16.mxu0 %v1869
          %2397 = vmatmul.mubr.bf16.gmra.mrb[0].mxu0 %v1868
          %v2398 = vpop.f32.mrb[0].mxu0
          %v2399 = vadd.f32 %v1617, %v2398
          %v2400 = vpop.f32.mrb[0].mxu0
          %v2401 = vadd.f32 %v1621, %v2400
          %v2402 = vpop.f32.mrb[0].mxu0
          %v2403 = vadd.f32 %v1617, %v2402
          %v2404 = vpop.f32.mrb[0].mxu0
          %v2405 = vadd.f32 %v1621, %v2404
          %2406 = vmatprep.mubr.bf16.mxu0 %v1871
          %2407 = vmatmul.mubr.bf16.gmra.mrb[0].mxu0 %v1870
          %v2408 = vpop.f32.mrb[0].mxu0
          %v2409 = vadd.f32 %v1617, %v2408
          %v2410 = vpop.f32.mrb[0].mxu0
          %v2411 = vadd.f32 %v1621, %v2410
          %v2412 = vpop.f32.mrb[0].mxu0
          %v2413 = vadd.f32 %v1617, %v2412
          %v2414 = vpop.f32.mrb[0].mxu0
          %v2415 = vadd.f32 %v1621, %v2414
          %2416 = vmatprep.mubr.bf16.mxu0 %v1873
          %2417 = vmatmul.mubr.bf16.gmra.mrb[0].mxu0 %v1872
          %v2418 = vpop.f32.mrb[0].mxu0
          %v2419 = vadd.f32 %v1617, %v2418
          %v2420 = vpop.f32.mrb[0].mxu0
          %v2421 = vadd.f32 %v1621, %v2420
          %v2422 = vpop.f32.mrb[0].mxu0
          %v2423 = vadd.f32 %v1617, %v2422
          %v2424 = vpop.f32.mrb[0].mxu0
          %v2425 = vadd.f32 %v1621, %v2424
          %2426 = vmatprep.mubr.bf16.mxu0 %v1875
          %2427 = vmatmul.mubr.bf16.gmra.mrb[0].mxu0 %v1874
          %v2428 = vpop.f32.mrb[0].mxu0
          %v2429 = vadd.f32 %v1617, %v2428
          %v2430 = vpop.f32.mrb[0].mxu0
          %v2431 = vadd.f32 %v1621, %v2430
          %v2432 = vpop.f32.mrb[0].mxu0
          %v2433 = vadd.f32 %v1617, %v2432
          %v2434 = vpop.f32.mrb[0].mxu0
          %v2435 = vadd.f32 %v1621, %v2434
          %2436 = vmatprep.mubr.bf16.mxu0 %v1877
          %2437 = vmatmul.mubr.bf16.gmra.mrb[0].mxu0 %v1876
          %v2438 = vpop.f32.mrb[0].mxu0
          %v2439 = vadd.f32 %v1617, %v2438
          %v2440 = vpop.f32.mrb[0].mxu0
          %v2441 = vadd.f32 %v1621, %v2440
          %v2442 = vpop.f32.mrb[0].mxu0
          %v2443 = vadd.f32 %v1617, %v2442
          %v2444 = vpop.f32.mrb[0].mxu0
          %v2445 = vadd.f32 %v1621, %v2444
          %2446 = vmatprep.mubr.bf16.mxu0 %v1879
          %2447 = vmatmul.mubr.bf16.gmra.mrb[0].mxu0 %v1878
          %v2448 = vpop.f32.mrb[0].mxu0
          %v2449 = vadd.f32 %v1617, %v2448
          %v2450 = vpop.f32.mrb[0].mxu0
          %v2451 = vadd.f32 %v1621, %v2450
          %v2452 = vpop.f32.mrb[0].mxu0
          %v2453 = vadd.f32 %v1617, %v2452
          %v2454 = vpop.f32.mrb[0].mxu0
          %v2455 = vadd.f32 %v1621, %v2454
          %2456 = vdwg.mxu0
          %2457 = vxpose.xlu0.b32.start [1/16] %v1262, 128
          %2458 = vxpose.xlu0.b32.cont [2/16] %v1266, 128
          %2459 = vxpose.xlu0.b32.cont [3/16] %v1272, 128
          %2460 = vxpose.xlu0.b32.cont [4/16] %v1276, 128
          %2461 = vxpose.xlu0.b32.cont [5/16] %v1282, 128
          %2462 = vxpose.xlu0.b32.cont [6/16] %v1286, 128
          %2463 = vxpose.xlu0.b32.cont [7/16] %v1292, 128
          %2464 = vxpose.xlu0.b32.cont [8/16] %v1296, 128
          %2465 = vxpose.xlu0.b32.cont [9/16] %v1302, 128
          %2466 = vxpose.xlu0.b32.cont [10/16] %v1306, 128
          %2467 = vxpose.xlu0.b32.cont [11/16] %v1312, 128
          %2468 = vxpose.xlu0.b32.cont [12/16] %v1316, 128
          %2469 = vxpose.xlu0.b32.cont [13/16] %v1322, 128
          %2470 = vxpose.xlu0.b32.cont [14/16] %v1326, 128
          %2471 = vxpose.xlu0.b32.cont [15/16] %v1332, 128
          %2472 = vxpose.xlu0.b32.end [16/16] %v1336, 128
          %v2473 = vpop.trf.xlu0
          %v2474 = vpop.trf.xlu0
          %v2475 = vpop.trf.xlu0
          %v2476 = vpop.trf.xlu0
          %v2477 = vpop.trf.xlu0
          %v2478 = vpop.trf.xlu0
          %v2479 = vpop.trf.xlu0
          %v2480 = vpop.trf.xlu0
          %v2481 = vpop.trf.xlu0
          %v2482 = vpop.trf.xlu0
          %v2483 = vpop.trf.xlu0
          %v2484 = vpop.trf.xlu0
          %v2485 = vpop.trf.xlu0
          %v2486 = vpop.trf.xlu0
          %v2487 = vpop.trf.xlu0
          %v2488 = vpop.trf.xlu0
          %2489 = vxpose.xlu0.b32.start [1/16] %v1264, 128
          %2490 = vxpose.xlu0.b32.cont [2/16] %v1268, 128
          %2491 = vxpose.xlu0.b32.cont [3/16] %v1274, 128
          %2492 = vxpose.xlu0.b32.cont [4/16] %v1278, 128
          %2493 = vxpose.xlu0.b32.cont [5/16] %v1284, 128
          %2494 = vxpose.xlu0.b32.cont [6/16] %v1288, 128
          %2495 = vxpose.xlu0.b32.cont [7/16] %v1294, 128
          %2496 = vxpose.xlu0.b32.cont [8/16] %v1298, 128
          %2497 = vxpose.xlu0.b32.cont [9/16] %v1304, 128
          %2498 = vxpose.xlu0.b32.cont [10/16] %v1308, 128
          %2499 = vxpose.xlu0.b32.cont [11/16] %v1314, 128
          %2500 = vxpose.xlu0.b32.cont [12/16] %v1318, 128
          %2501 = vxpose.xlu0.b32.cont [13/16] %v1324, 128
          %2502 = vxpose.xlu0.b32.cont [14/16] %v1328, 128
          %2503 = vxpose.xlu0.b32.cont [15/16] %v1334, 128
          %2504 = vxpose.xlu0.b32.end [16/16] %v1338, 128
          %v2505 = vpop.trf.xlu0
          %v2506 = vpop.trf.xlu0
          %v2507 = vpop.trf.xlu0
          %v2508 = vpop.trf.xlu0
          %v2509 = vpop.trf.xlu0
          %v2510 = vpop.trf.xlu0
          %v2511 = vpop.trf.xlu0
          %v2512 = vpop.trf.xlu0
          %v2513 = vpop.trf.xlu0
          %v2514 = vpop.trf.xlu0
          %v2515 = vpop.trf.xlu0
          %v2516 = vpop.trf.xlu0
          %v2517 = vpop.trf.xlu0
          %v2518 = vpop.trf.xlu0
          %v2519 = vpop.trf.xlu0
          %v2520 = vpop.trf.xlu0
          %2521 = vxpose.xlu0.b32.start [1/16] %v1342, 128
          %2522 = vxpose.xlu0.b32.cont [2/16] %v1346, 128
          %2523 = vxpose.xlu0.b32.cont [3/16] %v1352, 128
          %2524 = vxpose.xlu0.b32.cont [4/16] %v1356, 128
          %2525 = vxpose.xlu0.b32.cont [5/16] %v1362, 128
          %2526 = vxpose.xlu0.b32.cont [6/16] %v1366, 128
          %2527 = vxpose.xlu0.b32.cont [7/16] %v1372, 128
          %2528 = vxpose.xlu0.b32.cont [8/16] %v1376, 128
          %2529 = vxpose.xlu0.b32.cont [9/16] %v1382, 128
          %2530 = vxpose.xlu0.b32.cont [10/16] %v1386, 128
          %2531 = vxpose.xlu0.b32.cont [11/16] %v1392, 128
          %2532 = vxpose.xlu0.b32.cont [12/16] %v1396, 128
          %2533 = vxpose.xlu0.b32.cont [13/16] %v1402, 128
          %2534 = vxpose.xlu0.b32.cont [14/16] %v1406, 128
          %2535 = vxpose.xlu0.b32.cont [15/16] %v1412, 128
          %2536 = vxpose.xlu0.b32.end [16/16] %v1416, 128
          %v2537 = vpop.trf.xlu0
          %v2538 = vpop.trf.xlu0
          %v2539 = vpop.trf.xlu0
          %v2540 = vpop.trf.xlu0
          %v2541 = vpop.trf.xlu0
          %v2542 = vpop.trf.xlu0
          %v2543 = vpop.trf.xlu0
          %v2544 = vpop.trf.xlu0
          %v2545 = vpop.trf.xlu0
          %v2546 = vpop.trf.xlu0
          %v2547 = vpop.trf.xlu0
          %v2548 = vpop.trf.xlu0
          %v2549 = vpop.trf.xlu0
          %v2550 = vpop.trf.xlu0
          %v2551 = vpop.trf.xlu0
          %v2552 = vpop.trf.xlu0
          %2553 = vxpose.xlu0.b32.start [1/16] %v1344, 128
          %2554 = vxpose.xlu0.b32.cont [2/16] %v1348, 128
          %2555 = vxpose.xlu0.b32.cont [3/16] %v1354, 128
          %2556 = vxpose.xlu0.b32.cont [4/16] %v1358, 128
          %2557 = vxpose.xlu0.b32.cont [5/16] %v1364, 128
          %2558 = vxpose.xlu0.b32.cont [6/16] %v1368, 128
          %2559 = vxpose.xlu0.b32.cont [7/16] %v1374, 128
          %2560 = vxpose.xlu0.b32.cont [8/16] %v1378, 128
          %2561 = vxpose.xlu0.b32.cont [9/16] %v1384, 128
          %2562 = vxpose.xlu0.b32.cont [10/16] %v1388, 128
          %2563 = vxpose.xlu0.b32.cont [11/16] %v1394, 128
          %2564 = vxpose.xlu0.b32.cont [12/16] %v1398, 128
          %2565 = vxpose.xlu0.b32.cont [13/16] %v1404, 128
          %2566 = vxpose.xlu0.b32.cont [14/16] %v1408, 128
          %2567 = vxpose.xlu0.b32.cont [15/16] %v1414, 128
          %2568 = vxpose.xlu0.b32.end [16/16] %v1418, 128
          %v2569 = vpop.trf.xlu0
          %v2570 = vpop.trf.xlu0
          %v2571 = vpop.trf.xlu0
          %v2572 = vpop.trf.xlu0
          %v2573 = vpop.trf.xlu0
          %v2574 = vpop.trf.xlu0
          %v2575 = vpop.trf.xlu0
          %v2576 = vpop.trf.xlu0
          %v2577 = vpop.trf.xlu0
          %v2578 = vpop.trf.xlu0
          %v2579 = vpop.trf.xlu0
          %v2580 = vpop.trf.xlu0
          %v2581 = vpop.trf.xlu0
          %v2582 = vpop.trf.xlu0
          %v2583 = vpop.trf.xlu0
          %v2584 = vpop.trf.xlu0
          %2585 = vxpose.xlu0.b32.start [1/16] %v1422, 128
          %2586 = vxpose.xlu0.b32.cont [2/16] %v1426, 128
          %2587 = vxpose.xlu0.b32.cont [3/16] %v1432, 128
          %2588 = vxpose.xlu0.b32.cont [4/16] %v1436, 128
          %2589 = vxpose.xlu0.b32.cont [5/16] %v1442, 128
          %2590 = vxpose.xlu0.b32.cont [6/16] %v1446, 128
          %2591 = vxpose.xlu0.b32.cont [7/16] %v1452, 128
          %2592 = vxpose.xlu0.b32.cont [8/16] %v1456, 128
          %2593 = vxpose.xlu0.b32.cont [9/16] %v1462, 128
          %2594 = vxpose.xlu0.b32.cont [10/16] %v1466, 128
          %2595 = vxpose.xlu0.b32.cont [11/16] %v1472, 128
          %2596 = vxpose.xlu0.b32.cont [12/16] %v1476, 128
          %2597 = vxpose.xlu0.b32.cont [13/16] %v1482, 128
          %2598 = vxpose.xlu0.b32.cont [14/16] %v1486, 128
          %2599 = vxpose.xlu0.b32.cont [15/16] %v1492, 128
          %2600 = vxpose.xlu0.b32.end [16/16] %v1496, 128
          %v2601 = vpop.trf.xlu0
          %v2602 = vpop.trf.xlu0
          %v2603 = vpop.trf.xlu0
          %v2604 = vpop.trf.xlu0
          %v2605 = vpop.trf.xlu0
          %v2606 = vpop.trf.xlu0
          %v2607 = vpop.trf.xlu0
          %v2608 = vpop.trf.xlu0
          %v2609 = vpop.trf.xlu0
          %v2610 = vpop.trf.xlu0
          %v2611 = vpop.trf.xlu0
          %v2612 = vpop.trf.xlu0
          %v2613 = vpop.trf.xlu0
          %v2614 = vpop.trf.xlu0
          %v2615 = vpop.trf.xlu0
          %v2616 = vpop.trf.xlu0
          %2617 = vxpose.xlu0.b32.start [1/16] %v1424, 128
          %2618 = vxpose.xlu0.b32.cont [2/16] %v1428, 128
          %2619 = vxpose.xlu0.b32.cont [3/16] %v1434, 128
          %2620 = vxpose.xlu0.b32.cont [4/16] %v1438, 128
          %2621 = vxpose.xlu0.b32.cont [5/16] %v1444, 128
          %2622 = vxpose.xlu0.b32.cont [6/16] %v1448, 128
          %2623 = vxpose.xlu0.b32.cont [7/16] %v1454, 128
          %2624 = vxpose.xlu0.b32.cont [8/16] %v1458, 128
          %2625 = vxpose.xlu0.b32.cont [9/16] %v1464, 128
          %2626 = vxpose.xlu0.b32.cont [10/16] %v1468, 128
          %2627 = vxpose.xlu0.b32.cont [11/16] %v1474, 128
          %2628 = vxpose.xlu0.b32.cont [12/16] %v1478, 128
          %2629 = vxpose.xlu0.b32.cont [13/16] %v1484, 128
          %2630 = vxpose.xlu0.b32.cont [14/16] %v1488, 128
          %2631 = vxpose.xlu0.b32.cont [15/16] %v1494, 128
          %2632 = vxpose.xlu0.b32.end [16/16] %v1498, 128
          %v2633 = vpop.trf.xlu0
          %v2634 = vpop.trf.xlu0
          %v2635 = vpop.trf.xlu0
          %v2636 = vpop.trf.xlu0
          %v2637 = vpop.trf.xlu0
          %v2638 = vpop.trf.xlu0
          %v2639 = vpop.trf.xlu0
          %v2640 = vpop.trf.xlu0
          %v2641 = vpop.trf.xlu0
          %v2642 = vpop.trf.xlu0
          %v2643 = vpop.trf.xlu0
          %v2644 = vpop.trf.xlu0
          %v2645 = vpop.trf.xlu0
          %v2646 = vpop.trf.xlu0
          %v2647 = vpop.trf.xlu0
          %v2648 = vpop.trf.xlu0
          %2649 = vxpose.xlu0.b32.start [1/16] %v1502, 128
          %2650 = vxpose.xlu0.b32.cont [2/16] %v1506, 128
          %2651 = vxpose.xlu0.b32.cont [3/16] %v1512, 128
          %2652 = vxpose.xlu0.b32.cont [4/16] %v1516, 128
          %2653 = vxpose.xlu0.b32.cont [5/16] %v1522, 128
          %2654 = vxpose.xlu0.b32.cont [6/16] %v1526, 128
          %2655 = vxpose.xlu0.b32.cont [7/16] %v1532, 128
          %2656 = vxpose.xlu0.b32.cont [8/16] %v1536, 128
          %2657 = vxpose.xlu0.b32.cont [9/16] %v1542, 128
          %2658 = vxpose.xlu0.b32.cont [10/16] %v1546, 128
          %2659 = vxpose.xlu0.b32.cont [11/16] %v1552, 128
          %2660 = vxpose.xlu0.b32.cont [12/16] %v1556, 128
          %2661 = vxpose.xlu0.b32.cont [13/16] %v1562, 128
          %2662 = vxpose.xlu0.b32.cont [14/16] %v1566, 128
          %2663 = vxpose.xlu0.b32.cont [15/16] %v1572, 128
          %2664 = vxpose.xlu0.b32.end [16/16] %v1576, 128
          %v2665 = vpop.trf.xlu0
          %v2666 = vpop.trf.xlu0
          %v2667 = vpop.trf.xlu0
          %v2668 = vpop.trf.xlu0
          %v2669 = vpop.trf.xlu0
          %v2670 = vpop.trf.xlu0
          %v2671 = vpop.trf.xlu0
          %v2672 = vpop.trf.xlu0
          %v2673 = vpop.trf.xlu0
          %v2674 = vpop.trf.xlu0
          %v2675 = vpop.trf.xlu0
          %v2676 = vpop.trf.xlu0
          %v2677 = vpop.trf.xlu0
          %v2678 = vpop.trf.xlu0
          %v2679 = vpop.trf.xlu0
          %v2680 = vpop.trf.xlu0
          %2681 = vxpose.xlu0.b32.start [1/16] %v1504, 128
          %2682 = vxpose.xlu0.b32.cont [2/16] %v1508, 128
          %2683 = vxpose.xlu0.b32.cont [3/16] %v1514, 128
          %2684 = vxpose.xlu0.b32.cont [4/16] %v1518, 128
          %2685 = vxpose.xlu0.b32.cont [5/16] %v1524, 128
          %2686 = vxpose.xlu0.b32.cont [6/16] %v1528, 128
          %2687 = vxpose.xlu0.b32.cont [7/16] %v1534, 128
          %2688 = vxpose.xlu0.b32.cont [8/16] %v1538, 128
          %2689 = vxpose.xlu0.b32.cont [9/16] %v1544, 128
          %2690 = vxpose.xlu0.b32.cont [10/16] %v1548, 128
          %2691 = vxpose.xlu0.b32.cont [11/16] %v1554, 128
          %2692 = vxpose.xlu0.b32.cont [12/16] %v1558, 128
          %2693 = vxpose.xlu0.b32.cont [13/16] %v1564, 128
          %2694 = vxpose.xlu0.b32.cont [14/16] %v1568, 128
          %2695 = vxpose.xlu0.b32.cont [15/16] %v1574, 128
          %2696 = vxpose.xlu0.b32.end [16/16] %v1578, 128
          %v2697 = vpop.trf.xlu0
          %v2698 = vpop.trf.xlu0
          %v2699 = vpop.trf.xlu0
          %v2700 = vpop.trf.xlu0
          %v2701 = vpop.trf.xlu0
          %v2702 = vpop.trf.xlu0
          %v2703 = vpop.trf.xlu0
          %v2704 = vpop.trf.xlu0
          %v2705 = vpop.trf.xlu0
          %v2706 = vpop.trf.xlu0
          %v2707 = vpop.trf.xlu0
          %v2708 = vpop.trf.xlu0
          %v2709 = vpop.trf.xlu0
          %v2710 = vpop.trf.xlu0
          %v2711 = vpop.trf.xlu0
          %v2712 = vpop.trf.xlu0
          %v2713 = vpack.c.bf16 %v2474, %v2473
          %v2714 = vpack.c.bf16 %v2538, %v2537
          %v2715 = vpack.c.bf16 %v2602, %v2601
          %v2716 = vpack.c.bf16 %v2666, %v2665
          %v2717 = vpack.c.bf16 %v2476, %v2475
          %v2718 = vpack.c.bf16 %v2540, %v2539
          %v2719 = vpack.c.bf16 %v2604, %v2603
          %v2720 = vpack.c.bf16 %v2668, %v2667
          %v2721 = vpack.c.bf16 %v2478, %v2477
          %v2722 = vpack.c.bf16 %v2542, %v2541
          %v2723 = vpack.c.bf16 %v2606, %v2605
          %v2724 = vpack.c.bf16 %v2670, %v2669
          %v2725 = vpack.c.bf16 %v2480, %v2479
          %v2726 = vpack.c.bf16 %v2544, %v2543
          %v2727 = vpack.c.bf16 %v2608, %v2607
          %v2728 = vpack.c.bf16 %v2672, %v2671
          %v2729 = vpack.c.bf16 %v2482, %v2481
          %v2730 = vpack.c.bf16 %v2546, %v2545
          %v2731 = vpack.c.bf16 %v2610, %v2609
          %v2732 = vpack.c.bf16 %v2674, %v2673
          %v2733 = vpack.c.bf16 %v2484, %v2483
          %v2734 = vpack.c.bf16 %v2548, %v2547
          %v2735 = vpack.c.bf16 %v2612, %v2611
          %v2736 = vpack.c.bf16 %v2676, %v2675
          %v2737 = vpack.c.bf16 %v2486, %v2485
          %v2738 = vpack.c.bf16 %v2550, %v2549
          %v2739 = vpack.c.bf16 %v2614, %v2613
          %v2740 = vpack.c.bf16 %v2678, %v2677
          %v2741 = vpack.c.bf16 %v2488, %v2487
          %v2742 = vpack.c.bf16 %v2552, %v2551
          %v2743 = vpack.c.bf16 %v2616, %v2615
          %v2744 = vpack.c.bf16 %v2680, %v2679
          %v2745 = vpack.c.bf16 %v2506, %v2505
          %v2746 = vpack.c.bf16 %v2570, %v2569
          %v2747 = vpack.c.bf16 %v2634, %v2633
          %v2748 = vpack.c.bf16 %v2698, %v2697
          %v2749 = vpack.c.bf16 %v2508, %v2507
          %v2750 = vpack.c.bf16 %v2572, %v2571
          %v2751 = vpack.c.bf16 %v2636, %v2635
          %v2752 = vpack.c.bf16 %v2700, %v2699
          %v2753 = vpack.c.bf16 %v2510, %v2509
          %v2754 = vpack.c.bf16 %v2574, %v2573
          %v2755 = vpack.c.bf16 %v2638, %v2637
          %v2756 = vpack.c.bf16 %v2702, %v2701
          %v2757 = vpack.c.bf16 %v2512, %v2511
          %v2758 = vpack.c.bf16 %v2576, %v2575
          %v2759 = vpack.c.bf16 %v2640, %v2639
          %v2760 = vpack.c.bf16 %v2704, %v2703
          %v2761 = vpack.c.bf16 %v2514, %v2513
          %v2762 = vpack.c.bf16 %v2578, %v2577
          %v2763 = vpack.c.bf16 %v2642, %v2641
          %v2764 = vpack.c.bf16 %v2706, %v2705
          %v2765 = vpack.c.bf16 %v2516, %v2515
          %v2766 = vpack.c.bf16 %v2580, %v2579
          %v2767 = vpack.c.bf16 %v2644, %v2643
          %v2768 = vpack.c.bf16 %v2708, %v2707
          %v2769 = vpack.c.bf16 %v2518, %v2517
          %v2770 = vpack.c.bf16 %v2582, %v2581
          %v2771 = vpack.c.bf16 %v2646, %v2645
          %v2772 = vpack.c.bf16 %v2710, %v2709
          %v2773 = vpack.c.bf16 %v2520, %v2519
          %v2774 = vpack.c.bf16 %v2584, %v2583
          %v2775 = vpack.c.bf16 %v2648, %v2647
          %v2776 = vpack.c.bf16 %v2712, %v2711
          %2777 = vst [vmem:[#allocation2] sm:$0xff] %v2713
          %2778 = vst [vmem:[#allocation2 + $0x8] sm:$0xff] %v2714
          %2779 = vst [vmem:[#allocation2 + $0x10] sm:$0xff] %v2715
          %2780 = vst [vmem:[#allocation2 + $0x18] sm:$0xff] %v2716
          %2781 = vst [vmem:[#allocation2 + $0x20] sm:$0xff] %v2717
          %2782 = vst [vmem:[#allocation2 + $0x28] sm:$0xff] %v2718
          %2783 = vst [vmem:[#allocation2 + $0x30] sm:$0xff] %v2719
          %2784 = vst [vmem:[#allocation2 + $0x38] sm:$0xff] %v2720
          %2785 = vst [vmem:[#allocation2 + $0x40] sm:$0xff] %v2721
          %2786 = vst [vmem:[#allocation2 + $0x48] sm:$0xff] %v2722
          %2787 = vst [vmem:[#allocation2 + $0x50] sm:$0xff] %v2723
          %2788 = vst [vmem:[#allocation2 + $0x58] sm:$0xff] %v2724
          %2789 = vst [vmem:[#allocation2 + $0x60] sm:$0xff] %v2725
          %2790 = vst [vmem:[#allocation2 + $0x68] sm:$0xff] %v2726
          %2791 = vst [vmem:[#allocation2 + $0x70] sm:$0xff] %v2727
          %2792 = vst [vmem:[#allocation2 + $0x78] sm:$0xff] %v2728
          %2793 = vst [vmem:[#allocation2 + $0x80] sm:$0xff] %v2729
          %2794 = vst [vmem:[#allocation2 + $0x88] sm:$0xff] %v2730
          %2795 = vst [vmem:[#allocation2 + $0x90] sm:$0xff] %v2731
          %2796 = vst [vmem:[#allocation2 + $0x98] sm:$0xff] %v2732
          %2797 = vst [vmem:[#allocation2 + $0xa0] sm:$0xff] %v2733
          %2798 = vst [vmem:[#allocation2 + $0xa8] sm:$0xff] %v2734
          %2799 = vst [vmem:[#allocation2 + $0xb0] sm:$0xff] %v2735
          %2800 = vst [vmem:[#allocation2 + $0xb8] sm:$0xff] %v2736
          %2801 = vst [vmem:[#allocation2 + $0xc0] sm:$0xff] %v2737
          %2802 = vst [vmem:[#allocation2 + $0xc8] sm:$0xff] %v2738
          %2803 = vst [vmem:[#allocation2 + $0xd0] sm:$0xff] %v2739
          %2804 = vst [vmem:[#allocation2 + $0xd8] sm:$0xff] %v2740
          %2805 = vst [vmem:[#allocation2 + $0xe0] sm:$0xff] %v2741
          %2806 = vst [vmem:[#allocation2 + $0xe8] sm:$0xff] %v2742
          %2807 = vst [vmem:[#allocation2 + $0xf0] sm:$0xff] %v2743
          %2808 = vst [vmem:[#allocation2 + $0xf8] sm:$0xff] %v2744
          %2809 = vst [vmem:[#allocation2 + $0x100] sm:$0xff] %v2745
          %2810 = vst [vmem:[#allocation2 + $0x108] sm:$0xff] %v2746
          %2811 = vst [vmem:[#allocation2 + $0x110] sm:$0xff] %v2747
          %2812 = vst [vmem:[#allocation2 + $0x118] sm:$0xff] %v2748
          %2813 = vst [vmem:[#allocation2 + $0x120] sm:$0xff] %v2749
          %2814 = vst [vmem:[#allocation2 + $0x128] sm:$0xff] %v2750
          %2815 = vst [vmem:[#allocation2 + $0x130] sm:$0xff] %v2751
          %2816 = vst [vmem:[#allocation2 + $0x138] sm:$0xff] %v2752
          %2817 = vst [vmem:[#allocation2 + $0x140] sm:$0xff] %v2753
          %2818 = vst [vmem:[#allocation2 + $0x148] sm:$0xff] %v2754
          %2819 = vst [vmem:[#allocation2 + $0x150] sm:$0xff] %v2755
          %2820 = vst [vmem:[#allocation2 + $0x158] sm:$0xff] %v2756
          %2821 = vst [vmem:[#allocation2 + $0x160] sm:$0xff] %v2757
          %2822 = vst [vmem:[#allocation2 + $0x168] sm:$0xff] %v2758
          %2823 = vst [vmem:[#allocation2 + $0x170] sm:$0xff] %v2759
          %2824 = vst [vmem:[#allocation2 + $0x178] sm:$0xff] %v2760
          %2825 = vst [vmem:[#allocation2 + $0x180] sm:$0xff] %v2761
          %2826 = vst [vmem:[#allocation2 + $0x188] sm:$0xff] %v2762
          %2827 = vst [vmem:[#allocation2 + $0x190] sm:$0xff] %v2763
          %2828 = vst [vmem:[#allocation2 + $0x198] sm:$0xff] %v2764
          %2829 = vst [vmem:[#allocation2 + $0x1a0] sm:$0xff] %v2765
          %2830 = vst [vmem:[#allocation2 + $0x1a8] sm:$0xff] %v2766
          %2831 = vst [vmem:[#allocation2 + $0x1b0] sm:$0xff] %v2767
          %2832 = vst [vmem:[#allocation2 + $0x1b8] sm:$0xff] %v2768
          %2833 = vst [vmem:[#allocation2 + $0x1c0] sm:$0xff] %v2769
          %2834 = vst [vmem:[#allocation2 + $0x1c8] sm:$0xff] %v2770
          %2835 = vst [vmem:[#allocation2 + $0x1d0] sm:$0xff] %v2771
          %2836 = vst [vmem:[#allocation2 + $0x1d8] sm:$0xff] %v2772
          %2837 = vst [vmem:[#allocation2 + $0x1e0] sm:$0xff] %v2773
          %2838 = vst [vmem:[#allocation2 + $0x1e8] sm:$0xff] %v2774
          %2839 = vst [vmem:[#allocation2 + $0x1f0] sm:$0xff] %v2775
          %2840 = vst [vmem:[#allocation2 + $0x1f8] sm:$0xff] %v2776
          %v2841 = vpack.c.bf16 %v2143, %v2139
          %v2842 = vpack.c.bf16 %v2145, %v2141
          %v2843 = vpack.c.bf16 %v2153, %v2149
          %v2844 = vpack.c.bf16 %v2155, %v2151
          %v2845 = vpack.c.bf16 %v2163, %v2159
          %v2846 = vpack.c.bf16 %v2165, %v2161
          %v2847 = vpack.c.bf16 %v2173, %v2169
          %v2848 = vpack.c.bf16 %v2175, %v2171
          %v2849 = vpack.c.bf16 %v2183, %v2179
          %v2850 = vpack.c.bf16 %v2185, %v2181
          %v2851 = vpack.c.bf16 %v2193, %v2189
          %v2852 = vpack.c.bf16 %v2195, %v2191
          %v2853 = vpack.c.bf16 %v2203, %v2199
          %v2854 = vpack.c.bf16 %v2205, %v2201
          %v2855 = vpack.c.bf16 %v2213, %v2209
          %v2856 = vpack.c.bf16 %v2215, %v2211
          %v2857 = vpack.c.bf16 %v2223, %v2219
          %v2858 = vpack.c.bf16 %v2225, %v2221
          %v2859 = vpack.c.bf16 %v2233, %v2229
          %v2860 = vpack.c.bf16 %v2235, %v2231
          %v2861 = vpack.c.bf16 %v2243, %v2239
          %v2862 = vpack.c.bf16 %v2245, %v2241
          %v2863 = vpack.c.bf16 %v2253, %v2249
          %v2864 = vpack.c.bf16 %v2255, %v2251
          %v2865 = vpack.c.bf16 %v2263, %v2259
          %v2866 = vpack.c.bf16 %v2265, %v2261
          %v2867 = vpack.c.bf16 %v2273, %v2269
          %v2868 = vpack.c.bf16 %v2275, %v2271
          %v2869 = vpack.c.bf16 %v2283, %v2279
          %v2870 = vpack.c.bf16 %v2285, %v2281
          %v2871 = vpack.c.bf16 %v2293, %v2289
          %v2872 = vpack.c.bf16 %v2295, %v2291
          %v2873 = vpack.c.bf16 %v2303, %v2299
          %v2874 = vpack.c.bf16 %v2305, %v2301
          %v2875 = vpack.c.bf16 %v2313, %v2309
          %v2876 = vpack.c.bf16 %v2315, %v2311
          %v2877 = vpack.c.bf16 %v2323, %v2319
          %v2878 = vpack.c.bf16 %v2325, %v2321
          %v2879 = vpack.c.bf16 %v2333, %v2329
          %v2880 = vpack.c.bf16 %v2335, %v2331
          %v2881 = vpack.c.bf16 %v2343, %v2339
          %v2882 = vpack.c.bf16 %v2345, %v2341
          %v2883 = vpack.c.bf16 %v2353, %v2349
          %v2884 = vpack.c.bf16 %v2355, %v2351
          %v2885 = vpack.c.bf16 %v2363, %v2359
          %v2886 = vpack.c.bf16 %v2365, %v2361
          %v2887 = vpack.c.bf16 %v2373, %v2369
          %v2888 = vpack.c.bf16 %v2375, %v2371
          %v2889 = vpack.c.bf16 %v2383, %v2379
          %v2890 = vpack.c.bf16 %v2385, %v2381
          %v2891 = vpack.c.bf16 %v2393, %v2389
          %v2892 = vpack.c.bf16 %v2395, %v2391
          %v2893 = vpack.c.bf16 %v2403, %v2399
          %v2894 = vpack.c.bf16 %v2405, %v2401
          %v2895 = vpack.c.bf16 %v2413, %v2409
          %v2896 = vpack.c.bf16 %v2415, %v2411
          %v2897 = vpack.c.bf16 %v2423, %v2419
          %v2898 = vpack.c.bf16 %v2425, %v2421
          %v2899 = vpack.c.bf16 %v2433, %v2429
          %v2900 = vpack.c.bf16 %v2435, %v2431
          %v2901 = vpack.c.bf16 %v2443, %v2439
          %v2902 = vpack.c.bf16 %v2445, %v2441
          %v2903 = vpack.c.bf16 %v2453, %v2449
          %v2904 = vpack.c.bf16 %v2455, %v2451
          %2905 = vst [vmem:[#allocation3] sm:$0xff] %v2841
          %2906 = vst [vmem:[#allocation3 + $0x8] sm:$0xff] %v2842
          %2907 = vst [vmem:[#allocation3 + $0x10] sm:$0xff] %v2843
          %2908 = vst [vmem:[#allocation3 + $0x18] sm:$0xff] %v2844
          %2909 = vst [vmem:[#allocation3 + $0x20] sm:$0xff] %v2845
          %2910 = vst [vmem:[#allocation3 + $0x28] sm:$0xff] %v2846
          %2911 = vst [vmem:[#allocation3 + $0x30] sm:$0xff] %v2847
          %2912 = vst [vmem:[#allocation3 + $0x38] sm:$0xff] %v2848
          %2913 = vst [vmem:[#allocation3 + $0x40] sm:$0xff] %v2849
          %2914 = vst [vmem:[#allocation3 + $0x48] sm:$0xff] %v2850
          %2915 = vst [vmem:[#allocation3 + $0x50] sm:$0xff] %v2851
          %2916 = vst [vmem:[#allocation3 + $0x58] sm:$0xff] %v2852
          %2917 = vst [vmem:[#allocation3 + $0x60] sm:$0xff] %v2853
          %2918 = vst [vmem:[#allocation3 + $0x68] sm:$0xff] %v2854
          %2919 = vst [vmem:[#allocation3 + $0x70] sm:$0xff] %v2855
          %2920 = vst [vmem:[#allocation3 + $0x78] sm:$0xff] %v2856
          %2921 = vst [vmem:[#allocation3 + $0x80] sm:$0xff] %v2857
          %2922 = vst [vmem:[#allocation3 + $0x88] sm:$0xff] %v2858
          %2923 = vst [vmem:[#allocation3 + $0x90] sm:$0xff] %v2859
          %2924 = vst [vmem:[#allocation3 + $0x98] sm:$0xff] %v2860
          %2925 = vst [vmem:[#allocation3 + $0xa0] sm:$0xff] %v2861
          %2926 = vst [vmem:[#allocation3 + $0xa8] sm:$0xff] %v2862
          %2927 = vst [vmem:[#allocation3 + $0xb0] sm:$0xff] %v2863
          %2928 = vst [vmem:[#allocation3 + $0xb8] sm:$0xff] %v2864
          %2929 = vst [vmem:[#allocation3 + $0xc0] sm:$0xff] %v2865
          %2930 = vst [vmem:[#allocation3 + $0xc8] sm:$0xff] %v2866
          %2931 = vst [vmem:[#allocation3 + $0xd0] sm:$0xff] %v2867
          %2932 = vst [vmem:[#allocation3 + $0xd8] sm:$0xff] %v2868
          %2933 = vst [vmem:[#allocation3 + $0xe0] sm:$0xff] %v2869
          %2934 = vst [vmem:[#allocation3 + $0xe8] sm:$0xff] %v2870
          %2935 = vst [vmem:[#allocation3 + $0xf0] sm:$0xff] %v2871
          %2936 = vst [vmem:[#allocation3 + $0xf8] sm:$0xff] %v2872
          %2937 = vst [vmem:[#allocation3 + $0x100] sm:$0xff] %v2873
          %2938 = vst [vmem:[#allocation3 + $0x108] sm:$0xff] %v2874
          %2939 = vst [vmem:[#allocation3 + $0x110] sm:$0xff] %v2875
          %2940 = vst [vmem:[#allocation3 + $0x118] sm:$0xff] %v2876
          %2941 = vst [vmem:[#allocation3 + $0x120] sm:$0xff] %v2877
          %2942 = vst [vmem:[#allocation3 + $0x128] sm:$0xff] %v2878
          %2943 = vst [vmem:[#allocation3 + $0x130] sm:$0xff] %v2879
          %2944 = vst [vmem:[#allocation3 + $0x138] sm:$0xff] %v2880
          %2945 = vst [vmem:[#allocation3 + $0x140] sm:$0xff] %v2881
          %2946 = vst [vmem:[#allocation3 + $0x148] sm:$0xff] %v2882
          %2947 = vst [vmem:[#allocation3 + $0x150] sm:$0xff] %v2883
          %2948 = vst [vmem:[#allocation3 + $0x158] sm:$0xff] %v2884
          %2949 = vst [vmem:[#allocation3 + $0x160] sm:$0xff] %v2885
          %2950 = vst [vmem:[#allocation3 + $0x168] sm:$0xff] %v2886
          %2951 = vst [vmem:[#allocation3 + $0x170] sm:$0xff] %v2887
          %2952 = vst [vmem:[#allocation3 + $0x178] sm:$0xff] %v2888
          %2953 = vst [vmem:[#allocation3 + $0x180] sm:$0xff] %v2889
          %2954 = vst [vmem:[#allocation3 + $0x188] sm:$0xff] %v2890
          %2955 = vst [vmem:[#allocation3 + $0x190] sm:$0xff] %v2891
          %2956 = vst [vmem:[#allocation3 + $0x198] sm:$0xff] %v2892
          %2957 = vst [vmem:[#allocation3 + $0x1a0] sm:$0xff] %v2893
          %2958 = vst [vmem:[#allocation3 + $0x1a8] sm:$0xff] %v2894
          %2959 = vst [vmem:[#allocation3 + $0x1b0] sm:$0xff] %v2895
          %2960 = vst [vmem:[#allocation3 + $0x1b8] sm:$0xff] %v2896
          %2961 = vst [vmem:[#allocation3 + $0x1c0] sm:$0xff] %v2897
          %2962 = vst [vmem:[#allocation3 + $0x1c8] sm:$0xff] %v2898
          %2963 = vst [vmem:[#allocation3 + $0x1d0] sm:$0xff] %v2899
          %2964 = vst [vmem:[#allocation3 + $0x1d8] sm:$0xff] %v2900
          %2965 = vst [vmem:[#allocation3 + $0x1e0] sm:$0xff] %v2901
          %2966 = vst [vmem:[#allocation3 + $0x1e8] sm:$0xff] %v2902
          %2967 = vst [vmem:[#allocation3 + $0x1f0] sm:$0xff] %v2903
          %2968 = vst [vmem:[#allocation3 + $0x1f8] sm:$0xff] %v2904
        $region96: #{tpu_custom_call.1} parent=63 // pred_fallthru
          _
        // Predicated region
        $region97: #{tpu_custom_call.1} parent=63 // pred_check
          %p2969 = pneg %p570
        $region98: #{tpu_custom_call.1} parent=63 // pred_check_branch
          %2971 = sbr.rel (%p2969) target = $region100
        $region99: #{tpu_custom_call.1} parent=63 // pred_region
          %v2972 = vld [vmem:[%s483] sm:$0xff]
          %v2973 = vld [vmem:[%s483 + $0x8] sm:$0xff]
          %v2974 = vld [vmem:[%s483 + $0x10] sm:$0xff]
          %v2975 = vld [vmem:[%s483 + $0x18] sm:$0xff]
          %v2976 = vld [vmem:[%s483 + $0x20] sm:$0xff]
          %v2977 = vld [vmem:[%s483 + $0x28] sm:$0xff]
          %v2978 = vld [vmem:[%s483 + $0x30] sm:$0xff]
          %v2979 = vld [vmem:[%s483 + $0x38] sm:$0xff]
          %v2980 = vld [vmem:[%s483 + $0x40] sm:$0xff]
          %v2981 = vld [vmem:[%s483 + $0x48] sm:$0xff]
          %v2982 = vld [vmem:[%s483 + $0x50] sm:$0xff]
          %v2983 = vld [vmem:[%s483 + $0x58] sm:$0xff]
          %v2984 = vld [vmem:[%s483 + $0x60] sm:$0xff]
          %v2985 = vld [vmem:[%s483 + $0x68] sm:$0xff]
          %v2986 = vld [vmem:[%s483 + $0x70] sm:$0xff]
          %v2987 = vld [vmem:[%s483 + $0x78] sm:$0xff]
          %v2988 = vld [vmem:[%s483 + $0x80] sm:$0xff]
          %v2989 = vld [vmem:[%s483 + $0x88] sm:$0xff]
          %v2990 = vld [vmem:[%s483 + $0x90] sm:$0xff]
          %v2991 = vld [vmem:[%s483 + $0x98] sm:$0xff]
          %v2992 = vld [vmem:[%s483 + $0xa0] sm:$0xff]
          %v2993 = vld [vmem:[%s483 + $0xa8] sm:$0xff]
          %v2994 = vld [vmem:[%s483 + $0xb0] sm:$0xff]
          %v2995 = vld [vmem:[%s483 + $0xb8] sm:$0xff]
          %v2996 = vld [vmem:[%s483 + $0xc0] sm:$0xff]
          %v2997 = vld [vmem:[%s483 + $0xc8] sm:$0xff]
          %v2998 = vld [vmem:[%s483 + $0xd0] sm:$0xff]
          %v2999 = vld [vmem:[%s483 + $0xd8] sm:$0xff]
          %v3000 = vld [vmem:[%s483 + $0xe0] sm:$0xff]
          %v3001 = vld [vmem:[%s483 + $0xe8] sm:$0xff]
          %v3002 = vld [vmem:[%s483 + $0xf0] sm:$0xff]
          %v3003 = vld [vmem:[%s483 + $0xf8] sm:$0xff]
          %v3004 = vld [vmem:[#allocation12] sm:$0xff]
          %v3005 = vld [vmem:[#allocation12 + $0x8] sm:$0xff]
          %v3006 = vld [vmem:[#allocation12 + $0x10] sm:$0xff]
          %v3007 = vld [vmem:[#allocation12 + $0x18] sm:$0xff]
          %v3008 = vld [vmem:[#allocation12 + $0x20] sm:$0xff]
          %v3009 = vld [vmem:[#allocation12 + $0x28] sm:$0xff]
          %v3010 = vld [vmem:[#allocation12 + $0x30] sm:$0xff]
          %v3011 = vld [vmem:[#allocation12 + $0x38] sm:$0xff]
          %v3012 = vld [vmem:[#allocation12 + $0x40] sm:$0xff]
          %v3013 = vld [vmem:[#allocation12 + $0x48] sm:$0xff]
          %v3014 = vld [vmem:[#allocation12 + $0x50] sm:$0xff]
          %v3015 = vld [vmem:[#allocation12 + $0x58] sm:$0xff]
          %v3016 = vld [vmem:[#allocation12 + $0x60] sm:$0xff]
          %v3017 = vld [vmem:[#allocation12 + $0x68] sm:$0xff]
          %v3018 = vld [vmem:[#allocation12 + $0x70] sm:$0xff]
          %v3019 = vld [vmem:[#allocation12 + $0x78] sm:$0xff]
          %v3020 = vld [vmem:[#allocation12 + $0x80] sm:$0xff]
          %v3021 = vld [vmem:[#allocation12 + $0x88] sm:$0xff]
          %v3022 = vld [vmem:[#allocation12 + $0x90] sm:$0xff]
          %v3023 = vld [vmem:[#allocation12 + $0x98] sm:$0xff]
          %v3024 = vld [vmem:[#allocation12 + $0xa0] sm:$0xff]
          %v3025 = vld [vmem:[#allocation12 + $0xa8] sm:$0xff]
          %v3026 = vld [vmem:[#allocation12 + $0xb0] sm:$0xff]
          %v3027 = vld [vmem:[#allocation12 + $0xb8] sm:$0xff]
          %v3028 = vld [vmem:[#allocation12 + $0xc0] sm:$0xff]
          %v3029 = vld [vmem:[#allocation12 + $0xc8] sm:$0xff]
          %v3030 = vld [vmem:[#allocation12 + $0xd0] sm:$0xff]
          %v3031 = vld [vmem:[#allocation12 + $0xd8] sm:$0xff]
          %v3032 = vld [vmem:[#allocation12 + $0xe0] sm:$0xff]
          %v3033 = vld [vmem:[#allocation12 + $0xe8] sm:$0xff]
          %v3034 = vld [vmem:[#allocation12 + $0xf0] sm:$0xff]
          %v3035 = vld [vmem:[#allocation12 + $0xf8] sm:$0xff]
          %v3036 = vld [vmem:[%s7] sm:$0x3]
          %v3038 = vlaneseq
          %v3039 = vshrl.u32 %v3038, 7
          %v3040 = vsub.s32 0, %v3039
          %v3041 = vrot.slane %v3036, %v3040
          %v3042 = vlaneseq
          %v3043 = vshrl.u32 %v3042, 7
          %v3044 = vsub.s32 1, %v3043
          %v3045 = vrot.slane %v3036, %v3044
          %v3080 = vunpack.c.l.b16 %v2972
          %v3081 = vunpack.c.h.b16 %v2972
          %v3082 = vunpack.c.l.b16 %v2973
          %v3083 = vunpack.c.h.b16 %v2973
          %v3084 = vunpack.c.l.b16 %v2974
          %v3085 = vunpack.c.h.b16 %v2974
          %v3086 = vunpack.c.l.b16 %v2975
          %v3087 = vunpack.c.h.b16 %v2975
          %v3088 = vunpack.c.l.b16 %v2976
          %v3089 = vunpack.c.h.b16 %v2976
          %v3090 = vunpack.c.l.b16 %v2977
          %v3091 = vunpack.c.h.b16 %v2977
          %v3092 = vunpack.c.l.b16 %v2978
          %v3093 = vunpack.c.h.b16 %v2978
          %v3094 = vunpack.c.l.b16 %v2979
          %v3095 = vunpack.c.h.b16 %v2979
          %v3096 = vunpack.c.l.b16 %v2980
          %v3097 = vunpack.c.h.b16 %v2980
          %v3098 = vunpack.c.l.b16 %v2981
          %v3099 = vunpack.c.h.b16 %v2981
          %v3100 = vunpack.c.l.b16 %v2982
          %v3101 = vunpack.c.h.b16 %v2982
          %v3102 = vunpack.c.l.b16 %v2983
          %v3103 = vunpack.c.h.b16 %v2983
          %v3104 = vunpack.c.l.b16 %v2984
          %v3105 = vunpack.c.h.b16 %v2984
          %v3106 = vunpack.c.l.b16 %v2985
          %v3107 = vunpack.c.h.b16 %v2985
          %v3108 = vunpack.c.l.b16 %v2986
          %v3109 = vunpack.c.h.b16 %v2986
          %v3110 = vunpack.c.l.b16 %v2987
          %v3111 = vunpack.c.h.b16 %v2987
          %v3112 = vunpack.c.l.b16 %v2988
          %v3113 = vunpack.c.h.b16 %v2988
          %v3114 = vunpack.c.l.b16 %v2989
          %v3115 = vunpack.c.h.b16 %v2989
          %v3116 = vunpack.c.l.b16 %v2990
          %v3117 = vunpack.c.h.b16 %v2990
          %v3118 = vunpack.c.l.b16 %v2991
          %v3119 = vunpack.c.h.b16 %v2991
          %v3120 = vunpack.c.l.b16 %v2992
          %v3121 = vunpack.c.h.b16 %v2992
          %v3122 = vunpack.c.l.b16 %v2993
          %v3123 = vunpack.c.h.b16 %v2993
          %v3124 = vunpack.c.l.b16 %v2994
          %v3125 = vunpack.c.h.b16 %v2994
          %v3126 = vunpack.c.l.b16 %v2995
          %v3127 = vunpack.c.h.b16 %v2995
          %v3128 = vunpack.c.l.b16 %v2996
          %v3129 = vunpack.c.h.b16 %v2996
          %v3130 = vunpack.c.l.b16 %v2997
          %v3131 = vunpack.c.h.b16 %v2997
          %v3132 = vunpack.c.l.b16 %v2998
          %v3133 = vunpack.c.h.b16 %v2998
          %v3134 = vunpack.c.l.b16 %v2999
          %v3135 = vunpack.c.h.b16 %v2999
          %v3136 = vunpack.c.l.b16 %v3000
          %v3137 = vunpack.c.h.b16 %v3000
          %v3138 = vunpack.c.l.b16 %v3001
          %v3139 = vunpack.c.h.b16 %v3001
          %v3140 = vunpack.c.l.b16 %v3002
          %v3141 = vunpack.c.h.b16 %v3002
          %v3142 = vunpack.c.l.b16 %v3003
          %v3143 = vunpack.c.h.b16 %v3003
          %v3144 = vpack.c.b16 %v3082, %v3080
          %v3145 = vpack.c.b16 %v3083, %v3081
          %v3146 = vpack.c.b16 %v3086, %v3084
          %v3147 = vpack.c.b16 %v3087, %v3085
          %v3148 = vpack.c.b16 %v3090, %v3088
          %v3149 = vpack.c.b16 %v3091, %v3089
          %v3150 = vpack.c.b16 %v3094, %v3092
          %v3151 = vpack.c.b16 %v3095, %v3093
          %v3152 = vpack.c.b16 %v3098, %v3096
          %v3153 = vpack.c.b16 %v3099, %v3097
          %v3154 = vpack.c.b16 %v3102, %v3100
          %v3155 = vpack.c.b16 %v3103, %v3101
          %v3156 = vpack.c.b16 %v3106, %v3104
          %v3157 = vpack.c.b16 %v3107, %v3105
          %v3158 = vpack.c.b16 %v3110, %v3108
          %v3159 = vpack.c.b16 %v3111, %v3109
          %v3160 = vpack.c.b16 %v3114, %v3112
          %v3161 = vpack.c.b16 %v3115, %v3113
          %v3162 = vpack.c.b16 %v3118, %v3116
          %v3163 = vpack.c.b16 %v3119, %v3117
          %v3164 = vpack.c.b16 %v3122, %v3120
          %v3165 = vpack.c.b16 %v3123, %v3121
          %v3166 = vpack.c.b16 %v3126, %v3124
          %v3167 = vpack.c.b16 %v3127, %v3125
          %v3168 = vpack.c.b16 %v3130, %v3128
          %v3169 = vpack.c.b16 %v3131, %v3129
          %v3170 = vpack.c.b16 %v3134, %v3132
          %v3171 = vpack.c.b16 %v3135, %v3133
          %v3172 = vpack.c.b16 %v3138, %v3136
          %v3173 = vpack.c.b16 %v3139, %v3137
          %v3174 = vpack.c.b16 %v3142, %v3140
          %v3175 = vpack.c.b16 %v3143, %v3141
          %v3240 = vunpack.c.l.b16 %v3004
          %v3241 = vunpack.c.h.b16 %v3004
          %v3242 = vunpack.c.l.b16 %v3005
          %v3243 = vunpack.c.h.b16 %v3005
          %v3244 = vunpack.c.l.b16 %v3006
          %v3245 = vunpack.c.h.b16 %v3006
          %v3246 = vunpack.c.l.b16 %v3007
          %v3247 = vunpack.c.h.b16 %v3007
          %v3248 = vunpack.c.l.b16 %v3008
          %v3249 = vunpack.c.h.b16 %v3008
          %v3250 = vunpack.c.l.b16 %v3009
          %v3251 = vunpack.c.h.b16 %v3009
          %v3252 = vunpack.c.l.b16 %v3010
          %v3253 = vunpack.c.h.b16 %v3010
          %v3254 = vunpack.c.l.b16 %v3011
          %v3255 = vunpack.c.h.b16 %v3011
          %v3256 = vunpack.c.l.b16 %v3012
          %v3257 = vunpack.c.h.b16 %v3012
          %v3258 = vunpack.c.l.b16 %v3013
          %v3259 = vunpack.c.h.b16 %v3013
          %v3260 = vunpack.c.l.b16 %v3014
          %v3261 = vunpack.c.h.b16 %v3014
          %v3262 = vunpack.c.l.b16 %v3015
          %v3263 = vunpack.c.h.b16 %v3015
          %v3264 = vunpack.c.l.b16 %v3016
          %v3265 = vunpack.c.h.b16 %v3016
          %v3266 = vunpack.c.l.b16 %v3017
          %v3267 = vunpack.c.h.b16 %v3017
          %v3268 = vunpack.c.l.b16 %v3018
          %v3269 = vunpack.c.h.b16 %v3018
          %v3270 = vunpack.c.l.b16 %v3019
          %v3271 = vunpack.c.h.b16 %v3019
          %v3272 = vunpack.c.l.b16 %v3020
          %v3273 = vunpack.c.h.b16 %v3020
          %v3274 = vunpack.c.l.b16 %v3021
          %v3275 = vunpack.c.h.b16 %v3021
          %v3276 = vunpack.c.l.b16 %v3022
          %v3277 = vunpack.c.h.b16 %v3022
          %v3278 = vunpack.c.l.b16 %v3023
          %v3279 = vunpack.c.h.b16 %v3023
          %v3280 = vunpack.c.l.b16 %v3024
          %v3281 = vunpack.c.h.b16 %v3024
          %v3282 = vunpack.c.l.b16 %v3025
          %v3283 = vunpack.c.h.b16 %v3025
          %v3284 = vunpack.c.l.b16 %v3026
          %v3285 = vunpack.c.h.b16 %v3026
          %v3286 = vunpack.c.l.b16 %v3027
          %v3287 = vunpack.c.h.b16 %v3027
          %v3288 = vunpack.c.l.b16 %v3028
          %v3289 = vunpack.c.h.b16 %v3028
          %v3290 = vunpack.c.l.b16 %v3029
          %v3291 = vunpack.c.h.b16 %v3029
          %v3292 = vunpack.c.l.b16 %v3030
          %v3293 = vunpack.c.h.b16 %v3030
          %v3294 = vunpack.c.l.b16 %v3031
          %v3295 = vunpack.c.h.b16 %v3031
          %v3296 = vunpack.c.l.b16 %v3032
          %v3297 = vunpack.c.h.b16 %v3032
          %v3298 = vunpack.c.l.b16 %v3033
          %v3299 = vunpack.c.h.b16 %v3033
          %v3300 = vunpack.c.l.b16 %v3034
          %v3301 = vunpack.c.h.b16 %v3034
          %v3302 = vunpack.c.l.b16 %v3035
          %v3303 = vunpack.c.h.b16 %v3035
          %v3304 = vpack.c.b16 %v3242, %v3240
          %v3305 = vpack.c.b16 %v3243, %v3241
          %v3306 = vpack.c.b16 %v3246, %v3244
          %v3307 = vpack.c.b16 %v3247, %v3245
          %v3308 = vpack.c.b16 %v3250, %v3248
          %v3309 = vpack.c.b16 %v3251, %v3249
          %v3310 = vpack.c.b16 %v3254, %v3252
          %v3311 = vpack.c.b16 %v3255, %v3253
          %v3312 = vpack.c.b16 %v3258, %v3256
          %v3313 = vpack.c.b16 %v3259, %v3257
          %v3314 = vpack.c.b16 %v3262, %v3260
          %v3315 = vpack.c.b16 %v3263, %v3261
          %v3316 = vpack.c.b16 %v3266, %v3264
          %v3317 = vpack.c.b16 %v3267, %v3265
          %v3318 = vpack.c.b16 %v3270, %v3268
          %v3319 = vpack.c.b16 %v3271, %v3269
          %v3320 = vpack.c.b16 %v3274, %v3272
          %v3321 = vpack.c.b16 %v3275, %v3273
          %v3322 = vpack.c.b16 %v3278, %v3276
          %v3323 = vpack.c.b16 %v3279, %v3277
          %v3324 = vpack.c.b16 %v3282, %v3280
          %v3325 = vpack.c.b16 %v3283, %v3281
          %v3326 = vpack.c.b16 %v3286, %v3284
          %v3327 = vpack.c.b16 %v3287, %v3285
          %v3328 = vpack.c.b16 %v3290, %v3288
          %v3329 = vpack.c.b16 %v3291, %v3289
          %v3330 = vpack.c.b16 %v3294, %v3292
          %v3331 = vpack.c.b16 %v3295, %v3293
          %v3332 = vpack.c.b16 %v3298, %v3296
          %v3333 = vpack.c.b16 %v3299, %v3297
          %v3334 = vpack.c.b16 %v3302, %v3300
          %v3335 = vpack.c.b16 %v3303, %v3301
          %3368 = vmatprep.subr.bf16.mxu0 %v3305
          %3369 = vmatpush1.bf16.msra.mxu0 %v3304
          %3370 = vmatprep.subr.bf16.mxu0 %v3307
          %3371 = vmatpush1.bf16.msra.mxu0 %v3306
          %3372 = vmatprep.subr.bf16.mxu0 %v3309
          %3373 = vmatpush1.bf16.msra.mxu0 %v3308
          %3374 = vmatprep.subr.bf16.mxu0 %v3311
          %3375 = vmatpush1.bf16.msra.mxu0 %v3310
          %3376 = vmatprep.subr.bf16.mxu0 %v3313
          %3377 = vmatpush1.bf16.msra.mxu0 %v3312
          %3378 = vmatprep.subr.bf16.mxu0 %v3315
          %3379 = vmatpush1.bf16.msra.mxu0 %v3314
          %3380 = vmatprep.subr.bf16.mxu0 %v3317
          %3381 = vmatpush1.bf16.msra.mxu0 %v3316
          %3382 = vmatprep.subr.bf16.mxu0 %v3319
          %3383 = vmatpush1.bf16.msra.mxu0 %v3318
          %3384 = vmatprep.subr.bf16.mxu0 %v3321
          %3385 = vmatpush1.bf16.msra.mxu0 %v3320
          %3386 = vmatprep.subr.bf16.mxu0 %v3323
          %3387 = vmatpush1.bf16.msra.mxu0 %v3322
          %3388 = vmatprep.subr.bf16.mxu0 %v3325
          %3389 = vmatpush1.bf16.msra.mxu0 %v3324
          %3390 = vmatprep.subr.bf16.mxu0 %v3327
          %3391 = vmatpush1.bf16.msra.mxu0 %v3326
          %3392 = vmatprep.subr.bf16.mxu0 %v3329
          %3393 = vmatpush1.bf16.msra.mxu0 %v3328
          %3394 = vmatprep.subr.bf16.mxu0 %v3331
          %3395 = vmatpush1.bf16.msra.mxu0 %v3330
          %3396 = vmatprep.subr.bf16.mxu0 %v3333
          %3397 = vmatpush1.bf16.msra.mxu0 %v3332
          %3398 = vmatprep.subr.bf16.mxu0 %v3335
          %3399 = vmatpush1.bf16.msra.mxu0 %v3334
          %3400 = vmatprep.mubr.bf16.mxu0 %v3145
          %3401 = vmatmul.mubr.bf16.gmra.mrb[0].mxu0 %v3144
          %v3402 = vpop.f32.mrb[0].mxu0
          %v3403 = vadd.f32 %v3041, %v3402
          %v3404 = vpop.f32.mrb[0].mxu0
          %v3405 = vadd.f32 %v3045, %v3404
          %v3406 = vpop.f32.mrb[0].mxu0
          %v3407 = vadd.f32 %v3041, %v3406
          %v3408 = vpop.f32.mrb[0].mxu0
          %v3409 = vadd.f32 %v3045, %v3408
          %3410 = vmatprep.mubr.bf16.mxu0 %v3147
          %3411 = vmatmul.mubr.bf16.gmra.mrb[0].mxu0 %v3146
          %v3412 = vpop.f32.mrb[0].mxu0
          %v3413 = vadd.f32 %v3041, %v3412
          %v3414 = vpop.f32.mrb[0].mxu0
          %v3415 = vadd.f32 %v3045, %v3414
          %v3416 = vpop.f32.mrb[0].mxu0
          %v3417 = vadd.f32 %v3041, %v3416
          %v3418 = vpop.f32.mrb[0].mxu0
          %v3419 = vadd.f32 %v3045, %v3418
          %3420 = vmatprep.mubr.bf16.mxu0 %v3149
          %3421 = vmatmul.mubr.bf16.gmra.mrb[0].mxu0 %v3148
          %v3422 = vpop.f32.mrb[0].mxu0
          %v3423 = vadd.f32 %v3041, %v3422
          %v3424 = vpop.f32.mrb[0].mxu0
          %v3425 = vadd.f32 %v3045, %v3424
          %v3426 = vpop.f32.mrb[0].mxu0
          %v3427 = vadd.f32 %v3041, %v3426
          %v3428 = vpop.f32.mrb[0].mxu0
          %v3429 = vadd.f32 %v3045, %v3428
          %3430 = vmatprep.mubr.bf16.mxu0 %v3151
          %3431 = vmatmul.mubr.bf16.gmra.mrb[0].mxu0 %v3150
          %v3432 = vpop.f32.mrb[0].mxu0
          %v3433 = vadd.f32 %v3041, %v3432
          %v3434 = vpop.f32.mrb[0].mxu0
          %v3435 = vadd.f32 %v3045, %v3434
          %v3436 = vpop.f32.mrb[0].mxu0
          %v3437 = vadd.f32 %v3041, %v3436
          %v3438 = vpop.f32.mrb[0].mxu0
          %v3439 = vadd.f32 %v3045, %v3438
          %3440 = vmatprep.mubr.bf16.mxu0 %v3153
          %3441 = vmatmul.mubr.bf16.gmra.mrb[0].mxu0 %v3152
          %v3442 = vpop.f32.mrb[0].mxu0
          %v3443 = vadd.f32 %v3041, %v3442
          %v3444 = vpop.f32.mrb[0].mxu0
          %v3445 = vadd.f32 %v3045, %v3444
          %v3446 = vpop.f32.mrb[0].mxu0
          %v3447 = vadd.f32 %v3041, %v3446
          %v3448 = vpop.f32.mrb[0].mxu0
          %v3449 = vadd.f32 %v3045, %v3448
          %3450 = vmatprep.mubr.bf16.mxu0 %v3155
          %3451 = vmatmul.mubr.bf16.gmra.mrb[0].mxu0 %v3154
          %v3452 = vpop.f32.mrb[0].mxu0
          %v3453 = vadd.f32 %v3041, %v3452
          %v3454 = vpop.f32.mrb[0].mxu0
          %v3455 = vadd.f32 %v3045, %v3454
          %v3456 = vpop.f32.mrb[0].mxu0
          %v3457 = vadd.f32 %v3041, %v3456
          %v3458 = vpop.f32.mrb[0].mxu0
          %v3459 = vadd.f32 %v3045, %v3458
          %3460 = vmatprep.mubr.bf16.mxu0 %v3157
          %3461 = vmatmul.mubr.bf16.gmra.mrb[0].mxu0 %v3156
          %v3462 = vpop.f32.mrb[0].mxu0
          %v3463 = vadd.f32 %v3041, %v3462
          %v3464 = vpop.f32.mrb[0].mxu0
          %v3465 = vadd.f32 %v3045, %v3464
          %v3466 = vpop.f32.mrb[0].mxu0
          %v3467 = vadd.f32 %v3041, %v3466
          %v3468 = vpop.f32.mrb[0].mxu0
          %v3469 = vadd.f32 %v3045, %v3468
          %3470 = vmatprep.mubr.bf16.mxu0 %v3159
          %3471 = vmatmul.mubr.bf16.gmra.mrb[0].mxu0 %v3158
          %v3472 = vpop.f32.mrb[0].mxu0
          %v3473 = vadd.f32 %v3041, %v3472
          %v3474 = vpop.f32.mrb[0].mxu0
          %v3475 = vadd.f32 %v3045, %v3474
          %v3476 = vpop.f32.mrb[0].mxu0
          %v3477 = vadd.f32 %v3041, %v3476
          %v3478 = vpop.f32.mrb[0].mxu0
          %v3479 = vadd.f32 %v3045, %v3478
          %3480 = vmatprep.mubr.bf16.mxu0 %v3161
          %3481 = vmatmul.mubr.bf16.gmra.mrb[0].mxu0 %v3160
          %v3482 = vpop.f32.mrb[0].mxu0
          %v3483 = vadd.f32 %v3041, %v3482
          %v3484 = vpop.f32.mrb[0].mxu0
          %v3485 = vadd.f32 %v3045, %v3484
          %v3486 = vpop.f32.mrb[0].mxu0
          %v3487 = vadd.f32 %v3041, %v3486
          %v3488 = vpop.f32.mrb[0].mxu0
          %v3489 = vadd.f32 %v3045, %v3488
          %3490 = vmatprep.mubr.bf16.mxu0 %v3163
          %3491 = vmatmul.mubr.bf16.gmra.mrb[0].mxu0 %v3162
          %v3492 = vpop.f32.mrb[0].mxu0
          %v3493 = vadd.f32 %v3041, %v3492
          %v3494 = vpop.f32.mrb[0].mxu0
          %v3495 = vadd.f32 %v3045, %v3494
          %v3496 = vpop.f32.mrb[0].mxu0
          %v3497 = vadd.f32 %v3041, %v3496
          %v3498 = vpop.f32.mrb[0].mxu0
          %v3499 = vadd.f32 %v3045, %v3498
          %3500 = vmatprep.mubr.bf16.mxu0 %v3165
          %3501 = vmatmul.mubr.bf16.gmra.mrb[0].mxu0 %v3164
          %v3502 = vpop.f32.mrb[0].mxu0
          %v3503 = vadd.f32 %v3041, %v3502
          %v3504 = vpop.f32.mrb[0].mxu0
          %v3505 = vadd.f32 %v3045, %v3504
          %v3506 = vpop.f32.mrb[0].mxu0
          %v3507 = vadd.f32 %v3041, %v3506
          %v3508 = vpop.f32.mrb[0].mxu0
          %v3509 = vadd.f32 %v3045, %v3508
          %3510 = vmatprep.mubr.bf16.mxu0 %v3167
          %3511 = vmatmul.mubr.bf16.gmra.mrb[0].mxu0 %v3166
          %v3512 = vpop.f32.mrb[0].mxu0
          %v3513 = vadd.f32 %v3041, %v3512
          %v3514 = vpop.f32.mrb[0].mxu0
          %v3515 = vadd.f32 %v3045, %v3514
          %v3516 = vpop.f32.mrb[0].mxu0
          %v3517 = vadd.f32 %v3041, %v3516
          %v3518 = vpop.f32.mrb[0].mxu0
          %v3519 = vadd.f32 %v3045, %v3518
          %3520 = vmatprep.mubr.bf16.mxu0 %v3169
          %3521 = vmatmul.mubr.bf16.gmra.mrb[0].mxu0 %v3168
          %v3522 = vpop.f32.mrb[0].mxu0
          %v3523 = vadd.f32 %v3041, %v3522
          %v3524 = vpop.f32.mrb[0].mxu0
          %v3525 = vadd.f32 %v3045, %v3524
          %v3526 = vpop.f32.mrb[0].mxu0
          %v3527 = vadd.f32 %v3041, %v3526
          %v3528 = vpop.f32.mrb[0].mxu0
          %v3529 = vadd.f32 %v3045, %v3528
          %3530 = vmatprep.mubr.bf16.mxu0 %v3171
          %3531 = vmatmul.mubr.bf16.gmra.mrb[0].mxu0 %v3170
          %v3532 = vpop.f32.mrb[0].mxu0
          %v3533 = vadd.f32 %v3041, %v3532
          %v3534 = vpop.f32.mrb[0].mxu0
          %v3535 = vadd.f32 %v3045, %v3534
          %v3536 = vpop.f32.mrb[0].mxu0
          %v3537 = vadd.f32 %v3041, %v3536
          %v3538 = vpop.f32.mrb[0].mxu0
          %v3539 = vadd.f32 %v3045, %v3538
          %3540 = vmatprep.mubr.bf16.mxu0 %v3173
          %3541 = vmatmul.mubr.bf16.gmra.mrb[0].mxu0 %v3172
          %v3542 = vpop.f32.mrb[0].mxu0
          %v3543 = vadd.f32 %v3041, %v3542
          %v3544 = vpop.f32.mrb[0].mxu0
          %v3545 = vadd.f32 %v3045, %v3544
          %v3546 = vpop.f32.mrb[0].mxu0
          %v3547 = vadd.f32 %v3041, %v3546
          %v3548 = vpop.f32.mrb[0].mxu0
          %v3549 = vadd.f32 %v3045, %v3548
          %3550 = vmatprep.mubr.bf16.mxu0 %v3175
          %3551 = vmatmul.mubr.bf16.gmra.mrb[0].mxu0 %v3174
          %v3552 = vpop.f32.mrb[0].mxu0
          %v3553 = vadd.f32 %v3041, %v3552
          %v3554 = vpop.f32.mrb[0].mxu0
          %v3555 = vadd.f32 %v3045, %v3554
          %v3556 = vpop.f32.mrb[0].mxu0
          %v3557 = vadd.f32 %v3041, %v3556
          %v3558 = vpop.f32.mrb[0].mxu0
          %v3559 = vadd.f32 %v3045, %v3558
          %3560 = vdwg.mxu0
          %v3561 = vmul.f32 %v3403, 11.313708
          %v3562 = vmul.f32 %v3405, 11.313708
          %v3563 = vmul.f32 %v3407, 11.313708
          %v3564 = vmul.f32 %v3409, 11.313708
          %v3565 = vmul.f32 %v3413, 11.313708
          %v3566 = vmul.f32 %v3415, 11.313708
          %v3567 = vmul.f32 %v3417, 11.313708
          %v3568 = vmul.f32 %v3419, 11.313708
          %v3569 = vmul.f32 %v3423, 11.313708
          %v3570 = vmul.f32 %v3425, 11.313708
          %v3571 = vmul.f32 %v3427, 11.313708
          %v3572 = vmul.f32 %v3429, 11.313708
          %v3573 = vmul.f32 %v3433, 11.313708
          %v3574 = vmul.f32 %v3435, 11.313708
          %v3575 = vmul.f32 %v3437, 11.313708
          %v3576 = vmul.f32 %v3439, 11.313708
          %v3577 = vmul.f32 %v3443, 11.313708
          %v3578 = vmul.f32 %v3445, 11.313708
          %v3579 = vmul.f32 %v3447, 11.313708
          %v3580 = vmul.f32 %v3449, 11.313708
          %v3581 = vmul.f32 %v3453, 11.313708
          %v3582 = vmul.f32 %v3455, 11.313708
          %v3583 = vmul.f32 %v3457, 11.313708
          %v3584 = vmul.f32 %v3459, 11.313708
          %v3585 = vmul.f32 %v3463, 11.313708
          %v3586 = vmul.f32 %v3465, 11.313708
          %v3587 = vmul.f32 %v3467, 11.313708
          %v3588 = vmul.f32 %v3469, 11.313708
          %v3589 = vmul.f32 %v3473, 11.313708
          %v3590 = vmul.f32 %v3475, 11.313708
          %v3591 = vmul.f32 %v3477, 11.313708
          %v3592 = vmul.f32 %v3479, 11.313708
          %v3593 = vmul.f32 %v3483, 11.313708
          %v3594 = vmul.f32 %v3485, 11.313708
          %v3595 = vmul.f32 %v3487, 11.313708
          %v3596 = vmul.f32 %v3489, 11.313708
          %v3597 = vmul.f32 %v3493, 11.313708
          %v3598 = vmul.f32 %v3495, 11.313708
          %v3599 = vmul.f32 %v3497, 11.313708
          %v3600 = vmul.f32 %v3499, 11.313708
          %v3601 = vmul.f32 %v3503, 11.313708
          %v3602 = vmul.f32 %v3505, 11.313708
          %v3603 = vmul.f32 %v3507, 11.313708
          %v3604 = vmul.f32 %v3509, 11.313708
          %v3605 = vmul.f32 %v3513, 11.313708
          %v3606 = vmul.f32 %v3515, 11.313708
          %v3607 = vmul.f32 %v3517, 11.313708
          %v3608 = vmul.f32 %v3519, 11.313708
          %v3609 = vmul.f32 %v3523, 11.313708
          %v3610 = vmul.f32 %v3525, 11.313708
          %v3611 = vmul.f32 %v3527, 11.313708
          %v3612 = vmul.f32 %v3529, 11.313708
          %v3613 = vmul.f32 %v3533, 11.313708
          %v3614 = vmul.f32 %v3535, 11.313708
          %v3615 = vmul.f32 %v3537, 11.313708
          %v3616 = vmul.f32 %v3539, 11.313708
          %v3617 = vmul.f32 %v3543, 11.313708
          %v3618 = vmul.f32 %v3545, 11.313708
          %v3619 = vmul.f32 %v3547, 11.313708
          %v3620 = vmul.f32 %v3549, 11.313708
          %v3621 = vmul.f32 %v3553, 11.313708
          %v3622 = vmul.f32 %v3555, 11.313708
          %v3623 = vmul.f32 %v3557, 11.313708
          %v3624 = vmul.f32 %v3559, 11.313708
          %v3625 = vpack.c.bf16 %v3563, %v3561
          %v3626 = vpack.c.bf16 %v3564, %v3562
          %v3627 = vpack.c.bf16 %v3567, %v3565
          %v3628 = vpack.c.bf16 %v3568, %v3566
          %v3629 = vpack.c.bf16 %v3571, %v3569
          %v3630 = vpack.c.bf16 %v3572, %v3570
          %v3631 = vpack.c.bf16 %v3575, %v3573
          %v3632 = vpack.c.bf16 %v3576, %v3574
          %v3633 = vpack.c.bf16 %v3579, %v3577
          %v3634 = vpack.c.bf16 %v3580, %v3578
          %v3635 = vpack.c.bf16 %v3583, %v3581
          %v3636 = vpack.c.bf16 %v3584, %v3582
          %v3637 = vpack.c.bf16 %v3587, %v3585
          %v3638 = vpack.c.bf16 %v3588, %v3586
          %v3639 = vpack.c.bf16 %v3591, %v3589
          %v3640 = vpack.c.bf16 %v3592, %v3590
          %v3641 = vpack.c.bf16 %v3595, %v3593
          %v3642 = vpack.c.bf16 %v3596, %v3594
          %v3643 = vpack.c.bf16 %v3599, %v3597
          %v3644 = vpack.c.bf16 %v3600, %v3598
          %v3645 = vpack.c.bf16 %v3603, %v3601
          %v3646 = vpack.c.bf16 %v3604, %v3602
          %v3647 = vpack.c.bf16 %v3607, %v3605
          %v3648 = vpack.c.bf16 %v3608, %v3606
          %v3649 = vpack.c.bf16 %v3611, %v3609
          %v3650 = vpack.c.bf16 %v3612, %v3610
          %v3651 = vpack.c.bf16 %v3615, %v3613
          %v3652 = vpack.c.bf16 %v3616, %v3614
          %v3653 = vpack.c.bf16 %v3619, %v3617
          %v3654 = vpack.c.bf16 %v3620, %v3618
          %v3655 = vpack.c.bf16 %v3623, %v3621
          %v3656 = vpack.c.bf16 %v3624, %v3622
          %3657 = vst [vmem:[#allocation4] sm:$0xff] %v3625
          %3658 = vst [vmem:[#allocation4 + $0x8] sm:$0xff] %v3626
          %3659 = vst [vmem:[#allocation4 + $0x10] sm:$0xff] %v3627
          %3660 = vst [vmem:[#allocation4 + $0x18] sm:$0xff] %v3628
          %3661 = vst [vmem:[#allocation4 + $0x20] sm:$0xff] %v3629
          %3662 = vst [vmem:[#allocation4 + $0x28] sm:$0xff] %v3630
          %3663 = vst [vmem:[#allocation4 + $0x30] sm:$0xff] %v3631
          %3664 = vst [vmem:[#allocation4 + $0x38] sm:$0xff] %v3632
          %3665 = vst [vmem:[#allocation4 + $0x40] sm:$0xff] %v3633
          %3666 = vst [vmem:[#allocation4 + $0x48] sm:$0xff] %v3634
          %3667 = vst [vmem:[#allocation4 + $0x50] sm:$0xff] %v3635
          %3668 = vst [vmem:[#allocation4 + $0x58] sm:$0xff] %v3636
          %3669 = vst [vmem:[#allocation4 + $0x60] sm:$0xff] %v3637
          %3670 = vst [vmem:[#allocation4 + $0x68] sm:$0xff] %v3638
          %3671 = vst [vmem:[#allocation4 + $0x70] sm:$0xff] %v3639
          %3672 = vst [vmem:[#allocation4 + $0x78] sm:$0xff] %v3640
          %3673 = vst [vmem:[#allocation4 + $0x80] sm:$0xff] %v3641
          %3674 = vst [vmem:[#allocation4 + $0x88] sm:$0xff] %v3642
          %3675 = vst [vmem:[#allocation4 + $0x90] sm:$0xff] %v3643
          %3676 = vst [vmem:[#allocation4 + $0x98] sm:$0xff] %v3644
          %3677 = vst [vmem:[#allocation4 + $0xa0] sm:$0xff] %v3645
          %3678 = vst [vmem:[#allocation4 + $0xa8] sm:$0xff] %v3646
          %3679 = vst [vmem:[#allocation4 + $0xb0] sm:$0xff] %v3647
          %3680 = vst [vmem:[#allocation4 + $0xb8] sm:$0xff] %v3648
          %3681 = vst [vmem:[#allocation4 + $0xc0] sm:$0xff] %v3649
          %3682 = vst [vmem:[#allocation4 + $0xc8] sm:$0xff] %v3650
          %3683 = vst [vmem:[#allocation4 + $0xd0] sm:$0xff] %v3651
          %3684 = vst [vmem:[#allocation4 + $0xd8] sm:$0xff] %v3652
          %3685 = vst [vmem:[#allocation4 + $0xe0] sm:$0xff] %v3653
          %3686 = vst [vmem:[#allocation4 + $0xe8] sm:$0xff] %v3654
          %3687 = vst [vmem:[#allocation4 + $0xf0] sm:$0xff] %v3655
          %3688 = vst [vmem:[#allocation4 + $0xf8] sm:$0xff] %v3656
        $region100: #{tpu_custom_call.1} parent=63 // pred_fallthru
          _
        %s3689 = smul.u32 %s40, 128
        %s3690 = sshra.s32 %s3689, 7
        %s3691 = sand.u32 %s3689, 127
        %s3692 = smul.addr %s3690, 8
        %s3693 = scalar_lea.vmem [#allocation4], %s3692
        %v3694 = vld [vmem:[%s3693] sm:$0xff]
        %v3695 = vld [vmem:[%s3693 + $0x10] sm:$0xff]
        %v3696 = vld [vmem:[%s3693 + $0x20] sm:$0xff]
        %v3697 = vld [vmem:[%s3693 + $0x30] sm:$0xff]
        %v3698 = vld [vmem:[%s3693 + $0x40] sm:$0xff]
        %v3699 = vld [vmem:[%s3693 + $0x50] sm:$0xff]
        %v3700 = vld [vmem:[%s3693 + $0x60] sm:$0xff]
        %v3701 = vld [vmem:[%s3693 + $0x70] sm:$0xff]
        %v3702 = vld [vmem:[%s3693 + $0x80] sm:$0xff]
        %v3703 = vld [vmem:[%s3693 + $0x90] sm:$0xff]
        %v3704 = vld [vmem:[%s3693 + $0xa0] sm:$0xff]
        %v3705 = vld [vmem:[%s3693 + $0xb0] sm:$0xff]
        %v3706 = vld [vmem:[%s3693 + $0xc0] sm:$0xff]
        %v3707 = vld [vmem:[%s3693 + $0xd0] sm:$0xff]
        %v3708 = vld [vmem:[%s3693 + $0xe0] sm:$0xff]
        %v3709 = vld [vmem:[%s3693 + $0xf0] sm:$0xff]
        %s3710 = sshra.s32 %s3689, 4
        %s3711 = sand.u32 %s3689, 15
        %s3712 = smul.u32 %s3710, 4
        %s3713 = sadd.s32 0, %s3712
        %s3714 = smul.addr %s3713, 8
        %s3715 = scalar_lea.vmem [#allocation2], %s3714
        %v3716 = vld [vmem:[%s3715] sm:$0xff]
        %v3717 = vld [vmem:[%s3715 + $0x8] sm:$0xff]
        %v3718 = vld [vmem:[%s3715 + $0x20] sm:$0xff]
        %v3719 = vld [vmem:[%s3715 + $0x28] sm:$0xff]
        %v3720 = vld [vmem:[%s3715 + $0x40] sm:$0xff]
        %v3721 = vld [vmem:[%s3715 + $0x48] sm:$0xff]
        %v3722 = vld [vmem:[%s3715 + $0x60] sm:$0xff]
        %v3723 = vld [vmem:[%s3715 + $0x68] sm:$0xff]
        %v3724 = vld [vmem:[%s3715 + $0x80] sm:$0xff]
        %v3725 = vld [vmem:[%s3715 + $0x88] sm:$0xff]
        %v3726 = vld [vmem:[%s3715 + $0xa0] sm:$0xff]
        %v3727 = vld [vmem:[%s3715 + $0xa8] sm:$0xff]
        %v3728 = vld [vmem:[%s3715 + $0xc0] sm:$0xff]
        %v3729 = vld [vmem:[%s3715 + $0xc8] sm:$0xff]
        %v3730 = vld [vmem:[%s3715 + $0xe0] sm:$0xff]
        %v3731 = vld [vmem:[%s3715 + $0xe8] sm:$0xff]
        %s3732 = smul.u32 0, 2
        %s3733 = sadd.s32 %s3690, %s3732
        %s3734 = smul.addr %s3733, 8
        %s3735 = scalar_lea.vmem [#allocation3], %s3734
        %v3736 = vld [vmem:[%s3735] sm:$0xff]
        %v3737 = vld [vmem:[%s3735 + $0x10] sm:$0xff]
        %v3738 = vld [vmem:[%s3735 + $0x20] sm:$0xff]
        %v3739 = vld [vmem:[%s3735 + $0x30] sm:$0xff]
        %v3740 = vld [vmem:[%s3735 + $0x40] sm:$0xff]
        %v3741 = vld [vmem:[%s3735 + $0x50] sm:$0xff]
        %v3742 = vld [vmem:[%s3735 + $0x60] sm:$0xff]
        %v3743 = vld [vmem:[%s3735 + $0x70] sm:$0xff]
        %v3744 = vld [vmem:[%s3735 + $0x80] sm:$0xff]
        %v3745 = vld [vmem:[%s3735 + $0x90] sm:$0xff]
        %v3746 = vld [vmem:[%s3735 + $0xa0] sm:$0xff]
        %v3747 = vld [vmem:[%s3735 + $0xb0] sm:$0xff]
        %v3748 = vld [vmem:[%s3735 + $0xc0] sm:$0xff]
        %v3749 = vld [vmem:[%s3735 + $0xd0] sm:$0xff]
        %v3750 = vld [vmem:[%s3735 + $0xe0] sm:$0xff]
        %v3751 = vld [vmem:[%s3735 + $0xf0] sm:$0xff]
        %3752 = vmatprep.subr.bf16.mxu0 %v3717
        %3753 = vmatpush1.bf16.msra.mxu0 %v3716
        %3754 = vmatprep.subr.bf16.mxu0 %v3719
        %3755 = vmatpush1.bf16.msra.mxu0 %v3718
        %3756 = vmatprep.subr.bf16.mxu0 %v3721
        %3757 = vmatpush1.bf16.msra.mxu0 %v3720
        %3758 = vmatprep.subr.bf16.mxu0 %v3723
        %3759 = vmatpush1.bf16.msra.mxu0 %v3722
        %3760 = vmatprep.subr.bf16.mxu0 %v3725
        %3761 = vmatpush1.bf16.msra.mxu0 %v3724
        %3762 = vmatprep.subr.bf16.mxu0 %v3727
        %3763 = vmatpush1.bf16.msra.mxu0 %v3726
        %3764 = vmatprep.subr.bf16.mxu0 %v3729
        %3765 = vmatpush1.bf16.msra.mxu0 %v3728
        %3766 = vmatprep.subr.bf16.mxu0 %v3731
        %3767 = vmatpush1.bf16.msra.mxu0 %v3730
        %3768 = vmatprep.subr.bf16.mxu0 0
        %3769 = vmatpush1.bf16.msra.mxu0 0
        %3770 = vmatprep.subr.bf16.mxu0 0
        %3771 = vmatpush1.bf16.msra.mxu0 0
        %3772 = vmatprep.subr.bf16.mxu0 0
        %3773 = vmatpush1.bf16.msra.mxu0 0
        %3774 = vmatprep.subr.bf16.mxu0 0
        %3775 = vmatpush1.bf16.msra.mxu0 0
        %3776 = vmatprep.subr.bf16.mxu0 0
        %3777 = vmatpush1.bf16.msra.mxu0 0
        %3778 = vmatprep.subr.bf16.mxu0 0
        %3779 = vmatpush1.bf16.msra.mxu0 0
        %3780 = vmatprep.subr.bf16.mxu0 0
        %3781 = vmatpush1.bf16.msra.mxu0 0
        %3782 = vmatprep.subr.bf16.mxu0 0
        %3783 = vmatpush1.bf16.msra.mxu0 0
        %3784 = vmatprep.mubr.bf16.mxu0 0
        %3785 = vmatmul.mubr.bf16.gmra.mrb[0].mxu0 %v3694
        %v3786 = vpop.f32.mrb[0].mxu0
        %v3787 = vadd.f32 0.0, %v3786
        %v3788 = vpop.f32.mrb[0].mxu0
        %v3789 = vadd.f32 0.0, %v3788
        %v3790 = vpop.f32.mrb[0].mxu0
        %v3791 = vadd.f32 0.0, %v3790
        %v3792 = vpop.f32.mrb[0].mxu0
        %v3793 = vadd.f32 0.0, %v3792
        %3794 = vmatprep.mubr.bf16.mxu0 0
        %3795 = vmatmul.mubr.bf16.gmra.mrb[0].mxu0 %v3695
        %v3796 = vpop.f32.mrb[0].mxu0
        %v3797 = vadd.f32 0.0, %v3796
        %v3798 = vpop.f32.mrb[0].mxu0
        %v3799 = vadd.f32 0.0, %v3798
        %v3800 = vpop.f32.mrb[0].mxu0
        %v3801 = vadd.f32 0.0, %v3800
        %v3802 = vpop.f32.mrb[0].mxu0
        %v3803 = vadd.f32 0.0, %v3802
        %3804 = vmatprep.mubr.bf16.mxu0 0
        %3805 = vmatmul.mubr.bf16.gmra.mrb[0].mxu0 %v3696
        %v3806 = vpop.f32.mrb[0].mxu0
        %v3807 = vadd.f32 0.0, %v3806
        %v3808 = vpop.f32.mrb[0].mxu0
        %v3809 = vadd.f32 0.0, %v3808
        %v3810 = vpop.f32.mrb[0].mxu0
        %v3811 = vadd.f32 0.0, %v3810
        %v3812 = vpop.f32.mrb[0].mxu0
        %v3813 = vadd.f32 0.0, %v3812
        %3814 = vmatprep.mubr.bf16.mxu0 0
        %3815 = vmatmul.mubr.bf16.gmra.mrb[0].mxu0 %v3697
        %v3816 = vpop.f32.mrb[0].mxu0
        %v3817 = vadd.f32 0.0, %v3816
        %v3818 = vpop.f32.mrb[0].mxu0
        %v3819 = vadd.f32 0.0, %v3818
        %v3820 = vpop.f32.mrb[0].mxu0
        %v3821 = vadd.f32 0.0, %v3820
        %v3822 = vpop.f32.mrb[0].mxu0
        %v3823 = vadd.f32 0.0, %v3822
        %3824 = vmatprep.mubr.bf16.mxu0 0
        %3825 = vmatmul.mubr.bf16.gmra.mrb[0].mxu0 %v3698
        %v3826 = vpop.f32.mrb[0].mxu0
        %v3827 = vadd.f32 0.0, %v3826
        %v3828 = vpop.f32.mrb[0].mxu0
        %v3829 = vadd.f32 0.0, %v3828
        %v3830 = vpop.f32.mrb[0].mxu0
        %v3831 = vadd.f32 0.0, %v3830
        %v3832 = vpop.f32.mrb[0].mxu0
        %v3833 = vadd.f32 0.0, %v3832
        %3834 = vmatprep.mubr.bf16.mxu0 0
        %3835 = vmatmul.mubr.bf16.gmra.mrb[0].mxu0 %v3699
        %v3836 = vpop.f32.mrb[0].mxu0
        %v3837 = vadd.f32 0.0, %v3836
        %v3838 = vpop.f32.mrb[0].mxu0
        %v3839 = vadd.f32 0.0, %v3838
        %v3840 = vpop.f32.mrb[0].mxu0
        %v3841 = vadd.f32 0.0, %v3840
        %v3842 = vpop.f32.mrb[0].mxu0
        %v3843 = vadd.f32 0.0, %v3842
        %3844 = vmatprep.mubr.bf16.mxu0 0
        %3845 = vmatmul.mubr.bf16.gmra.mrb[0].mxu0 %v3700
        %v3846 = vpop.f32.mrb[0].mxu0
        %v3847 = vadd.f32 0.0, %v3846
        %v3848 = vpop.f32.mrb[0].mxu0
        %v3849 = vadd.f32 0.0, %v3848
        %v3850 = vpop.f32.mrb[0].mxu0
        %v3851 = vadd.f32 0.0, %v3850
        %v3852 = vpop.f32.mrb[0].mxu0
        %v3853 = vadd.f32 0.0, %v3852
        %3854 = vmatprep.mubr.bf16.mxu0 0
        %3855 = vmatmul.mubr.bf16.gmra.mrb[0].mxu0 %v3701
        %v3856 = vpop.f32.mrb[0].mxu0
        %v3857 = vadd.f32 0.0, %v3856
        %v3858 = vpop.f32.mrb[0].mxu0
        %v3859 = vadd.f32 0.0, %v3858
        %v3860 = vpop.f32.mrb[0].mxu0
        %v3861 = vadd.f32 0.0, %v3860
        %v3862 = vpop.f32.mrb[0].mxu0
        %v3863 = vadd.f32 0.0, %v3862
        %3864 = vmatprep.mubr.bf16.mxu0 0
        %3865 = vmatmul.mubr.bf16.gmra.mrb[0].mxu0 %v3702
        %v3866 = vpop.f32.mrb[0].mxu0
        %v3867 = vadd.f32 0.0, %v3866
        %v3868 = vpop.f32.mrb[0].mxu0
        %v3869 = vadd.f32 0.0, %v3868
        %v3870 = vpop.f32.mrb[0].mxu0
        %v3871 = vadd.f32 0.0, %v3870
        %v3872 = vpop.f32.mrb[0].mxu0
        %v3873 = vadd.f32 0.0, %v3872
        %3874 = vmatprep.mubr.bf16.mxu0 0
        %3875 = vmatmul.mubr.bf16.gmra.mrb[0].mxu0 %v3703
        %v3876 = vpop.f32.mrb[0].mxu0
        %v3877 = vadd.f32 0.0, %v3876
        %v3878 = vpop.f32.mrb[0].mxu0
        %v3879 = vadd.f32 0.0, %v3878
        %v3880 = vpop.f32.mrb[0].mxu0
        %v3881 = vadd.f32 0.0, %v3880
        %v3882 = vpop.f32.mrb[0].mxu0
        %v3883 = vadd.f32 0.0, %v3882
        %3884 = vmatprep.mubr.bf16.mxu0 0
        %3885 = vmatmul.mubr.bf16.gmra.mrb[0].mxu0 %v3704
        %v3886 = vpop.f32.mrb[0].mxu0
        %v3887 = vadd.f32 0.0, %v3886
        %v3888 = vpop.f32.mrb[0].mxu0
        %v3889 = vadd.f32 0.0, %v3888
        %v3890 = vpop.f32.mrb[0].mxu0
        %v3891 = vadd.f32 0.0, %v3890
        %v3892 = vpop.f32.mrb[0].mxu0
        %v3893 = vadd.f32 0.0, %v3892
        %3894 = vmatprep.mubr.bf16.mxu0 0
        %3895 = vmatmul.mubr.bf16.gmra.mrb[0].mxu0 %v3705
        %v3896 = vpop.f32.mrb[0].mxu0
        %v3897 = vadd.f32 0.0, %v3896
        %v3898 = vpop.f32.mrb[0].mxu0
        %v3899 = vadd.f32 0.0, %v3898
        %v3900 = vpop.f32.mrb[0].mxu0
        %v3901 = vadd.f32 0.0, %v3900
        %v3902 = vpop.f32.mrb[0].mxu0
        %v3903 = vadd.f32 0.0, %v3902
        %3904 = vmatprep.mubr.bf16.mxu0 0
        %3905 = vmatmul.mubr.bf16.gmra.mrb[0].mxu0 %v3706
        %v3906 = vpop.f32.mrb[0].mxu0
        %v3907 = vadd.f32 0.0, %v3906
        %v3908 = vpop.f32.mrb[0].mxu0
        %v3909 = vadd.f32 0.0, %v3908
        %v3910 = vpop.f32.mrb[0].mxu0
        %v3911 = vadd.f32 0.0, %v3910
        %v3912 = vpop.f32.mrb[0].mxu0
        %v3913 = vadd.f32 0.0, %v3912
        %3914 = vmatprep.mubr.bf16.mxu0 0
        %3915 = vmatmul.mubr.bf16.gmra.mrb[0].mxu0 %v3707
        %v3916 = vpop.f32.mrb[0].mxu0
        %v3917 = vadd.f32 0.0, %v3916
        %v3918 = vpop.f32.mrb[0].mxu0
        %v3919 = vadd.f32 0.0, %v3918
        %v3920 = vpop.f32.mrb[0].mxu0
        %v3921 = vadd.f32 0.0, %v3920
        %v3922 = vpop.f32.mrb[0].mxu0
        %v3923 = vadd.f32 0.0, %v3922
        %3924 = vmatprep.mubr.bf16.mxu0 0
        %3925 = vmatmul.mubr.bf16.gmra.mrb[0].mxu0 %v3708
        %v3926 = vpop.f32.mrb[0].mxu0
        %v3927 = vadd.f32 0.0, %v3926
        %v3928 = vpop.f32.mrb[0].mxu0
        %v3929 = vadd.f32 0.0, %v3928
        %v3930 = vpop.f32.mrb[0].mxu0
        %v3931 = vadd.f32 0.0, %v3930
        %v3932 = vpop.f32.mrb[0].mxu0
        %v3933 = vadd.f32 0.0, %v3932
        %3934 = vmatprep.mubr.bf16.mxu0 0
        %3935 = vmatmul.mubr.bf16.gmra.mrb[0].mxu0 %v3709
        %v3936 = vpop.f32.mrb[0].mxu0
        %v3937 = vadd.f32 0.0, %v3936
        %v3938 = vpop.f32.mrb[0].mxu0
        %v3939 = vadd.f32 0.0, %v3938
        %v3940 = vpop.f32.mrb[0].mxu0
        %v3941 = vadd.f32 0.0, %v3940
        %v3942 = vpop.f32.mrb[0].mxu0
        %v3943 = vadd.f32 0.0, %v3942
        %3944 = vdwg.mxu0
        %v3945 = vmax.f32 %v3787, %v3789
        %3946 = vmax.xlane.f32.xlu0 %v3945
        %v3947 = vpop.xlane.xlu0 %3946
        %v3948 = vmax.f32 %v3791, %v3793
        %3949 = vmax.xlane.f32.xlu0 %v3948
        %v3950 = vpop.xlane.xlu0 %3949
        %v3951 = vmax.f32 %v3797, %v3799
        %3952 = vmax.xlane.f32.xlu0 %v3951
        %v3953 = vpop.xlane.xlu0 %3952
        %v3954 = vmax.f32 %v3801, %v3803
        %3955 = vmax.xlane.f32.xlu0 %v3954
        %v3956 = vpop.xlane.xlu0 %3955
        %v3957 = vmax.f32 %v3807, %v3809
        %3958 = vmax.xlane.f32.xlu0 %v3957
        %v3959 = vpop.xlane.xlu0 %3958
        %v3960 = vmax.f32 %v3811, %v3813
        %3961 = vmax.xlane.f32.xlu0 %v3960
        %v3962 = vpop.xlane.xlu0 %3961
        %v3963 = vmax.f32 %v3817, %v3819
        %3964 = vmax.xlane.f32.xlu0 %v3963
        %v3965 = vpop.xlane.xlu0 %3964
        %v3966 = vmax.f32 %v3821, %v3823
        %3967 = vmax.xlane.f32.xlu0 %v3966
        %v3968 = vpop.xlane.xlu0 %3967
        %v3969 = vmax.f32 %v3827, %v3829
        %3970 = vmax.xlane.f32.xlu0 %v3969
        %v3971 = vpop.xlane.xlu0 %3970
        %v3972 = vmax.f32 %v3831, %v3833
        %3973 = vmax.xlane.f32.xlu0 %v3972
        %v3974 = vpop.xlane.xlu0 %3973
        %v3975 = vmax.f32 %v3837, %v3839
        %3976 = vmax.xlane.f32.xlu0 %v3975
        %v3977 = vpop.xlane.xlu0 %3976
        %v3978 = vmax.f32 %v3841, %v3843
        %3979 = vmax.xlane.f32.xlu0 %v3978
        %v3980 = vpop.xlane.xlu0 %3979
        %v3981 = vmax.f32 %v3847, %v3849
        %3982 = vmax.xlane.f32.xlu0 %v3981
        %v3983 = vpop.xlane.xlu0 %3982
        %v3984 = vmax.f32 %v3851, %v3853
        %3985 = vmax.xlane.f32.xlu0 %v3984
        %v3986 = vpop.xlane.xlu0 %3985
        %v3987 = vmax.f32 %v3857, %v3859
        %3988 = vmax.xlane.f32.xlu0 %v3987
        %v3989 = vpop.xlane.xlu0 %3988
        %v3990 = vmax.f32 %v3861, %v3863
        %3991 = vmax.xlane.f32.xlu0 %v3990
        %v3992 = vpop.xlane.xlu0 %3991
        %v3993 = vmax.f32 %v3867, %v3869
        %3994 = vmax.xlane.f32.xlu0 %v3993
        %v3995 = vpop.xlane.xlu0 %3994
        %v3996 = vmax.f32 %v3871, %v3873
        %3997 = vmax.xlane.f32.xlu0 %v3996
        %v3998 = vpop.xlane.xlu0 %3997
        %v3999 = vmax.f32 %v3877, %v3879
        %4000 = vmax.xlane.f32.xlu0 %v3999
        %v4001 = vpop.xlane.xlu0 %4000
        %v4002 = vmax.f32 %v3881, %v3883
        %4003 = vmax.xlane.f32.xlu0 %v4002
        %v4004 = vpop.xlane.xlu0 %4003
        %v4005 = vmax.f32 %v3887, %v3889
        %4006 = vmax.xlane.f32.xlu0 %v4005
        %v4007 = vpop.xlane.xlu0 %4006
        %v4008 = vmax.f32 %v3891, %v3893
        %4009 = vmax.xlane.f32.xlu0 %v4008
        %v4010 = vpop.xlane.xlu0 %4009
        %v4011 = vmax.f32 %v3897, %v3899
        %4012 = vmax.xlane.f32.xlu0 %v4011
        %v4013 = vpop.xlane.xlu0 %4012
        %v4014 = vmax.f32 %v3901, %v3903
        %4015 = vmax.xlane.f32.xlu0 %v4014
        %v4016 = vpop.xlane.xlu0 %4015
        %v4017 = vmax.f32 %v3907, %v3909
        %4018 = vmax.xlane.f32.xlu0 %v4017
        %v4019 = vpop.xlane.xlu0 %4018
        %v4020 = vmax.f32 %v3911, %v3913
        %4021 = vmax.xlane.f32.xlu0 %v4020
        %v4022 = vpop.xlane.xlu0 %4021
        %v4023 = vmax.f32 %v3917, %v3919
        %4024 = vmax.xlane.f32.xlu0 %v4023
        %v4025 = vpop.xlane.xlu0 %4024
        %v4026 = vmax.f32 %v3921, %v3923
        %4027 = vmax.xlane.f32.xlu0 %v4026
        %v4028 = vpop.xlane.xlu0 %4027
        %v4029 = vmax.f32 %v3927, %v3929
        %4030 = vmax.xlane.f32.xlu0 %v4029
        %v4031 = vpop.xlane.xlu0 %4030
        %v4032 = vmax.f32 %v3931, %v3933
        %4033 = vmax.xlane.f32.xlu0 %v4032
        %v4034 = vpop.xlane.xlu0 %4033
        %v4035 = vmax.f32 %v3937, %v3939
        %4036 = vmax.xlane.f32.xlu0 %v4035
        %v4037 = vpop.xlane.xlu0 %4036
        %v4038 = vmax.f32 %v3941, %v3943
        %4039 = vmax.xlane.f32.xlu0 %v4038
        %v4040 = vpop.xlane.xlu0 %4039
        %v4041 = vsub.f32 -inf, %v3947
        %v4042 = vsub.f32 -inf, %v3950
        %v4043 = vsub.f32 -inf, %v3953
        %v4044 = vsub.f32 -inf, %v3956
        %v4045 = vsub.f32 -inf, %v3959
        %v4046 = vsub.f32 -inf, %v3962
        %v4047 = vsub.f32 -inf, %v3965
        %v4048 = vsub.f32 -inf, %v3968
        %v4049 = vsub.f32 -inf, %v3971
        %v4050 = vsub.f32 -inf, %v3974
        %v4051 = vsub.f32 -inf, %v3977
        %v4052 = vsub.f32 -inf, %v3980
        %v4053 = vsub.f32 -inf, %v3983
        %v4054 = vsub.f32 -inf, %v3986
        %v4055 = vsub.f32 -inf, %v3989
        %v4056 = vsub.f32 -inf, %v3992
        %v4057 = vsub.f32 -inf, %v3995
        %v4058 = vsub.f32 -inf, %v3998
        %v4059 = vsub.f32 -inf, %v4001
        %v4060 = vsub.f32 -inf, %v4004
        %v4061 = vsub.f32 -inf, %v4007
        %v4062 = vsub.f32 -inf, %v4010
        %v4063 = vsub.f32 -inf, %v4013
        %v4064 = vsub.f32 -inf, %v4016
        %v4065 = vsub.f32 -inf, %v4019
        %v4066 = vsub.f32 -inf, %v4022
        %v4067 = vsub.f32 -inf, %v4025
        %v4068 = vsub.f32 -inf, %v4028
        %v4069 = vsub.f32 -inf, %v4031
        %v4070 = vsub.f32 -inf, %v4034
        %v4071 = vsub.f32 -inf, %v4037
        %v4072 = vsub.f32 -inf, %v4040
        %v4073 = vmul.f32 %v4041, 1.442695
        %v4074 = vpow.pop %v4073
        %v4075 = vmul.f32 %v4042, 1.442695
        %v4076 = vpow.pop %v4075
        %v4077 = vmul.f32 %v4043, 1.442695
        %v4078 = vpow.pop %v4077
        %v4079 = vmul.f32 %v4044, 1.442695
        %v4080 = vpow.pop %v4079
        %v4081 = vmul.f32 %v4045, 1.442695
        %v4082 = vpow.pop %v4081
        %v4083 = vmul.f32 %v4046, 1.442695
        %v4084 = vpow.pop %v4083
        %v4085 = vmul.f32 %v4047, 1.442695
        %v4086 = vpow.pop %v4085
        %v4087 = vmul.f32 %v4048, 1.442695
        %v4088 = vpow.pop %v4087
        %v4089 = vmul.f32 %v4049, 1.442695
        %v4090 = vpow.pop %v4089
        %v4091 = vmul.f32 %v4050, 1.442695
        %v4092 = vpow.pop %v4091
        %v4093 = vmul.f32 %v4051, 1.442695
        %v4094 = vpow.pop %v4093
        %v4095 = vmul.f32 %v4052, 1.442695
        %v4096 = vpow.pop %v4095
        %v4097 = vmul.f32 %v4053, 1.442695
        %v4098 = vpow.pop %v4097
        %v4099 = vmul.f32 %v4054, 1.442695
        %v4100 = vpow.pop %v4099
        %v4101 = vmul.f32 %v4055, 1.442695
        %v4102 = vpow.pop %v4101
        %v4103 = vmul.f32 %v4056, 1.442695
        %v4104 = vpow.pop %v4103
        %v4105 = vmul.f32 %v4057, 1.442695
        %v4106 = vpow.pop %v4105
        %v4107 = vmul.f32 %v4058, 1.442695
        %v4108 = vpow.pop %v4107
        %v4109 = vmul.f32 %v4059, 1.442695
        %v4110 = vpow.pop %v4109
        %v4111 = vmul.f32 %v4060, 1.442695
        %v4112 = vpow.pop %v4111
        %v4113 = vmul.f32 %v4061, 1.442695
        %v4114 = vpow.pop %v4113
        %v4115 = vmul.f32 %v4062, 1.442695
        %v4116 = vpow.pop %v4115
        %v4117 = vmul.f32 %v4063, 1.442695
        %v4118 = vpow.pop %v4117
        %v4119 = vmul.f32 %v4064, 1.442695
        %v4120 = vpow.pop %v4119
        %v4121 = vmul.f32 %v4065, 1.442695
        %v4122 = vpow.pop %v4121
        %v4123 = vmul.f32 %v4066, 1.442695
        %v4124 = vpow.pop %v4123
        %v4125 = vmul.f32 %v4067, 1.442695
        %v4126 = vpow.pop %v4125
        %v4127 = vmul.f32 %v4068, 1.442695
        %v4128 = vpow.pop %v4127
        %v4129 = vmul.f32 %v4069, 1.442695
        %v4130 = vpow.pop %v4129
        %v4131 = vmul.f32 %v4070, 1.442695
        %v4132 = vpow.pop %v4131
        %v4133 = vmul.f32 %v4071, 1.442695
        %v4134 = vpow.pop %v4133
        %v4135 = vmul.f32 %v4072, 1.442695
        %v4136 = vpow.pop %v4135
        %v4137 = vsub.f32 %v3787, %v3947
        %v4138 = vsub.f32 %v3789, %v3947
        %v4139 = vsub.f32 %v3791, %v3950
        %v4140 = vsub.f32 %v3793, %v3950
        %v4141 = vsub.f32 %v3797, %v3953
        %v4142 = vsub.f32 %v3799, %v3953
        %v4143 = vsub.f32 %v3801, %v3956
        %v4144 = vsub.f32 %v3803, %v3956
        %v4145 = vsub.f32 %v3807, %v3959
        %v4146 = vsub.f32 %v3809, %v3959
        %v4147 = vsub.f32 %v3811, %v3962
        %v4148 = vsub.f32 %v3813, %v3962
        %v4149 = vsub.f32 %v3817, %v3965
        %v4150 = vsub.f32 %v3819, %v3965
        %v4151 = vsub.f32 %v3821, %v3968
        %v4152 = vsub.f32 %v3823, %v3968
        %v4153 = vsub.f32 %v3827, %v3971
        %v4154 = vsub.f32 %v3829, %v3971
        %v4155 = vsub.f32 %v3831, %v3974
        %v4156 = vsub.f32 %v3833, %v3974
        %v4157 = vsub.f32 %v3837, %v3977
        %v4158 = vsub.f32 %v3839, %v3977
        %v4159 = vsub.f32 %v3841, %v3980
        %v4160 = vsub.f32 %v3843, %v3980
        %v4161 = vsub.f32 %v3847, %v3983
        %v4162 = vsub.f32 %v3849, %v3983
        %v4163 = vsub.f32 %v3851, %v3986
        %v4164 = vsub.f32 %v3853, %v3986
        %v4165 = vsub.f32 %v3857, %v3989
        %v4166 = vsub.f32 %v3859, %v3989
        %v4167 = vsub.f32 %v3861, %v3992
        %v4168 = vsub.f32 %v3863, %v3992
        %v4169 = vsub.f32 %v3867, %v3995
        %v4170 = vsub.f32 %v3869, %v3995
        %v4171 = vsub.f32 %v3871, %v3998
        %v4172 = vsub.f32 %v3873, %v3998
        %v4173 = vsub.f32 %v3877, %v4001
        %v4174 = vsub.f32 %v3879, %v4001
        %v4175 = vsub.f32 %v3881, %v4004
        %v4176 = vsub.f32 %v3883, %v4004
        %v4177 = vsub.f32 %v3887, %v4007
        %v4178 = vsub.f32 %v3889, %v4007
        %v4179 = vsub.f32 %v3891, %v4010
        %v4180 = vsub.f32 %v3893, %v4010
        %v4181 = vsub.f32 %v3897, %v4013
        %v4182 = vsub.f32 %v3899, %v4013
        %v4183 = vsub.f32 %v3901, %v4016
        %v4184 = vsub.f32 %v3903, %v4016
        %v4185 = vsub.f32 %v3907, %v4019
        %v4186 = vsub.f32 %v3909, %v4019
        %v4187 = vsub.f32 %v3911, %v4022
        %v4188 = vsub.f32 %v3913, %v4022
        %v4189 = vsub.f32 %v3917, %v4025
        %v4190 = vsub.f32 %v3919, %v4025
        %v4191 = vsub.f32 %v3921, %v4028
        %v4192 = vsub.f32 %v3923, %v4028
        %v4193 = vsub.f32 %v3927, %v4031
        %v4194 = vsub.f32 %v3929, %v4031
        %v4195 = vsub.f32 %v3931, %v4034
        %v4196 = vsub.f32 %v3933, %v4034
        %v4197 = vsub.f32 %v3937, %v4037
        %v4198 = vsub.f32 %v3939, %v4037
        %v4199 = vsub.f32 %v3941, %v4040
        %v4200 = vsub.f32 %v3943, %v4040
        %v4201 = vmul.f32 %v4137, 1.442695
        %v4202 = vpow.pop %v4201
        %v4203 = vmul.f32 %v4138, 1.442695
        %v4204 = vpow.pop %v4203
        %v4205 = vmul.f32 %v4139, 1.442695
        %v4206 = vpow.pop %v4205
        %v4207 = vmul.f32 %v4140, 1.442695
        %v4208 = vpow.pop %v4207
        %v4209 = vmul.f32 %v4141, 1.442695
        %v4210 = vpow.pop %v4209
        %v4211 = vmul.f32 %v4142, 1.442695
        %v4212 = vpow.pop %v4211
        %v4213 = vmul.f32 %v4143, 1.442695
        %v4214 = vpow.pop %v4213
        %v4215 = vmul.f32 %v4144, 1.442695
        %v4216 = vpow.pop %v4215
        %v4217 = vmul.f32 %v4145, 1.442695
        %v4218 = vpow.pop %v4217
        %v4219 = vmul.f32 %v4146, 1.442695
        %v4220 = vpow.pop %v4219
        %v4221 = vmul.f32 %v4147, 1.442695
        %v4222 = vpow.pop %v4221
        %v4223 = vmul.f32 %v4148, 1.442695
        %v4224 = vpow.pop %v4223
        %v4225 = vmul.f32 %v4149, 1.442695
        %v4226 = vpow.pop %v4225
        %v4227 = vmul.f32 %v4150, 1.442695
        %v4228 = vpow.pop %v4227
        %v4229 = vmul.f32 %v4151, 1.442695
        %v4230 = vpow.pop %v4229
        %v4231 = vmul.f32 %v4152, 1.442695
        %v4232 = vpow.pop %v4231
        %v4233 = vmul.f32 %v4153, 1.442695
        %v4234 = vpow.pop %v4233
        %v4235 = vmul.f32 %v4154, 1.442695
        %v4236 = vpow.pop %v4235
        %v4237 = vmul.f32 %v4155, 1.442695
        %v4238 = vpow.pop %v4237
        %v4239 = vmul.f32 %v4156, 1.442695
        %v4240 = vpow.pop %v4239
        %v4241 = vmul.f32 %v4157, 1.442695
        %v4242 = vpow.pop %v4241
        %v4243 = vmul.f32 %v4158, 1.442695
        %v4244 = vpow.pop %v4243
        %v4245 = vmul.f32 %v4159, 1.442695
        %v4246 = vpow.pop %v4245
        %v4247 = vmul.f32 %v4160, 1.442695
        %v4248 = vpow.pop %v4247
        %v4249 = vmul.f32 %v4161, 1.442695
        %v4250 = vpow.pop %v4249
        %v4251 = vmul.f32 %v4162, 1.442695
        %v4252 = vpow.pop %v4251
        %v4253 = vmul.f32 %v4163, 1.442695
        %v4254 = vpow.pop %v4253
        %v4255 = vmul.f32 %v4164, 1.442695
        %v4256 = vpow.pop %v4255
        %v4257 = vmul.f32 %v4165, 1.442695
        %v4258 = vpow.pop %v4257
        %v4259 = vmul.f32 %v4166, 1.442695
        %v4260 = vpow.pop %v4259
        %v4261 = vmul.f32 %v4167, 1.442695
        %v4262 = vpow.pop %v4261
        %v4263 = vmul.f32 %v4168, 1.442695
        %v4264 = vpow.pop %v4263
        %v4265 = vmul.f32 %v4169, 1.442695
        %v4266 = vpow.pop %v4265
        %v4267 = vmul.f32 %v4170, 1.442695
        %v4268 = vpow.pop %v4267
        %v4269 = vmul.f32 %v4171, 1.442695
        %v4270 = vpow.pop %v4269
        %v4271 = vmul.f32 %v4172, 1.442695
        %v4272 = vpow.pop %v4271
        %v4273 = vmul.f32 %v4173, 1.442695
        %v4274 = vpow.pop %v4273
        %v4275 = vmul.f32 %v4174, 1.442695
        %v4276 = vpow.pop %v4275
        %v4277 = vmul.f32 %v4175, 1.442695
        %v4278 = vpow.pop %v4277
        %v4279 = vmul.f32 %v4176, 1.442695
        %v4280 = vpow.pop %v4279
        %v4281 = vmul.f32 %v4177, 1.442695
        %v4282 = vpow.pop %v4281
        %v4283 = vmul.f32 %v4178, 1.442695
        %v4284 = vpow.pop %v4283
        %v4285 = vmul.f32 %v4179, 1.442695
        %v4286 = vpow.pop %v4285
        %v4287 = vmul.f32 %v4180, 1.442695
        %v4288 = vpow.pop %v4287
        %v4289 = vmul.f32 %v4181, 1.442695
        %v4290 = vpow.pop %v4289
        %v4291 = vmul.f32 %v4182, 1.442695
        %v4292 = vpow.pop %v4291
        %v4293 = vmul.f32 %v4183, 1.442695
        %v4294 = vpow.pop %v4293
        %v4295 = vmul.f32 %v4184, 1.442695
        %v4296 = vpow.pop %v4295
        %v4297 = vmul.f32 %v4185, 1.442695
        %v4298 = vpow.pop %v4297
        %v4299 = vmul.f32 %v4186, 1.442695
        %v4300 = vpow.pop %v4299
        %v4301 = vmul.f32 %v4187, 1.442695
        %v4302 = vpow.pop %v4301
        %v4303 = vmul.f32 %v4188, 1.442695
        %v4304 = vpow.pop %v4303
        %v4305 = vmul.f32 %v4189, 1.442695
        %v4306 = vpow.pop %v4305
        %v4307 = vmul.f32 %v4190, 1.442695
        %v4308 = vpow.pop %v4307
        %v4309 = vmul.f32 %v4191, 1.442695
        %v4310 = vpow.pop %v4309
        %v4311 = vmul.f32 %v4192, 1.442695
        %v4312 = vpow.pop %v4311
        %v4313 = vmul.f32 %v4193, 1.442695
        %v4314 = vpow.pop %v4313
        %v4315 = vmul.f32 %v4194, 1.442695
        %v4316 = vpow.pop %v4315
        %v4317 = vmul.f32 %v4195, 1.442695
        %v4318 = vpow.pop %v4317
        %v4319 = vmul.f32 %v4196, 1.442695
        %v4320 = vpow.pop %v4319
        %v4321 = vmul.f32 %v4197, 1.442695
        %v4322 = vpow.pop %v4321
        %v4323 = vmul.f32 %v4198, 1.442695
        %v4324 = vpow.pop %v4323
        %v4325 = vmul.f32 %v4199, 1.442695
        %v4326 = vpow.pop %v4325
        %v4327 = vmul.f32 %v4200, 1.442695
        %v4328 = vpow.pop %v4327
        %v4329 = vmul.f32 %v4074, 0.0
        %v4330 = vmul.f32 %v4076, 0.0
        %v4331 = vmul.f32 %v4078, 0.0
        %v4332 = vmul.f32 %v4080, 0.0
        %v4333 = vmul.f32 %v4082, 0.0
        %v4334 = vmul.f32 %v4084, 0.0
        %v4335 = vmul.f32 %v4086, 0.0
        %v4336 = vmul.f32 %v4088, 0.0
        %v4337 = vmul.f32 %v4090, 0.0
        %v4338 = vmul.f32 %v4092, 0.0
        %v4339 = vmul.f32 %v4094, 0.0
        %v4340 = vmul.f32 %v4096, 0.0
        %v4341 = vmul.f32 %v4098, 0.0
        %v4342 = vmul.f32 %v4100, 0.0
        %v4343 = vmul.f32 %v4102, 0.0
        %v4344 = vmul.f32 %v4104, 0.0
        %v4345 = vmul.f32 %v4106, 0.0
        %v4346 = vmul.f32 %v4108, 0.0
        %v4347 = vmul.f32 %v4110, 0.0
        %v4348 = vmul.f32 %v4112, 0.0
        %v4349 = vmul.f32 %v4114, 0.0
        %v4350 = vmul.f32 %v4116, 0.0
        %v4351 = vmul.f32 %v4118, 0.0
        %v4352 = vmul.f32 %v4120, 0.0
        %v4353 = vmul.f32 %v4122, 0.0
        %v4354 = vmul.f32 %v4124, 0.0
        %v4355 = vmul.f32 %v4126, 0.0
        %v4356 = vmul.f32 %v4128, 0.0
        %v4357 = vmul.f32 %v4130, 0.0
        %v4358 = vmul.f32 %v4132, 0.0
        %v4359 = vmul.f32 %v4134, 0.0
        %v4360 = vmul.f32 %v4136, 0.0
        %v4361 = vadd.f32 %v4202, %v4204
        %4362 = vadd.xlane.f32.xlu0 %v4361
        %v4363 = vpop.xlane.xlu0 %4362
        %v4364 = vadd.f32 %v4206, %v4208
        %4365 = vadd.xlane.f32.xlu0 %v4364
        %v4366 = vpop.xlane.xlu0 %4365
        %v4367 = vadd.f32 %v4210, %v4212
        %4368 = vadd.xlane.f32.xlu0 %v4367
        %v4369 = vpop.xlane.xlu0 %4368
        %v4370 = vadd.f32 %v4214, %v4216
        %4371 = vadd.xlane.f32.xlu0 %v4370
        %v4372 = vpop.xlane.xlu0 %4371
        %v4373 = vadd.f32 %v4218, %v4220
        %4374 = vadd.xlane.f32.xlu0 %v4373
        %v4375 = vpop.xlane.xlu0 %4374
        %v4376 = vadd.f32 %v4222, %v4224
        %4377 = vadd.xlane.f32.xlu0 %v4376
        %v4378 = vpop.xlane.xlu0 %4377
        %v4379 = vadd.f32 %v4226, %v4228
        %4380 = vadd.xlane.f32.xlu0 %v4379
        %v4381 = vpop.xlane.xlu0 %4380
        %v4382 = vadd.f32 %v4230, %v4232
        %4383 = vadd.xlane.f32.xlu0 %v4382
        %v4384 = vpop.xlane.xlu0 %4383
        %v4385 = vadd.f32 %v4234, %v4236
        %4386 = vadd.xlane.f32.xlu0 %v4385
        %v4387 = vpop.xlane.xlu0 %4386
        %v4388 = vadd.f32 %v4238, %v4240
        %4389 = vadd.xlane.f32.xlu0 %v4388
        %v4390 = vpop.xlane.xlu0 %4389
        %v4391 = vadd.f32 %v4242, %v4244
        %4392 = vadd.xlane.f32.xlu0 %v4391
        %v4393 = vpop.xlane.xlu0 %4392
        %v4394 = vadd.f32 %v4246, %v4248
        %4395 = vadd.xlane.f32.xlu0 %v4394
        %v4396 = vpop.xlane.xlu0 %4395
        %v4397 = vadd.f32 %v4250, %v4252
        %4398 = vadd.xlane.f32.xlu0 %v4397
        %v4399 = vpop.xlane.xlu0 %4398
        %v4400 = vadd.f32 %v4254, %v4256
        %4401 = vadd.xlane.f32.xlu0 %v4400
        %v4402 = vpop.xlane.xlu0 %4401
        %v4403 = vadd.f32 %v4258, %v4260
        %4404 = vadd.xlane.f32.xlu0 %v4403
        %v4405 = vpop.xlane.xlu0 %4404
        %v4406 = vadd.f32 %v4262, %v4264
        %4407 = vadd.xlane.f32.xlu0 %v4406
        %v4408 = vpop.xlane.xlu0 %4407
        %v4409 = vadd.f32 %v4266, %v4268
        %4410 = vadd.xlane.f32.xlu0 %v4409
        %v4411 = vpop.xlane.xlu0 %4410
        %v4412 = vadd.f32 %v4270, %v4272
        %4413 = vadd.xlane.f32.xlu0 %v4412
        %v4414 = vpop.xlane.xlu0 %4413
        %v4415 = vadd.f32 %v4274, %v4276
        %4416 = vadd.xlane.f32.xlu0 %v4415
        %v4417 = vpop.xlane.xlu0 %4416
        %v4418 = vadd.f32 %v4278, %v4280
        %4419 = vadd.xlane.f32.xlu0 %v4418
        %v4420 = vpop.xlane.xlu0 %4419
        %v4421 = vadd.f32 %v4282, %v4284
        %4422 = vadd.xlane.f32.xlu0 %v4421
        %v4423 = vpop.xlane.xlu0 %4422
        %v4424 = vadd.f32 %v4286, %v4288
        %4425 = vadd.xlane.f32.xlu0 %v4424
        %v4426 = vpop.xlane.xlu0 %4425
        %v4427 = vadd.f32 %v4290, %v4292
        %4428 = vadd.xlane.f32.xlu0 %v4427
        %v4429 = vpop.xlane.xlu0 %4428
        %v4430 = vadd.f32 %v4294, %v4296
        %4431 = vadd.xlane.f32.xlu0 %v4430
        %v4432 = vpop.xlane.xlu0 %4431
        %v4433 = vadd.f32 %v4298, %v4300
        %4434 = vadd.xlane.f32.xlu0 %v4433
        %v4435 = vpop.xlane.xlu0 %4434
        %v4436 = vadd.f32 %v4302, %v4304
        %4437 = vadd.xlane.f32.xlu0 %v4436
        %v4438 = vpop.xlane.xlu0 %4437
        %v4439 = vadd.f32 %v4306, %v4308
        %4440 = vadd.xlane.f32.xlu0 %v4439
        %v4441 = vpop.xlane.xlu0 %4440
        %v4442 = vadd.f32 %v4310, %v4312
        %4443 = vadd.xlane.f32.xlu0 %v4442
        %v4444 = vpop.xlane.xlu0 %4443
        %v4445 = vadd.f32 %v4314, %v4316
        %4446 = vadd.xlane.f32.xlu0 %v4445
        %v4447 = vpop.xlane.xlu0 %4446
        %v4448 = vadd.f32 %v4318, %v4320
        %4449 = vadd.xlane.f32.xlu0 %v4448
        %v4450 = vpop.xlane.xlu0 %4449
        %v4451 = vadd.f32 %v4322, %v4324
        %4452 = vadd.xlane.f32.xlu0 %v4451
        %v4453 = vpop.xlane.xlu0 %4452
        %v4454 = vadd.f32 %v4326, %v4328
        %4455 = vadd.xlane.f32.xlu0 %v4454
        %v4456 = vpop.xlane.xlu0 %4455
        %v4457 = vadd.f32 %v4329, %v4363
        %v4458 = vadd.f32 %v4330, %v4366
        %v4459 = vadd.f32 %v4331, %v4369
        %v4460 = vadd.f32 %v4332, %v4372
        %v4461 = vadd.f32 %v4333, %v4375
        %v4462 = vadd.f32 %v4334, %v4378
        %v4463 = vadd.f32 %v4335, %v4381
        %v4464 = vadd.f32 %v4336, %v4384
        %v4465 = vadd.f32 %v4337, %v4387
        %v4466 = vadd.f32 %v4338, %v4390
        %v4467 = vadd.f32 %v4339, %v4393
        %v4468 = vadd.f32 %v4340, %v4396
        %v4469 = vadd.f32 %v4341, %v4399
        %v4470 = vadd.f32 %v4342, %v4402
        %v4471 = vadd.f32 %v4343, %v4405
        %v4472 = vadd.f32 %v4344, %v4408
        %v4473 = vadd.f32 %v4345, %v4411
        %v4474 = vadd.f32 %v4346, %v4414
        %v4475 = vadd.f32 %v4347, %v4417
        %v4476 = vadd.f32 %v4348, %v4420
        %v4477 = vadd.f32 %v4349, %v4423
        %v4478 = vadd.f32 %v4350, %v4426
        %v4479 = vadd.f32 %v4351, %v4429
        %v4480 = vadd.f32 %v4352, %v4432
        %v4481 = vadd.f32 %v4353, %v4435
        %v4482 = vadd.f32 %v4354, %v4438
        %v4483 = vadd.f32 %v4355, %v4441
        %v4484 = vadd.f32 %v4356, %v4444
        %v4485 = vadd.f32 %v4357, %v4447
        %v4486 = vadd.f32 %v4358, %v4450
        %v4487 = vadd.f32 %v4359, %v4453
        %v4488 = vadd.f32 %v4360, %v4456
        %v4489 = vpack.c.bf16 %v4206, %v4202
        %v4490 = vpack.c.bf16 %v4208, %v4204
        %v4491 = vpack.c.bf16 %v4214, %v4210
        %v4492 = vpack.c.bf16 %v4216, %v4212
        %v4493 = vpack.c.bf16 %v4222, %v4218
        %v4494 = vpack.c.bf16 %v4224, %v4220
        %v4495 = vpack.c.bf16 %v4230, %v4226
        %v4496 = vpack.c.bf16 %v4232, %v4228
        %v4497 = vpack.c.bf16 %v4238, %v4234
        %v4498 = vpack.c.bf16 %v4240, %v4236
        %v4499 = vpack.c.bf16 %v4246, %v4242
        %v4500 = vpack.c.bf16 %v4248, %v4244
        %v4501 = vpack.c.bf16 %v4254, %v4250
        %v4502 = vpack.c.bf16 %v4256, %v4252
        %v4503 = vpack.c.bf16 %v4262, %v4258
        %v4504 = vpack.c.bf16 %v4264, %v4260
        %v4505 = vpack.c.bf16 %v4270, %v4266
        %v4506 = vpack.c.bf16 %v4272, %v4268
        %v4507 = vpack.c.bf16 %v4278, %v4274
        %v4508 = vpack.c.bf16 %v4280, %v4276
        %v4509 = vpack.c.bf16 %v4286, %v4282
        %v4510 = vpack.c.bf16 %v4288, %v4284
        %v4511 = vpack.c.bf16 %v4294, %v4290
        %v4512 = vpack.c.bf16 %v4296, %v4292
        %v4513 = vpack.c.bf16 %v4302, %v4298
        %v4514 = vpack.c.bf16 %v4304, %v4300
        %v4515 = vpack.c.bf16 %v4310, %v4306
        %v4516 = vpack.c.bf16 %v4312, %v4308
        %v4517 = vpack.c.bf16 %v4318, %v4314
        %v4518 = vpack.c.bf16 %v4320, %v4316
        %v4519 = vpack.c.bf16 %v4326, %v4322
        %v4520 = vpack.c.bf16 %v4328, %v4324
        %4521 = vmatprep.subr.bf16.mxu0 0
        %4522 = vmatpush1.bf16.msra.mxu0 %v3736
        %4523 = vmatprep.subr.bf16.mxu0 0
        %4524 = vmatpush1.bf16.msra.mxu0 %v3737
        %4525 = vmatprep.subr.bf16.mxu0 0
        %4526 = vmatpush1.bf16.msra.mxu0 %v3738
        %4527 = vmatprep.subr.bf16.mxu0 0
        %4528 = vmatpush1.bf16.msra.mxu0 %v3739
        %4529 = vmatprep.subr.bf16.mxu0 0
        %4530 = vmatpush1.bf16.msra.mxu0 %v3740
        %4531 = vmatprep.subr.bf16.mxu0 0
        %4532 = vmatpush1.bf16.msra.mxu0 %v3741
        %4533 = vmatprep.subr.bf16.mxu0 0
        %4534 = vmatpush1.bf16.msra.mxu0 %v3742
        %4535 = vmatprep.subr.bf16.mxu0 0
        %4536 = vmatpush1.bf16.msra.mxu0 %v3743
        %4537 = vmatprep.subr.bf16.mxu0 0
        %4538 = vmatpush1.bf16.msra.mxu0 %v3744
        %4539 = vmatprep.subr.bf16.mxu0 0
        %4540 = vmatpush1.bf16.msra.mxu0 %v3745
        %4541 = vmatprep.subr.bf16.mxu0 0
        %4542 = vmatpush1.bf16.msra.mxu0 %v3746
        %4543 = vmatprep.subr.bf16.mxu0 0
        %4544 = vmatpush1.bf16.msra.mxu0 %v3747
        %4545 = vmatprep.subr.bf16.mxu0 0
        %4546 = vmatpush1.bf16.msra.mxu0 %v3748
        %4547 = vmatprep.subr.bf16.mxu0 0
        %4548 = vmatpush1.bf16.msra.mxu0 %v3749
        %4549 = vmatprep.subr.bf16.mxu0 0
        %4550 = vmatpush1.bf16.msra.mxu0 %v3750
        %4551 = vmatprep.subr.bf16.mxu0 0
        %4552 = vmatpush1.bf16.msra.mxu0 %v3751
        %4553 = vmatprep.mubr.bf16.mxu0 %v4490
        %4554 = vmatmul.mubr.bf16.gmra.mrb[0].mxu0 %v4489
        %v4555 = vpop.f32.mrb[0].mxu0
        %v4556 = vadd.f32 0.0, %v4555
        %v4557 = vpop.f32.mrb[0].mxu0
        %v4558 = vpop.f32.mrb[0].mxu0
        %v4559 = vadd.f32 0.0, %v4558
        %v4560 = vpop.f32.mrb[0].mxu0
        %4561 = vmatprep.mubr.bf16.mxu0 %v4492
        %4562 = vmatmul.mubr.bf16.gmra.mrb[0].mxu0 %v4491
        %v4563 = vpop.f32.mrb[0].mxu0
        %v4564 = vadd.f32 0.0, %v4563
        %v4565 = vpop.f32.mrb[0].mxu0
        %v4566 = vpop.f32.mrb[0].mxu0
        %v4567 = vadd.f32 0.0, %v4566
        %v4568 = vpop.f32.mrb[0].mxu0
        %4569 = vmatprep.mubr.bf16.mxu0 %v4494
        %4570 = vmatmul.mubr.bf16.gmra.mrb[0].mxu0 %v4493
        %v4571 = vpop.f32.mrb[0].mxu0
        %v4572 = vadd.f32 0.0, %v4571
        %v4573 = vpop.f32.mrb[0].mxu0
        %v4574 = vpop.f32.mrb[0].mxu0
        %v4575 = vadd.f32 0.0, %v4574
        %v4576 = vpop.f32.mrb[0].mxu0
        %4577 = vmatprep.mubr.bf16.mxu0 %v4496
        %4578 = vmatmul.mubr.bf16.gmra.mrb[0].mxu0 %v4495
        %v4579 = vpop.f32.mrb[0].mxu0
        %v4580 = vadd.f32 0.0, %v4579
        %v4581 = vpop.f32.mrb[0].mxu0
        %v4582 = vpop.f32.mrb[0].mxu0
        %v4583 = vadd.f32 0.0, %v4582
        %v4584 = vpop.f32.mrb[0].mxu0
        %4585 = vmatprep.mubr.bf16.mxu0 %v4498
        %4586 = vmatmul.mubr.bf16.gmra.mrb[0].mxu0 %v4497
        %v4587 = vpop.f32.mrb[0].mxu0
        %v4588 = vadd.f32 0.0, %v4587
        %v4589 = vpop.f32.mrb[0].mxu0
        %v4590 = vpop.f32.mrb[0].mxu0
        %v4591 = vadd.f32 0.0, %v4590
        %v4592 = vpop.f32.mrb[0].mxu0
        %4593 = vmatprep.mubr.bf16.mxu0 %v4500
        %4594 = vmatmul.mubr.bf16.gmra.mrb[0].mxu0 %v4499
        %v4595 = vpop.f32.mrb[0].mxu0
        %v4596 = vadd.f32 0.0, %v4595
        %v4597 = vpop.f32.mrb[0].mxu0
        %v4598 = vpop.f32.mrb[0].mxu0
        %v4599 = vadd.f32 0.0, %v4598
        %v4600 = vpop.f32.mrb[0].mxu0
        %4601 = vmatprep.mubr.bf16.mxu0 %v4502
        %4602 = vmatmul.mubr.bf16.gmra.mrb[0].mxu0 %v4501
        %v4603 = vpop.f32.mrb[0].mxu0
        %v4604 = vadd.f32 0.0, %v4603
        %v4605 = vpop.f32.mrb[0].mxu0
        %v4606 = vpop.f32.mrb[0].mxu0
        %v4607 = vadd.f32 0.0, %v4606
        %v4608 = vpop.f32.mrb[0].mxu0
        %4609 = vmatprep.mubr.bf16.mxu0 %v4504
        %4610 = vmatmul.mubr.bf16.gmra.mrb[0].mxu0 %v4503
        %v4611 = vpop.f32.mrb[0].mxu0
        %v4612 = vadd.f32 0.0, %v4611
        %v4613 = vpop.f32.mrb[0].mxu0
        %v4614 = vpop.f32.mrb[0].mxu0
        %v4615 = vadd.f32 0.0, %v4614
        %v4616 = vpop.f32.mrb[0].mxu0
        %4617 = vmatprep.mubr.bf16.mxu0 %v4506
        %4618 = vmatmul.mubr.bf16.gmra.mrb[0].mxu0 %v4505
        %v4619 = vpop.f32.mrb[0].mxu0
        %v4620 = vadd.f32 0.0, %v4619
        %v4621 = vpop.f32.mrb[0].mxu0
        %v4622 = vpop.f32.mrb[0].mxu0
        %v4623 = vadd.f32 0.0, %v4622
        %v4624 = vpop.f32.mrb[0].mxu0
        %4625 = vmatprep.mubr.bf16.mxu0 %v4508
        %4626 = vmatmul.mubr.bf16.gmra.mrb[0].mxu0 %v4507
        %v4627 = vpop.f32.mrb[0].mxu0
        %v4628 = vadd.f32 0.0, %v4627
        %v4629 = vpop.f32.mrb[0].mxu0
        %v4630 = vpop.f32.mrb[0].mxu0
        %v4631 = vadd.f32 0.0, %v4630
        %v4632 = vpop.f32.mrb[0].mxu0
        %4633 = vmatprep.mubr.bf16.mxu0 %v4510
        %4634 = vmatmul.mubr.bf16.gmra.mrb[0].mxu0 %v4509
        %v4635 = vpop.f32.mrb[0].mxu0
        %v4636 = vadd.f32 0.0, %v4635
        %v4637 = vpop.f32.mrb[0].mxu0
        %v4638 = vpop.f32.mrb[0].mxu0
        %v4639 = vadd.f32 0.0, %v4638
        %v4640 = vpop.f32.mrb[0].mxu0
        %4641 = vmatprep.mubr.bf16.mxu0 %v4512
        %4642 = vmatmul.mubr.bf16.gmra.mrb[0].mxu0 %v4511
        %v4643 = vpop.f32.mrb[0].mxu0
        %v4644 = vadd.f32 0.0, %v4643
        %v4645 = vpop.f32.mrb[0].mxu0
        %v4646 = vpop.f32.mrb[0].mxu0
        %v4647 = vadd.f32 0.0, %v4646
        %v4648 = vpop.f32.mrb[0].mxu0
        %4649 = vmatprep.mubr.bf16.mxu0 %v4514
        %4650 = vmatmul.mubr.bf16.gmra.mrb[0].mxu0 %v4513
        %v4651 = vpop.f32.mrb[0].mxu0
        %v4652 = vadd.f32 0.0, %v4651
        %v4653 = vpop.f32.mrb[0].mxu0
        %v4654 = vpop.f32.mrb[0].mxu0
        %v4655 = vadd.f32 0.0, %v4654
        %v4656 = vpop.f32.mrb[0].mxu0
        %4657 = vmatprep.mubr.bf16.mxu0 %v4516
        %4658 = vmatmul.mubr.bf16.gmra.mrb[0].mxu0 %v4515
        %v4659 = vpop.f32.mrb[0].mxu0
        %v4660 = vadd.f32 0.0, %v4659
        %v4661 = vpop.f32.mrb[0].mxu0
        %v4662 = vpop.f32.mrb[0].mxu0
        %v4663 = vadd.f32 0.0, %v4662
        %v4664 = vpop.f32.mrb[0].mxu0
        %4665 = vmatprep.mubr.bf16.mxu0 %v4518
        %4666 = vmatmul.mubr.bf16.gmra.mrb[0].mxu0 %v4517
        %v4667 = vpop.f32.mrb[0].mxu0
        %v4668 = vadd.f32 0.0, %v4667
        %v4669 = vpop.f32.mrb[0].mxu0
        %v4670 = vpop.f32.mrb[0].mxu0
        %v4671 = vadd.f32 0.0, %v4670
        %v4672 = vpop.f32.mrb[0].mxu0
        %4673 = vmatprep.mubr.bf16.mxu0 %v4520
        %4674 = vmatmul.mubr.bf16.gmra.mrb[0].mxu0 %v4519
        %v4675 = vpop.f32.mrb[0].mxu0
        %v4676 = vadd.f32 0.0, %v4675
        %v4677 = vpop.f32.mrb[0].mxu0
        %v4678 = vpop.f32.mrb[0].mxu0
        %v4679 = vadd.f32 0.0, %v4678
        %v4680 = vpop.f32.mrb[0].mxu0
        %4681 = vdwg.mxu0
        %v4682 = vadd.f32 %v4329, %v4556
        %v4683 = vadd.f32 %v4330, %v4559
        %v4684 = vadd.f32 %v4331, %v4564
        %v4685 = vadd.f32 %v4332, %v4567
        %v4686 = vadd.f32 %v4333, %v4572
        %v4687 = vadd.f32 %v4334, %v4575
        %v4688 = vadd.f32 %v4335, %v4580
        %v4689 = vadd.f32 %v4336, %v4583
        %v4690 = vadd.f32 %v4337, %v4588
        %v4691 = vadd.f32 %v4338, %v4591
        %v4692 = vadd.f32 %v4339, %v4596
        %v4693 = vadd.f32 %v4340, %v4599
        %v4694 = vadd.f32 %v4341, %v4604
        %v4695 = vadd.f32 %v4342, %v4607
        %v4696 = vadd.f32 %v4343, %v4612
        %v4697 = vadd.f32 %v4344, %v4615
        %v4698 = vadd.f32 %v4345, %v4620
        %v4699 = vadd.f32 %v4346, %v4623
        %v4700 = vadd.f32 %v4347, %v4628
        %v4701 = vadd.f32 %v4348, %v4631
        %v4702 = vadd.f32 %v4349, %v4636
        %v4703 = vadd.f32 %v4350, %v4639
        %v4704 = vadd.f32 %v4351, %v4644
        %v4705 = vadd.f32 %v4352, %v4647
        %v4706 = vadd.f32 %v4353, %v4652
        %v4707 = vadd.f32 %v4354, %v4655
        %v4708 = vadd.f32 %v4355, %v4660
        %v4709 = vadd.f32 %v4356, %v4663
        %v4710 = vadd.f32 %v4357, %v4668
        %v4711 = vadd.f32 %v4358, %v4671
        %v4712 = vadd.f32 %v4359, %v4676
        %v4713 = vadd.f32 %v4360, %v4679
        %s4714 = sadd.s32 2, %s3712
        %s4715 = smul.addr %s4714, 8
        %s4716 = scalar_lea.vmem [#allocation2], %s4715
        %v4717 = vld [vmem:[%s4716] sm:$0xff]
        %v4718 = vld [vmem:[%s4716 + $0x8] sm:$0xff]
        %v4719 = vld [vmem:[%s4716 + $0x20] sm:$0xff]
        %v4720 = vld [vmem:[%s4716 + $0x28] sm:$0xff]
        %v4721 = vld [vmem:[%s4716 + $0x40] sm:$0xff]
        %v4722 = vld [vmem:[%s4716 + $0x48] sm:$0xff]
        %v4723 = vld [vmem:[%s4716 + $0x60] sm:$0xff]
        %v4724 = vld [vmem:[%s4716 + $0x68] sm:$0xff]
        %v4725 = vld [vmem:[%s4716 + $0x80] sm:$0xff]
        %v4726 = vld [vmem:[%s4716 + $0x88] sm:$0xff]
        %v4727 = vld [vmem:[%s4716 + $0xa0] sm:$0xff]
        %v4728 = vld [vmem:[%s4716 + $0xa8] sm:$0xff]
        %v4729 = vld [vmem:[%s4716 + $0xc0] sm:$0xff]
        %v4730 = vld [vmem:[%s4716 + $0xc8] sm:$0xff]
        %v4731 = vld [vmem:[%s4716 + $0xe0] sm:$0xff]
        %v4732 = vld [vmem:[%s4716 + $0xe8] sm:$0xff]
        %s4733 = smul.u32 16, 2
        %s4734 = sadd.s32 %s3690, %s4733
        %s4735 = smul.addr %s4734, 8
        %s4736 = scalar_lea.vmem [#allocation3], %s4735
        %v4737 = vld [vmem:[%s4736] sm:$0xff]
        %v4738 = vld [vmem:[%s4736 + $0x10] sm:$0xff]
        %v4739 = vld [vmem:[%s4736 + $0x20] sm:$0xff]
        %v4740 = vld [vmem:[%s4736 + $0x30] sm:$0xff]
        %v4741 = vld [vmem:[%s4736 + $0x40] sm:$0xff]
        %v4742 = vld [vmem:[%s4736 + $0x50] sm:$0xff]
        %v4743 = vld [vmem:[%s4736 + $0x60] sm:$0xff]
        %v4744 = vld [vmem:[%s4736 + $0x70] sm:$0xff]
        %v4745 = vld [vmem:[%s4736 + $0x80] sm:$0xff]
        %v4746 = vld [vmem:[%s4736 + $0x90] sm:$0xff]
        %v4747 = vld [vmem:[%s4736 + $0xa0] sm:$0xff]
        %v4748 = vld [vmem:[%s4736 + $0xb0] sm:$0xff]
        %v4749 = vld [vmem:[%s4736 + $0xc0] sm:$0xff]
        %v4750 = vld [vmem:[%s4736 + $0xd0] sm:$0xff]
        %v4751 = vld [vmem:[%s4736 + $0xe0] sm:$0xff]
        %v4752 = vld [vmem:[%s4736 + $0xf0] sm:$0xff]
        %4753 = vmatprep.subr.bf16.mxu0 %v4718
        %4754 = vmatpush1.bf16.msra.mxu0 %v4717
        %4755 = vmatprep.subr.bf16.mxu0 %v4720
        %4756 = vmatpush1.bf16.msra.mxu0 %v4719
        %4757 = vmatprep.subr.bf16.mxu0 %v4722
        %4758 = vmatpush1.bf16.msra.mxu0 %v4721
        %4759 = vmatprep.subr.bf16.mxu0 %v4724
        %4760 = vmatpush1.bf16.msra.mxu0 %v4723
        %4761 = vmatprep.subr.bf16.mxu0 %v4726
        %4762 = vmatpush1.bf16.msra.mxu0 %v4725
        %4763 = vmatprep.subr.bf16.mxu0 %v4728
        %4764 = vmatpush1.bf16.msra.mxu0 %v4727
        %4765 = vmatprep.subr.bf16.mxu0 %v4730
        %4766 = vmatpush1.bf16.msra.mxu0 %v4729
        %4767 = vmatprep.subr.bf16.mxu0 %v4732
        %4768 = vmatpush1.bf16.msra.mxu0 %v4731
        %4769 = vmatprep.subr.bf16.mxu0 0
        %4770 = vmatpush1.bf16.msra.mxu0 0
        %4771 = vmatprep.subr.bf16.mxu0 0
        %4772 = vmatpush1.bf16.msra.mxu0 0
        %4773 = vmatprep.subr.bf16.mxu0 0
        %4774 = vmatpush1.bf16.msra.mxu0 0
        %4775 = vmatprep.subr.bf16.mxu0 0
        %4776 = vmatpush1.bf16.msra.mxu0 0
        %4777 = vmatprep.subr.bf16.mxu0 0
        %4778 = vmatpush1.bf16.msra.mxu0 0
        %4779 = vmatprep.subr.bf16.mxu0 0
        %4780 = vmatpush1.bf16.msra.mxu0 0
        %4781 = vmatprep.subr.bf16.mxu0 0
        %4782 = vmatpush1.bf16.msra.mxu0 0
        %4783 = vmatprep.subr.bf16.mxu0 0
        %4784 = vmatpush1.bf16.msra.mxu0 0
        %4785 = vmatprep.mubr.bf16.mxu0 0
        %4786 = vmatmul.mubr.bf16.gmra.mrb[0].mxu0 %v3694
        %v4787 = vpop.f32.mrb[0].mxu0
        %v4788 = vadd.f32 0.0, %v4787
        %v4789 = vpop.f32.mrb[0].mxu0
        %v4790 = vadd.f32 0.0, %v4789
        %v4791 = vpop.f32.mrb[0].mxu0
        %v4792 = vadd.f32 0.0, %v4791
        %v4793 = vpop.f32.mrb[0].mxu0
        %v4794 = vadd.f32 0.0, %v4793
        %4795 = vmatprep.mubr.bf16.mxu0 0
        %4796 = vmatmul.mubr.bf16.gmra.mrb[0].mxu0 %v3695
        %v4797 = vpop.f32.mrb[0].mxu0
        %v4798 = vadd.f32 0.0, %v4797
        %v4799 = vpop.f32.mrb[0].mxu0
        %v4800 = vadd.f32 0.0, %v4799
        %v4801 = vpop.f32.mrb[0].mxu0
        %v4802 = vadd.f32 0.0, %v4801
        %v4803 = vpop.f32.mrb[0].mxu0
        %v4804 = vadd.f32 0.0, %v4803
        %4805 = vmatprep.mubr.bf16.mxu0 0
        %4806 = vmatmul.mubr.bf16.gmra.mrb[0].mxu0 %v3696
        %v4807 = vpop.f32.mrb[0].mxu0
        %v4808 = vadd.f32 0.0, %v4807
        %v4809 = vpop.f32.mrb[0].mxu0
        %v4810 = vadd.f32 0.0, %v4809
        %v4811 = vpop.f32.mrb[0].mxu0
        %v4812 = vadd.f32 0.0, %v4811
        %v4813 = vpop.f32.mrb[0].mxu0
        %v4814 = vadd.f32 0.0, %v4813
        %4815 = vmatprep.mubr.bf16.mxu0 0
        %4816 = vmatmul.mubr.bf16.gmra.mrb[0].mxu0 %v3697
        %v4817 = vpop.f32.mrb[0].mxu0
        %v4818 = vadd.f32 0.0, %v4817
        %v4819 = vpop.f32.mrb[0].mxu0
        %v4820 = vadd.f32 0.0, %v4819
        %v4821 = vpop.f32.mrb[0].mxu0
        %v4822 = vadd.f32 0.0, %v4821
        %v4823 = vpop.f32.mrb[0].mxu0
        %v4824 = vadd.f32 0.0, %v4823
        %4825 = vmatprep.mubr.bf16.mxu0 0
        %4826 = vmatmul.mubr.bf16.gmra.mrb[0].mxu0 %v3698
        %v4827 = vpop.f32.mrb[0].mxu0
        %v4828 = vadd.f32 0.0, %v4827
        %v4829 = vpop.f32.mrb[0].mxu0
        %v4830 = vadd.f32 0.0, %v4829
        %v4831 = vpop.f32.mrb[0].mxu0
        %v4832 = vadd.f32 0.0, %v4831
        %v4833 = vpop.f32.mrb[0].mxu0
        %v4834 = vadd.f32 0.0, %v4833
        %4835 = vmatprep.mubr.bf16.mxu0 0
        %4836 = vmatmul.mubr.bf16.gmra.mrb[0].mxu0 %v3699
        %v4837 = vpop.f32.mrb[0].mxu0
        %v4838 = vadd.f32 0.0, %v4837
        %v4839 = vpop.f32.mrb[0].mxu0
        %v4840 = vadd.f32 0.0, %v4839
        %v4841 = vpop.f32.mrb[0].mxu0
        %v4842 = vadd.f32 0.0, %v4841
        %v4843 = vpop.f32.mrb[0].mxu0
        %v4844 = vadd.f32 0.0, %v4843
        %4845 = vmatprep.mubr.bf16.mxu0 0
        %4846 = vmatmul.mubr.bf16.gmra.mrb[0].mxu0 %v3700
        %v4847 = vpop.f32.mrb[0].mxu0
        %v4848 = vadd.f32 0.0, %v4847
        %v4849 = vpop.f32.mrb[0].mxu0
        %v4850 = vadd.f32 0.0, %v4849
        %v4851 = vpop.f32.mrb[0].mxu0
        %v4852 = vadd.f32 0.0, %v4851
        %v4853 = vpop.f32.mrb[0].mxu0
        %v4854 = vadd.f32 0.0, %v4853
        %4855 = vmatprep.mubr.bf16.mxu0 0
        %4856 = vmatmul.mubr.bf16.gmra.mrb[0].mxu0 %v3701
        %v4857 = vpop.f32.mrb[0].mxu0
        %v4858 = vadd.f32 0.0, %v4857
        %v4859 = vpop.f32.mrb[0].mxu0
        %v4860 = vadd.f32 0.0, %v4859
        %v4861 = vpop.f32.mrb[0].mxu0
        %v4862 = vadd.f32 0.0, %v4861
        %v4863 = vpop.f32.mrb[0].mxu0
        %v4864 = vadd.f32 0.0, %v4863
        %4865 = vmatprep.mubr.bf16.mxu0 0
        %4866 = vmatmul.mubr.bf16.gmra.mrb[0].mxu0 %v3702
        %v4867 = vpop.f32.mrb[0].mxu0
        %v4868 = vadd.f32 0.0, %v4867
        %v4869 = vpop.f32.mrb[0].mxu0
        %v4870 = vadd.f32 0.0, %v4869
        %v4871 = vpop.f32.mrb[0].mxu0
        %v4872 = vadd.f32 0.0, %v4871
        %v4873 = vpop.f32.mrb[0].mxu0
        %v4874 = vadd.f32 0.0, %v4873
        %4875 = vmatprep.mubr.bf16.mxu0 0
        %4876 = vmatmul.mubr.bf16.gmra.mrb[0].mxu0 %v3703
        %v4877 = vpop.f32.mrb[0].mxu0
        %v4878 = vadd.f32 0.0, %v4877
        %v4879 = vpop.f32.mrb[0].mxu0
        %v4880 = vadd.f32 0.0, %v4879
        %v4881 = vpop.f32.mrb[0].mxu0
        %v4882 = vadd.f32 0.0, %v4881
        %v4883 = vpop.f32.mrb[0].mxu0
        %v4884 = vadd.f32 0.0, %v4883
        %4885 = vmatprep.mubr.bf16.mxu0 0
        %4886 = vmatmul.mubr.bf16.gmra.mrb[0].mxu0 %v3704
        %v4887 = vpop.f32.mrb[0].mxu0
        %v4888 = vadd.f32 0.0, %v4887
        %v4889 = vpop.f32.mrb[0].mxu0
        %v4890 = vadd.f32 0.0, %v4889
        %v4891 = vpop.f32.mrb[0].mxu0
        %v4892 = vadd.f32 0.0, %v4891
        %v4893 = vpop.f32.mrb[0].mxu0
        %v4894 = vadd.f32 0.0, %v4893
        %4895 = vmatprep.mubr.bf16.mxu0 0
        %4896 = vmatmul.mubr.bf16.gmra.mrb[0].mxu0 %v3705
        %v4897 = vpop.f32.mrb[0].mxu0
        %v4898 = vadd.f32 0.0, %v4897
        %v4899 = vpop.f32.mrb[0].mxu0
        %v4900 = vadd.f32 0.0, %v4899
        %v4901 = vpop.f32.mrb[0].mxu0
        %v4902 = vadd.f32 0.0, %v4901
        %v4903 = vpop.f32.mrb[0].mxu0
        %v4904 = vadd.f32 0.0, %v4903
        %4905 = vmatprep.mubr.bf16.mxu0 0
        %4906 = vmatmul.mubr.bf16.gmra.mrb[0].mxu0 %v3706
        %v4907 = vpop.f32.mrb[0].mxu0
        %v4908 = vadd.f32 0.0, %v4907
        %v4909 = vpop.f32.mrb[0].mxu0
        %v4910 = vadd.f32 0.0, %v4909
        %v4911 = vpop.f32.mrb[0].mxu0
        %v4912 = vadd.f32 0.0, %v4911
        %v4913 = vpop.f32.mrb[0].mxu0
        %v4914 = vadd.f32 0.0, %v4913
        %4915 = vmatprep.mubr.bf16.mxu0 0
        %4916 = vmatmul.mubr.bf16.gmra.mrb[0].mxu0 %v3707
        %v4917 = vpop.f32.mrb[0].mxu0
        %v4918 = vadd.f32 0.0, %v4917
        %v4919 = vpop.f32.mrb[0].mxu0
        %v4920 = vadd.f32 0.0, %v4919
        %v4921 = vpop.f32.mrb[0].mxu0
        %v4922 = vadd.f32 0.0, %v4921
        %v4923 = vpop.f32.mrb[0].mxu0
        %v4924 = vadd.f32 0.0, %v4923
        %4925 = vmatprep.mubr.bf16.mxu0 0
        %4926 = vmatmul.mubr.bf16.gmra.mrb[0].mxu0 %v3708
        %v4927 = vpop.f32.mrb[0].mxu0
        %v4928 = vadd.f32 0.0, %v4927
        %v4929 = vpop.f32.mrb[0].mxu0
        %v4930 = vadd.f32 0.0, %v4929
        %v4931 = vpop.f32.mrb[0].mxu0
        %v4932 = vadd.f32 0.0, %v4931
        %v4933 = vpop.f32.mrb[0].mxu0
        %v4934 = vadd.f32 0.0, %v4933
        %4935 = vmatprep.mubr.bf16.mxu0 0
        %4936 = vmatmul.mubr.bf16.gmra.mrb[0].mxu0 %v3709
        %v4937 = vpop.f32.mrb[0].mxu0
        %v4938 = vadd.f32 0.0, %v4937
        %v4939 = vpop.f32.mrb[0].mxu0
        %v4940 = vadd.f32 0.0, %v4939
        %v4941 = vpop.f32.mrb[0].mxu0
        %v4942 = vadd.f32 0.0, %v4941
        %v4943 = vpop.f32.mrb[0].mxu0
        %v4944 = vadd.f32 0.0, %v4943
        %4945 = vdwg.mxu0
        %v4946 = vmax.f32 %v4788, %v4790
        %4947 = vmax.xlane.f32.xlu0 %v4946
        %v4948 = vpop.xlane.xlu0 %4947
        %v4949 = vmax.f32 %v4792, %v4794
        %4950 = vmax.xlane.f32.xlu0 %v4949
        %v4951 = vpop.xlane.xlu0 %4950
        %v4952 = vmax.f32 %v4798, %v4800
        %4953 = vmax.xlane.f32.xlu0 %v4952
        %v4954 = vpop.xlane.xlu0 %4953
        %v4955 = vmax.f32 %v4802, %v4804
        %4956 = vmax.xlane.f32.xlu0 %v4955
        %v4957 = vpop.xlane.xlu0 %4956
        %v4958 = vmax.f32 %v4808, %v4810
        %4959 = vmax.xlane.f32.xlu0 %v4958
        %v4960 = vpop.xlane.xlu0 %4959
        %v4961 = vmax.f32 %v4812, %v4814
        %4962 = vmax.xlane.f32.xlu0 %v4961
        %v4963 = vpop.xlane.xlu0 %4962
        %v4964 = vmax.f32 %v4818, %v4820
        %4965 = vmax.xlane.f32.xlu0 %v4964
        %v4966 = vpop.xlane.xlu0 %4965
        %v4967 = vmax.f32 %v4822, %v4824
        %4968 = vmax.xlane.f32.xlu0 %v4967
        %v4969 = vpop.xlane.xlu0 %4968
        %v4970 = vmax.f32 %v4828, %v4830
        %4971 = vmax.xlane.f32.xlu0 %v4970
        %v4972 = vpop.xlane.xlu0 %4971
        %v4973 = vmax.f32 %v4832, %v4834
        %4974 = vmax.xlane.f32.xlu0 %v4973
        %v4975 = vpop.xlane.xlu0 %4974
        %v4976 = vmax.f32 %v4838, %v4840
        %4977 = vmax.xlane.f32.xlu0 %v4976
        %v4978 = vpop.xlane.xlu0 %4977
        %v4979 = vmax.f32 %v4842, %v4844
        %4980 = vmax.xlane.f32.xlu0 %v4979
        %v4981 = vpop.xlane.xlu0 %4980
        %v4982 = vmax.f32 %v4848, %v4850
        %4983 = vmax.xlane.f32.xlu0 %v4982
        %v4984 = vpop.xlane.xlu0 %4983
        %v4985 = vmax.f32 %v4852, %v4854
        %4986 = vmax.xlane.f32.xlu0 %v4985
        %v4987 = vpop.xlane.xlu0 %4986
        %v4988 = vmax.f32 %v4858, %v4860
        %4989 = vmax.xlane.f32.xlu0 %v4988
        %v4990 = vpop.xlane.xlu0 %4989
        %v4991 = vmax.f32 %v4862, %v4864
        %4992 = vmax.xlane.f32.xlu0 %v4991
        %v4993 = vpop.xlane.xlu0 %4992
        %v4994 = vmax.f32 %v4868, %v4870
        %4995 = vmax.xlane.f32.xlu0 %v4994
        %v4996 = vpop.xlane.xlu0 %4995
        %v4997 = vmax.f32 %v4872, %v4874
        %4998 = vmax.xlane.f32.xlu0 %v4997
        %v4999 = vpop.xlane.xlu0 %4998
        %v5000 = vmax.f32 %v4878, %v4880
        %5001 = vmax.xlane.f32.xlu0 %v5000
        %v5002 = vpop.xlane.xlu0 %5001
        %v5003 = vmax.f32 %v4882, %v4884
        %5004 = vmax.xlane.f32.xlu0 %v5003
        %v5005 = vpop.xlane.xlu0 %5004
        %v5006 = vmax.f32 %v4888, %v4890
        %5007 = vmax.xlane.f32.xlu0 %v5006
        %v5008 = vpop.xlane.xlu0 %5007
        %v5009 = vmax.f32 %v4892, %v4894
        %5010 = vmax.xlane.f32.xlu0 %v5009
        %v5011 = vpop.xlane.xlu0 %5010
        %v5012 = vmax.f32 %v4898, %v4900
        %5013 = vmax.xlane.f32.xlu0 %v5012
        %v5014 = vpop.xlane.xlu0 %5013
        %v5015 = vmax.f32 %v4902, %v4904
        %5016 = vmax.xlane.f32.xlu0 %v5015
        %v5017 = vpop.xlane.xlu0 %5016
        %v5018 = vmax.f32 %v4908, %v4910
        %5019 = vmax.xlane.f32.xlu0 %v5018
        %v5020 = vpop.xlane.xlu0 %5019
        %v5021 = vmax.f32 %v4912, %v4914
        %5022 = vmax.xlane.f32.xlu0 %v5021
        %v5023 = vpop.xlane.xlu0 %5022
        %v5024 = vmax.f32 %v4918, %v4920
        %5025 = vmax.xlane.f32.xlu0 %v5024
        %v5026 = vpop.xlane.xlu0 %5025
        %v5027 = vmax.f32 %v4922, %v4924
        %5028 = vmax.xlane.f32.xlu0 %v5027
        %v5029 = vpop.xlane.xlu0 %5028
        %v5030 = vmax.f32 %v4928, %v4930
        %5031 = vmax.xlane.f32.xlu0 %v5030
        %v5032 = vpop.xlane.xlu0 %5031
        %v5033 = vmax.f32 %v4932, %v4934
        %5034 = vmax.xlane.f32.xlu0 %v5033
        %v5035 = vpop.xlane.xlu0 %5034
        %v5036 = vmax.f32 %v4938, %v4940
        %5037 = vmax.xlane.f32.xlu0 %v5036
        %v5038 = vpop.xlane.xlu0 %5037
        %v5039 = vmax.f32 %v4942, %v4944
        %5040 = vmax.xlane.f32.xlu0 %v5039
        %v5041 = vpop.xlane.xlu0 %5040
        %v5042 = vmax.f32 %v3947, %v4948
        %v5043 = vmax.f32 %v3950, %v4951
        %v5044 = vmax.f32 %v3953, %v4954
        %v5045 = vmax.f32 %v3956, %v4957
        %v5046 = vmax.f32 %v3959, %v4960
        %v5047 = vmax.f32 %v3962, %v4963
        %v5048 = vmax.f32 %v3965, %v4966
        %v5049 = vmax.f32 %v3968, %v4969
        %v5050 = vmax.f32 %v3971, %v4972
        %v5051 = vmax.f32 %v3974, %v4975
        %v5052 = vmax.f32 %v3977, %v4978
        %v5053 = vmax.f32 %v3980, %v4981
        %v5054 = vmax.f32 %v3983, %v4984
        %v5055 = vmax.f32 %v3986, %v4987
        %v5056 = vmax.f32 %v3989, %v4990
        %v5057 = vmax.f32 %v3992, %v4993
        %v5058 = vmax.f32 %v3995, %v4996
        %v5059 = vmax.f32 %v3998, %v4999
        %v5060 = vmax.f32 %v4001, %v5002
        %v5061 = vmax.f32 %v4004, %v5005
        %v5062 = vmax.f32 %v4007, %v5008
        %v5063 = vmax.f32 %v4010, %v5011
        %v5064 = vmax.f32 %v4013, %v5014
        %v5065 = vmax.f32 %v4016, %v5017
        %v5066 = vmax.f32 %v4019, %v5020
        %v5067 = vmax.f32 %v4022, %v5023
        %v5068 = vmax.f32 %v4025, %v5026
        %v5069 = vmax.f32 %v4028, %v5029
        %v5070 = vmax.f32 %v4031, %v5032
        %v5071 = vmax.f32 %v4034, %v5035
        %v5072 = vmax.f32 %v4037, %v5038
        %v5073 = vmax.f32 %v4040, %v5041
        %v5074 = vsub.f32 %v3947, %v5042
        %v5075 = vsub.f32 %v3950, %v5043
        %v5076 = vsub.f32 %v3953, %v5044
        %v5077 = vsub.f32 %v3956, %v5045
        %v5078 = vsub.f32 %v3959, %v5046
        %v5079 = vsub.f32 %v3962, %v5047
        %v5080 = vsub.f32 %v3965, %v5048
        %v5081 = vsub.f32 %v3968, %v5049
        %v5082 = vsub.f32 %v3971, %v5050
        %v5083 = vsub.f32 %v3974, %v5051
        %v5084 = vsub.f32 %v3977, %v5052
        %v5085 = vsub.f32 %v3980, %v5053
        %v5086 = vsub.f32 %v3983, %v5054
        %v5087 = vsub.f32 %v3986, %v5055
        %v5088 = vsub.f32 %v3989, %v5056
        %v5089 = vsub.f32 %v3992, %v5057
        %v5090 = vsub.f32 %v3995, %v5058
        %v5091 = vsub.f32 %v3998, %v5059
        %v5092 = vsub.f32 %v4001, %v5060
        %v5093 = vsub.f32 %v4004, %v5061
        %v5094 = vsub.f32 %v4007, %v5062
        %v5095 = vsub.f32 %v4010, %v5063
        %v5096 = vsub.f32 %v4013, %v5064
        %v5097 = vsub.f32 %v4016, %v5065
        %v5098 = vsub.f32 %v4019, %v5066
        %v5099 = vsub.f32 %v4022, %v5067
        %v5100 = vsub.f32 %v4025, %v5068
        %v5101 = vsub.f32 %v4028, %v5069
        %v5102 = vsub.f32 %v4031, %v5070
        %v5103 = vsub.f32 %v4034, %v5071
        %v5104 = vsub.f32 %v4037, %v5072
        %v5105 = vsub.f32 %v4040, %v5073
        %v5106 = vmul.f32 %v5074, 1.442695
        %v5107 = vpow.pop %v5106
        %v5108 = vmul.f32 %v5075, 1.442695
        %v5109 = vpow.pop %v5108
        %v5110 = vmul.f32 %v5076, 1.442695
        %v5111 = vpow.pop %v5110
        %v5112 = vmul.f32 %v5077, 1.442695
        %v5113 = vpow.pop %v5112
        %v5114 = vmul.f32 %v5078, 1.442695
        %v5115 = vpow.pop %v5114
        %v5116 = vmul.f32 %v5079, 1.442695
        %v5117 = vpow.pop %v5116
        %v5118 = vmul.f32 %v5080, 1.442695
        %v5119 = vpow.pop %v5118
        %v5120 = vmul.f32 %v5081, 1.442695
        %v5121 = vpow.pop %v5120
        %v5122 = vmul.f32 %v5082, 1.442695
        %v5123 = vpow.pop %v5122
        %v5124 = vmul.f32 %v5083, 1.442695
        %v5125 = vpow.pop %v5124
        %v5126 = vmul.f32 %v5084, 1.442695
        %v5127 = vpow.pop %v5126
        %v5128 = vmul.f32 %v5085, 1.442695
        %v5129 = vpow.pop %v5128
        %v5130 = vmul.f32 %v5086, 1.442695
        %v5131 = vpow.pop %v5130
        %v5132 = vmul.f32 %v5087, 1.442695
        %v5133 = vpow.pop %v5132
        %v5134 = vmul.f32 %v5088, 1.442695
        %v5135 = vpow.pop %v5134
        %v5136 = vmul.f32 %v5089, 1.442695
        %v5137 = vpow.pop %v5136
        %v5138 = vmul.f32 %v5090, 1.442695
        %v5139 = vpow.pop %v5138
        %v5140 = vmul.f32 %v5091, 1.442695
        %v5141 = vpow.pop %v5140
        %v5142 = vmul.f32 %v5092, 1.442695
        %v5143 = vpow.pop %v5142
        %v5144 = vmul.f32 %v5093, 1.442695
        %v5145 = vpow.pop %v5144
        %v5146 = vmul.f32 %v5094, 1.442695
        %v5147 = vpow.pop %v5146
        %v5148 = vmul.f32 %v5095, 1.442695
        %v5149 = vpow.pop %v5148
        %v5150 = vmul.f32 %v5096, 1.442695
        %v5151 = vpow.pop %v5150
        %v5152 = vmul.f32 %v5097, 1.442695
        %v5153 = vpow.pop %v5152
        %v5154 = vmul.f32 %v5098, 1.442695
        %v5155 = vpow.pop %v5154
        %v5156 = vmul.f32 %v5099, 1.442695
        %v5157 = vpow.pop %v5156
        %v5158 = vmul.f32 %v5100, 1.442695
        %v5159 = vpow.pop %v5158
        %v5160 = vmul.f32 %v5101, 1.442695
        %v5161 = vpow.pop %v5160
        %v5162 = vmul.f32 %v5102, 1.442695
        %v5163 = vpow.pop %v5162
        %v5164 = vmul.f32 %v5103, 1.442695
        %v5165 = vpow.pop %v5164
        %v5166 = vmul.f32 %v5104, 1.442695
        %v5167 = vpow.pop %v5166
        %v5168 = vmul.f32 %v5105, 1.442695
        %v5169 = vpow.pop %v5168
        %v5170 = vsub.f32 %v4788, %v5042
        %v5171 = vsub.f32 %v4790, %v5042
        %v5172 = vsub.f32 %v4792, %v5043
        %v5173 = vsub.f32 %v4794, %v5043
        %v5174 = vsub.f32 %v4798, %v5044
        %v5175 = vsub.f32 %v4800, %v5044
        %v5176 = vsub.f32 %v4802, %v5045
        %v5177 = vsub.f32 %v4804, %v5045
        %v5178 = vsub.f32 %v4808, %v5046
        %v5179 = vsub.f32 %v4810, %v5046
        %v5180 = vsub.f32 %v4812, %v5047
        %v5181 = vsub.f32 %v4814, %v5047
        %v5182 = vsub.f32 %v4818, %v5048
        %v5183 = vsub.f32 %v4820, %v5048
        %v5184 = vsub.f32 %v4822, %v5049
        %v5185 = vsub.f32 %v4824, %v5049
        %v5186 = vsub.f32 %v4828, %v5050
        %v5187 = vsub.f32 %v4830, %v5050
        %v5188 = vsub.f32 %v4832, %v5051
        %v5189 = vsub.f32 %v4834, %v5051
        %v5190 = vsub.f32 %v4838, %v5052
        %v5191 = vsub.f32 %v4840, %v5052
        %v5192 = vsub.f32 %v4842, %v5053
        %v5193 = vsub.f32 %v4844, %v5053
        %v5194 = vsub.f32 %v4848, %v5054
        %v5195 = vsub.f32 %v4850, %v5054
        %v5196 = vsub.f32 %v4852, %v5055
        %v5197 = vsub.f32 %v4854, %v5055
        %v5198 = vsub.f32 %v4858, %v5056
        %v5199 = vsub.f32 %v4860, %v5056
        %v5200 = vsub.f32 %v4862, %v5057
        %v5201 = vsub.f32 %v4864, %v5057
        %v5202 = vsub.f32 %v4868, %v5058
        %v5203 = vsub.f32 %v4870, %v5058
        %v5204 = vsub.f32 %v4872, %v5059
        %v5205 = vsub.f32 %v4874, %v5059
        %v5206 = vsub.f32 %v4878, %v5060
        %v5207 = vsub.f32 %v4880, %v5060
        %v5208 = vsub.f32 %v4882, %v5061
        %v5209 = vsub.f32 %v4884, %v5061
        %v5210 = vsub.f32 %v4888, %v5062
        %v5211 = vsub.f32 %v4890, %v5062
        %v5212 = vsub.f32 %v4892, %v5063
        %v5213 = vsub.f32 %v4894, %v5063
        %v5214 = vsub.f32 %v4898, %v5064
        %v5215 = vsub.f32 %v4900, %v5064
        %v5216 = vsub.f32 %v4902, %v5065
        %v5217 = vsub.f32 %v4904, %v5065
        %v5218 = vsub.f32 %v4908, %v5066
        %v5219 = vsub.f32 %v4910, %v5066
        %v5220 = vsub.f32 %v4912, %v5067
        %v5221 = vsub.f32 %v4914, %v5067
        %v5222 = vsub.f32 %v4918, %v5068
        %v5223 = vsub.f32 %v4920, %v5068
        %v5224 = vsub.f32 %v4922, %v5069
        %v5225 = vsub.f32 %v4924, %v5069
        %v5226 = vsub.f32 %v4928, %v5070
        %v5227 = vsub.f32 %v4930, %v5070
        %v5228 = vsub.f32 %v4932, %v5071
        %v5229 = vsub.f32 %v4934, %v5071
        %v5230 = vsub.f32 %v4938, %v5072
        %v5231 = vsub.f32 %v4940, %v5072
        %v5232 = vsub.f32 %v4942, %v5073
        %v5233 = vsub.f32 %v4944, %v5073
        %v5234 = vmul.f32 %v5170, 1.442695
        %v5235 = vpow.pop %v5234
        %v5236 = vmul.f32 %v5171, 1.442695
        %v5237 = vpow.pop %v5236
        %v5238 = vmul.f32 %v5172, 1.442695
        %v5239 = vpow.pop %v5238
        %v5240 = vmul.f32 %v5173, 1.442695
        %v5241 = vpow.pop %v5240
        %v5242 = vmul.f32 %v5174, 1.442695
        %v5243 = vpow.pop %v5242
        %v5244 = vmul.f32 %v5175, 1.442695
        %v5245 = vpow.pop %v5244
        %v5246 = vmul.f32 %v5176, 1.442695
        %v5247 = vpow.pop %v5246
        %v5248 = vmul.f32 %v5177, 1.442695
        %v5249 = vpow.pop %v5248
        %v5250 = vmul.f32 %v5178, 1.442695
        %v5251 = vpow.pop %v5250
        %v5252 = vmul.f32 %v5179, 1.442695
        %v5253 = vpow.pop %v5252
        %v5254 = vmul.f32 %v5180, 1.442695
        %v5255 = vpow.pop %v5254
        %v5256 = vmul.f32 %v5181, 1.442695
        %v5257 = vpow.pop %v5256
        %v5258 = vmul.f32 %v5182, 1.442695
        %v5259 = vpow.pop %v5258
        %v5260 = vmul.f32 %v5183, 1.442695
        %v5261 = vpow.pop %v5260
        %v5262 = vmul.f32 %v5184, 1.442695
        %v5263 = vpow.pop %v5262
        %v5264 = vmul.f32 %v5185, 1.442695
        %v5265 = vpow.pop %v5264
        %v5266 = vmul.f32 %v5186, 1.442695
        %v5267 = vpow.pop %v5266
        %v5268 = vmul.f32 %v5187, 1.442695
        %v5269 = vpow.pop %v5268
        %v5270 = vmul.f32 %v5188, 1.442695
        %v5271 = vpow.pop %v5270
        %v5272 = vmul.f32 %v5189, 1.442695
        %v5273 = vpow.pop %v5272
        %v5274 = vmul.f32 %v5190, 1.442695
        %v5275 = vpow.pop %v5274
        %v5276 = vmul.f32 %v5191, 1.442695
        %v5277 = vpow.pop %v5276
        %v5278 = vmul.f32 %v5192, 1.442695
        %v5279 = vpow.pop %v5278
        %v5280 = vmul.f32 %v5193, 1.442695
        %v5281 = vpow.pop %v5280
        %v5282 = vmul.f32 %v5194, 1.442695
        %v5283 = vpow.pop %v5282
        %v5284 = vmul.f32 %v5195, 1.442695
        %v5285 = vpow.pop %v5284
        %v5286 = vmul.f32 %v5196, 1.442695
        %v5287 = vpow.pop %v5286
        %v5288 = vmul.f32 %v5197, 1.442695
        %v5289 = vpow.pop %v5288
        %v5290 = vmul.f32 %v5198, 1.442695
        %v5291 = vpow.pop %v5290
        %v5292 = vmul.f32 %v5199, 1.442695
        %v5293 = vpow.pop %v5292
        %v5294 = vmul.f32 %v5200, 1.442695
        %v5295 = vpow.pop %v5294
        %v5296 = vmul.f32 %v5201, 1.442695
        %v5297 = vpow.pop %v5296
        %v5298 = vmul.f32 %v5202, 1.442695
        %v5299 = vpow.pop %v5298
        %v5300 = vmul.f32 %v5203, 1.442695
        %v5301 = vpow.pop %v5300
        %v5302 = vmul.f32 %v5204, 1.442695
        %v5303 = vpow.pop %v5302
        %v5304 = vmul.f32 %v5205, 1.442695
        %v5305 = vpow.pop %v5304
        %v5306 = vmul.f32 %v5206, 1.442695
        %v5307 = vpow.pop %v5306
        %v5308 = vmul.f32 %v5207, 1.442695
        %v5309 = vpow.pop %v5308
        %v5310 = vmul.f32 %v5208, 1.442695
        %v5311 = vpow.pop %v5310
        %v5312 = vmul.f32 %v5209, 1.442695
        %v5313 = vpow.pop %v5312
        %v5314 = vmul.f32 %v5210, 1.442695
        %v5315 = vpow.pop %v5314
        %v5316 = vmul.f32 %v5211, 1.442695
        %v5317 = vpow.pop %v5316
        %v5318 = vmul.f32 %v5212, 1.442695
        %v5319 = vpow.pop %v5318
        %v5320 = vmul.f32 %v5213, 1.442695
        %v5321 = vpow.pop %v5320
        %v5322 = vmul.f32 %v5214, 1.442695
        %v5323 = vpow.pop %v5322
        %v5324 = vmul.f32 %v5215, 1.442695
        %v5325 = vpow.pop %v5324
        %v5326 = vmul.f32 %v5216, 1.442695
        %v5327 = vpow.pop %v5326
        %v5328 = vmul.f32 %v5217, 1.442695
        %v5329 = vpow.pop %v5328
        %v5330 = vmul.f32 %v5218, 1.442695
        %v5331 = vpow.pop %v5330
        %v5332 = vmul.f32 %v5219, 1.442695
        %v5333 = vpow.pop %v5332
        %v5334 = vmul.f32 %v5220, 1.442695
        %v5335 = vpow.pop %v5334
        %v5336 = vmul.f32 %v5221, 1.442695
        %v5337 = vpow.pop %v5336
        %v5338 = vmul.f32 %v5222, 1.442695
        %v5339 = vpow.pop %v5338
        %v5340 = vmul.f32 %v5223, 1.442695
        %v5341 = vpow.pop %v5340
        %v5342 = vmul.f32 %v5224, 1.442695
        %v5343 = vpow.pop %v5342
        %v5344 = vmul.f32 %v5225, 1.442695
        %v5345 = vpow.pop %v5344
        %v5346 = vmul.f32 %v5226, 1.442695
        %v5347 = vpow.pop %v5346
        %v5348 = vmul.f32 %v5227, 1.442695
        %v5349 = vpow.pop %v5348
        %v5350 = vmul.f32 %v5228, 1.442695
        %v5351 = vpow.pop %v5350
        %v5352 = vmul.f32 %v5229, 1.442695
        %v5353 = vpow.pop %v5352
        %v5354 = vmul.f32 %v5230, 1.442695
        %v5355 = vpow.pop %v5354
        %v5356 = vmul.f32 %v5231, 1.442695
        %v5357 = vpow.pop %v5356
        %v5358 = vmul.f32 %v5232, 1.442695
        %v5359 = vpow.pop %v5358
        %v5360 = vmul.f32 %v5233, 1.442695
        %v5361 = vpow.pop %v5360
        %v5362 = vmul.f32 %v5107, %v4457
        %v5363 = vmul.f32 %v5109, %v4458
        %v5364 = vmul.f32 %v5111, %v4459
        %v5365 = vmul.f32 %v5113, %v4460
        %v5366 = vmul.f32 %v5115, %v4461
        %v5367 = vmul.f32 %v5117, %v4462
        %v5368 = vmul.f32 %v5119, %v4463
        %v5369 = vmul.f32 %v5121, %v4464
        %v5370 = vmul.f32 %v5123, %v4465
        %v5371 = vmul.f32 %v5125, %v4466
        %v5372 = vmul.f32 %v5127, %v4467
        %v5373 = vmul.f32 %v5129, %v4468
        %v5374 = vmul.f32 %v5131, %v4469
        %v5375 = vmul.f32 %v5133, %v4470
        %v5376 = vmul.f32 %v5135, %v4471
        %v5377 = vmul.f32 %v5137, %v4472
        %v5378 = vmul.f32 %v5139, %v4473
        %v5379 = vmul.f32 %v5141, %v4474
        %v5380 = vmul.f32 %v5143, %v4475
        %v5381 = vmul.f32 %v5145, %v4476
        %v5382 = vmul.f32 %v5147, %v4477
        %v5383 = vmul.f32 %v5149, %v4478
        %v5384 = vmul.f32 %v5151, %v4479
        %v5385 = vmul.f32 %v5153, %v4480
        %v5386 = vmul.f32 %v5155, %v4481
        %v5387 = vmul.f32 %v5157, %v4482
        %v5388 = vmul.f32 %v5159, %v4483
        %v5389 = vmul.f32 %v5161, %v4484
        %v5390 = vmul.f32 %v5163, %v4485
        %v5391 = vmul.f32 %v5165, %v4486
        %v5392 = vmul.f32 %v5167, %v4487
        %v5393 = vmul.f32 %v5169, %v4488
        %v5394 = vadd.f32 %v5235, %v5237
        %5395 = vadd.xlane.f32.xlu0 %v5394
        %v5396 = vpop.xlane.xlu0 %5395
        %v5397 = vadd.f32 %v5239, %v5241
        %5398 = vadd.xlane.f32.xlu0 %v5397
        %v5399 = vpop.xlane.xlu0 %5398
        %v5400 = vadd.f32 %v5243, %v5245
        %5401 = vadd.xlane.f32.xlu0 %v5400
        %v5402 = vpop.xlane.xlu0 %5401
        %v5403 = vadd.f32 %v5247, %v5249
        %5404 = vadd.xlane.f32.xlu0 %v5403
        %v5405 = vpop.xlane.xlu0 %5404
        %v5406 = vadd.f32 %v5251, %v5253
        %5407 = vadd.xlane.f32.xlu0 %v5406
        %v5408 = vpop.xlane.xlu0 %5407
        %v5409 = vadd.f32 %v5255, %v5257
        %5410 = vadd.xlane.f32.xlu0 %v5409
        %v5411 = vpop.xlane.xlu0 %5410
        %v5412 = vadd.f32 %v5259, %v5261
        %5413 = vadd.xlane.f32.xlu0 %v5412
        %v5414 = vpop.xlane.xlu0 %5413
        %v5415 = vadd.f32 %v5263, %v5265
        %5416 = vadd.xlane.f32.xlu0 %v5415
        %v5417 = vpop.xlane.xlu0 %5416
        %v5418 = vadd.f32 %v5267, %v5269
        %5419 = vadd.xlane.f32.xlu0 %v5418
        %v5420 = vpop.xlane.xlu0 %5419
        %v5421 = vadd.f32 %v5271, %v5273
        %5422 = vadd.xlane.f32.xlu0 %v5421
        %v5423 = vpop.xlane.xlu0 %5422
        %v5424 = vadd.f32 %v5275, %v5277
        %5425 = vadd.xlane.f32.xlu0 %v5424
        %v5426 = vpop.xlane.xlu0 %5425
        %v5427 = vadd.f32 %v5279, %v5281
        %5428 = vadd.xlane.f32.xlu0 %v5427
        %v5429 = vpop.xlane.xlu0 %5428
        %v5430 = vadd.f32 %v5283, %v5285
        %5431 = vadd.xlane.f32.xlu0 %v5430
        %v5432 = vpop.xlane.xlu0 %5431
        %v5433 = vadd.f32 %v5287, %v5289
        %5434 = vadd.xlane.f32.xlu0 %v5433
        %v5435 = vpop.xlane.xlu0 %5434
        %v5436 = vadd.f32 %v5291, %v5293
        %5437 = vadd.xlane.f32.xlu0 %v5436
        %v5438 = vpop.xlane.xlu0 %5437
        %v5439 = vadd.f32 %v5295, %v5297
        %5440 = vadd.xlane.f32.xlu0 %v5439
        %v5441 = vpop.xlane.xlu0 %5440
        %v5442 = vadd.f32 %v5299, %v5301
        %5443 = vadd.xlane.f32.xlu0 %v5442
        %v5444 = vpop.xlane.xlu0 %5443
        %v5445 = vadd.f32 %v5303, %v5305
        %5446 = vadd.xlane.f32.xlu0 %v5445
        %v5447 = vpop.xlane.xlu0 %5446
        %v5448 = vadd.f32 %v5307, %v5309
        %5449 = vadd.xlane.f32.xlu0 %v5448
        %v5450 = vpop.xlane.xlu0 %5449
        %v5451 = vadd.f32 %v5311, %v5313
        %5452 = vadd.xlane.f32.xlu0 %v5451
        %v5453 = vpop.xlane.xlu0 %5452
        %v5454 = vadd.f32 %v5315, %v5317
        %5455 = vadd.xlane.f32.xlu0 %v5454
        %v5456 = vpop.xlane.xlu0 %5455
        %v5457 = vadd.f32 %v5319, %v5321
        %5458 = vadd.xlane.f32.xlu0 %v5457
        %v5459 = vpop.xlane.xlu0 %5458
        %v5460 = vadd.f32 %v5323, %v5325
        %5461 = vadd.xlane.f32.xlu0 %v5460
        %v5462 = vpop.xlane.xlu0 %5461
        %v5463 = vadd.f32 %v5327, %v5329
        %5464 = vadd.xlane.f32.xlu0 %v5463
        %v5465 = vpop.xlane.xlu0 %5464
        %v5466 = vadd.f32 %v5331, %v5333
        %5467 = vadd.xlane.f32.xlu0 %v5466
        %v5468 = vpop.xlane.xlu0 %5467
        %v5469 = vadd.f32 %v5335, %v5337
        %5470 = vadd.xlane.f32.xlu0 %v5469
        %v5471 = vpop.xlane.xlu0 %5470
        %v5472 = vadd.f32 %v5339, %v5341
        %5473 = vadd.xlane.f32.xlu0 %v5472
        %v5474 = vpop.xlane.xlu0 %5473
        %v5475 = vadd.f32 %v5343, %v5345
        %5476 = vadd.xlane.f32.xlu0 %v5475
        %v5477 = vpop.xlane.xlu0 %5476
        %v5478 = vadd.f32 %v5347, %v5349
        %5479 = vadd.xlane.f32.xlu0 %v5478
        %v5480 = vpop.xlane.xlu0 %5479
        %v5481 = vadd.f32 %v5351, %v5353
        %5482 = vadd.xlane.f32.xlu0 %v5481
        %v5483 = vpop.xlane.xlu0 %5482
        %v5484 = vadd.f32 %v5355, %v5357
        %5485 = vadd.xlane.f32.xlu0 %v5484
        %v5486 = vpop.xlane.xlu0 %5485
        %v5487 = vadd.f32 %v5359, %v5361
        %5488 = vadd.xlane.f32.xlu0 %v5487
        %v5489 = vpop.xlane.xlu0 %5488
        %v5490 = vadd.f32 %v5362, %v5396
        %v5491 = vadd.f32 %v5363, %v5399
        %v5492 = vadd.f32 %v5364, %v5402
        %v5493 = vadd.f32 %v5365, %v5405
        %v5494 = vadd.f32 %v5366, %v5408
        %v5495 = vadd.f32 %v5367, %v5411
        %v5496 = vadd.f32 %v5368, %v5414
        %v5497 = vadd.f32 %v5369, %v5417
        %v5498 = vadd.f32 %v5370, %v5420
        %v5499 = vadd.f32 %v5371, %v5423
        %v5500 = vadd.f32 %v5372, %v5426
        %v5501 = vadd.f32 %v5373, %v5429
        %v5502 = vadd.f32 %v5374, %v5432
        %v5503 = vadd.f32 %v5375, %v5435
        %v5504 = vadd.f32 %v5376, %v5438
        %v5505 = vadd.f32 %v5377, %v5441
        %v5506 = vadd.f32 %v5378, %v5444
        %v5507 = vadd.f32 %v5379, %v5447
        %v5508 = vadd.f32 %v5380, %v5450
        %v5509 = vadd.f32 %v5381, %v5453
        %v5510 = vadd.f32 %v5382, %v5456
        %v5511 = vadd.f32 %v5383, %v5459
        %v5512 = vadd.f32 %v5384, %v5462
        %v5513 = vadd.f32 %v5385, %v5465
        %v5514 = vadd.f32 %v5386, %v5468
        %v5515 = vadd.f32 %v5387, %v5471
        %v5516 = vadd.f32 %v5388, %v5474
        %v5517 = vadd.f32 %v5389, %v5477
        %v5518 = vadd.f32 %v5390, %v5480
        %v5519 = vadd.f32 %v5391, %v5483
        %v5520 = vadd.f32 %v5392, %v5486
        %v5521 = vadd.f32 %v5393, %v5489
        %v5522 = vmul.f32 %v5107, %v4682
        %v5523 = vmul.f32 %v5109, %v4683
        %v5524 = vmul.f32 %v5111, %v4684
        %v5525 = vmul.f32 %v5113, %v4685
        %v5526 = vmul.f32 %v5115, %v4686
        %v5527 = vmul.f32 %v5117, %v4687
        %v5528 = vmul.f32 %v5119, %v4688
        %v5529 = vmul.f32 %v5121, %v4689
        %v5530 = vmul.f32 %v5123, %v4690
        %v5531 = vmul.f32 %v5125, %v4691
        %v5532 = vmul.f32 %v5127, %v4692
        %v5533 = vmul.f32 %v5129, %v4693
        %v5534 = vmul.f32 %v5131, %v4694
        %v5535 = vmul.f32 %v5133, %v4695
        %v5536 = vmul.f32 %v5135, %v4696
        %v5537 = vmul.f32 %v5137, %v4697
        %v5538 = vmul.f32 %v5139, %v4698
        %v5539 = vmul.f32 %v5141, %v4699
        %v5540 = vmul.f32 %v5143, %v4700
        %v5541 = vmul.f32 %v5145, %v4701
        %v5542 = vmul.f32 %v5147, %v4702
        %v5543 = vmul.f32 %v5149, %v4703
        %v5544 = vmul.f32 %v5151, %v4704
        %v5545 = vmul.f32 %v5153, %v4705
        %v5546 = vmul.f32 %v5155, %v4706
        %v5547 = vmul.f32 %v5157, %v4707
        %v5548 = vmul.f32 %v5159, %v4708
        %v5549 = vmul.f32 %v5161, %v4709
        %v5550 = vmul.f32 %v5163, %v4710
        %v5551 = vmul.f32 %v5165, %v4711
        %v5552 = vmul.f32 %v5167, %v4712
        %v5553 = vmul.f32 %v5169, %v4713
        %v5554 = vpack.c.bf16 %v5239, %v5235
        %v5555 = vpack.c.bf16 %v5241, %v5237
        %v5556 = vpack.c.bf16 %v5247, %v5243
        %v5557 = vpack.c.bf16 %v5249, %v5245
        %v5558 = vpack.c.bf16 %v5255, %v5251
        %v5559 = vpack.c.bf16 %v5257, %v5253
        %v5560 = vpack.c.bf16 %v5263, %v5259
        %v5561 = vpack.c.bf16 %v5265, %v5261
        %v5562 = vpack.c.bf16 %v5271, %v5267
        %v5563 = vpack.c.bf16 %v5273, %v5269
        %v5564 = vpack.c.bf16 %v5279, %v5275
        %v5565 = vpack.c.bf16 %v5281, %v5277
        %v5566 = vpack.c.bf16 %v5287, %v5283
        %v5567 = vpack.c.bf16 %v5289, %v5285
        %v5568 = vpack.c.bf16 %v5295, %v5291
        %v5569 = vpack.c.bf16 %v5297, %v5293
        %v5570 = vpack.c.bf16 %v5303, %v5299
        %v5571 = vpack.c.bf16 %v5305, %v5301
        %v5572 = vpack.c.bf16 %v5311, %v5307
        %v5573 = vpack.c.bf16 %v5313, %v5309
        %v5574 = vpack.c.bf16 %v5319, %v5315
        %v5575 = vpack.c.bf16 %v5321, %v5317
        %v5576 = vpack.c.bf16 %v5327, %v5323
        %v5577 = vpack.c.bf16 %v5329, %v5325
        %v5578 = vpack.c.bf16 %v5335, %v5331
        %v5579 = vpack.c.bf16 %v5337, %v5333
        %v5580 = vpack.c.bf16 %v5343, %v5339
        %v5581 = vpack.c.bf16 %v5345, %v5341
        %v5582 = vpack.c.bf16 %v5351, %v5347
        %v5583 = vpack.c.bf16 %v5353, %v5349
        %v5584 = vpack.c.bf16 %v5359, %v5355
        %v5585 = vpack.c.bf16 %v5361, %v5357
        %5586 = vmatprep.subr.bf16.mxu0 0
        %5587 = vmatpush1.bf16.msra.mxu0 %v4737
        %5588 = vmatprep.subr.bf16.mxu0 0
        %5589 = vmatpush1.bf16.msra.mxu0 %v4738
        %5590 = vmatprep.subr.bf16.mxu0 0
        %5591 = vmatpush1.bf16.msra.mxu0 %v4739
        %5592 = vmatprep.subr.bf16.mxu0 0
        %5593 = vmatpush1.bf16.msra.mxu0 %v4740
        %5594 = vmatprep.subr.bf16.mxu0 0
        %5595 = vmatpush1.bf16.msra.mxu0 %v4741
        %5596 = vmatprep.subr.bf16.mxu0 0
        %5597 = vmatpush1.bf16.msra.mxu0 %v4742
        %5598 = vmatprep.subr.bf16.mxu0 0
        %5599 = vmatpush1.bf16.msra.mxu0 %v4743
        %5600 = vmatprep.subr.bf16.mxu0 0
        %5601 = vmatpush1.bf16.msra.mxu0 %v4744
        %5602 = vmatprep.subr.bf16.mxu0 0
        %5603 = vmatpush1.bf16.msra.mxu0 %v4745
        %5604 = vmatprep.subr.bf16.mxu0 0
        %5605 = vmatpush1.bf16.msra.mxu0 %v4746
        %5606 = vmatprep.subr.bf16.mxu0 0
        %5607 = vmatpush1.bf16.msra.mxu0 %v4747
        %5608 = vmatprep.subr.bf16.mxu0 0
        %5609 = vmatpush1.bf16.msra.mxu0 %v4748
        %5610 = vmatprep.subr.bf16.mxu0 0
        %5611 = vmatpush1.bf16.msra.mxu0 %v4749
        %5612 = vmatprep.subr.bf16.mxu0 0
        %5613 = vmatpush1.bf16.msra.mxu0 %v4750
        %5614 = vmatprep.subr.bf16.mxu0 0
        %5615 = vmatpush1.bf16.msra.mxu0 %v4751
        %5616 = vmatprep.subr.bf16.mxu0 0
        %5617 = vmatpush1.bf16.msra.mxu0 %v4752
        %5618 = vmatprep.mubr.bf16.mxu0 %v5555
        %5619 = vmatmul.mubr.bf16.gmra.mrb[0].mxu0 %v5554
        %v5620 = vpop.f32.mrb[0].mxu0
        %v5621 = vadd.f32 0.0, %v5620
        %v5622 = vpop.f32.mrb[0].mxu0
        %v5623 = vpop.f32.mrb[0].mxu0
        %v5624 = vadd.f32 0.0, %v5623
        %v5625 = vpop.f32.mrb[0].mxu0
        %5626 = vmatprep.mubr.bf16.mxu0 %v5557
        %5627 = vmatmul.mubr.bf16.gmra.mrb[0].mxu0 %v5556
        %v5628 = vpop.f32.mrb[0].mxu0
        %v5629 = vadd.f32 0.0, %v5628
        %v5630 = vpop.f32.mrb[0].mxu0
        %v5631 = vpop.f32.mrb[0].mxu0
        %v5632 = vadd.f32 0.0, %v5631
        %v5633 = vpop.f32.mrb[0].mxu0
        %5634 = vmatprep.mubr.bf16.mxu0 %v5559
        %5635 = vmatmul.mubr.bf16.gmra.mrb[0].mxu0 %v5558
        %v5636 = vpop.f32.mrb[0].mxu0
        %v5637 = vadd.f32 0.0, %v5636
        %v5638 = vpop.f32.mrb[0].mxu0
        %v5639 = vpop.f32.mrb[0].mxu0
        %v5640 = vadd.f32 0.0, %v5639
        %v5641 = vpop.f32.mrb[0].mxu0
        %5642 = vmatprep.mubr.bf16.mxu0 %v5561
        %5643 = vmatmul.mubr.bf16.gmra.mrb[0].mxu0 %v5560
        %v5644 = vpop.f32.mrb[0].mxu0
        %v5645 = vadd.f32 0.0, %v5644
        %v5646 = vpop.f32.mrb[0].mxu0
        %v5647 = vpop.f32.mrb[0].mxu0
        %v5648 = vadd.f32 0.0, %v5647
        %v5649 = vpop.f32.mrb[0].mxu0
        %5650 = vmatprep.mubr.bf16.mxu0 %v5563
        %5651 = vmatmul.mubr.bf16.gmra.mrb[0].mxu0 %v5562
        %v5652 = vpop.f32.mrb[0].mxu0
        %v5653 = vadd.f32 0.0, %v5652
        %v5654 = vpop.f32.mrb[0].mxu0
        %v5655 = vpop.f32.mrb[0].mxu0
        %v5656 = vadd.f32 0.0, %v5655
        %v5657 = vpop.f32.mrb[0].mxu0
        %5658 = vmatprep.mubr.bf16.mxu0 %v5565
        %5659 = vmatmul.mubr.bf16.gmra.mrb[0].mxu0 %v5564
        %v5660 = vpop.f32.mrb[0].mxu0
        %v5661 = vadd.f32 0.0, %v5660
        %v5662 = vpop.f32.mrb[0].mxu0
        %v5663 = vpop.f32.mrb[0].mxu0
        %v5664 = vadd.f32 0.0, %v5663
        %v5665 = vpop.f32.mrb[0].mxu0
        %5666 = vmatprep.mubr.bf16.mxu0 %v5567
        %5667 = vmatmul.mubr.bf16.gmra.mrb[0].mxu0 %v5566
        %v5668 = vpop.f32.mrb[0].mxu0
        %v5669 = vadd.f32 0.0, %v5668
        %v5670 = vpop.f32.mrb[0].mxu0
        %v5671 = vpop.f32.mrb[0].mxu0
        %v5672 = vadd.f32 0.0, %v5671
        %v5673 = vpop.f32.mrb[0].mxu0
        %5674 = vmatprep.mubr.bf16.mxu0 %v5569
        %5675 = vmatmul.mubr.bf16.gmra.mrb[0].mxu0 %v5568
        %v5676 = vpop.f32.mrb[0].mxu0
        %v5677 = vadd.f32 0.0, %v5676
        %v5678 = vpop.f32.mrb[0].mxu0
        %v5679 = vpop.f32.mrb[0].mxu0
        %v5680 = vadd.f32 0.0, %v5679
        %v5681 = vpop.f32.mrb[0].mxu0
        %5682 = vmatprep.mubr.bf16.mxu0 %v5571
        %5683 = vmatmul.mubr.bf16.gmra.mrb[0].mxu0 %v5570
        %v5684 = vpop.f32.mrb[0].mxu0
        %v5685 = vadd.f32 0.0, %v5684
        %v5686 = vpop.f32.mrb[0].mxu0
        %v5687 = vpop.f32.mrb[0].mxu0
        %v5688 = vadd.f32 0.0, %v5687
        %v5689 = vpop.f32.mrb[0].mxu0
        %5690 = vmatprep.mubr.bf16.mxu0 %v5573
        %5691 = vmatmul.mubr.bf16.gmra.mrb[0].mxu0 %v5572
        %v5692 = vpop.f32.mrb[0].mxu0
        %v5693 = vadd.f32 0.0, %v5692
        %v5694 = vpop.f32.mrb[0].mxu0
        %v5695 = vpop.f32.mrb[0].mxu0
        %v5696 = vadd.f32 0.0, %v5695
        %v5697 = vpop.f32.mrb[0].mxu0
        %5698 = vmatprep.mubr.bf16.mxu0 %v5575
        %5699 = vmatmul.mubr.bf16.gmra.mrb[0].mxu0 %v5574
        %v5700 = vpop.f32.mrb[0].mxu0
        %v5701 = vadd.f32 0.0, %v5700
        %v5702 = vpop.f32.mrb[0].mxu0
        %v5703 = vpop.f32.mrb[0].mxu0
        %v5704 = vadd.f32 0.0, %v5703
        %v5705 = vpop.f32.mrb[0].mxu0
        %5706 = vmatprep.mubr.bf16.mxu0 %v5577
        %5707 = vmatmul.mubr.bf16.gmra.mrb[0].mxu0 %v5576
        %v5708 = vpop.f32.mrb[0].mxu0
        %v5709 = vadd.f32 0.0, %v5708
        %v5710 = vpop.f32.mrb[0].mxu0
        %v5711 = vpop.f32.mrb[0].mxu0
        %v5712 = vadd.f32 0.0, %v5711
        %v5713 = vpop.f32.mrb[0].mxu0
        %5714 = vmatprep.mubr.bf16.mxu0 %v5579
        %5715 = vmatmul.mubr.bf16.gmra.mrb[0].mxu0 %v5578
        %v5716 = vpop.f32.mrb[0].mxu0
        %v5717 = vadd.f32 0.0, %v5716
        %v5718 = vpop.f32.mrb[0].mxu0
        %v5719 = vpop.f32.mrb[0].mxu0
        %v5720 = vadd.f32 0.0, %v5719
        %v5721 = vpop.f32.mrb[0].mxu0
        %5722 = vmatprep.mubr.bf16.mxu0 %v5581
        %5723 = vmatmul.mubr.bf16.gmra.mrb[0].mxu0 %v5580
        %v5724 = vpop.f32.mrb[0].mxu0
        %v5725 = vadd.f32 0.0, %v5724
        %v5726 = vpop.f32.mrb[0].mxu0
        %v5727 = vpop.f32.mrb[0].mxu0
        %v5728 = vadd.f32 0.0, %v5727
        %v5729 = vpop.f32.mrb[0].mxu0
        %5730 = vmatprep.mubr.bf16.mxu0 %v5583
        %5731 = vmatmul.mubr.bf16.gmra.mrb[0].mxu0 %v5582
        %v5732 = vpop.f32.mrb[0].mxu0
        %v5733 = vadd.f32 0.0, %v5732
        %v5734 = vpop.f32.mrb[0].mxu0
        %v5735 = vpop.f32.mrb[0].mxu0
        %v5736 = vadd.f32 0.0, %v5735
        %v5737 = vpop.f32.mrb[0].mxu0
        %5738 = vmatprep.mubr.bf16.mxu0 %v5585
        %5739 = vmatmul.mubr.bf16.gmra.mrb[0].mxu0 %v5584
        %v5740 = vpop.f32.mrb[0].mxu0
        %v5741 = vadd.f32 0.0, %v5740
        %v5742 = vpop.f32.mrb[0].mxu0
        %v5743 = vpop.f32.mrb[0].mxu0
        %v5744 = vadd.f32 0.0, %v5743
        %v5745 = vpop.f32.mrb[0].mxu0
        %5746 = vdwg.mxu0
        %v5747 = vadd.f32 %v5522, %v5621
        %v5748 = vadd.f32 %v5523, %v5624
        %v5749 = vadd.f32 %v5524, %v5629
        %v5750 = vadd.f32 %v5525, %v5632
        %v5751 = vadd.f32 %v5526, %v5637
        %v5752 = vadd.f32 %v5527, %v5640
        %v5753 = vadd.f32 %v5528, %v5645
        %v5754 = vadd.f32 %v5529, %v5648
        %v5755 = vadd.f32 %v5530, %v5653
        %v5756 = vadd.f32 %v5531, %v5656
        %v5757 = vadd.f32 %v5532, %v5661
        %v5758 = vadd.f32 %v5533, %v5664
        %v5759 = vadd.f32 %v5534, %v5669
        %v5760 = vadd.f32 %v5535, %v5672
        %v5761 = vadd.f32 %v5536, %v5677
        %v5762 = vadd.f32 %v5537, %v5680
        %v5763 = vadd.f32 %v5538, %v5685
        %v5764 = vadd.f32 %v5539, %v5688
        %v5765 = vadd.f32 %v5540, %v5693
        %v5766 = vadd.f32 %v5541, %v5696
        %v5767 = vadd.f32 %v5542, %v5701
        %v5768 = vadd.f32 %v5543, %v5704
        %v5769 = vadd.f32 %v5544, %v5709
        %v5770 = vadd.f32 %v5545, %v5712
        %v5771 = vadd.f32 %v5546, %v5717
        %v5772 = vadd.f32 %v5547, %v5720
        %v5773 = vadd.f32 %v5548, %v5725
        %v5774 = vadd.f32 %v5549, %v5728
        %v5775 = vadd.f32 %v5550, %v5733
        %v5776 = vadd.f32 %v5551, %v5736
        %v5777 = vadd.f32 %v5552, %v5741
        %v5778 = vadd.f32 %v5553, %v5744
        %v5779 = vrcp.pop %v5490
        %v5780 = vrcp.pop %v5491
        %v5781 = vrcp.pop %v5492
        %v5782 = vrcp.pop %v5493
        %v5783 = vrcp.pop %v5494
        %v5784 = vrcp.pop %v5495
        %v5785 = vrcp.pop %v5496
        %v5786 = vrcp.pop %v5497
        %v5787 = vrcp.pop %v5498
        %v5788 = vrcp.pop %v5499
        %v5789 = vrcp.pop %v5500
        %v5790 = vrcp.pop %v5501
        %v5791 = vrcp.pop %v5502
        %v5792 = vrcp.pop %v5503
        %v5793 = vrcp.pop %v5504
        %v5794 = vrcp.pop %v5505
        %v5795 = vrcp.pop %v5506
        %v5796 = vrcp.pop %v5507
        %v5797 = vrcp.pop %v5508
        %v5798 = vrcp.pop %v5509
        %v5799 = vrcp.pop %v5510
        %v5800 = vrcp.pop %v5511
        %v5801 = vrcp.pop %v5512
        %v5802 = vrcp.pop %v5513
        %v5803 = vrcp.pop %v5514
        %v5804 = vrcp.pop %v5515
        %v5805 = vrcp.pop %v5516
        %v5806 = vrcp.pop %v5517
        %v5807 = vrcp.pop %v5518
        %v5808 = vrcp.pop %v5519
        %v5809 = vrcp.pop %v5520
        %v5810 = vrcp.pop %v5521
        %v5811 = vmul.f32 %v5747, %v5779
        %v5812 = vmul.f32 %v5748, %v5780
        %v5813 = vmul.f32 %v5749, %v5781
        %v5814 = vmul.f32 %v5750, %v5782
        %v5815 = vmul.f32 %v5751, %v5783
        %v5816 = vmul.f32 %v5752, %v5784
        %v5817 = vmul.f32 %v5753, %v5785
        %v5818 = vmul.f32 %v5754, %v5786
        %v5819 = vmul.f32 %v5755, %v5787
        %v5820 = vmul.f32 %v5756, %v5788
        %v5821 = vmul.f32 %v5757, %v5789
        %v5822 = vmul.f32 %v5758, %v5790
        %v5823 = vmul.f32 %v5759, %v5791
        %v5824 = vmul.f32 %v5760, %v5792
        %v5825 = vmul.f32 %v5761, %v5793
        %v5826 = vmul.f32 %v5762, %v5794
        %v5827 = vmul.f32 %v5763, %v5795
        %v5828 = vmul.f32 %v5764, %v5796
        %v5829 = vmul.f32 %v5765, %v5797
        %v5830 = vmul.f32 %v5766, %v5798
        %v5831 = vmul.f32 %v5767, %v5799
        %v5832 = vmul.f32 %v5768, %v5800
        %v5833 = vmul.f32 %v5769, %v5801
        %v5834 = vmul.f32 %v5770, %v5802
        %v5835 = vmul.f32 %v5771, %v5803
        %v5836 = vmul.f32 %v5772, %v5804
        %v5837 = vmul.f32 %v5773, %v5805
        %v5838 = vmul.f32 %v5774, %v5806
        %v5839 = vmul.f32 %v5775, %v5807
        %v5840 = vmul.f32 %v5776, %v5808
        %v5841 = vmul.f32 %v5777, %v5809
        %v5842 = vmul.f32 %v5778, %v5810
        %v5843 = vpack.c.bf16 %v5812, %v5811
        %v5844 = vpack.c.bf16 %v5814, %v5813
        %v5845 = vpack.c.bf16 %v5816, %v5815
        %v5846 = vpack.c.bf16 %v5818, %v5817
        %v5847 = vpack.c.bf16 %v5820, %v5819
        %v5848 = vpack.c.bf16 %v5822, %v5821
        %v5849 = vpack.c.bf16 %v5824, %v5823
        %v5850 = vpack.c.bf16 %v5826, %v5825
        %v5851 = vpack.c.bf16 %v5828, %v5827
        %v5852 = vpack.c.bf16 %v5830, %v5829
        %v5853 = vpack.c.bf16 %v5832, %v5831
        %v5854 = vpack.c.bf16 %v5834, %v5833
        %v5855 = vpack.c.bf16 %v5836, %v5835
        %v5856 = vpack.c.bf16 %v5838, %v5837
        %v5857 = vpack.c.bf16 %v5840, %v5839
        %v5858 = vpack.c.bf16 %v5842, %v5841
        %s5859 = smul.addr %s3690, 8
        %s5860 = scalar_lea.vmem [#allocation5], %s5859
        %5861 = vst [vmem:[%s5860] sm:$0xff] %v5843
        %5862 = vst [vmem:[%s5860 + $0x10] sm:$0xff] %v5844
        %5863 = vst [vmem:[%s5860 + $0x20] sm:$0xff] %v5845
        %5864 = vst [vmem:[%s5860 + $0x30] sm:$0xff] %v5846
        %5865 = vst [vmem:[%s5860 + $0x40] sm:$0xff] %v5847
        %5866 = vst [vmem:[%s5860 + $0x50] sm:$0xff] %v5848
        %5867 = vst [vmem:[%s5860 + $0x60] sm:$0xff] %v5849
        %5868 = vst [vmem:[%s5860 + $0x70] sm:$0xff] %v5850
        %5869 = vst [vmem:[%s5860 + $0x80] sm:$0xff] %v5851
        %5870 = vst [vmem:[%s5860 + $0x90] sm:$0xff] %v5852
        %5871 = vst [vmem:[%s5860 + $0xa0] sm:$0xff] %v5853
        %5872 = vst [vmem:[%s5860 + $0xb0] sm:$0xff] %v5854
        %5873 = vst [vmem:[%s5860 + $0xc0] sm:$0xff] %v5855
        %5874 = vst [vmem:[%s5860 + $0xd0] sm:$0xff] %v5856
        %5875 = vst [vmem:[%s5860 + $0xe0] sm:$0xff] %v5857
        %5876 = vst [vmem:[%s5860 + $0xf0] sm:$0xff] %v5858
        %p5877 = scmp.eq.s32.totalorder %s40, 1
        // Predicated region
        $region101: #{tpu_custom_call.1} parent=63 // pred_check
          %p5878 = pneg %p5877
        $region102: #{tpu_custom_call.1} parent=63 // pred_check_branch
          %5880 = sbr.rel (%p5878) target = $region104
        $region103: #{tpu_custom_call.1} parent=63 // pred_region
          %v5881 = vld [vmem:[#allocation5] sm:$0xff]
          %v5882 = vld [vmem:[#allocation5 + $0x8] sm:$0xff]
          %v5883 = vld [vmem:[#allocation5 + $0x10] sm:$0xff]
          %v5884 = vld [vmem:[#allocation5 + $0x18] sm:$0xff]
          %v5885 = vld [vmem:[#allocation5 + $0x20] sm:$0xff]
          %v5886 = vld [vmem:[#allocation5 + $0x28] sm:$0xff]
          %v5887 = vld [vmem:[#allocation5 + $0x30] sm:$0xff]
          %v5888 = vld [vmem:[#allocation5 + $0x38] sm:$0xff]
          %v5889 = vld [vmem:[#allocation5 + $0x40] sm:$0xff]
          %v5890 = vld [vmem:[#allocation5 + $0x48] sm:$0xff]
          %v5891 = vld [vmem:[#allocation5 + $0x50] sm:$0xff]
          %v5892 = vld [vmem:[#allocation5 + $0x58] sm:$0xff]
          %v5893 = vld [vmem:[#allocation5 + $0x60] sm:$0xff]
          %v5894 = vld [vmem:[#allocation5 + $0x68] sm:$0xff]
          %v5895 = vld [vmem:[#allocation5 + $0x70] sm:$0xff]
          %v5896 = vld [vmem:[#allocation5 + $0x78] sm:$0xff]
          %v5897 = vld [vmem:[#allocation5 + $0x80] sm:$0xff]
          %v5898 = vld [vmem:[#allocation5 + $0x88] sm:$0xff]
          %v5899 = vld [vmem:[#allocation5 + $0x90] sm:$0xff]
          %v5900 = vld [vmem:[#allocation5 + $0x98] sm:$0xff]
          %v5901 = vld [vmem:[#allocation5 + $0xa0] sm:$0xff]
          %v5902 = vld [vmem:[#allocation5 + $0xa8] sm:$0xff]
          %v5903 = vld [vmem:[#allocation5 + $0xb0] sm:$0xff]
          %v5904 = vld [vmem:[#allocation5 + $0xb8] sm:$0xff]
          %v5905 = vld [vmem:[#allocation5 + $0xc0] sm:$0xff]
          %v5906 = vld [vmem:[#allocation5 + $0xc8] sm:$0xff]
          %v5907 = vld [vmem:[#allocation5 + $0xd0] sm:$0xff]
          %v5908 = vld [vmem:[#allocation5 + $0xd8] sm:$0xff]
          %v5909 = vld [vmem:[#allocation5 + $0xe0] sm:$0xff]
          %v5910 = vld [vmem:[#allocation5 + $0xe8] sm:$0xff]
          %v5911 = vld [vmem:[#allocation5 + $0xf0] sm:$0xff]
          %v5912 = vld [vmem:[#allocation5 + $0xf8] sm:$0xff]
          %v5913 = vld [vmem:[#allocation17] sm:$0xff]
          %v5914 = vld [vmem:[#allocation17 + $0x8] sm:$0xff]
          %v5915 = vld [vmem:[#allocation17 + $0x10] sm:$0xff]
          %v5916 = vld [vmem:[#allocation17 + $0x18] sm:$0xff]
          %v5917 = vld [vmem:[#allocation17 + $0x20] sm:$0xff]
          %v5918 = vld [vmem:[#allocation17 + $0x28] sm:$0xff]
          %v5919 = vld [vmem:[#allocation17 + $0x30] sm:$0xff]
          %v5920 = vld [vmem:[#allocation17 + $0x38] sm:$0xff]
          %v5921 = vld [vmem:[#allocation17 + $0x40] sm:$0xff]
          %v5922 = vld [vmem:[#allocation17 + $0x48] sm:$0xff]
          %v5923 = vld [vmem:[#allocation17 + $0x50] sm:$0xff]
          %v5924 = vld [vmem:[#allocation17 + $0x58] sm:$0xff]
          %v5925 = vld [vmem:[#allocation17 + $0x60] sm:$0xff]
          %v5926 = vld [vmem:[#allocation17 + $0x68] sm:$0xff]
          %v5927 = vld [vmem:[#allocation17 + $0x70] sm:$0xff]
          %v5928 = vld [vmem:[#allocation17 + $0x78] sm:$0xff]
          %v5929 = vld [vmem:[#allocation17 + $0x80] sm:$0xff]
          %v5930 = vld [vmem:[#allocation17 + $0x88] sm:$0xff]
          %v5931 = vld [vmem:[#allocation17 + $0x90] sm:$0xff]
          %v5932 = vld [vmem:[#allocation17 + $0x98] sm:$0xff]
          %v5933 = vld [vmem:[#allocation17 + $0xa0] sm:$0xff]
          %v5934 = vld [vmem:[#allocation17 + $0xa8] sm:$0xff]
          %v5935 = vld [vmem:[#allocation17 + $0xb0] sm:$0xff]
          %v5936 = vld [vmem:[#allocation17 + $0xb8] sm:$0xff]
          %v5937 = vld [vmem:[#allocation17 + $0xc0] sm:$0xff]
          %v5938 = vld [vmem:[#allocation17 + $0xc8] sm:$0xff]
          %v5939 = vld [vmem:[#allocation17 + $0xd0] sm:$0xff]
          %v5940 = vld [vmem:[#allocation17 + $0xd8] sm:$0xff]
          %v5941 = vld [vmem:[#allocation17 + $0xe0] sm:$0xff]
          %v5942 = vld [vmem:[#allocation17 + $0xe8] sm:$0xff]
          %v5943 = vld [vmem:[#allocation17 + $0xf0] sm:$0xff]
          %v5944 = vld [vmem:[#allocation17 + $0xf8] sm:$0xff]
          %v5945 = vld [vmem:[%s10] sm:$0x3]
          %v5947 = vlaneseq
          %v5948 = vshrl.u32 %v5947, 7
          %v5949 = vsub.s32 0, %v5948
          %v5950 = vrot.slane %v5945, %v5949
          %v5951 = vlaneseq
          %v5952 = vshrl.u32 %v5951, 7
          %v5953 = vsub.s32 1, %v5952
          %v5954 = vrot.slane %v5945, %v5953
          %v5989 = vunpack.c.l.b16 %v5913
          %v5990 = vunpack.c.h.b16 %v5913
          %v5991 = vunpack.c.l.b16 %v5914
          %v5992 = vunpack.c.h.b16 %v5914
          %v5993 = vunpack.c.l.b16 %v5915
          %v5994 = vunpack.c.h.b16 %v5915
          %v5995 = vunpack.c.l.b16 %v5916
          %v5996 = vunpack.c.h.b16 %v5916
          %v5997 = vunpack.c.l.b16 %v5917
          %v5998 = vunpack.c.h.b16 %v5917
          %v5999 = vunpack.c.l.b16 %v5918
          %v6000 = vunpack.c.h.b16 %v5918
          %v6001 = vunpack.c.l.b16 %v5919
          %v6002 = vunpack.c.h.b16 %v5919
          %v6003 = vunpack.c.l.b16 %v5920
          %v6004 = vunpack.c.h.b16 %v5920
          %v6005 = vunpack.c.l.b16 %v5921
          %v6006 = vunpack.c.h.b16 %v5921
          %v6007 = vunpack.c.l.b16 %v5922
          %v6008 = vunpack.c.h.b16 %v5922
          %v6009 = vunpack.c.l.b16 %v5923
          %v6010 = vunpack.c.h.b16 %v5923
          %v6011 = vunpack.c.l.b16 %v5924
          %v6012 = vunpack.c.h.b16 %v5924
          %v6013 = vunpack.c.l.b16 %v5925
          %v6014 = vunpack.c.h.b16 %v5925
          %v6015 = vunpack.c.l.b16 %v5926
          %v6016 = vunpack.c.h.b16 %v5926
          %v6017 = vunpack.c.l.b16 %v5927
          %v6018 = vunpack.c.h.b16 %v5927
          %v6019 = vunpack.c.l.b16 %v5928
          %v6020 = vunpack.c.h.b16 %v5928
          %v6021 = vunpack.c.l.b16 %v5929
          %v6022 = vunpack.c.h.b16 %v5929
          %v6023 = vunpack.c.l.b16 %v5930
          %v6024 = vunpack.c.h.b16 %v5930
          %v6025 = vunpack.c.l.b16 %v5931
          %v6026 = vunpack.c.h.b16 %v5931
          %v6027 = vunpack.c.l.b16 %v5932
          %v6028 = vunpack.c.h.b16 %v5932
          %v6029 = vunpack.c.l.b16 %v5933
          %v6030 = vunpack.c.h.b16 %v5933
          %v6031 = vunpack.c.l.b16 %v5934
          %v6032 = vunpack.c.h.b16 %v5934
          %v6033 = vunpack.c.l.b16 %v5935
          %v6034 = vunpack.c.h.b16 %v5935
          %v6035 = vunpack.c.l.b16 %v5936
          %v6036 = vunpack.c.h.b16 %v5936
          %v6037 = vunpack.c.l.b16 %v5937
          %v6038 = vunpack.c.h.b16 %v5937
          %v6039 = vunpack.c.l.b16 %v5938
          %v6040 = vunpack.c.h.b16 %v5938
          %v6041 = vunpack.c.l.b16 %v5939
          %v6042 = vunpack.c.h.b16 %v5939
          %v6043 = vunpack.c.l.b16 %v5940
          %v6044 = vunpack.c.h.b16 %v5940
          %v6045 = vunpack.c.l.b16 %v5941
          %v6046 = vunpack.c.h.b16 %v5941
          %v6047 = vunpack.c.l.b16 %v5942
          %v6048 = vunpack.c.h.b16 %v5942
          %v6049 = vunpack.c.l.b16 %v5943
          %v6050 = vunpack.c.h.b16 %v5943
          %v6051 = vunpack.c.l.b16 %v5944
          %v6052 = vunpack.c.h.b16 %v5944
          %v6053 = vpack.c.b16 %v5991, %v5989
          %v6054 = vpack.c.b16 %v5992, %v5990
          %v6055 = vpack.c.b16 %v5995, %v5993
          %v6056 = vpack.c.b16 %v5996, %v5994
          %v6057 = vpack.c.b16 %v5999, %v5997
          %v6058 = vpack.c.b16 %v6000, %v5998
          %v6059 = vpack.c.b16 %v6003, %v6001
          %v6060 = vpack.c.b16 %v6004, %v6002
          %v6061 = vpack.c.b16 %v6007, %v6005
          %v6062 = vpack.c.b16 %v6008, %v6006
          %v6063 = vpack.c.b16 %v6011, %v6009
          %v6064 = vpack.c.b16 %v6012, %v6010
          %v6065 = vpack.c.b16 %v6015, %v6013
          %v6066 = vpack.c.b16 %v6016, %v6014
          %v6067 = vpack.c.b16 %v6019, %v6017
          %v6068 = vpack.c.b16 %v6020, %v6018
          %v6069 = vpack.c.b16 %v6023, %v6021
          %v6070 = vpack.c.b16 %v6024, %v6022
          %v6071 = vpack.c.b16 %v6027, %v6025
          %v6072 = vpack.c.b16 %v6028, %v6026
          %v6073 = vpack.c.b16 %v6031, %v6029
          %v6074 = vpack.c.b16 %v6032, %v6030
          %v6075 = vpack.c.b16 %v6035, %v6033
          %v6076 = vpack.c.b16 %v6036, %v6034
          %v6077 = vpack.c.b16 %v6039, %v6037
          %v6078 = vpack.c.b16 %v6040, %v6038
          %v6079 = vpack.c.b16 %v6043, %v6041
          %v6080 = vpack.c.b16 %v6044, %v6042
          %v6081 = vpack.c.b16 %v6047, %v6045
          %v6082 = vpack.c.b16 %v6048, %v6046
          %v6083 = vpack.c.b16 %v6051, %v6049
          %v6084 = vpack.c.b16 %v6052, %v6050
          %6117 = vmatprep.subr.bf16.mxu0 %v6054
          %6118 = vmatpush1.bf16.msra.mxu0 %v6053
          %6119 = vmatprep.subr.bf16.mxu0 %v6056
          %6120 = vmatpush1.bf16.msra.mxu0 %v6055
          %6121 = vmatprep.subr.bf16.mxu0 %v6058
          %6122 = vmatpush1.bf16.msra.mxu0 %v6057
          %6123 = vmatprep.subr.bf16.mxu0 %v6060
          %6124 = vmatpush1.bf16.msra.mxu0 %v6059
          %6125 = vmatprep.subr.bf16.mxu0 %v6062
          %6126 = vmatpush1.bf16.msra.mxu0 %v6061
          %6127 = vmatprep.subr.bf16.mxu0 %v6064
          %6128 = vmatpush1.bf16.msra.mxu0 %v6063
          %6129 = vmatprep.subr.bf16.mxu0 %v6066
          %6130 = vmatpush1.bf16.msra.mxu0 %v6065
          %6131 = vmatprep.subr.bf16.mxu0 %v6068
          %6132 = vmatpush1.bf16.msra.mxu0 %v6067
          %6133 = vmatprep.subr.bf16.mxu0 %v6070
          %6134 = vmatpush1.bf16.msra.mxu0 %v6069
          %6135 = vmatprep.subr.bf16.mxu0 %v6072
          %6136 = vmatpush1.bf16.msra.mxu0 %v6071
          %6137 = vmatprep.subr.bf16.mxu0 %v6074
          %6138 = vmatpush1.bf16.msra.mxu0 %v6073
          %6139 = vmatprep.subr.bf16.mxu0 %v6076
          %6140 = vmatpush1.bf16.msra.mxu0 %v6075
          %6141 = vmatprep.subr.bf16.mxu0 %v6078
          %6142 = vmatpush1.bf16.msra.mxu0 %v6077
          %6143 = vmatprep.subr.bf16.mxu0 %v6080
          %6144 = vmatpush1.bf16.msra.mxu0 %v6079
          %6145 = vmatprep.subr.bf16.mxu0 %v6082
          %6146 = vmatpush1.bf16.msra.mxu0 %v6081
          %6147 = vmatprep.subr.bf16.mxu0 %v6084
          %6148 = vmatpush1.bf16.msra.mxu0 %v6083
          %6149 = vmatprep.mubr.bf16.mxu0 %v5882
          %6150 = vmatmul.mubr.bf16.gmra.mrb[0].mxu0 %v5881
          %v6151 = vpop.f32.mrb[0].mxu0
          %v6152 = vadd.f32 %v5950, %v6151
          %v6153 = vpop.f32.mrb[0].mxu0
          %v6154 = vadd.f32 %v5954, %v6153
          %v6155 = vpop.f32.mrb[0].mxu0
          %v6156 = vadd.f32 %v5950, %v6155
          %v6157 = vpop.f32.mrb[0].mxu0
          %v6158 = vadd.f32 %v5954, %v6157
          %6159 = vmatprep.mubr.bf16.mxu0 %v5884
          %6160 = vmatmul.mubr.bf16.gmra.mrb[0].mxu0 %v5883
          %v6161 = vpop.f32.mrb[0].mxu0
          %v6162 = vadd.f32 %v5950, %v6161
          %v6163 = vpop.f32.mrb[0].mxu0
          %v6164 = vadd.f32 %v5954, %v6163
          %v6165 = vpop.f32.mrb[0].mxu0
          %v6166 = vadd.f32 %v5950, %v6165
          %v6167 = vpop.f32.mrb[0].mxu0
          %v6168 = vadd.f32 %v5954, %v6167
          %6169 = vmatprep.mubr.bf16.mxu0 %v5886
          %6170 = vmatmul.mubr.bf16.gmra.mrb[0].mxu0 %v5885
          %v6171 = vpop.f32.mrb[0].mxu0
          %v6172 = vadd.f32 %v5950, %v6171
          %v6173 = vpop.f32.mrb[0].mxu0
          %v6174 = vadd.f32 %v5954, %v6173
          %v6175 = vpop.f32.mrb[0].mxu0
          %v6176 = vadd.f32 %v5950, %v6175
          %v6177 = vpop.f32.mrb[0].mxu0
          %v6178 = vadd.f32 %v5954, %v6177
          %6179 = vmatprep.mubr.bf16.mxu0 %v5888
          %6180 = vmatmul.mubr.bf16.gmra.mrb[0].mxu0 %v5887
          %v6181 = vpop.f32.mrb[0].mxu0
          %v6182 = vadd.f32 %v5950, %v6181
          %v6183 = vpop.f32.mrb[0].mxu0
          %v6184 = vadd.f32 %v5954, %v6183
          %v6185 = vpop.f32.mrb[0].mxu0
          %v6186 = vadd.f32 %v5950, %v6185
          %v6187 = vpop.f32.mrb[0].mxu0
          %v6188 = vadd.f32 %v5954, %v6187
          %6189 = vmatprep.mubr.bf16.mxu0 %v5890
          %6190 = vmatmul.mubr.bf16.gmra.mrb[0].mxu0 %v5889
          %v6191 = vpop.f32.mrb[0].mxu0
          %v6192 = vadd.f32 %v5950, %v6191
          %v6193 = vpop.f32.mrb[0].mxu0
          %v6194 = vadd.f32 %v5954, %v6193
          %v6195 = vpop.f32.mrb[0].mxu0
          %v6196 = vadd.f32 %v5950, %v6195
          %v6197 = vpop.f32.mrb[0].mxu0
          %v6198 = vadd.f32 %v5954, %v6197
          %6199 = vmatprep.mubr.bf16.mxu0 %v5892
          %6200 = vmatmul.mubr.bf16.gmra.mrb[0].mxu0 %v5891
          %v6201 = vpop.f32.mrb[0].mxu0
          %v6202 = vadd.f32 %v5950, %v6201
          %v6203 = vpop.f32.mrb[0].mxu0
          %v6204 = vadd.f32 %v5954, %v6203
          %v6205 = vpop.f32.mrb[0].mxu0
          %v6206 = vadd.f32 %v5950, %v6205
          %v6207 = vpop.f32.mrb[0].mxu0
          %v6208 = vadd.f32 %v5954, %v6207
          %6209 = vmatprep.mubr.bf16.mxu0 %v5894
          %6210 = vmatmul.mubr.bf16.gmra.mrb[0].mxu0 %v5893
          %v6211 = vpop.f32.mrb[0].mxu0
          %v6212 = vadd.f32 %v5950, %v6211
          %v6213 = vpop.f32.mrb[0].mxu0
          %v6214 = vadd.f32 %v5954, %v6213
          %v6215 = vpop.f32.mrb[0].mxu0
          %v6216 = vadd.f32 %v5950, %v6215
          %v6217 = vpop.f32.mrb[0].mxu0
          %v6218 = vadd.f32 %v5954, %v6217
          %6219 = vmatprep.mubr.bf16.mxu0 %v5896
          %6220 = vmatmul.mubr.bf16.gmra.mrb[0].mxu0 %v5895
          %v6221 = vpop.f32.mrb[0].mxu0
          %v6222 = vadd.f32 %v5950, %v6221
          %v6223 = vpop.f32.mrb[0].mxu0
          %v6224 = vadd.f32 %v5954, %v6223
          %v6225 = vpop.f32.mrb[0].mxu0
          %v6226 = vadd.f32 %v5950, %v6225
          %v6227 = vpop.f32.mrb[0].mxu0
          %v6228 = vadd.f32 %v5954, %v6227
          %6229 = vmatprep.mubr.bf16.mxu0 %v5898
          %6230 = vmatmul.mubr.bf16.gmra.mrb[0].mxu0 %v5897
          %v6231 = vpop.f32.mrb[0].mxu0
          %v6232 = vadd.f32 %v5950, %v6231
          %v6233 = vpop.f32.mrb[0].mxu0
          %v6234 = vadd.f32 %v5954, %v6233
          %v6235 = vpop.f32.mrb[0].mxu0
          %v6236 = vadd.f32 %v5950, %v6235
          %v6237 = vpop.f32.mrb[0].mxu0
          %v6238 = vadd.f32 %v5954, %v6237
          %6239 = vmatprep.mubr.bf16.mxu0 %v5900
          %6240 = vmatmul.mubr.bf16.gmra.mrb[0].mxu0 %v5899
          %v6241 = vpop.f32.mrb[0].mxu0
          %v6242 = vadd.f32 %v5950, %v6241
          %v6243 = vpop.f32.mrb[0].mxu0
          %v6244 = vadd.f32 %v5954, %v6243
          %v6245 = vpop.f32.mrb[0].mxu0
          %v6246 = vadd.f32 %v5950, %v6245
          %v6247 = vpop.f32.mrb[0].mxu0
          %v6248 = vadd.f32 %v5954, %v6247
          %6249 = vmatprep.mubr.bf16.mxu0 %v5902
          %6250 = vmatmul.mubr.bf16.gmra.mrb[0].mxu0 %v5901
          %v6251 = vpop.f32.mrb[0].mxu0
          %v6252 = vadd.f32 %v5950, %v6251
          %v6253 = vpop.f32.mrb[0].mxu0
          %v6254 = vadd.f32 %v5954, %v6253
          %v6255 = vpop.f32.mrb[0].mxu0
          %v6256 = vadd.f32 %v5950, %v6255
          %v6257 = vpop.f32.mrb[0].mxu0
          %v6258 = vadd.f32 %v5954, %v6257
          %6259 = vmatprep.mubr.bf16.mxu0 %v5904
          %6260 = vmatmul.mubr.bf16.gmra.mrb[0].mxu0 %v5903
          %v6261 = vpop.f32.mrb[0].mxu0
          %v6262 = vadd.f32 %v5950, %v6261
          %v6263 = vpop.f32.mrb[0].mxu0
          %v6264 = vadd.f32 %v5954, %v6263
          %v6265 = vpop.f32.mrb[0].mxu0
          %v6266 = vadd.f32 %v5950, %v6265
          %v6267 = vpop.f32.mrb[0].mxu0
          %v6268 = vadd.f32 %v5954, %v6267
          %6269 = vmatprep.mubr.bf16.mxu0 %v5906
          %6270 = vmatmul.mubr.bf16.gmra.mrb[0].mxu0 %v5905
          %v6271 = vpop.f32.mrb[0].mxu0
          %v6272 = vadd.f32 %v5950, %v6271
          %v6273 = vpop.f32.mrb[0].mxu0
          %v6274 = vadd.f32 %v5954, %v6273
          %v6275 = vpop.f32.mrb[0].mxu0
          %v6276 = vadd.f32 %v5950, %v6275
          %v6277 = vpop.f32.mrb[0].mxu0
          %v6278 = vadd.f32 %v5954, %v6277
          %6279 = vmatprep.mubr.bf16.mxu0 %v5908
          %6280 = vmatmul.mubr.bf16.gmra.mrb[0].mxu0 %v5907
          %v6281 = vpop.f32.mrb[0].mxu0
          %v6282 = vadd.f32 %v5950, %v6281
          %v6283 = vpop.f32.mrb[0].mxu0
          %v6284 = vadd.f32 %v5954, %v6283
          %v6285 = vpop.f32.mrb[0].mxu0
          %v6286 = vadd.f32 %v5950, %v6285
          %v6287 = vpop.f32.mrb[0].mxu0
          %v6288 = vadd.f32 %v5954, %v6287
          %6289 = vmatprep.mubr.bf16.mxu0 %v5910
          %6290 = vmatmul.mubr.bf16.gmra.mrb[0].mxu0 %v5909
          %v6291 = vpop.f32.mrb[0].mxu0
          %v6292 = vadd.f32 %v5950, %v6291
          %v6293 = vpop.f32.mrb[0].mxu0
          %v6294 = vadd.f32 %v5954, %v6293
          %v6295 = vpop.f32.mrb[0].mxu0
          %v6296 = vadd.f32 %v5950, %v6295
          %v6297 = vpop.f32.mrb[0].mxu0
          %v6298 = vadd.f32 %v5954, %v6297
          %6299 = vmatprep.mubr.bf16.mxu0 %v5912
          %6300 = vmatmul.mubr.bf16.gmra.mrb[0].mxu0 %v5911
          %v6301 = vpop.f32.mrb[0].mxu0
          %v6302 = vadd.f32 %v5950, %v6301
          %v6303 = vpop.f32.mrb[0].mxu0
          %v6304 = vadd.f32 %v5954, %v6303
          %v6305 = vpop.f32.mrb[0].mxu0
          %v6306 = vadd.f32 %v5950, %v6305
          %v6307 = vpop.f32.mrb[0].mxu0
          %v6308 = vadd.f32 %v5954, %v6307
          %6309 = vdwg.mxu0
          %6310 = vst [vmem:[%s565] sm:$0xff] %v6152
          %6311 = vst [vmem:[%s565 + $0x8] sm:$0xff] %v6154
          %6312 = vst [vmem:[%s565 + $0x10] sm:$0xff] %v6156
          %6313 = vst [vmem:[%s565 + $0x18] sm:$0xff] %v6158
          %6314 = vst [vmem:[%s565 + $0x20] sm:$0xff] %v6162
          %6315 = vst [vmem:[%s565 + $0x28] sm:$0xff] %v6164
          %6316 = vst [vmem:[%s565 + $0x30] sm:$0xff] %v6166
          %6317 = vst [vmem:[%s565 + $0x38] sm:$0xff] %v6168
          %6318 = vst [vmem:[%s565 + $0x40] sm:$0xff] %v6172
          %6319 = vst [vmem:[%s565 + $0x48] sm:$0xff] %v6174
          %6320 = vst [vmem:[%s565 + $0x50] sm:$0xff] %v6176
          %6321 = vst [vmem:[%s565 + $0x58] sm:$0xff] %v6178
          %6322 = vst [vmem:[%s565 + $0x60] sm:$0xff] %v6182
          %6323 = vst [vmem:[%s565 + $0x68] sm:$0xff] %v6184
          %6324 = vst [vmem:[%s565 + $0x70] sm:$0xff] %v6186
          %6325 = vst [vmem:[%s565 + $0x78] sm:$0xff] %v6188
          %6326 = vst [vmem:[%s565 + $0x80] sm:$0xff] %v6192
          %6327 = vst [vmem:[%s565 + $0x88] sm:$0xff] %v6194
          %6328 = vst [vmem:[%s565 + $0x90] sm:$0xff] %v6196
          %6329 = vst [vmem:[%s565 + $0x98] sm:$0xff] %v6198
          %6330 = vst [vmem:[%s565 + $0xa0] sm:$0xff] %v6202
          %6331 = vst [vmem:[%s565 + $0xa8] sm:$0xff] %v6204
          %6332 = vst [vmem:[%s565 + $0xb0] sm:$0xff] %v6206
          %6333 = vst [vmem:[%s565 + $0xb8] sm:$0xff] %v6208
          %6334 = vst [vmem:[%s565 + $0xc0] sm:$0xff] %v6212
          %6335 = vst [vmem:[%s565 + $0xc8] sm:$0xff] %v6214
          %6336 = vst [vmem:[%s565 + $0xd0] sm:$0xff] %v6216
          %6337 = vst [vmem:[%s565 + $0xd8] sm:$0xff] %v6218
          %6338 = vst [vmem:[%s565 + $0xe0] sm:$0xff] %v6222
          %6339 = vst [vmem:[%s565 + $0xe8] sm:$0xff] %v6224
          %6340 = vst [vmem:[%s565 + $0xf0] sm:$0xff] %v6226
          %6341 = vst [vmem:[%s565 + $0xf8] sm:$0xff] %v6228
          %6342 = vst [vmem:[%s565 + $0x100] sm:$0xff] %v6232
          %6343 = vst [vmem:[%s565 + $0x108] sm:$0xff] %v6234
          %6344 = vst [vmem:[%s565 + $0x110] sm:$0xff] %v6236
          %6345 = vst [vmem:[%s565 + $0x118] sm:$0xff] %v6238
          %6346 = vst [vmem:[%s565 + $0x120] sm:$0xff] %v6242
          %6347 = vst [vmem:[%s565 + $0x128] sm:$0xff] %v6244
          %6348 = vst [vmem:[%s565 + $0x130] sm:$0xff] %v6246
          %6349 = vst [vmem:[%s565 + $0x138] sm:$0xff] %v6248
          %6350 = vst [vmem:[%s565 + $0x140] sm:$0xff] %v6252
          %6351 = vst [vmem:[%s565 + $0x148] sm:$0xff] %v6254
          %6352 = vst [vmem:[%s565 + $0x150] sm:$0xff] %v6256
          %6353 = vst [vmem:[%s565 + $0x158] sm:$0xff] %v6258
          %6354 = vst [vmem:[%s565 + $0x160] sm:$0xff] %v6262
          %6355 = vst [vmem:[%s565 + $0x168] sm:$0xff] %v6264
          %6356 = vst [vmem:[%s565 + $0x170] sm:$0xff] %v6266
          %6357 = vst [vmem:[%s565 + $0x178] sm:$0xff] %v6268
          %6358 = vst [vmem:[%s565 + $0x180] sm:$0xff] %v6272
          %6359 = vst [vmem:[%s565 + $0x188] sm:$0xff] %v6274
          %6360 = vst [vmem:[%s565 + $0x190] sm:$0xff] %v6276
          %6361 = vst [vmem:[%s565 + $0x198] sm:$0xff] %v6278
          %6362 = vst [vmem:[%s565 + $0x1a0] sm:$0xff] %v6282
          %6363 = vst [vmem:[%s565 + $0x1a8] sm:$0xff] %v6284
          %6364 = vst [vmem:[%s565 + $0x1b0] sm:$0xff] %v6286
          %6365 = vst [vmem:[%s565 + $0x1b8] sm:$0xff] %v6288
          %6366 = vst [vmem:[%s565 + $0x1c0] sm:$0xff] %v6292
          %6367 = vst [vmem:[%s565 + $0x1c8] sm:$0xff] %v6294
          %6368 = vst [vmem:[%s565 + $0x1d0] sm:$0xff] %v6296
          %6369 = vst [vmem:[%s565 + $0x1d8] sm:$0xff] %v6298
          %6370 = vst [vmem:[%s565 + $0x1e0] sm:$0xff] %v6302
          %6371 = vst [vmem:[%s565 + $0x1e8] sm:$0xff] %v6304
          %6372 = vst [vmem:[%s565 + $0x1f0] sm:$0xff] %v6306
          %6373 = vst [vmem:[%s565 + $0x1f8] sm:$0xff] %v6308
        $region104: #{tpu_custom_call.1} parent=63 // pred_fallthru
          _
        %s6374 = sand.u32 %s310, 1
        %s6375 = scalar_lea.sflag [#allocation8], %s6374
        %s6376 = sand.u32 %s310, 1
        %s6377 = smul.addr %s6376, 512
        %s6378 = scalar_lea.vmem [#allocation18], %s6377
        // Predicated region
        $region105: #{tpu_custom_call.1} parent=63 // pred_check
          %p6379 = pneg %p320
        $region106: #{tpu_custom_call.1} parent=63 // pred_check_branch
          %6381 = sbr.rel (%p6379) target = $region108
        $region107: #{tpu_custom_call.1} parent=63 // pred_region
          %s6382 = smul.u32 32, %s39
          %s6384 = ssub.s32 8192, 8192
          %6385 = vsyncadd %s6375, %s6384
          %s6386 = smul.addr %s6382, 2
          %s6387 = smul.addr %s38, 128
          %s6388 = sadd.s32 %s6386, %s6387
          %s6389 = smul.addr %s6388, 128
          %s6390 = scalar_lea.hbm %s11, %s6389
          %s6391 = sshll.u32 %s6378, 4
          %s6392 = int_to_ptr.vmem [resolvable:$true] %s6391
          %6397 = dma.vmem_to_hbm [thread:$0]  %s6392, 8192, %s6390, %s6375, 256, 256, 16
        $region108: #{tpu_custom_call.1} parent=63 // pred_fallthru
          _
      $region64: #{tpu_custom_call.1} parent=5 // pred_fallthru
        _
      %p6398 = scmp.le.s32.totalorder 2, %s28
      // Predicated region
      $region109: #{tpu_custom_call.1} parent=5 // pred_check
        %p6399 = pneg %p6398
      $region110: #{tpu_custom_call.1} parent=5 // pred_check_branch
        %6401 = sbr.rel (%p6399) target = $region112
      $region111: #{tpu_custom_call.1} parent=5 // pred_region
        %s6402 = ssub.s32 %s28, 2
        // Predicated region
        $region113: #{tpu_custom_call.1} parent=111 // pred_check
          %p6403 = pneg %p326
        $region114: #{tpu_custom_call.1} parent=111 // pred_check_branch
          %6405 = sbr.rel (%p6403) target = $region116
        $region115: #{tpu_custom_call.1} parent=111 // pred_region
          %s6406 = sand.u32 %s311, 1
          %s6407 = scalar_lea.sflag [#allocation8], %s6406
          %s6408 = sand.u32 %s311, 1
          %s6409 = smul.addr %s6408, 512
          %s6410 = scalar_lea.vmem [#allocation18], %s6409
          %6411 = dma.done %s6407, 8192
        $region116: #{tpu_custom_call.1} parent=111 // pred_fallthru
          _
      $region112: #{tpu_custom_call.1} parent=5 // pred_fallthru
        _
    $region6: #{tpu_custom_call.1} parent=1 // loop_footer
      %s32 = sadd.s32 1, %s28
    $region7: #{tpu_custom_call.1} parent=1 // loop_footer_branch
      %27 = sbr.rel target = $region3
    $region8: #{tpu_custom_call.1} parent=1 // loop_exit
      _
    %6412 = vsyncpa [#allocation7], 1
    %s6413 = scalar_lea.sflag [#allocation7], 1
    %6414 = vsyncpa %s6413, 1
    %6415 = vsyncpa [#allocation10], 1
    %s6416 = scalar_lea.sflag [#allocation10], 1
    %6417 = vsyncpa %s6416, 1
    %6418 = vsyncpa [#allocation13], 1
    %6419 = vsyncpa [#allocation16], 1
    %6420 = vsyncpa [#allocation8], 1
    %s6421 = scalar_lea.sflag [#allocation8], 1
    %6422 = vsyncpa %s6421, 1

</llo_original>
